<compile_context>
chip_gen: v7x
topology: tpu7x:2x2x1
jax: 0.10.0
libtpu: 0.0.40
codegen_flags: <defaults>
</compile_context>

<pallas_src>
import math
import functools
import numpy as np

import jax
import jax.numpy as jnp
from jax.experimental import pallas as pl
from jax.experimental.pallas import tpu as pltpu


MXU_DTYPE = jnp.bfloat16      # matmul operand dtype (accumulation stays f32)


# -------------------------- kernel helpers --------------------------

def _leaky(x):
    return jnp.where(x > 0, x, 0.01 * x)


def _layernorm(x, g, b, eps):
    mu = jnp.mean(x, axis=-1, keepdims=True)
    var = jnp.mean(jnp.square(x - mu), axis=-1, keepdims=True)
    return (x - mu) * jax.lax.rsqrt(var + eps) * g + b


# -------------------------- fused encoder kernel --------------------------

def _encoder_kernel(part_ref, kmask_ref, ttdd_ref, tout_ref,
                    wfeat_ref, bfeat_ref, wtdd1_ref, wtdd2_ref, btdd2_ref,
                    ln1g_ref, ln1b_ref, wqkv_ref, bqkv_ref, wo_ref, bo_ref,
                    ln2g_ref, ln2b_ref, wm1_ref, bm1_ref, wm2_ref, bm2_ref,
                    lnog_ref, lnob_ref, wout1_ref, wout2_ref, bout2_ref,
                    o_ref, *, num_layers, num_heads, eps):
    f32 = jnp.float32

    def mm(a, w):                       # a @ w, bf16 operands, f32 accumulate
        return jnp.dot(a.astype(w.dtype), w, preferred_element_type=f32)

    def mm_nt(a, b):                    # a @ b.T without materializing b.T
        return jax.lax.dot_general(a.astype(MXU_DTYPE), b.astype(MXU_DTYPE),
                                    (((1,), (1,)), ((), ())),
                                    preferred_element_type=f32)

    part = part_ref[0]                  # [N, F]   (already mask-multiplied)
    kmask = kmask_ref[0]                # [1, N]   (1 = valid key)
    neg_bias = (1.0 - kmask) * (-1e9)

    # --- per-particle input projection; time-token half is pre-folded ---
    feat = mm(part, wfeat_ref[...]) + bfeat_ref[...]
    x = _leaky(mm(feat, wtdd1_ref[...]) + ttdd_ref[0])
    x = mm(x, wtdd2_ref[...]) + btdd2_ref[...]          # [N, D]

    D = x.shape[-1]
    Dh = D // num_heads
    scale = 1.0 / math.sqrt(Dh)

    # --- transformer blocks (weights resident in VMEM) ---
    for l in range(num_layers):
        x1 = _layernorm(x, ln1g_ref[l], ln1b_ref[l], eps)
        qkv = mm(x1, wqkv_ref[l]) + bqkv_ref[l]          # [N, 3D] fused QKV
        heads = []
        for h in range(num_heads):
            q = qkv[:, h * Dh:(h + 1) * Dh]
            k = qkv[:, D + h * Dh:D + (h + 1) * Dh]
            v = qkv[:, 2 * D + h * Dh:2 * D + (h + 1) * Dh]
            s = mm_nt(q, k) * scale + neg_bias           # [N, N]
            s = s - jnp.max(s, axis=-1, keepdims=True)
            p = jnp.exp(s)
            p = p * pl.reciprocal(jnp.sum(p, axis=-1, keepdims=True),
                                  approx=True)
            heads.append(mm(p, v.astype(MXU_DTYPE)))     # [N, Dh]
        attn = jnp.concatenate(heads, axis=-1)           # [N, D]  lane-dense
        x2 = mm(attn, wo_ref[l]) + bo_ref[l] + x
        x3 = _layernorm(x2, ln2g_ref[l], ln2b_ref[l], eps)
        h1 = jax.nn.gelu(mm(x3, wm1_ref[l]) + bm1_ref[l], approximate=True)
        h2 = jax.nn.gelu(mm(h1, wm2_ref[l]) + bm2_ref[l], approximate=True)
        x = h2 + x2

    # --- output head; time-token half of out_fc1 pre-folded ---
    rep = _layernorm(x, lnog_ref[...], lnob_ref[...], eps)
    rep = _leaky(mm(rep, wout1_ref[...]) + tout_ref[0])
    out = mm(rep, wout2_ref[...]) + bout2_ref[...]       # [N, F]
    o_ref[0] = out.astype(o_ref.dtype)


def fused_deepsets_encoder(part_masked, key_mask, time_tdd, time_out, att,
                           *, num_heads=2, eps=1e-6):
    """part_masked:[B,N,F], key_mask:[B,1,N], time_tdd:[B,1,D], time_out:[B,1,2D]."""
    B, N, F = part_masked.shape
    D = att["tdd2_w"].shape[0]
    blocks = att["blocks"]
    L = blocks["w_qkv"].shape[0]
    wdt = MXU_DTYPE

    # matmul weights in bf16 (halves weight DMA, feeds MXU bf16 path);
    # biases / LayerNorm params stay f32 for f32 elementwise math.
    inputs = (
        part_masked, key_mask, time_tdd, time_out,
        att["feat_w"].astype(wdt), att["feat_b"],
        att["tdd1_w"][:D].astype(wdt),                   # feature half of tdd_fc1
        att["tdd2_w"].astype(wdt), att["tdd2_b"],
        blocks["ln1_g"], blocks["ln1_b"],
        blocks["w_qkv"].astype(wdt), blocks["b_qkv"],
        blocks["w_o"].astype(wdt), blocks["b_o"],
        blocks["ln2_g"], blocks["ln2_b"],
        blocks["w_mlp1"].astype(wdt), blocks["b_mlp1"],
        blocks["w_mlp2"].astype(wdt), blocks["b_mlp2"],
        att["ln_out_g"], att["ln_out_b"],
        att["out1_w"][:D].astype(wdt),                   # rep half of out_fc1
        att["out2_w"].astype(wdt), att["out2_b"],
    )

    def batched_spec(a):
        nd = a.ndim
        return pl.BlockSpec((1,) + a.shape[1:],
                            lambda b, _nd=nd: (b,) + (0,) * (_nd - 1))

    def resident_spec(a):
        nd = a.ndim
        return pl.BlockSpec(a.shape, lambda b, _nd=nd: (0,) * _nd)

    in_specs = ([batched_spec(part_masked), batched_spec(key_mask),
                 batched_spec(time_tdd), batched_spec(time_out)]
                + [resident_spec(a) for a in inputs[4:]])

    kernel = functools.partial(_encoder_kernel, num_layers=L,
                               num_heads=num_heads, eps=eps)

    return pl.pallas_call(
        kernel,
        out_shape=jax.ShapeDtypeStruct((B, N, F), jnp.float32),
        grid=(B,),
        in_specs=in_specs,
        out_specs=pl.BlockSpec((1, N, F), lambda b: (b, 0, 0)),
        compiler_params=pltpu.CompilerParams(
            dimension_semantics=("parallel",),
            vmem_limit_bytes=32 * 1024 * 1024),
    )(*inputs)


# -------------------------- plain-JAX feature engineering --------------------------

def ff_features(features, min_proj=4, max_proj=8):
    """Exact port of FF(): [B, d] -> [B, 9*d]."""
    if features.ndim == 1:
        features = features[:, None]
    features = features.astype(jnp.float32)
    freq = 2.0 ** jnp.arange(min_proj, max_proj, dtype=jnp.float32) * 2.0 * np.pi
    num_freq = max_proj - min_proj
    d = features.shape[-1]
    h = jnp.tile(features, (1, num_freq))
    freq_t = jnp.tile(freq[None, :], (1, d))
    angle = h * freq_t
    h = jnp.concatenate([jnp.sin(angle), jnp.cos(angle)], axis=-1)
    return jnp.concatenate([features, h], axis=-1)


def base_embedding(t, projection):
    """Exact port of base_Embedding(): t:[B,1], projection:[E/2] -> [B,E]."""
    angle = t * projection[None, :] * 1000.0
    return jnp.concatenate([jnp.sin(angle), jnp.cos(angle)], axis=-1)


# -------------------------- parameters --------------------------

def _dense_init(key, fan_in, fan_out):
    lim = 1.0 / math.sqrt(fan_in)
    w = jax.random.uniform(key, (fan_in, fan_out), jnp.float32, -lim, lim)
    b = jnp.zeros((1, fan_out), jnp.float32)
    return {"w": w, "b": b}


def _w(key, shape, fan_in):
    lim = 1.0 / math.sqrt(fan_in)
    return jax.random.uniform(key, shape, jnp.float32, -lim, lim)


def init_params(key, num_feat, num_jet, num_cond, num_embed,
                proj_dim=128, num_transformer=6):
    keys = iter(jax.random.split(key, 32))
    p = {}
    p["emb_fc1"] = _dense_init(next(keys), num_embed, 2 * num_embed)
    p["emb_fc2"] = _dense_init(next(keys), 2 * num_embed, num_embed)
    p["jet_fc1"] = _dense_init(next(keys), num_jet, 2 * num_embed)
    p["jet_fc2"] = _dense_init(next(keys), 2 * num_embed, num_embed)
    p["cond_fc1"] = _dense_init(next(keys), num_cond * 9, 2 * num_embed)
    p["cond_fc2"] = _dense_init(next(keys), 2 * num_embed, num_embed)
    p["graph_fc"] = _dense_init(next(keys), 3 * num_embed, 3 * num_embed)

    D, L = proj_dim, num_transformer
    t_dim = 3 * num_embed
    att = {}
    tf1 = _dense_init(next(keys), t_dim, 2 * D)
    tf2 = _dense_init(next(keys), 2 * D, D)
    att["time_fc1_w"], att["time_fc1_b"] = tf1["w"], tf1["b"]
    att["time_fc2_w"], att["time_fc2_b"] = tf2["w"], tf2["b"]
    att["feat_w"] = _w(next(keys), (num_feat, D), num_feat)
    att["feat_b"] = jnp.zeros((1, D), jnp.float32)
    att["tdd1_w"] = _w(next(keys), (2 * D, D), 2 * D)
    att["tdd1_b"] = jnp.zeros((1, D), jnp.float32)
    att["tdd2_w"] = _w(next(keys), (D, D), D)
    att["tdd2_b"] = jnp.zeros((1, D), jnp.float32)
    att["blocks"] = {
        "ln1_g": jnp.ones((L, 1, D), jnp.float32),
        "ln1_b": jnp.zeros((L, 1, D), jnp.float32),
        "w_qkv": _w(next(keys), (L, D, 3 * D), D),        # fused Wq|Wk|Wv
        "b_qkv": jnp.zeros((L, 1, 3 * D), jnp.float32),
        "w_o": _w(next(keys), (L, D, D), D),
        "b_o": jnp.zeros((L, 1, D), jnp.float32),
        "ln2_g": jnp.ones((L, 1, D), jnp.float32),
        "ln2_b": jnp.zeros((L, 1, D), jnp.float32),
        "w_mlp1": _w(next(keys), (L, D, 4 * D), D),
        "b_mlp1": jnp.zeros((L, 1, 4 * D), jnp.float32),
        "w_mlp2": _w(next(keys), (L, 4 * D, D), 4 * D),
        "b_mlp2": jnp.zeros((L, 1, D), jnp.float32),
    }
    att["ln_out_g"] = jnp.ones((1, D), jnp.float32)
    att["ln_out_b"] = jnp.zeros((1, D), jnp.float32)
    att["out1_w"] = _w(next(keys), (2 * D, 2 * D), 2 * D)
    att["out1_b"] = jnp.zeros((1, 2 * D), jnp.float32)
    att["out2_w"] = _w(next(keys), (2 * D, num_feat), 2 * D)
    att["out2_b"] = jnp.zeros((1, num_feat), jnp.float32)
    p["att"] = att
    return p


# -------------------------- model forward --------------------------

def deepsets_att(att, part, time_emb, mask, *, num_heads=2):
    """part:[B,N,F], time_emb:[B,3*num_embed], mask:[B,N,1] -> [B,N,F]."""
    B, N, F = part.shape
    D = att["tdd2_w"].shape[0]

    # time token (per-batch, tiny) -> plain XLA
    t = _leaky(time_emb @ att["time_fc1_w"] + att["time_fc1_b"])
    t = t @ att["time_fc2_w"] + att["time_fc2_b"]                  # [B, D]

    # fold the time-token halves of tdd_fc1 / out_fc1 into per-batch biases:
    # concat([feat, time]) @ W == feat @ W[:D] + (time @ W[D:] + b)
    time_tdd = (t @ att["tdd1_w"][D:] + att["tdd1_b"])[:, None, :]  # [B,1,D]
    time_out = (t @ att["out1_w"][D:] + att["out1_b"])[:, None, :]  # [B,1,2D]

    part_masked = part * mask
    key_mask = mask.reshape(B, 1, N)

    out = fused_deepsets_encoder(part_masked, key_mask, time_tdd, time_out,
                                 att, num_heads=num_heads)
    return out * mask


def model_part_forward(params, projection, part, t, jet, cond, mask):
    # Tiny conditioning matmuls stay in XLA (launch overhead >> FLOPs there).
    def dense(x, p, act=None):
        y = x @ p["w"] + p["b"]
        return _leaky(y) if act == "leaky" else y

    # --- embed_time ---
    t_emb = base_embedding(t, projection)
    t_emb = dense(t_emb, params["emb_fc1"], "leaky")
    t_emb = dense(t_emb, params["emb_fc2"], "leaky")
    # --- jet conditioning ---
    jet_d = dense(jet, params["jet_fc1"])                 # no activation (as in torch)
    jet_d = dense(jet_d, params["jet_fc2"], "leaky")
    # --- event conditioning via fourier features ---
    cond_d = dense(ff_features(cond), params["cond_fc1"])
    cond_d = dense(cond_d, params["cond_fc2"], "leaky")
    # --- graph conditional ---
    graph = jnp.concatenate([t_emb, jet_d, cond_d], axis=-1)
    graph = dense(graph, params["graph_fc"], "leaky")
    # --- DeepSetsAtt (fused Pallas kernel) ---
    return deepsets_att(params["att"], part, graph, mask)


# -------------------------- main --------------------------

if __name__ == "__main__":
    B, N = 2, 8                                  # batch, max_part
    num_feat, num_jet, num_cond, num_embed = 3, 4, 2, 16

    key = jax.random.PRNGKey(0)
    k_par, k_part, k_t, k_jet, k_cond = jax.random.split(key, 5)

    params = init_params(k_par, num_feat, num_jet, num_cond, num_embed)

    half = num_embed // 2
    projection = jnp.exp(-jnp.arange(half, dtype=jnp.float32)
                         * (math.log(10000.0) / max(half - 1, 1)))

    part = jax.random.normal(k_part, (B, N, num_feat), jnp.float32)
    t = jax.random.uniform(k_t, (B, 1), jnp.float32)
    jet = jax.random.normal(k_jet, (B, num_jet), jnp.float32)
    cond = jax.random.normal(k_cond, (B, num_cond), jnp.float32)
    mask = jnp.ones((B, N, 1), jnp.float32).at[:, -2:, :].set(0.0)   # last 2 padded

    fwd = jax.jit(functools.partial(model_part_forward, params, projection))
    out = fwd(part, t, jet, cond, mask)
    jax.block_until_ready(out)

    assert out.shape == (B, N, num_feat)
    assert bool(jnp.all(jnp.isfinite(out)))
    print("KERNEL_OK")
</pallas_src>

<mosaic_0001>
module attributes {stable_mosaic.version = 11 : i64} {
  func.func @_encoder_kernel(%arg0: i32, %arg1: memref<1x8x3xf32, #tpu.memory_space<vmem>>, %arg2: memref<1x1x8xf32, #tpu.memory_space<vmem>>, %arg3: memref<1x1x128xf32, #tpu.memory_space<vmem>>, %arg4: memref<1x1x256xf32, #tpu.memory_space<vmem>>, %arg5: memref<3x128xbf16, #tpu.memory_space<vmem>>, %arg6: memref<1x128xf32, #tpu.memory_space<vmem>>, %arg7: memref<128x128xbf16, #tpu.memory_space<vmem>>, %arg8: memref<128x128xbf16, #tpu.memory_space<vmem>>, %arg9: memref<1x128xf32, #tpu.memory_space<vmem>>, %arg10: memref<6x1x128xf32, #tpu.memory_space<vmem>>, %arg11: memref<6x1x128xf32, #tpu.memory_space<vmem>>, %arg12: memref<6x128x384xbf16, #tpu.memory_space<vmem>>, %arg13: memref<6x1x384xf32, #tpu.memory_space<vmem>>, %arg14: memref<6x128x128xbf16, #tpu.memory_space<vmem>>, %arg15: memref<6x1x128xf32, #tpu.memory_space<vmem>>, %arg16: memref<6x1x128xf32, #tpu.memory_space<vmem>>, %arg17: memref<6x1x128xf32, #tpu.memory_space<vmem>>, %arg18: memref<6x128x512xbf16, #tpu.memory_space<vmem>>, %arg19: memref<6x1x512xf32, #tpu.memory_space<vmem>>, %arg20: memref<6x512x128xbf16, #tpu.memory_space<vmem>>, %arg21: memref<6x1x128xf32, #tpu.memory_space<vmem>>, %arg22: memref<1x128xf32, #tpu.memory_space<vmem>>, %arg23: memref<1x128xf32, #tpu.memory_space<vmem>>, %arg24: memref<128x256xbf16, #tpu.memory_space<vmem>>, %arg25: memref<256x3xbf16, #tpu.memory_space<vmem>>, %arg26: memref<1x3xf32, #tpu.memory_space<vmem>>, %arg27: memref<1x8x3xf32, #tpu.memory_space<vmem>>) attributes {dimension_semantics = [#tpu.dimension_semantics<parallel>], iteration_bounds = array<i64: 2>, scalar_prefetch = 0 : i64, scratch_operands = 0 : i64, tpu.core_type = #tpu.core_type<tc>, window_params = [{transform_indices = @transform_0, window_bounds = array<i64: 1, 8, 3>}, {transform_indices = @transform_1, window_bounds = array<i64: 1, 1, 8>}, {transform_indices = @transform_2, window_bounds = array<i64: 1, 1, 128>}, {transform_indices = @transform_3, window_bounds = array<i64: 1, 1, 256>}, {pipeline_mode = #tpu.pipeline_mode<synchronous>, transform_indices = @transform_4, window_bounds = array<i64: 3, 128>}, {pipeline_mode = #tpu.pipeline_mode<synchronous>, transform_indices = @transform_5, window_bounds = array<i64: 1, 128>}, {pipeline_mode = #tpu.pipeline_mode<synchronous>, transform_indices = @transform_6, window_bounds = array<i64: 128, 128>}, {pipeline_mode = #tpu.pipeline_mode<synchronous>, transform_indices = @transform_7, window_bounds = array<i64: 128, 128>}, {pipeline_mode = #tpu.pipeline_mode<synchronous>, transform_indices = @transform_8, window_bounds = array<i64: 1, 128>}, {pipeline_mode = #tpu.pipeline_mode<synchronous>, transform_indices = @transform_9, window_bounds = array<i64: 6, 1, 128>}, {pipeline_mode = #tpu.pipeline_mode<synchronous>, transform_indices = @transform_10, window_bounds = array<i64: 6, 1, 128>}, {pipeline_mode = #tpu.pipeline_mode<synchronous>, transform_indices = @transform_11, window_bounds = array<i64: 6, 128, 384>}, {pipeline_mode = #tpu.pipeline_mode<synchronous>, transform_indices = @transform_12, window_bounds = array<i64: 6, 1, 384>}, {pipeline_mode = #tpu.pipeline_mode<synchronous>, transform_indices = @transform_13, window_bounds = array<i64: 6, 128, 128>}, {pipeline_mode = #tpu.pipeline_mode<synchronous>, transform_indices = @transform_14, window_bounds = array<i64: 6, 1, 128>}, {pipeline_mode = #tpu.pipeline_mode<synchronous>, transform_indices = @transform_15, window_bounds = array<i64: 6, 1, 128>}, {pipeline_mode = #tpu.pipeline_mode<synchronous>, transform_indices = @transform_16, window_bounds = array<i64: 6, 1, 128>}, {pipeline_mode = #tpu.pipeline_mode<synchronous>, transform_indices = @transform_17, window_bounds = array<i64: 6, 128, 512>}, {pipeline_mode = #tpu.pipeline_mode<synchronous>, transform_indices = @transform_18, window_bounds = array<i64: 6, 1, 512>}, {pipeline_mode = #tpu.pipeline_mode<synchronous>, transform_indices = @transform_19, window_bounds = array<i64: 6, 512, 128>}, {pipeline_mode = #tpu.pipeline_mode<synchronous>, transform_indices = @transform_20, window_bounds = array<i64: 6, 1, 128>}, {pipeline_mode = #tpu.pipeline_mode<synchronous>, transform_indices = @transform_21, window_bounds = array<i64: 1, 128>}, {pipeline_mode = #tpu.pipeline_mode<synchronous>, transform_indices = @transform_22, window_bounds = array<i64: 1, 128>}, {pipeline_mode = #tpu.pipeline_mode<synchronous>, transform_indices = @transform_23, window_bounds = array<i64: 128, 256>}, {pipeline_mode = #tpu.pipeline_mode<synchronous>, transform_indices = @transform_24, window_bounds = array<i64: 256, 3>}, {pipeline_mode = #tpu.pipeline_mode<synchronous>, transform_indices = @transform_25, window_bounds = array<i64: 1, 3>}, {transform_indices = @transform_26, window_bounds = array<i64: 1, 8, 3>}]} {
    %c0 = arith.constant 0 : index
    %c0_0 = arith.constant 0 : index
    %c0_1 = arith.constant 0 : index
    %0 = vector.load %arg1[%c0, %c0_0, %c0_1] : memref<1x8x3xf32, #tpu.memory_space<vmem>>, vector<1x8x3xf32>
    %1 = vector.shape_cast %0 : vector<1x8x3xf32> to vector<8x3xf32>
    %c0_2 = arith.constant 0 : index
    %c0_3 = arith.constant 0 : index
    %c0_4 = arith.constant 0 : index
    %2 = vector.load %arg2[%c0_2, %c0_3, %c0_4] : memref<1x1x8xf32, #tpu.memory_space<vmem>>, vector<1x1x8xf32>
    %3 = vector.shape_cast %2 : vector<1x1x8xf32> to vector<1x8xf32>
    %cst = arith.constant 1.000000e+00 : f32
    %4 = vector.broadcast %cst : f32 to vector<1x8xf32>
    %5 = arith.subf %4, %3 : vector<1x8xf32>
    %cst_5 = arith.constant -1.000000e+09 : f32
    %6 = vector.broadcast %cst_5 : f32 to vector<1x8xf32>
    %7 = arith.mulf %5, %6 : vector<1x8xf32>
    %c0_6 = arith.constant 0 : index
    %c0_7 = arith.constant 0 : index
    %8 = vector.load %arg5[%c0_6, %c0_7] : memref<3x128xbf16, #tpu.memory_space<vmem>>, vector<3x128xbf16>
    %9 = arith.truncf %1 : vector<8x3xf32> to vector<8x3xbf16>
    %cst_8 = arith.constant dense<0.000000e+00> : vector<8x128xf32>
    %10 = tpu.matmul %9, %8, %cst_8 {dimension_numbers = #tpu.dot_dimension_numbers<[1], [0], [0], [1], [0, 0, 1, 1], [], []>} : vector<8x3xbf16>, vector<3x128xbf16>, vector<8x128xf32> -> vector<8x128xf32>
    %c0_9 = arith.constant 0 : index
    %c0_10 = arith.constant 0 : index
    %11 = vector.load %arg6[%c0_9, %c0_10] : memref<1x128xf32, #tpu.memory_space<vmem>>, vector<1x128xf32>
    %12 = vector.broadcast %11 : vector<1x128xf32> to vector<8x128xf32>
    %13 = arith.addf %10, %12 : vector<8x128xf32>
    %c0_11 = arith.constant 0 : index
    %c0_12 = arith.constant 0 : index
    %14 = vector.load %arg7[%c0_11, %c0_12] : memref<128x128xbf16, #tpu.memory_space<vmem>>, vector<128x128xbf16>
    %15 = arith.truncf %13 : vector<8x128xf32> to vector<8x128xbf16>
    %cst_13 = arith.constant dense<0.000000e+00> : vector<8x128xf32>
    %16 = tpu.matmul %15, %14, %cst_13 {dimension_numbers = #tpu.dot_dimension_numbers<[1], [0], [0], [1], [0, 0, 1, 1], [], []>} : vector<8x128xbf16>, vector<128x128xbf16>, vector<8x128xf32> -> vector<8x128xf32>
    %c0_14 = arith.constant 0 : index
    %c0_15 = arith.constant 0 : index
    %c0_16 = arith.constant 0 : index
    %17 = vector.load %arg3[%c0_14, %c0_15, %c0_16] : memref<1x1x128xf32, #tpu.memory_space<vmem>>, vector<1x1x128xf32>
    %18 = vector.shape_cast %17 : vector<1x1x128xf32> to vector<1x128xf32>
    %19 = vector.broadcast %18 : vector<1x128xf32> to vector<8x128xf32>
    %20 = arith.addf %16, %19 : vector<8x128xf32>
    %cst_17 = arith.constant 0.000000e+00 : f32
    %21 = vector.broadcast %cst_17 : f32 to vector<8x128xf32>
    %22 = arith.cmpf ogt, %20, %21 : vector<8x128xf32>
    %cst_18 = arith.constant 0.00999999977 : f32
    %23 = vector.broadcast %cst_18 : f32 to vector<8x128xf32>
    %24 = arith.mulf %23, %20 : vector<8x128xf32>
    %25 = arith.select %22, %20, %24 : vector<8x128xi1>, vector<8x128xf32>
    %c0_19 = arith.constant 0 : index
    %c0_20 = arith.constant 0 : index
    %26 = vector.load %arg8[%c0_19, %c0_20] : memref<128x128xbf16, #tpu.memory_space<vmem>>, vector<128x128xbf16>
    %27 = arith.truncf %25 : vector<8x128xf32> to vector<8x128xbf16>
    %cst_21 = arith.constant dense<0.000000e+00> : vector<8x128xf32>
    %28 = tpu.matmul %27, %26, %cst_21 {dimension_numbers = #tpu.dot_dimension_numbers<[1], [0], [0], [1], [0, 0, 1, 1], [], []>} : vector<8x128xbf16>, vector<128x128xbf16>, vector<8x128xf32> -> vector<8x128xf32>
    %c0_22 = arith.constant 0 : index
    %c0_23 = arith.constant 0 : index
    %29 = vector.load %arg9[%c0_22, %c0_23] : memref<1x128xf32, #tpu.memory_space<vmem>>, vector<1x128xf32>
    %30 = vector.broadcast %29 : vector<1x128xf32> to vector<8x128xf32>
    %31 = arith.addf %28, %30 : vector<8x128xf32>
    %c0_24 = arith.constant 0 : index
    %c0_25 = arith.constant 0 : index
    %c0_26 = arith.constant 0 : index
    %32 = vector.load %arg10[%c0_24, %c0_25, %c0_26] : memref<6x1x128xf32, #tpu.memory_space<vmem>>, vector<1x1x128xf32>
    %33 = vector.shape_cast %32 : vector<1x1x128xf32> to vector<1x128xf32>
    %c0_27 = arith.constant 0 : index
    %c0_28 = arith.constant 0 : index
    %c0_29 = arith.constant 0 : index
    %34 = vector.load %arg11[%c0_27, %c0_28, %c0_29] : memref<6x1x128xf32, #tpu.memory_space<vmem>>, vector<1x1x128xf32>
    %35 = vector.shape_cast %34 : vector<1x1x128xf32> to vector<1x128xf32>
    %cst_30 = arith.constant dense<0.000000e+00> : vector<8xf32>
    %36 = vector.multi_reduction <add>, %31, %cst_30 [1] : vector<8x128xf32> to vector<8xf32>
    %37 = vector.shape_cast %36 : vector<8xf32> to vector<8x1xf32>
    %cst_31 = arith.constant 1.280000e+02 : f32
    %38 = vector.broadcast %cst_31 : f32 to vector<8x1xf32>
    %39 = arith.divf %37, %38 : vector<8x1xf32>
    %40 = vector.broadcast %39 : vector<8x1xf32> to vector<8x128xf32>
    %41 = arith.subf %31, %40 : vector<8x128xf32>
    %42 = arith.mulf %41, %41 : vector<8x128xf32>
    %cst_32 = arith.constant dense<0.000000e+00> : vector<8xf32>
    %43 = vector.multi_reduction <add>, %42, %cst_32 [1] : vector<8x128xf32> to vector<8xf32>
    %44 = vector.shape_cast %43 : vector<8xf32> to vector<8x1xf32>
    %cst_33 = arith.constant 1.280000e+02 : f32
    %45 = vector.broadcast %cst_33 : f32 to vector<8x1xf32>
    %46 = arith.divf %44, %45 : vector<8x1xf32>
    %47 = vector.broadcast %39 : vector<8x1xf32> to vector<8x128xf32>
    %48 = arith.subf %31, %47 : vector<8x128xf32>
    %cst_34 = arith.constant 9.99999997E-7 : f32
    %49 = vector.broadcast %cst_34 : f32 to vector<8x1xf32>
    %50 = arith.addf %46, %49 : vector<8x1xf32>
    %51 = math.rsqrt %50 : vector<8x1xf32>
    %52 = vector.broadcast %51 : vector<8x1xf32> to vector<8x128xf32>
    %53 = arith.mulf %48, %52 : vector<8x128xf32>
    %54 = vector.broadcast %33 : vector<1x128xf32> to vector<8x128xf32>
    %55 = arith.mulf %53, %54 : vector<8x128xf32>
    %56 = vector.broadcast %35 : vector<1x128xf32> to vector<8x128xf32>
    %57 = arith.addf %55, %56 : vector<8x128xf32>
    %c0_35 = arith.constant 0 : index
    %c0_36 = arith.constant 0 : index
    %c0_37 = arith.constant 0 : index
    %58 = vector.load %arg12[%c0_35, %c0_36, %c0_37] : memref<6x128x384xbf16, #tpu.memory_space<vmem>>, vector<1x128x384xbf16>
    %59 = vector.shape_cast %58 : vector<1x128x384xbf16> to vector<128x384xbf16>
    %60 = arith.truncf %57 : vector<8x128xf32> to vector<8x128xbf16>
    %cst_38 = arith.constant dense<0.000000e+00> : vector<8x384xf32>
    %61 = tpu.matmul %60, %59, %cst_38 {dimension_numbers = #tpu.dot_dimension_numbers<[1], [0], [0], [1], [0, 0, 1, 1], [], []>} : vector<8x128xbf16>, vector<128x384xbf16>, vector<8x384xf32> -> vector<8x384xf32>
    %c0_39 = arith.constant 0 : index
    %c0_40 = arith.constant 0 : index
    %c0_41 = arith.constant 0 : index
    %62 = vector.load %arg13[%c0_39, %c0_40, %c0_41] : memref<6x1x384xf32, #tpu.memory_space<vmem>>, vector<1x1x384xf32>
    %63 = vector.shape_cast %62 : vector<1x1x384xf32> to vector<1x384xf32>
    %64 = vector.broadcast %63 : vector<1x384xf32> to vector<8x384xf32>
    %65 = arith.addf %61, %64 : vector<8x384xf32>
    %66 = vector.extract_strided_slice %65 {offsets = [0, 0], sizes = [8, 64], strides = [1, 1]} : vector<8x384xf32> to vector<8x64xf32>
    %67 = vector.extract_strided_slice %65 {offsets = [0, 128], sizes = [8, 64], strides = [1, 1]} : vector<8x384xf32> to vector<8x64xf32>
    %68 = vector.extract_strided_slice %65 {offsets = [0, 256], sizes = [8, 64], strides = [1, 1]} : vector<8x384xf32> to vector<8x64xf32>
    %69 = arith.truncf %66 : vector<8x64xf32> to vector<8x64xbf16>
    %70 = arith.truncf %67 : vector<8x64xf32> to vector<8x64xbf16>
    %cst_42 = arith.constant dense<0.000000e+00> : vector<8x8xf32>
    %71 = tpu.matmul %69, %70, %cst_42 {dimension_numbers = #tpu.dot_dimension_numbers<[1], [1], [0], [0], [0, 0, 1, 0], [], []>} : vector<8x64xbf16>, vector<8x64xbf16>, vector<8x8xf32> -> vector<8x8xf32>
    %cst_43 = arith.constant 1.250000e-01 : f32
    %72 = vector.broadcast %cst_43 : f32 to vector<8x8xf32>
    %73 = arith.mulf %71, %72 : vector<8x8xf32>
    %74 = vector.broadcast %7 : vector<1x8xf32> to vector<8x8xf32>
    %75 = arith.addf %73, %74 : vector<8x8xf32>
    %cst_44 = arith.constant dense<0xFF800000> : vector<8xf32>
    %76 = vector.multi_reduction <maximumf>, %75, %cst_44 [1] : vector<8x8xf32> to vector<8xf32>
    %77 = vector.shape_cast %76 : vector<8xf32> to vector<8x1xf32>
    %78 = vector.broadcast %77 : vector<8x1xf32> to vector<8x8xf32>
    %79 = arith.subf %75, %78 : vector<8x8xf32>
    %80 = math.exp %79 : vector<8x8xf32>
    %cst_45 = arith.constant dense<0.000000e+00> : vector<8xf32>
    %81 = vector.multi_reduction <add>, %80, %cst_45 [1] : vector<8x8xf32> to vector<8xf32>
    %82 = vector.shape_cast %81 : vector<8xf32> to vector<8x1xf32>
    %83 = tpu.reciprocal %82 {approx = true} : vector<8x1xf32> -> vector<8x1xf32>
    %84 = vector.broadcast %83 : vector<8x1xf32> to vector<8x8xf32>
    %85 = arith.mulf %80, %84 : vector<8x8xf32>
    %86 = arith.truncf %68 : vector<8x64xf32> to vector<8x64xbf16>
    %87 = arith.truncf %85 : vector<8x8xf32> to vector<8x8xbf16>
    %cst_46 = arith.constant dense<0.000000e+00> : vector<8x64xf32>
    %88 = tpu.matmul %87, %86, %cst_46 {dimension_numbers = #tpu.dot_dimension_numbers<[1], [0], [0], [1], [0, 0, 1, 1], [], []>} : vector<8x8xbf16>, vector<8x64xbf16>, vector<8x64xf32> -> vector<8x64xf32>
    %89 = vector.extract_strided_slice %65 {offsets = [0, 64], sizes = [8, 64], strides = [1, 1]} : vector<8x384xf32> to vector<8x64xf32>
    %90 = vector.extract_strided_slice %65 {offsets = [0, 192], sizes = [8, 64], strides = [1, 1]} : vector<8x384xf32> to vector<8x64xf32>
    %91 = vector.extract_strided_slice %65 {offsets = [0, 320], sizes = [8, 64], strides = [1, 1]} : vector<8x384xf32> to vector<8x64xf32>
    %92 = arith.truncf %89 : vector<8x64xf32> to vector<8x64xbf16>
    %93 = arith.truncf %90 : vector<8x64xf32> to vector<8x64xbf16>
    %cst_47 = arith.constant dense<0.000000e+00> : vector<8x8xf32>
    %94 = tpu.matmul %92, %93, %cst_47 {dimension_numbers = #tpu.dot_dimension_numbers<[1], [1], [0], [0], [0, 0, 1, 0], [], []>} : vector<8x64xbf16>, vector<8x64xbf16>, vector<8x8xf32> -> vector<8x8xf32>
    %cst_48 = arith.constant 1.250000e-01 : f32
    %95 = vector.broadcast %cst_48 : f32 to vector<8x8xf32>
    %96 = arith.mulf %94, %95 : vector<8x8xf32>
    %97 = vector.broadcast %7 : vector<1x8xf32> to vector<8x8xf32>
    %98 = arith.addf %96, %97 : vector<8x8xf32>
    %cst_49 = arith.constant dense<0xFF800000> : vector<8xf32>
    %99 = vector.multi_reduction <maximumf>, %98, %cst_49 [1] : vector<8x8xf32> to vector<8xf32>
    %100 = vector.shape_cast %99 : vector<8xf32> to vector<8x1xf32>
    %101 = vector.broadcast %100 : vector<8x1xf32> to vector<8x8xf32>
    %102 = arith.subf %98, %101 : vector<8x8xf32>
    %103 = math.exp %102 : vector<8x8xf32>
    %cst_50 = arith.constant dense<0.000000e+00> : vector<8xf32>
    %104 = vector.multi_reduction <add>, %103, %cst_50 [1] : vector<8x8xf32> to vector<8xf32>
    %105 = vector.shape_cast %104 : vector<8xf32> to vector<8x1xf32>
    %106 = tpu.reciprocal %105 {approx = true} : vector<8x1xf32> -> vector<8x1xf32>
    %107 = vector.broadcast %106 : vector<8x1xf32> to vector<8x8xf32>
    %108 = arith.mulf %103, %107 : vector<8x8xf32>
    %109 = arith.truncf %91 : vector<8x64xf32> to vector<8x64xbf16>
    %110 = arith.truncf %108 : vector<8x8xf32> to vector<8x8xbf16>
    %cst_51 = arith.constant dense<0.000000e+00> : vector<8x64xf32>
    %111 = tpu.matmul %110, %109, %cst_51 {dimension_numbers = #tpu.dot_dimension_numbers<[1], [0], [0], [1], [0, 0, 1, 1], [], []>} : vector<8x8xbf16>, vector<8x64xbf16>, vector<8x64xf32> -> vector<8x64xf32>
    %112 = tpu.concatenate %88, %111 in 1 : vector<8x64xf32>, vector<8x64xf32> -> vector<8x128xf32>
    %c0_52 = arith.constant 0 : index
    %c0_53 = arith.constant 0 : index
    %c0_54 = arith.constant 0 : index
    %113 = vector.load %arg14[%c0_52, %c0_53, %c0_54] : memref<6x128x128xbf16, #tpu.memory_space<vmem>>, vector<1x128x128xbf16>
    %114 = vector.shape_cast %113 : vector<1x128x128xbf16> to vector<128x128xbf16>
    %115 = arith.truncf %112 : vector<8x128xf32> to vector<8x128xbf16>
    %cst_55 = arith.constant dense<0.000000e+00> : vector<8x128xf32>
    %116 = tpu.matmul %115, %114, %cst_55 {dimension_numbers = #tpu.dot_dimension_numbers<[1], [0], [0], [1], [0, 0, 1, 1], [], []>} : vector<8x128xbf16>, vector<128x128xbf16>, vector<8x128xf32> -> vector<8x128xf32>
    %c0_56 = arith.constant 0 : index
    %c0_57 = arith.constant 0 : index
    %c0_58 = arith.constant 0 : index
    %117 = vector.load %arg15[%c0_56, %c0_57, %c0_58] : memref<6x1x128xf32, #tpu.memory_space<vmem>>, vector<1x1x128xf32>
    %118 = vector.shape_cast %117 : vector<1x1x128xf32> to vector<1x128xf32>
    %119 = vector.broadcast %118 : vector<1x128xf32> to vector<8x128xf32>
    %120 = arith.addf %116, %119 : vector<8x128xf32>
    %121 = arith.addf %120, %31 : vector<8x128xf32>
    %c0_59 = arith.constant 0 : index
    %c0_60 = arith.constant 0 : index
    %c0_61 = arith.constant 0 : index
    %122 = vector.load %arg16[%c0_59, %c0_60, %c0_61] : memref<6x1x128xf32, #tpu.memory_space<vmem>>, vector<1x1x128xf32>
    %123 = vector.shape_cast %122 : vector<1x1x128xf32> to vector<1x128xf32>
    %c0_62 = arith.constant 0 : index
    %c0_63 = arith.constant 0 : index
    %c0_64 = arith.constant 0 : index
    %124 = vector.load %arg17[%c0_62, %c0_63, %c0_64] : memref<6x1x128xf32, #tpu.memory_space<vmem>>, vector<1x1x128xf32>
    %125 = vector.shape_cast %124 : vector<1x1x128xf32> to vector<1x128xf32>
    %cst_65 = arith.constant dense<0.000000e+00> : vector<8xf32>
    %126 = vector.multi_reduction <add>, %121, %cst_65 [1] : vector<8x128xf32> to vector<8xf32>
    %127 = vector.shape_cast %126 : vector<8xf32> to vector<8x1xf32>
    %cst_66 = arith.constant 1.280000e+02 : f32
    %128 = vector.broadcast %cst_66 : f32 to vector<8x1xf32>
    %129 = arith.divf %127, %128 : vector<8x1xf32>
    %130 = vector.broadcast %129 : vector<8x1xf32> to vector<8x128xf32>
    %131 = arith.subf %121, %130 : vector<8x128xf32>
    %132 = arith.mulf %131, %131 : vector<8x128xf32>
    %cst_67 = arith.constant dense<0.000000e+00> : vector<8xf32>
    %133 = vector.multi_reduction <add>, %132, %cst_67 [1] : vector<8x128xf32> to vector<8xf32>
    %134 = vector.shape_cast %133 : vector<8xf32> to vector<8x1xf32>
    %cst_68 = arith.constant 1.280000e+02 : f32
    %135 = vector.broadcast %cst_68 : f32 to vector<8x1xf32>
    %136 = arith.divf %134, %135 : vector<8x1xf32>
    %137 = vector.broadcast %129 : vector<8x1xf32> to vector<8x128xf32>
    %138 = arith.subf %121, %137 : vector<8x128xf32>
    %cst_69 = arith.constant 9.99999997E-7 : f32
    %139 = vector.broadcast %cst_69 : f32 to vector<8x1xf32>
    %140 = arith.addf %136, %139 : vector<8x1xf32>
    %141 = math.rsqrt %140 : vector<8x1xf32>
    %142 = vector.broadcast %141 : vector<8x1xf32> to vector<8x128xf32>
    %143 = arith.mulf %138, %142 : vector<8x128xf32>
    %144 = vector.broadcast %123 : vector<1x128xf32> to vector<8x128xf32>
    %145 = arith.mulf %143, %144 : vector<8x128xf32>
    %146 = vector.broadcast %125 : vector<1x128xf32> to vector<8x128xf32>
    %147 = arith.addf %145, %146 : vector<8x128xf32>
    %c0_70 = arith.constant 0 : index
    %c0_71 = arith.constant 0 : index
    %c0_72 = arith.constant 0 : index
    %148 = vector.load %arg18[%c0_70, %c0_71, %c0_72] : memref<6x128x512xbf16, #tpu.memory_space<vmem>>, vector<1x128x512xbf16>
    %149 = vector.shape_cast %148 : vector<1x128x512xbf16> to vector<128x512xbf16>
    %150 = arith.truncf %147 : vector<8x128xf32> to vector<8x128xbf16>
    %cst_73 = arith.constant dense<0.000000e+00> : vector<8x512xf32>
    %151 = tpu.matmul %150, %149, %cst_73 {dimension_numbers = #tpu.dot_dimension_numbers<[1], [0], [0], [1], [0, 0, 1, 1], [], []>} : vector<8x128xbf16>, vector<128x512xbf16>, vector<8x512xf32> -> vector<8x512xf32>
    %c0_74 = arith.constant 0 : index
    %c0_75 = arith.constant 0 : index
    %c0_76 = arith.constant 0 : index
    %152 = vector.load %arg19[%c0_74, %c0_75, %c0_76] : memref<6x1x512xf32, #tpu.memory_space<vmem>>, vector<1x1x512xf32>
    %153 = vector.shape_cast %152 : vector<1x1x512xf32> to vector<1x512xf32>
    %154 = vector.broadcast %153 : vector<1x512xf32> to vector<8x512xf32>
    %155 = arith.addf %151, %154 : vector<8x512xf32>
    %156 = arith.mulf %155, %155 : vector<8x512xf32>
    %157 = arith.mulf %155, %156 : vector<8x512xf32>
    %cst_77 = arith.constant 4.471500e-02 : f32
    %158 = vector.broadcast %cst_77 : f32 to vector<8x512xf32>
    %159 = arith.mulf %158, %157 : vector<8x512xf32>
    %160 = arith.addf %155, %159 : vector<8x512xf32>
    %cst_78 = arith.constant 0.797884583 : f32
    %161 = vector.broadcast %cst_78 : f32 to vector<8x512xf32>
    %162 = arith.mulf %161, %160 : vector<8x512xf32>
    %163 = math.tanh %162 : vector<8x512xf32>
    %cst_79 = arith.constant 1.000000e+00 : f32
    %164 = vector.broadcast %cst_79 : f32 to vector<8x512xf32>
    %165 = arith.addf %164, %163 : vector<8x512xf32>
    %cst_80 = arith.constant 5.000000e-01 : f32
    %166 = vector.broadcast %cst_80 : f32 to vector<8x512xf32>
    %167 = arith.mulf %166, %165 : vector<8x512xf32>
    %168 = arith.mulf %155, %167 : vector<8x512xf32>
    %c0_81 = arith.constant 0 : index
    %c0_82 = arith.constant 0 : index
    %c0_83 = arith.constant 0 : index
    %169 = vector.load %arg20[%c0_81, %c0_82, %c0_83] : memref<6x512x128xbf16, #tpu.memory_space<vmem>>, vector<1x512x128xbf16>
    %170 = vector.shape_cast %169 : vector<1x512x128xbf16> to vector<512x128xbf16>
    %171 = arith.truncf %168 : vector<8x512xf32> to vector<8x512xbf16>
    %cst_84 = arith.constant dense<0.000000e+00> : vector<8x128xf32>
    %172 = tpu.matmul %171, %170, %cst_84 {dimension_numbers = #tpu.dot_dimension_numbers<[1], [0], [0], [1], [0, 0, 1, 1], [], []>} : vector<8x512xbf16>, vector<512x128xbf16>, vector<8x128xf32> -> vector<8x128xf32>
    %c0_85 = arith.constant 0 : index
    %c0_86 = arith.constant 0 : index
    %c0_87 = arith.constant 0 : index
    %173 = vector.load %arg21[%c0_85, %c0_86, %c0_87] : memref<6x1x128xf32, #tpu.memory_space<vmem>>, vector<1x1x128xf32>
    %174 = vector.shape_cast %173 : vector<1x1x128xf32> to vector<1x128xf32>
    %175 = vector.broadcast %174 : vector<1x128xf32> to vector<8x128xf32>
    %176 = arith.addf %172, %175 : vector<8x128xf32>
    %177 = arith.mulf %176, %176 : vector<8x128xf32>
    %178 = arith.mulf %176, %177 : vector<8x128xf32>
    %cst_88 = arith.constant 4.471500e-02 : f32
    %179 = vector.broadcast %cst_88 : f32 to vector<8x128xf32>
    %180 = arith.mulf %179, %178 : vector<8x128xf32>
    %181 = arith.addf %176, %180 : vector<8x128xf32>
    %cst_89 = arith.constant 0.797884583 : f32
    %182 = vector.broadcast %cst_89 : f32 to vector<8x128xf32>
    %183 = arith.mulf %182, %181 : vector<8x128xf32>
    %184 = math.tanh %183 : vector<8x128xf32>
    %cst_90 = arith.constant 1.000000e+00 : f32
    %185 = vector.broadcast %cst_90 : f32 to vector<8x128xf32>
    %186 = arith.addf %185, %184 : vector<8x128xf32>
    %cst_91 = arith.constant 5.000000e-01 : f32
    %187 = vector.broadcast %cst_91 : f32 to vector<8x128xf32>
    %188 = arith.mulf %187, %186 : vector<8x128xf32>
    %189 = arith.mulf %176, %188 : vector<8x128xf32>
    %190 = arith.addf %189, %121 : vector<8x128xf32>
    %c1 = arith.constant 1 : index
    %c0_92 = arith.constant 0 : index
    %c0_93 = arith.constant 0 : index
    %191 = vector.load %arg10[%c1, %c0_92, %c0_93] : memref<6x1x128xf32, #tpu.memory_space<vmem>>, vector<1x1x128xf32>
    %192 = vector.shape_cast %191 : vector<1x1x128xf32> to vector<1x128xf32>
    %c1_94 = arith.constant 1 : index
    %c0_95 = arith.constant 0 : index
    %c0_96 = arith.constant 0 : index
    %193 = vector.load %arg11[%c1_94, %c0_95, %c0_96] : memref<6x1x128xf32, #tpu.memory_space<vmem>>, vector<1x1x128xf32>
    %194 = vector.shape_cast %193 : vector<1x1x128xf32> to vector<1x128xf32>
    %cst_97 = arith.constant dense<0.000000e+00> : vector<8xf32>
    %195 = vector.multi_reduction <add>, %190, %cst_97 [1] : vector<8x128xf32> to vector<8xf32>
    %196 = vector.shape_cast %195 : vector<8xf32> to vector<8x1xf32>
    %cst_98 = arith.constant 1.280000e+02 : f32
    %197 = vector.broadcast %cst_98 : f32 to vector<8x1xf32>
    %198 = arith.divf %196, %197 : vector<8x1xf32>
    %199 = vector.broadcast %198 : vector<8x1xf32> to vector<8x128xf32>
    %200 = arith.subf %190, %199 : vector<8x128xf32>
    %201 = arith.mulf %200, %200 : vector<8x128xf32>
    %cst_99 = arith.constant dense<0.000000e+00> : vector<8xf32>
    %202 = vector.multi_reduction <add>, %201, %cst_99 [1] : vector<8x128xf32> to vector<8xf32>
    %203 = vector.shape_cast %202 : vector<8xf32> to vector<8x1xf32>
    %cst_100 = arith.constant 1.280000e+02 : f32
    %204 = vector.broadcast %cst_100 : f32 to vector<8x1xf32>
    %205 = arith.divf %203, %204 : vector<8x1xf32>
    %206 = vector.broadcast %198 : vector<8x1xf32> to vector<8x128xf32>
    %207 = arith.subf %190, %206 : vector<8x128xf32>
    %cst_101 = arith.constant 9.99999997E-7 : f32
    %208 = vector.broadcast %cst_101 : f32 to vector<8x1xf32>
    %209 = arith.addf %205, %208 : vector<8x1xf32>
    %210 = math.rsqrt %209 : vector<8x1xf32>
    %211 = vector.broadcast %210 : vector<8x1xf32> to vector<8x128xf32>
    %212 = arith.mulf %207, %211 : vector<8x128xf32>
    %213 = vector.broadcast %192 : vector<1x128xf32> to vector<8x128xf32>
    %214 = arith.mulf %212, %213 : vector<8x128xf32>
    %215 = vector.broadcast %194 : vector<1x128xf32> to vector<8x128xf32>
    %216 = arith.addf %214, %215 : vector<8x128xf32>
    %c1_102 = arith.constant 1 : index
    %c0_103 = arith.constant 0 : index
    %c0_104 = arith.constant 0 : index
    %217 = vector.load %arg12[%c1_102, %c0_103, %c0_104] : memref<6x128x384xbf16, #tpu.memory_space<vmem>>, vector<1x128x384xbf16>
    %218 = vector.shape_cast %217 : vector<1x128x384xbf16> to vector<128x384xbf16>
    %219 = arith.truncf %216 : vector<8x128xf32> to vector<8x128xbf16>
    %cst_105 = arith.constant dense<0.000000e+00> : vector<8x384xf32>
    %220 = tpu.matmul %219, %218, %cst_105 {dimension_numbers = #tpu.dot_dimension_numbers<[1], [0], [0], [1], [0, 0, 1, 1], [], []>} : vector<8x128xbf16>, vector<128x384xbf16>, vector<8x384xf32> -> vector<8x384xf32>
    %c1_106 = arith.constant 1 : index
    %c0_107 = arith.constant 0 : index
    %c0_108 = arith.constant 0 : index
    %221 = vector.load %arg13[%c1_106, %c0_107, %c0_108] : memref<6x1x384xf32, #tpu.memory_space<vmem>>, vector<1x1x384xf32>
    %222 = vector.shape_cast %221 : vector<1x1x384xf32> to vector<1x384xf32>
    %223 = vector.broadcast %222 : vector<1x384xf32> to vector<8x384xf32>
    %224 = arith.addf %220, %223 : vector<8x384xf32>
    %225 = vector.extract_strided_slice %224 {offsets = [0, 0], sizes = [8, 64], strides = [1, 1]} : vector<8x384xf32> to vector<8x64xf32>
    %226 = vector.extract_strided_slice %224 {offsets = [0, 128], sizes = [8, 64], strides = [1, 1]} : vector<8x384xf32> to vector<8x64xf32>
    %227 = vector.extract_strided_slice %224 {offsets = [0, 256], sizes = [8, 64], strides = [1, 1]} : vector<8x384xf32> to vector<8x64xf32>
    %228 = arith.truncf %225 : vector<8x64xf32> to vector<8x64xbf16>
    %229 = arith.truncf %226 : vector<8x64xf32> to vector<8x64xbf16>
    %cst_109 = arith.constant dense<0.000000e+00> : vector<8x8xf32>
    %230 = tpu.matmul %228, %229, %cst_109 {dimension_numbers = #tpu.dot_dimension_numbers<[1], [1], [0], [0], [0, 0, 1, 0], [], []>} : vector<8x64xbf16>, vector<8x64xbf16>, vector<8x8xf32> -> vector<8x8xf32>
    %cst_110 = arith.constant 1.250000e-01 : f32
    %231 = vector.broadcast %cst_110 : f32 to vector<8x8xf32>
    %232 = arith.mulf %230, %231 : vector<8x8xf32>
    %233 = vector.broadcast %7 : vector<1x8xf32> to vector<8x8xf32>
    %234 = arith.addf %232, %233 : vector<8x8xf32>
    %cst_111 = arith.constant dense<0xFF800000> : vector<8xf32>
    %235 = vector.multi_reduction <maximumf>, %234, %cst_111 [1] : vector<8x8xf32> to vector<8xf32>
    %236 = vector.shape_cast %235 : vector<8xf32> to vector<8x1xf32>
    %237 = vector.broadcast %236 : vector<8x1xf32> to vector<8x8xf32>
    %238 = arith.subf %234, %237 : vector<8x8xf32>
    %239 = math.exp %238 : vector<8x8xf32>
    %cst_112 = arith.constant dense<0.000000e+00> : vector<8xf32>
    %240 = vector.multi_reduction <add>, %239, %cst_112 [1] : vector<8x8xf32> to vector<8xf32>
    %241 = vector.shape_cast %240 : vector<8xf32> to vector<8x1xf32>
    %242 = tpu.reciprocal %241 {approx = true} : vector<8x1xf32> -> vector<8x1xf32>
    %243 = vector.broadcast %242 : vector<8x1xf32> to vector<8x8xf32>
    %244 = arith.mulf %239, %243 : vector<8x8xf32>
    %245 = arith.truncf %227 : vector<8x64xf32> to vector<8x64xbf16>
    %246 = arith.truncf %244 : vector<8x8xf32> to vector<8x8xbf16>
    %cst_113 = arith.constant dense<0.000000e+00> : vector<8x64xf32>
    %247 = tpu.matmul %246, %245, %cst_113 {dimension_numbers = #tpu.dot_dimension_numbers<[1], [0], [0], [1], [0, 0, 1, 1], [], []>} : vector<8x8xbf16>, vector<8x64xbf16>, vector<8x64xf32> -> vector<8x64xf32>
    %248 = vector.extract_strided_slice %224 {offsets = [0, 64], sizes = [8, 64], strides = [1, 1]} : vector<8x384xf32> to vector<8x64xf32>
    %249 = vector.extract_strided_slice %224 {offsets = [0, 192], sizes = [8, 64], strides = [1, 1]} : vector<8x384xf32> to vector<8x64xf32>
    %250 = vector.extract_strided_slice %224 {offsets = [0, 320], sizes = [8, 64], strides = [1, 1]} : vector<8x384xf32> to vector<8x64xf32>
    %251 = arith.truncf %248 : vector<8x64xf32> to vector<8x64xbf16>
    %252 = arith.truncf %249 : vector<8x64xf32> to vector<8x64xbf16>
    %cst_114 = arith.constant dense<0.000000e+00> : vector<8x8xf32>
    %253 = tpu.matmul %251, %252, %cst_114 {dimension_numbers = #tpu.dot_dimension_numbers<[1], [1], [0], [0], [0, 0, 1, 0], [], []>} : vector<8x64xbf16>, vector<8x64xbf16>, vector<8x8xf32> -> vector<8x8xf32>
    %cst_115 = arith.constant 1.250000e-01 : f32
    %254 = vector.broadcast %cst_115 : f32 to vector<8x8xf32>
    %255 = arith.mulf %253, %254 : vector<8x8xf32>
    %256 = vector.broadcast %7 : vector<1x8xf32> to vector<8x8xf32>
    %257 = arith.addf %255, %256 : vector<8x8xf32>
    %cst_116 = arith.constant dense<0xFF800000> : vector<8xf32>
    %258 = vector.multi_reduction <maximumf>, %257, %cst_116 [1] : vector<8x8xf32> to vector<8xf32>
    %259 = vector.shape_cast %258 : vector<8xf32> to vector<8x1xf32>
    %260 = vector.broadcast %259 : vector<8x1xf32> to vector<8x8xf32>
    %261 = arith.subf %257, %260 : vector<8x8xf32>
    %262 = math.exp %261 : vector<8x8xf32>
    %cst_117 = arith.constant dense<0.000000e+00> : vector<8xf32>
    %263 = vector.multi_reduction <add>, %262, %cst_117 [1] : vector<8x8xf32> to vector<8xf32>
    %264 = vector.shape_cast %263 : vector<8xf32> to vector<8x1xf32>
    %265 = tpu.reciprocal %264 {approx = true} : vector<8x1xf32> -> vector<8x1xf32>
    %266 = vector.broadcast %265 : vector<8x1xf32> to vector<8x8xf32>
    %267 = arith.mulf %262, %266 : vector<8x8xf32>
    %268 = arith.truncf %250 : vector<8x64xf32> to vector<8x64xbf16>
    %269 = arith.truncf %267 : vector<8x8xf32> to vector<8x8xbf16>
    %cst_118 = arith.constant dense<0.000000e+00> : vector<8x64xf32>
    %270 = tpu.matmul %269, %268, %cst_118 {dimension_numbers = #tpu.dot_dimension_numbers<[1], [0], [0], [1], [0, 0, 1, 1], [], []>} : vector<8x8xbf16>, vector<8x64xbf16>, vector<8x64xf32> -> vector<8x64xf32>
    %271 = tpu.concatenate %247, %270 in 1 : vector<8x64xf32>, vector<8x64xf32> -> vector<8x128xf32>
    %c1_119 = arith.constant 1 : index
    %c0_120 = arith.constant 0 : index
    %c0_121 = arith.constant 0 : index
    %272 = vector.load %arg14[%c1_119, %c0_120, %c0_121] : memref<6x128x128xbf16, #tpu.memory_space<vmem>>, vector<1x128x128xbf16>
    %273 = vector.shape_cast %272 : vector<1x128x128xbf16> to vector<128x128xbf16>
    %274 = arith.truncf %271 : vector<8x128xf32> to vector<8x128xbf16>
    %cst_122 = arith.constant dense<0.000000e+00> : vector<8x128xf32>
    %275 = tpu.matmul %274, %273, %cst_122 {dimension_numbers = #tpu.dot_dimension_numbers<[1], [0], [0], [1], [0, 0, 1, 1], [], []>} : vector<8x128xbf16>, vector<128x128xbf16>, vector<8x128xf32> -> vector<8x128xf32>
    %c1_123 = arith.constant 1 : index
    %c0_124 = arith.constant 0 : index
    %c0_125 = arith.constant 0 : index
    %276 = vector.load %arg15[%c1_123, %c0_124, %c0_125] : memref<6x1x128xf32, #tpu.memory_space<vmem>>, vector<1x1x128xf32>
    %277 = vector.shape_cast %276 : vector<1x1x128xf32> to vector<1x128xf32>
    %278 = vector.broadcast %277 : vector<1x128xf32> to vector<8x128xf32>
    %279 = arith.addf %275, %278 : vector<8x128xf32>
    %280 = arith.addf %279, %190 : vector<8x128xf32>
    %c1_126 = arith.constant 1 : index
    %c0_127 = arith.constant 0 : index
    %c0_128 = arith.constant 0 : index
    %281 = vector.load %arg16[%c1_126, %c0_127, %c0_128] : memref<6x1x128xf32, #tpu.memory_space<vmem>>, vector<1x1x128xf32>
    %282 = vector.shape_cast %281 : vector<1x1x128xf32> to vector<1x128xf32>
    %c1_129 = arith.constant 1 : index
    %c0_130 = arith.constant 0 : index
    %c0_131 = arith.constant 0 : index
    %283 = vector.load %arg17[%c1_129, %c0_130, %c0_131] : memref<6x1x128xf32, #tpu.memory_space<vmem>>, vector<1x1x128xf32>
    %284 = vector.shape_cast %283 : vector<1x1x128xf32> to vector<1x128xf32>
    %cst_132 = arith.constant dense<0.000000e+00> : vector<8xf32>
    %285 = vector.multi_reduction <add>, %280, %cst_132 [1] : vector<8x128xf32> to vector<8xf32>
    %286 = vector.shape_cast %285 : vector<8xf32> to vector<8x1xf32>
    %cst_133 = arith.constant 1.280000e+02 : f32
    %287 = vector.broadcast %cst_133 : f32 to vector<8x1xf32>
    %288 = arith.divf %286, %287 : vector<8x1xf32>
    %289 = vector.broadcast %288 : vector<8x1xf32> to vector<8x128xf32>
    %290 = arith.subf %280, %289 : vector<8x128xf32>
    %291 = arith.mulf %290, %290 : vector<8x128xf32>
    %cst_134 = arith.constant dense<0.000000e+00> : vector<8xf32>
    %292 = vector.multi_reduction <add>, %291, %cst_134 [1] : vector<8x128xf32> to vector<8xf32>
    %293 = vector.shape_cast %292 : vector<8xf32> to vector<8x1xf32>
    %cst_135 = arith.constant 1.280000e+02 : f32
    %294 = vector.broadcast %cst_135 : f32 to vector<8x1xf32>
    %295 = arith.divf %293, %294 : vector<8x1xf32>
    %296 = vector.broadcast %288 : vector<8x1xf32> to vector<8x128xf32>
    %297 = arith.subf %280, %296 : vector<8x128xf32>
    %cst_136 = arith.constant 9.99999997E-7 : f32
    %298 = vector.broadcast %cst_136 : f32 to vector<8x1xf32>
    %299 = arith.addf %295, %298 : vector<8x1xf32>
    %300 = math.rsqrt %299 : vector<8x1xf32>
    %301 = vector.broadcast %300 : vector<8x1xf32> to vector<8x128xf32>
    %302 = arith.mulf %297, %301 : vector<8x128xf32>
    %303 = vector.broadcast %282 : vector<1x128xf32> to vector<8x128xf32>
    %304 = arith.mulf %302, %303 : vector<8x128xf32>
    %305 = vector.broadcast %284 : vector<1x128xf32> to vector<8x128xf32>
    %306 = arith.addf %304, %305 : vector<8x128xf32>
    %c1_137 = arith.constant 1 : index
    %c0_138 = arith.constant 0 : index
    %c0_139 = arith.constant 0 : index
    %307 = vector.load %arg18[%c1_137, %c0_138, %c0_139] : memref<6x128x512xbf16, #tpu.memory_space<vmem>>, vector<1x128x512xbf16>
    %308 = vector.shape_cast %307 : vector<1x128x512xbf16> to vector<128x512xbf16>
    %309 = arith.truncf %306 : vector<8x128xf32> to vector<8x128xbf16>
    %cst_140 = arith.constant dense<0.000000e+00> : vector<8x512xf32>
    %310 = tpu.matmul %309, %308, %cst_140 {dimension_numbers = #tpu.dot_dimension_numbers<[1], [0], [0], [1], [0, 0, 1, 1], [], []>} : vector<8x128xbf16>, vector<128x512xbf16>, vector<8x512xf32> -> vector<8x512xf32>
    %c1_141 = arith.constant 1 : index
    %c0_142 = arith.constant 0 : index
    %c0_143 = arith.constant 0 : index
    %311 = vector.load %arg19[%c1_141, %c0_142, %c0_143] : memref<6x1x512xf32, #tpu.memory_space<vmem>>, vector<1x1x512xf32>
    %312 = vector.shape_cast %311 : vector<1x1x512xf32> to vector<1x512xf32>
    %313 = vector.broadcast %312 : vector<1x512xf32> to vector<8x512xf32>
    %314 = arith.addf %310, %313 : vector<8x512xf32>
    %315 = arith.mulf %314, %314 : vector<8x512xf32>
    %316 = arith.mulf %314, %315 : vector<8x512xf32>
    %cst_144 = arith.constant 4.471500e-02 : f32
    %317 = vector.broadcast %cst_144 : f32 to vector<8x512xf32>
    %318 = arith.mulf %317, %316 : vector<8x512xf32>
    %319 = arith.addf %314, %318 : vector<8x512xf32>
    %cst_145 = arith.constant 0.797884583 : f32
    %320 = vector.broadcast %cst_145 : f32 to vector<8x512xf32>
    %321 = arith.mulf %320, %319 : vector<8x512xf32>
    %322 = math.tanh %321 : vector<8x512xf32>
    %cst_146 = arith.constant 1.000000e+00 : f32
    %323 = vector.broadcast %cst_146 : f32 to vector<8x512xf32>
    %324 = arith.addf %323, %322 : vector<8x512xf32>
    %cst_147 = arith.constant 5.000000e-01 : f32
    %325 = vector.broadcast %cst_147 : f32 to vector<8x512xf32>
    %326 = arith.mulf %325, %324 : vector<8x512xf32>
    %327 = arith.mulf %314, %326 : vector<8x512xf32>
    %c1_148 = arith.constant 1 : index
    %c0_149 = arith.constant 0 : index
    %c0_150 = arith.constant 0 : index
    %328 = vector.load %arg20[%c1_148, %c0_149, %c0_150] : memref<6x512x128xbf16, #tpu.memory_space<vmem>>, vector<1x512x128xbf16>
    %329 = vector.shape_cast %328 : vector<1x512x128xbf16> to vector<512x128xbf16>
    %330 = arith.truncf %327 : vector<8x512xf32> to vector<8x512xbf16>
    %cst_151 = arith.constant dense<0.000000e+00> : vector<8x128xf32>
    %331 = tpu.matmul %330, %329, %cst_151 {dimension_numbers = #tpu.dot_dimension_numbers<[1], [0], [0], [1], [0, 0, 1, 1], [], []>} : vector<8x512xbf16>, vector<512x128xbf16>, vector<8x128xf32> -> vector<8x128xf32>
    %c1_152 = arith.constant 1 : index
    %c0_153 = arith.constant 0 : index
    %c0_154 = arith.constant 0 : index
    %332 = vector.load %arg21[%c1_152, %c0_153, %c0_154] : memref<6x1x128xf32, #tpu.memory_space<vmem>>, vector<1x1x128xf32>
    %333 = vector.shape_cast %332 : vector<1x1x128xf32> to vector<1x128xf32>
    %334 = vector.broadcast %333 : vector<1x128xf32> to vector<8x128xf32>
    %335 = arith.addf %331, %334 : vector<8x128xf32>
    %336 = arith.mulf %335, %335 : vector<8x128xf32>
    %337 = arith.mulf %335, %336 : vector<8x128xf32>
    %cst_155 = arith.constant 4.471500e-02 : f32
    %338 = vector.broadcast %cst_155 : f32 to vector<8x128xf32>
    %339 = arith.mulf %338, %337 : vector<8x128xf32>
    %340 = arith.addf %335, %339 : vector<8x128xf32>
    %cst_156 = arith.constant 0.797884583 : f32
    %341 = vector.broadcast %cst_156 : f32 to vector<8x128xf32>
    %342 = arith.mulf %341, %340 : vector<8x128xf32>
    %343 = math.tanh %342 : vector<8x128xf32>
    %cst_157 = arith.constant 1.000000e+00 : f32
    %344 = vector.broadcast %cst_157 : f32 to vector<8x128xf32>
    %345 = arith.addf %344, %343 : vector<8x128xf32>
    %cst_158 = arith.constant 5.000000e-01 : f32
    %346 = vector.broadcast %cst_158 : f32 to vector<8x128xf32>
    %347 = arith.mulf %346, %345 : vector<8x128xf32>
    %348 = arith.mulf %335, %347 : vector<8x128xf32>
    %349 = arith.addf %348, %280 : vector<8x128xf32>
    %c2 = arith.constant 2 : index
    %c0_159 = arith.constant 0 : index
    %c0_160 = arith.constant 0 : index
    %350 = vector.load %arg10[%c2, %c0_159, %c0_160] : memref<6x1x128xf32, #tpu.memory_space<vmem>>, vector<1x1x128xf32>
    %351 = vector.shape_cast %350 : vector<1x1x128xf32> to vector<1x128xf32>
    %c2_161 = arith.constant 2 : index
    %c0_162 = arith.constant 0 : index
    %c0_163 = arith.constant 0 : index
    %352 = vector.load %arg11[%c2_161, %c0_162, %c0_163] : memref<6x1x128xf32, #tpu.memory_space<vmem>>, vector<1x1x128xf32>
    %353 = vector.shape_cast %352 : vector<1x1x128xf32> to vector<1x128xf32>
    %cst_164 = arith.constant dense<0.000000e+00> : vector<8xf32>
    %354 = vector.multi_reduction <add>, %349, %cst_164 [1] : vector<8x128xf32> to vector<8xf32>
    %355 = vector.shape_cast %354 : vector<8xf32> to vector<8x1xf32>
    %cst_165 = arith.constant 1.280000e+02 : f32
    %356 = vector.broadcast %cst_165 : f32 to vector<8x1xf32>
    %357 = arith.divf %355, %356 : vector<8x1xf32>
    %358 = vector.broadcast %357 : vector<8x1xf32> to vector<8x128xf32>
    %359 = arith.subf %349, %358 : vector<8x128xf32>
    %360 = arith.mulf %359, %359 : vector<8x128xf32>
    %cst_166 = arith.constant dense<0.000000e+00> : vector<8xf32>
    %361 = vector.multi_reduction <add>, %360, %cst_166 [1] : vector<8x128xf32> to vector<8xf32>
    %362 = vector.shape_cast %361 : vector<8xf32> to vector<8x1xf32>
    %cst_167 = arith.constant 1.280000e+02 : f32
    %363 = vector.broadcast %cst_167 : f32 to vector<8x1xf32>
    %364 = arith.divf %362, %363 : vector<8x1xf32>
    %365 = vector.broadcast %357 : vector<8x1xf32> to vector<8x128xf32>
    %366 = arith.subf %349, %365 : vector<8x128xf32>
    %cst_168 = arith.constant 9.99999997E-7 : f32
    %367 = vector.broadcast %cst_168 : f32 to vector<8x1xf32>
    %368 = arith.addf %364, %367 : vector<8x1xf32>
    %369 = math.rsqrt %368 : vector<8x1xf32>
    %370 = vector.broadcast %369 : vector<8x1xf32> to vector<8x128xf32>
    %371 = arith.mulf %366, %370 : vector<8x128xf32>
    %372 = vector.broadcast %351 : vector<1x128xf32> to vector<8x128xf32>
    %373 = arith.mulf %371, %372 : vector<8x128xf32>
    %374 = vector.broadcast %353 : vector<1x128xf32> to vector<8x128xf32>
    %375 = arith.addf %373, %374 : vector<8x128xf32>
    %c2_169 = arith.constant 2 : index
    %c0_170 = arith.constant 0 : index
    %c0_171 = arith.constant 0 : index
    %376 = vector.load %arg12[%c2_169, %c0_170, %c0_171] : memref<6x128x384xbf16, #tpu.memory_space<vmem>>, vector<1x128x384xbf16>
    %377 = vector.shape_cast %376 : vector<1x128x384xbf16> to vector<128x384xbf16>
    %378 = arith.truncf %375 : vector<8x128xf32> to vector<8x128xbf16>
    %cst_172 = arith.constant dense<0.000000e+00> : vector<8x384xf32>
    %379 = tpu.matmul %378, %377, %cst_172 {dimension_numbers = #tpu.dot_dimension_numbers<[1], [0], [0], [1], [0, 0, 1, 1], [], []>} : vector<8x128xbf16>, vector<128x384xbf16>, vector<8x384xf32> -> vector<8x384xf32>
    %c2_173 = arith.constant 2 : index
    %c0_174 = arith.constant 0 : index
    %c0_175 = arith.constant 0 : index
    %380 = vector.load %arg13[%c2_173, %c0_174, %c0_175] : memref<6x1x384xf32, #tpu.memory_space<vmem>>, vector<1x1x384xf32>
    %381 = vector.shape_cast %380 : vector<1x1x384xf32> to vector<1x384xf32>
    %382 = vector.broadcast %381 : vector<1x384xf32> to vector<8x384xf32>
    %383 = arith.addf %379, %382 : vector<8x384xf32>
    %384 = vector.extract_strided_slice %383 {offsets = [0, 0], sizes = [8, 64], strides = [1, 1]} : vector<8x384xf32> to vector<8x64xf32>
    %385 = vector.extract_strided_slice %383 {offsets = [0, 128], sizes = [8, 64], strides = [1, 1]} : vector<8x384xf32> to vector<8x64xf32>
    %386 = vector.extract_strided_slice %383 {offsets = [0, 256], sizes = [8, 64], strides = [1, 1]} : vector<8x384xf32> to vector<8x64xf32>
    %387 = arith.truncf %384 : vector<8x64xf32> to vector<8x64xbf16>
    %388 = arith.truncf %385 : vector<8x64xf32> to vector<8x64xbf16>
    %cst_176 = arith.constant dense<0.000000e+00> : vector<8x8xf32>
    %389 = tpu.matmul %387, %388, %cst_176 {dimension_numbers = #tpu.dot_dimension_numbers<[1], [1], [0], [0], [0, 0, 1, 0], [], []>} : vector<8x64xbf16>, vector<8x64xbf16>, vector<8x8xf32> -> vector<8x8xf32>
    %cst_177 = arith.constant 1.250000e-01 : f32
    %390 = vector.broadcast %cst_177 : f32 to vector<8x8xf32>
    %391 = arith.mulf %389, %390 : vector<8x8xf32>
    %392 = vector.broadcast %7 : vector<1x8xf32> to vector<8x8xf32>
    %393 = arith.addf %391, %392 : vector<8x8xf32>
    %cst_178 = arith.constant dense<0xFF800000> : vector<8xf32>
    %394 = vector.multi_reduction <maximumf>, %393, %cst_178 [1] : vector<8x8xf32> to vector<8xf32>
    %395 = vector.shape_cast %394 : vector<8xf32> to vector<8x1xf32>
    %396 = vector.broadcast %395 : vector<8x1xf32> to vector<8x8xf32>
    %397 = arith.subf %393, %396 : vector<8x8xf32>
    %398 = math.exp %397 : vector<8x8xf32>
    %cst_179 = arith.constant dense<0.000000e+00> : vector<8xf32>
    %399 = vector.multi_reduction <add>, %398, %cst_179 [1] : vector<8x8xf32> to vector<8xf32>
    %400 = vector.shape_cast %399 : vector<8xf32> to vector<8x1xf32>
    %401 = tpu.reciprocal %400 {approx = true} : vector<8x1xf32> -> vector<8x1xf32>
    %402 = vector.broadcast %401 : vector<8x1xf32> to vector<8x8xf32>
    %403 = arith.mulf %398, %402 : vector<8x8xf32>
    %404 = arith.truncf %386 : vector<8x64xf32> to vector<8x64xbf16>
    %405 = arith.truncf %403 : vector<8x8xf32> to vector<8x8xbf16>
    %cst_180 = arith.constant dense<0.000000e+00> : vector<8x64xf32>
    %406 = tpu.matmul %405, %404, %cst_180 {dimension_numbers = #tpu.dot_dimension_numbers<[1], [0], [0], [1], [0, 0, 1, 1], [], []>} : vector<8x8xbf16>, vector<8x64xbf16>, vector<8x64xf32> -> vector<8x64xf32>
    %407 = vector.extract_strided_slice %383 {offsets = [0, 64], sizes = [8, 64], strides = [1, 1]} : vector<8x384xf32> to vector<8x64xf32>
    %408 = vector.extract_strided_slice %383 {offsets = [0, 192], sizes = [8, 64], strides = [1, 1]} : vector<8x384xf32> to vector<8x64xf32>
    %409 = vector.extract_strided_slice %383 {offsets = [0, 320], sizes = [8, 64], strides = [1, 1]} : vector<8x384xf32> to vector<8x64xf32>
    %410 = arith.truncf %407 : vector<8x64xf32> to vector<8x64xbf16>
    %411 = arith.truncf %408 : vector<8x64xf32> to vector<8x64xbf16>
    %cst_181 = arith.constant dense<0.000000e+00> : vector<8x8xf32>
    %412 = tpu.matmul %410, %411, %cst_181 {dimension_numbers = #tpu.dot_dimension_numbers<[1], [1], [0], [0], [0, 0, 1, 0], [], []>} : vector<8x64xbf16>, vector<8x64xbf16>, vector<8x8xf32> -> vector<8x8xf32>
    %cst_182 = arith.constant 1.250000e-01 : f32
    %413 = vector.broadcast %cst_182 : f32 to vector<8x8xf32>
    %414 = arith.mulf %412, %413 : vector<8x8xf32>
    %415 = vector.broadcast %7 : vector<1x8xf32> to vector<8x8xf32>
    %416 = arith.addf %414, %415 : vector<8x8xf32>
    %cst_183 = arith.constant dense<0xFF800000> : vector<8xf32>
    %417 = vector.multi_reduction <maximumf>, %416, %cst_183 [1] : vector<8x8xf32> to vector<8xf32>
    %418 = vector.shape_cast %417 : vector<8xf32> to vector<8x1xf32>
    %419 = vector.broadcast %418 : vector<8x1xf32> to vector<8x8xf32>
    %420 = arith.subf %416, %419 : vector<8x8xf32>
    %421 = math.exp %420 : vector<8x8xf32>
    %cst_184 = arith.constant dense<0.000000e+00> : vector<8xf32>
    %422 = vector.multi_reduction <add>, %421, %cst_184 [1] : vector<8x8xf32> to vector<8xf32>
    %423 = vector.shape_cast %422 : vector<8xf32> to vector<8x1xf32>
    %424 = tpu.reciprocal %423 {approx = true} : vector<8x1xf32> -> vector<8x1xf32>
    %425 = vector.broadcast %424 : vector<8x1xf32> to vector<8x8xf32>
    %426 = arith.mulf %421, %425 : vector<8x8xf32>
    %427 = arith.truncf %409 : vector<8x64xf32> to vector<8x64xbf16>
    %428 = arith.truncf %426 : vector<8x8xf32> to vector<8x8xbf16>
    %cst_185 = arith.constant dense<0.000000e+00> : vector<8x64xf32>
    %429 = tpu.matmul %428, %427, %cst_185 {dimension_numbers = #tpu.dot_dimension_numbers<[1], [0], [0], [1], [0, 0, 1, 1], [], []>} : vector<8x8xbf16>, vector<8x64xbf16>, vector<8x64xf32> -> vector<8x64xf32>
    %430 = tpu.concatenate %406, %429 in 1 : vector<8x64xf32>, vector<8x64xf32> -> vector<8x128xf32>
    %c2_186 = arith.constant 2 : index
    %c0_187 = arith.constant 0 : index
    %c0_188 = arith.constant 0 : index
    %431 = vector.load %arg14[%c2_186, %c0_187, %c0_188] : memref<6x128x128xbf16, #tpu.memory_space<vmem>>, vector<1x128x128xbf16>
    %432 = vector.shape_cast %431 : vector<1x128x128xbf16> to vector<128x128xbf16>
    %433 = arith.truncf %430 : vector<8x128xf32> to vector<8x128xbf16>
    %cst_189 = arith.constant dense<0.000000e+00> : vector<8x128xf32>
    %434 = tpu.matmul %433, %432, %cst_189 {dimension_numbers = #tpu.dot_dimension_numbers<[1], [0], [0], [1], [0, 0, 1, 1], [], []>} : vector<8x128xbf16>, vector<128x128xbf16>, vector<8x128xf32> -> vector<8x128xf32>
    %c2_190 = arith.constant 2 : index
    %c0_191 = arith.constant 0 : index
    %c0_192 = arith.constant 0 : index
    %435 = vector.load %arg15[%c2_190, %c0_191, %c0_192] : memref<6x1x128xf32, #tpu.memory_space<vmem>>, vector<1x1x128xf32>
    %436 = vector.shape_cast %435 : vector<1x1x128xf32> to vector<1x128xf32>
    %437 = vector.broadcast %436 : vector<1x128xf32> to vector<8x128xf32>
    %438 = arith.addf %434, %437 : vector<8x128xf32>
    %439 = arith.addf %438, %349 : vector<8x128xf32>
    %c2_193 = arith.constant 2 : index
    %c0_194 = arith.constant 0 : index
    %c0_195 = arith.constant 0 : index
    %440 = vector.load %arg16[%c2_193, %c0_194, %c0_195] : memref<6x1x128xf32, #tpu.memory_space<vmem>>, vector<1x1x128xf32>
    %441 = vector.shape_cast %440 : vector<1x1x128xf32> to vector<1x128xf32>
    %c2_196 = arith.constant 2 : index
    %c0_197 = arith.constant 0 : index
    %c0_198 = arith.constant 0 : index
    %442 = vector.load %arg17[%c2_196, %c0_197, %c0_198] : memref<6x1x128xf32, #tpu.memory_space<vmem>>, vector<1x1x128xf32>
    %443 = vector.shape_cast %442 : vector<1x1x128xf32> to vector<1x128xf32>
    %cst_199 = arith.constant dense<0.000000e+00> : vector<8xf32>
    %444 = vector.multi_reduction <add>, %439, %cst_199 [1] : vector<8x128xf32> to vector<8xf32>
    %445 = vector.shape_cast %444 : vector<8xf32> to vector<8x1xf32>
    %cst_200 = arith.constant 1.280000e+02 : f32
    %446 = vector.broadcast %cst_200 : f32 to vector<8x1xf32>
    %447 = arith.divf %445, %446 : vector<8x1xf32>
    %448 = vector.broadcast %447 : vector<8x1xf32> to vector<8x128xf32>
    %449 = arith.subf %439, %448 : vector<8x128xf32>
    %450 = arith.mulf %449, %449 : vector<8x128xf32>
    %cst_201 = arith.constant dense<0.000000e+00> : vector<8xf32>
    %451 = vector.multi_reduction <add>, %450, %cst_201 [1] : vector<8x128xf32> to vector<8xf32>
    %452 = vector.shape_cast %451 : vector<8xf32> to vector<8x1xf32>
    %cst_202 = arith.constant 1.280000e+02 : f32
    %453 = vector.broadcast %cst_202 : f32 to vector<8x1xf32>
    %454 = arith.divf %452, %453 : vector<8x1xf32>
    %455 = vector.broadcast %447 : vector<8x1xf32> to vector<8x128xf32>
    %456 = arith.subf %439, %455 : vector<8x128xf32>
    %cst_203 = arith.constant 9.99999997E-7 : f32
    %457 = vector.broadcast %cst_203 : f32 to vector<8x1xf32>
    %458 = arith.addf %454, %457 : vector<8x1xf32>
    %459 = math.rsqrt %458 : vector<8x1xf32>
    %460 = vector.broadcast %459 : vector<8x1xf32> to vector<8x128xf32>
    %461 = arith.mulf %456, %460 : vector<8x128xf32>
    %462 = vector.broadcast %441 : vector<1x128xf32> to vector<8x128xf32>
    %463 = arith.mulf %461, %462 : vector<8x128xf32>
    %464 = vector.broadcast %443 : vector<1x128xf32> to vector<8x128xf32>
    %465 = arith.addf %463, %464 : vector<8x128xf32>
    %c2_204 = arith.constant 2 : index
    %c0_205 = arith.constant 0 : index
    %c0_206 = arith.constant 0 : index
    %466 = vector.load %arg18[%c2_204, %c0_205, %c0_206] : memref<6x128x512xbf16, #tpu.memory_space<vmem>>, vector<1x128x512xbf16>
    %467 = vector.shape_cast %466 : vector<1x128x512xbf16> to vector<128x512xbf16>
    %468 = arith.truncf %465 : vector<8x128xf32> to vector<8x128xbf16>
    %cst_207 = arith.constant dense<0.000000e+00> : vector<8x512xf32>
    %469 = tpu.matmul %468, %467, %cst_207 {dimension_numbers = #tpu.dot_dimension_numbers<[1], [0], [0], [1], [0, 0, 1, 1], [], []>} : vector<8x128xbf16>, vector<128x512xbf16>, vector<8x512xf32> -> vector<8x512xf32>
    %c2_208 = arith.constant 2 : index
    %c0_209 = arith.constant 0 : index
    %c0_210 = arith.constant 0 : index
    %470 = vector.load %arg19[%c2_208, %c0_209, %c0_210] : memref<6x1x512xf32, #tpu.memory_space<vmem>>, vector<1x1x512xf32>
    %471 = vector.shape_cast %470 : vector<1x1x512xf32> to vector<1x512xf32>
    %472 = vector.broadcast %471 : vector<1x512xf32> to vector<8x512xf32>
    %473 = arith.addf %469, %472 : vector<8x512xf32>
    %474 = arith.mulf %473, %473 : vector<8x512xf32>
    %475 = arith.mulf %473, %474 : vector<8x512xf32>
    %cst_211 = arith.constant 4.471500e-02 : f32
    %476 = vector.broadcast %cst_211 : f32 to vector<8x512xf32>
    %477 = arith.mulf %476, %475 : vector<8x512xf32>
    %478 = arith.addf %473, %477 : vector<8x512xf32>
    %cst_212 = arith.constant 0.797884583 : f32
    %479 = vector.broadcast %cst_212 : f32 to vector<8x512xf32>
    %480 = arith.mulf %479, %478 : vector<8x512xf32>
    %481 = math.tanh %480 : vector<8x512xf32>
    %cst_213 = arith.constant 1.000000e+00 : f32
    %482 = vector.broadcast %cst_213 : f32 to vector<8x512xf32>
    %483 = arith.addf %482, %481 : vector<8x512xf32>
    %cst_214 = arith.constant 5.000000e-01 : f32
    %484 = vector.broadcast %cst_214 : f32 to vector<8x512xf32>
    %485 = arith.mulf %484, %483 : vector<8x512xf32>
    %486 = arith.mulf %473, %485 : vector<8x512xf32>
    %c2_215 = arith.constant 2 : index
    %c0_216 = arith.constant 0 : index
    %c0_217 = arith.constant 0 : index
    %487 = vector.load %arg20[%c2_215, %c0_216, %c0_217] : memref<6x512x128xbf16, #tpu.memory_space<vmem>>, vector<1x512x128xbf16>
    %488 = vector.shape_cast %487 : vector<1x512x128xbf16> to vector<512x128xbf16>
    %489 = arith.truncf %486 : vector<8x512xf32> to vector<8x512xbf16>
    %cst_218 = arith.constant dense<0.000000e+00> : vector<8x128xf32>
    %490 = tpu.matmul %489, %488, %cst_218 {dimension_numbers = #tpu.dot_dimension_numbers<[1], [0], [0], [1], [0, 0, 1, 1], [], []>} : vector<8x512xbf16>, vector<512x128xbf16>, vector<8x128xf32> -> vector<8x128xf32>
    %c2_219 = arith.constant 2 : index
    %c0_220 = arith.constant 0 : index
    %c0_221 = arith.constant 0 : index
    %491 = vector.load %arg21[%c2_219, %c0_220, %c0_221] : memref<6x1x128xf32, #tpu.memory_space<vmem>>, vector<1x1x128xf32>
    %492 = vector.shape_cast %491 : vector<1x1x128xf32> to vector<1x128xf32>
    %493 = vector.broadcast %492 : vector<1x128xf32> to vector<8x128xf32>
    %494 = arith.addf %490, %493 : vector<8x128xf32>
    %495 = arith.mulf %494, %494 : vector<8x128xf32>
    %496 = arith.mulf %494, %495 : vector<8x128xf32>
    %cst_222 = arith.constant 4.471500e-02 : f32
    %497 = vector.broadcast %cst_222 : f32 to vector<8x128xf32>
    %498 = arith.mulf %497, %496 : vector<8x128xf32>
    %499 = arith.addf %494, %498 : vector<8x128xf32>
    %cst_223 = arith.constant 0.797884583 : f32
    %500 = vector.broadcast %cst_223 : f32 to vector<8x128xf32>
    %501 = arith.mulf %500, %499 : vector<8x128xf32>
    %502 = math.tanh %501 : vector<8x128xf32>
    %cst_224 = arith.constant 1.000000e+00 : f32
    %503 = vector.broadcast %cst_224 : f32 to vector<8x128xf32>
    %504 = arith.addf %503, %502 : vector<8x128xf32>
    %cst_225 = arith.constant 5.000000e-01 : f32
    %505 = vector.broadcast %cst_225 : f32 to vector<8x128xf32>
    %506 = arith.mulf %505, %504 : vector<8x128xf32>
    %507 = arith.mulf %494, %506 : vector<8x128xf32>
    %508 = arith.addf %507, %439 : vector<8x128xf32>
    %c3 = arith.constant 3 : index
    %c0_226 = arith.constant 0 : index
    %c0_227 = arith.constant 0 : index
    %509 = vector.load %arg10[%c3, %c0_226, %c0_227] : memref<6x1x128xf32, #tpu.memory_space<vmem>>, vector<1x1x128xf32>
    %510 = vector.shape_cast %509 : vector<1x1x128xf32> to vector<1x128xf32>
    %c3_228 = arith.constant 3 : index
    %c0_229 = arith.constant 0 : index
    %c0_230 = arith.constant 0 : index
    %511 = vector.load %arg11[%c3_228, %c0_229, %c0_230] : memref<6x1x128xf32, #tpu.memory_space<vmem>>, vector<1x1x128xf32>
    %512 = vector.shape_cast %511 : vector<1x1x128xf32> to vector<1x128xf32>
    %cst_231 = arith.constant dense<0.000000e+00> : vector<8xf32>
    %513 = vector.multi_reduction <add>, %508, %cst_231 [1] : vector<8x128xf32> to vector<8xf32>
    %514 = vector.shape_cast %513 : vector<8xf32> to vector<8x1xf32>
    %cst_232 = arith.constant 1.280000e+02 : f32
    %515 = vector.broadcast %cst_232 : f32 to vector<8x1xf32>
    %516 = arith.divf %514, %515 : vector<8x1xf32>
    %517 = vector.broadcast %516 : vector<8x1xf32> to vector<8x128xf32>
    %518 = arith.subf %508, %517 : vector<8x128xf32>
    %519 = arith.mulf %518, %518 : vector<8x128xf32>
    %cst_233 = arith.constant dense<0.000000e+00> : vector<8xf32>
    %520 = vector.multi_reduction <add>, %519, %cst_233 [1] : vector<8x128xf32> to vector<8xf32>
    %521 = vector.shape_cast %520 : vector<8xf32> to vector<8x1xf32>
    %cst_234 = arith.constant 1.280000e+02 : f32
    %522 = vector.broadcast %cst_234 : f32 to vector<8x1xf32>
    %523 = arith.divf %521, %522 : vector<8x1xf32>
    %524 = vector.broadcast %516 : vector<8x1xf32> to vector<8x128xf32>
    %525 = arith.subf %508, %524 : vector<8x128xf32>
    %cst_235 = arith.constant 9.99999997E-7 : f32
    %526 = vector.broadcast %cst_235 : f32 to vector<8x1xf32>
    %527 = arith.addf %523, %526 : vector<8x1xf32>
    %528 = math.rsqrt %527 : vector<8x1xf32>
    %529 = vector.broadcast %528 : vector<8x1xf32> to vector<8x128xf32>
    %530 = arith.mulf %525, %529 : vector<8x128xf32>
    %531 = vector.broadcast %510 : vector<1x128xf32> to vector<8x128xf32>
    %532 = arith.mulf %530, %531 : vector<8x128xf32>
    %533 = vector.broadcast %512 : vector<1x128xf32> to vector<8x128xf32>
    %534 = arith.addf %532, %533 : vector<8x128xf32>
    %c3_236 = arith.constant 3 : index
    %c0_237 = arith.constant 0 : index
    %c0_238 = arith.constant 0 : index
    %535 = vector.load %arg12[%c3_236, %c0_237, %c0_238] : memref<6x128x384xbf16, #tpu.memory_space<vmem>>, vector<1x128x384xbf16>
    %536 = vector.shape_cast %535 : vector<1x128x384xbf16> to vector<128x384xbf16>
    %537 = arith.truncf %534 : vector<8x128xf32> to vector<8x128xbf16>
    %cst_239 = arith.constant dense<0.000000e+00> : vector<8x384xf32>
    %538 = tpu.matmul %537, %536, %cst_239 {dimension_numbers = #tpu.dot_dimension_numbers<[1], [0], [0], [1], [0, 0, 1, 1], [], []>} : vector<8x128xbf16>, vector<128x384xbf16>, vector<8x384xf32> -> vector<8x384xf32>
    %c3_240 = arith.constant 3 : index
    %c0_241 = arith.constant 0 : index
    %c0_242 = arith.constant 0 : index
    %539 = vector.load %arg13[%c3_240, %c0_241, %c0_242] : memref<6x1x384xf32, #tpu.memory_space<vmem>>, vector<1x1x384xf32>
    %540 = vector.shape_cast %539 : vector<1x1x384xf32> to vector<1x384xf32>
    %541 = vector.broadcast %540 : vector<1x384xf32> to vector<8x384xf32>
    %542 = arith.addf %538, %541 : vector<8x384xf32>
    %543 = vector.extract_strided_slice %542 {offsets = [0, 0], sizes = [8, 64], strides = [1, 1]} : vector<8x384xf32> to vector<8x64xf32>
    %544 = vector.extract_strided_slice %542 {offsets = [0, 128], sizes = [8, 64], strides = [1, 1]} : vector<8x384xf32> to vector<8x64xf32>
    %545 = vector.extract_strided_slice %542 {offsets = [0, 256], sizes = [8, 64], strides = [1, 1]} : vector<8x384xf32> to vector<8x64xf32>
    %546 = arith.truncf %543 : vector<8x64xf32> to vector<8x64xbf16>
    %547 = arith.truncf %544 : vector<8x64xf32> to vector<8x64xbf16>
    %cst_243 = arith.constant dense<0.000000e+00> : vector<8x8xf32>
    %548 = tpu.matmul %546, %547, %cst_243 {dimension_numbers = #tpu.dot_dimension_numbers<[1], [1], [0], [0], [0, 0, 1, 0], [], []>} : vector<8x64xbf16>, vector<8x64xbf16>, vector<8x8xf32> -> vector<8x8xf32>
    %cst_244 = arith.constant 1.250000e-01 : f32
    %549 = vector.broadcast %cst_244 : f32 to vector<8x8xf32>
    %550 = arith.mulf %548, %549 : vector<8x8xf32>
    %551 = vector.broadcast %7 : vector<1x8xf32> to vector<8x8xf32>
    %552 = arith.addf %550, %551 : vector<8x8xf32>
    %cst_245 = arith.constant dense<0xFF800000> : vector<8xf32>
    %553 = vector.multi_reduction <maximumf>, %552, %cst_245 [1] : vector<8x8xf32> to vector<8xf32>
    %554 = vector.shape_cast %553 : vector<8xf32> to vector<8x1xf32>
    %555 = vector.broadcast %554 : vector<8x1xf32> to vector<8x8xf32>
    %556 = arith.subf %552, %555 : vector<8x8xf32>
    %557 = math.exp %556 : vector<8x8xf32>
    %cst_246 = arith.constant dense<0.000000e+00> : vector<8xf32>
    %558 = vector.multi_reduction <add>, %557, %cst_246 [1] : vector<8x8xf32> to vector<8xf32>
    %559 = vector.shape_cast %558 : vector<8xf32> to vector<8x1xf32>
    %560 = tpu.reciprocal %559 {approx = true} : vector<8x1xf32> -> vector<8x1xf32>
    %561 = vector.broadcast %560 : vector<8x1xf32> to vector<8x8xf32>
    %562 = arith.mulf %557, %561 : vector<8x8xf32>
    %563 = arith.truncf %545 : vector<8x64xf32> to vector<8x64xbf16>
    %564 = arith.truncf %562 : vector<8x8xf32> to vector<8x8xbf16>
    %cst_247 = arith.constant dense<0.000000e+00> : vector<8x64xf32>
    %565 = tpu.matmul %564, %563, %cst_247 {dimension_numbers = #tpu.dot_dimension_numbers<[1], [0], [0], [1], [0, 0, 1, 1], [], []>} : vector<8x8xbf16>, vector<8x64xbf16>, vector<8x64xf32> -> vector<8x64xf32>
    %566 = vector.extract_strided_slice %542 {offsets = [0, 64], sizes = [8, 64], strides = [1, 1]} : vector<8x384xf32> to vector<8x64xf32>
    %567 = vector.extract_strided_slice %542 {offsets = [0, 192], sizes = [8, 64], strides = [1, 1]} : vector<8x384xf32> to vector<8x64xf32>
    %568 = vector.extract_strided_slice %542 {offsets = [0, 320], sizes = [8, 64], strides = [1, 1]} : vector<8x384xf32> to vector<8x64xf32>
    %569 = arith.truncf %566 : vector<8x64xf32> to vector<8x64xbf16>
    %570 = arith.truncf %567 : vector<8x64xf32> to vector<8x64xbf16>
    %cst_248 = arith.constant dense<0.000000e+00> : vector<8x8xf32>
    %571 = tpu.matmul %569, %570, %cst_248 {dimension_numbers = #tpu.dot_dimension_numbers<[1], [1], [0], [0], [0, 0, 1, 0], [], []>} : vector<8x64xbf16>, vector<8x64xbf16>, vector<8x8xf32> -> vector<8x8xf32>
    %cst_249 = arith.constant 1.250000e-01 : f32
    %572 = vector.broadcast %cst_249 : f32 to vector<8x8xf32>
    %573 = arith.mulf %571, %572 : vector<8x8xf32>
    %574 = vector.broadcast %7 : vector<1x8xf32> to vector<8x8xf32>
    %575 = arith.addf %573, %574 : vector<8x8xf32>
    %cst_250 = arith.constant dense<0xFF800000> : vector<8xf32>
    %576 = vector.multi_reduction <maximumf>, %575, %cst_250 [1] : vector<8x8xf32> to vector<8xf32>
    %577 = vector.shape_cast %576 : vector<8xf32> to vector<8x1xf32>
    %578 = vector.broadcast %577 : vector<8x1xf32> to vector<8x8xf32>
    %579 = arith.subf %575, %578 : vector<8x8xf32>
    %580 = math.exp %579 : vector<8x8xf32>
    %cst_251 = arith.constant dense<0.000000e+00> : vector<8xf32>
    %581 = vector.multi_reduction <add>, %580, %cst_251 [1] : vector<8x8xf32> to vector<8xf32>
    %582 = vector.shape_cast %581 : vector<8xf32> to vector<8x1xf32>
    %583 = tpu.reciprocal %582 {approx = true} : vector<8x1xf32> -> vector<8x1xf32>
    %584 = vector.broadcast %583 : vector<8x1xf32> to vector<8x8xf32>
    %585 = arith.mulf %580, %584 : vector<8x8xf32>
    %586 = arith.truncf %568 : vector<8x64xf32> to vector<8x64xbf16>
    %587 = arith.truncf %585 : vector<8x8xf32> to vector<8x8xbf16>
    %cst_252 = arith.constant dense<0.000000e+00> : vector<8x64xf32>
    %588 = tpu.matmul %587, %586, %cst_252 {dimension_numbers = #tpu.dot_dimension_numbers<[1], [0], [0], [1], [0, 0, 1, 1], [], []>} : vector<8x8xbf16>, vector<8x64xbf16>, vector<8x64xf32> -> vector<8x64xf32>
    %589 = tpu.concatenate %565, %588 in 1 : vector<8x64xf32>, vector<8x64xf32> -> vector<8x128xf32>
    %c3_253 = arith.constant 3 : index
    %c0_254 = arith.constant 0 : index
    %c0_255 = arith.constant 0 : index
    %590 = vector.load %arg14[%c3_253, %c0_254, %c0_255] : memref<6x128x128xbf16, #tpu.memory_space<vmem>>, vector<1x128x128xbf16>
    %591 = vector.shape_cast %590 : vector<1x128x128xbf16> to vector<128x128xbf16>
    %592 = arith.truncf %589 : vector<8x128xf32> to vector<8x128xbf16>
    %cst_256 = arith.constant dense<0.000000e+00> : vector<8x128xf32>
    %593 = tpu.matmul %592, %591, %cst_256 {dimension_numbers = #tpu.dot_dimension_numbers<[1], [0], [0], [1], [0, 0, 1, 1], [], []>} : vector<8x128xbf16>, vector<128x128xbf16>, vector<8x128xf32> -> vector<8x128xf32>
    %c3_257 = arith.constant 3 : index
    %c0_258 = arith.constant 0 : index
    %c0_259 = arith.constant 0 : index
    %594 = vector.load %arg15[%c3_257, %c0_258, %c0_259] : memref<6x1x128xf32, #tpu.memory_space<vmem>>, vector<1x1x128xf32>
    %595 = vector.shape_cast %594 : vector<1x1x128xf32> to vector<1x128xf32>
    %596 = vector.broadcast %595 : vector<1x128xf32> to vector<8x128xf32>
    %597 = arith.addf %593, %596 : vector<8x128xf32>
    %598 = arith.addf %597, %508 : vector<8x128xf32>
    %c3_260 = arith.constant 3 : index
    %c0_261 = arith.constant 0 : index
    %c0_262 = arith.constant 0 : index
    %599 = vector.load %arg16[%c3_260, %c0_261, %c0_262] : memref<6x1x128xf32, #tpu.memory_space<vmem>>, vector<1x1x128xf32>
    %600 = vector.shape_cast %599 : vector<1x1x128xf32> to vector<1x128xf32>
    %c3_263 = arith.constant 3 : index
    %c0_264 = arith.constant 0 : index
    %c0_265 = arith.constant 0 : index
    %601 = vector.load %arg17[%c3_263, %c0_264, %c0_265] : memref<6x1x128xf32, #tpu.memory_space<vmem>>, vector<1x1x128xf32>
    %602 = vector.shape_cast %601 : vector<1x1x128xf32> to vector<1x128xf32>
    %cst_266 = arith.constant dense<0.000000e+00> : vector<8xf32>
    %603 = vector.multi_reduction <add>, %598, %cst_266 [1] : vector<8x128xf32> to vector<8xf32>
    %604 = vector.shape_cast %603 : vector<8xf32> to vector<8x1xf32>
    %cst_267 = arith.constant 1.280000e+02 : f32
    %605 = vector.broadcast %cst_267 : f32 to vector<8x1xf32>
    %606 = arith.divf %604, %605 : vector<8x1xf32>
    %607 = vector.broadcast %606 : vector<8x1xf32> to vector<8x128xf32>
    %608 = arith.subf %598, %607 : vector<8x128xf32>
    %609 = arith.mulf %608, %608 : vector<8x128xf32>
    %cst_268 = arith.constant dense<0.000000e+00> : vector<8xf32>
    %610 = vector.multi_reduction <add>, %609, %cst_268 [1] : vector<8x128xf32> to vector<8xf32>
    %611 = vector.shape_cast %610 : vector<8xf32> to vector<8x1xf32>
    %cst_269 = arith.constant 1.280000e+02 : f32
    %612 = vector.broadcast %cst_269 : f32 to vector<8x1xf32>
    %613 = arith.divf %611, %612 : vector<8x1xf32>
    %614 = vector.broadcast %606 : vector<8x1xf32> to vector<8x128xf32>
    %615 = arith.subf %598, %614 : vector<8x128xf32>
    %cst_270 = arith.constant 9.99999997E-7 : f32
    %616 = vector.broadcast %cst_270 : f32 to vector<8x1xf32>
    %617 = arith.addf %613, %616 : vector<8x1xf32>
    %618 = math.rsqrt %617 : vector<8x1xf32>
    %619 = vector.broadcast %618 : vector<8x1xf32> to vector<8x128xf32>
    %620 = arith.mulf %615, %619 : vector<8x128xf32>
    %621 = vector.broadcast %600 : vector<1x128xf32> to vector<8x128xf32>
    %622 = arith.mulf %620, %621 : vector<8x128xf32>
    %623 = vector.broadcast %602 : vector<1x128xf32> to vector<8x128xf32>
    %624 = arith.addf %622, %623 : vector<8x128xf32>
    %c3_271 = arith.constant 3 : index
    %c0_272 = arith.constant 0 : index
    %c0_273 = arith.constant 0 : index
    %625 = vector.load %arg18[%c3_271, %c0_272, %c0_273] : memref<6x128x512xbf16, #tpu.memory_space<vmem>>, vector<1x128x512xbf16>
    %626 = vector.shape_cast %625 : vector<1x128x512xbf16> to vector<128x512xbf16>
    %627 = arith.truncf %624 : vector<8x128xf32> to vector<8x128xbf16>
    %cst_274 = arith.constant dense<0.000000e+00> : vector<8x512xf32>
    %628 = tpu.matmul %627, %626, %cst_274 {dimension_numbers = #tpu.dot_dimension_numbers<[1], [0], [0], [1], [0, 0, 1, 1], [], []>} : vector<8x128xbf16>, vector<128x512xbf16>, vector<8x512xf32> -> vector<8x512xf32>
    %c3_275 = arith.constant 3 : index
    %c0_276 = arith.constant 0 : index
    %c0_277 = arith.constant 0 : index
    %629 = vector.load %arg19[%c3_275, %c0_276, %c0_277] : memref<6x1x512xf32, #tpu.memory_space<vmem>>, vector<1x1x512xf32>
    %630 = vector.shape_cast %629 : vector<1x1x512xf32> to vector<1x512xf32>
    %631 = vector.broadcast %630 : vector<1x512xf32> to vector<8x512xf32>
    %632 = arith.addf %628, %631 : vector<8x512xf32>
    %633 = arith.mulf %632, %632 : vector<8x512xf32>
    %634 = arith.mulf %632, %633 : vector<8x512xf32>
    %cst_278 = arith.constant 4.471500e-02 : f32
    %635 = vector.broadcast %cst_278 : f32 to vector<8x512xf32>
    %636 = arith.mulf %635, %634 : vector<8x512xf32>
    %637 = arith.addf %632, %636 : vector<8x512xf32>
    %cst_279 = arith.constant 0.797884583 : f32
    %638 = vector.broadcast %cst_279 : f32 to vector<8x512xf32>
    %639 = arith.mulf %638, %637 : vector<8x512xf32>
    %640 = math.tanh %639 : vector<8x512xf32>
    %cst_280 = arith.constant 1.000000e+00 : f32
    %641 = vector.broadcast %cst_280 : f32 to vector<8x512xf32>
    %642 = arith.addf %641, %640 : vector<8x512xf32>
    %cst_281 = arith.constant 5.000000e-01 : f32
    %643 = vector.broadcast %cst_281 : f32 to vector<8x512xf32>
    %644 = arith.mulf %643, %642 : vector<8x512xf32>
    %645 = arith.mulf %632, %644 : vector<8x512xf32>
    %c3_282 = arith.constant 3 : index
    %c0_283 = arith.constant 0 : index
    %c0_284 = arith.constant 0 : index
    %646 = vector.load %arg20[%c3_282, %c0_283, %c0_284] : memref<6x512x128xbf16, #tpu.memory_space<vmem>>, vector<1x512x128xbf16>
    %647 = vector.shape_cast %646 : vector<1x512x128xbf16> to vector<512x128xbf16>
    %648 = arith.truncf %645 : vector<8x512xf32> to vector<8x512xbf16>
    %cst_285 = arith.constant dense<0.000000e+00> : vector<8x128xf32>
    %649 = tpu.matmul %648, %647, %cst_285 {dimension_numbers = #tpu.dot_dimension_numbers<[1], [0], [0], [1], [0, 0, 1, 1], [], []>} : vector<8x512xbf16>, vector<512x128xbf16>, vector<8x128xf32> -> vector<8x128xf32>
    %c3_286 = arith.constant 3 : index
    %c0_287 = arith.constant 0 : index
    %c0_288 = arith.constant 0 : index
    %650 = vector.load %arg21[%c3_286, %c0_287, %c0_288] : memref<6x1x128xf32, #tpu.memory_space<vmem>>, vector<1x1x128xf32>
    %651 = vector.shape_cast %650 : vector<1x1x128xf32> to vector<1x128xf32>
    %652 = vector.broadcast %651 : vector<1x128xf32> to vector<8x128xf32>
    %653 = arith.addf %649, %652 : vector<8x128xf32>
    %654 = arith.mulf %653, %653 : vector<8x128xf32>
    %655 = arith.mulf %653, %654 : vector<8x128xf32>
    %cst_289 = arith.constant 4.471500e-02 : f32
    %656 = vector.broadcast %cst_289 : f32 to vector<8x128xf32>
    %657 = arith.mulf %656, %655 : vector<8x128xf32>
    %658 = arith.addf %653, %657 : vector<8x128xf32>
    %cst_290 = arith.constant 0.797884583 : f32
    %659 = vector.broadcast %cst_290 : f32 to vector<8x128xf32>
    %660 = arith.mulf %659, %658 : vector<8x128xf32>
    %661 = math.tanh %660 : vector<8x128xf32>
    %cst_291 = arith.constant 1.000000e+00 : f32
    %662 = vector.broadcast %cst_291 : f32 to vector<8x128xf32>
    %663 = arith.addf %662, %661 : vector<8x128xf32>
    %cst_292 = arith.constant 5.000000e-01 : f32
    %664 = vector.broadcast %cst_292 : f32 to vector<8x128xf32>
    %665 = arith.mulf %664, %663 : vector<8x128xf32>
    %666 = arith.mulf %653, %665 : vector<8x128xf32>
    %667 = arith.addf %666, %598 : vector<8x128xf32>
    %c4 = arith.constant 4 : index
    %c0_293 = arith.constant 0 : index
    %c0_294 = arith.constant 0 : index
    %668 = vector.load %arg10[%c4, %c0_293, %c0_294] : memref<6x1x128xf32, #tpu.memory_space<vmem>>, vector<1x1x128xf32>
    %669 = vector.shape_cast %668 : vector<1x1x128xf32> to vector<1x128xf32>
    %c4_295 = arith.constant 4 : index
    %c0_296 = arith.constant 0 : index
    %c0_297 = arith.constant 0 : index
    %670 = vector.load %arg11[%c4_295, %c0_296, %c0_297] : memref<6x1x128xf32, #tpu.memory_space<vmem>>, vector<1x1x128xf32>
    %671 = vector.shape_cast %670 : vector<1x1x128xf32> to vector<1x128xf32>
    %cst_298 = arith.constant dense<0.000000e+00> : vector<8xf32>
    %672 = vector.multi_reduction <add>, %667, %cst_298 [1] : vector<8x128xf32> to vector<8xf32>
    %673 = vector.shape_cast %672 : vector<8xf32> to vector<8x1xf32>
    %cst_299 = arith.constant 1.280000e+02 : f32
    %674 = vector.broadcast %cst_299 : f32 to vector<8x1xf32>
    %675 = arith.divf %673, %674 : vector<8x1xf32>
    %676 = vector.broadcast %675 : vector<8x1xf32> to vector<8x128xf32>
    %677 = arith.subf %667, %676 : vector<8x128xf32>
    %678 = arith.mulf %677, %677 : vector<8x128xf32>
    %cst_300 = arith.constant dense<0.000000e+00> : vector<8xf32>
    %679 = vector.multi_reduction <add>, %678, %cst_300 [1] : vector<8x128xf32> to vector<8xf32>
    %680 = vector.shape_cast %679 : vector<8xf32> to vector<8x1xf32>
    %cst_301 = arith.constant 1.280000e+02 : f32
    %681 = vector.broadcast %cst_301 : f32 to vector<8x1xf32>
    %682 = arith.divf %680, %681 : vector<8x1xf32>
    %683 = vector.broadcast %675 : vector<8x1xf32> to vector<8x128xf32>
    %684 = arith.subf %667, %683 : vector<8x128xf32>
    %cst_302 = arith.constant 9.99999997E-7 : f32
    %685 = vector.broadcast %cst_302 : f32 to vector<8x1xf32>
    %686 = arith.addf %682, %685 : vector<8x1xf32>
    %687 = math.rsqrt %686 : vector<8x1xf32>
    %688 = vector.broadcast %687 : vector<8x1xf32> to vector<8x128xf32>
    %689 = arith.mulf %684, %688 : vector<8x128xf32>
    %690 = vector.broadcast %669 : vector<1x128xf32> to vector<8x128xf32>
    %691 = arith.mulf %689, %690 : vector<8x128xf32>
    %692 = vector.broadcast %671 : vector<1x128xf32> to vector<8x128xf32>
    %693 = arith.addf %691, %692 : vector<8x128xf32>
    %c4_303 = arith.constant 4 : index
    %c0_304 = arith.constant 0 : index
    %c0_305 = arith.constant 0 : index
    %694 = vector.load %arg12[%c4_303, %c0_304, %c0_305] : memref<6x128x384xbf16, #tpu.memory_space<vmem>>, vector<1x128x384xbf16>
    %695 = vector.shape_cast %694 : vector<1x128x384xbf16> to vector<128x384xbf16>
    %696 = arith.truncf %693 : vector<8x128xf32> to vector<8x128xbf16>
    %cst_306 = arith.constant dense<0.000000e+00> : vector<8x384xf32>
    %697 = tpu.matmul %696, %695, %cst_306 {dimension_numbers = #tpu.dot_dimension_numbers<[1], [0], [0], [1], [0, 0, 1, 1], [], []>} : vector<8x128xbf16>, vector<128x384xbf16>, vector<8x384xf32> -> vector<8x384xf32>
    %c4_307 = arith.constant 4 : index
    %c0_308 = arith.constant 0 : index
    %c0_309 = arith.constant 0 : index
    %698 = vector.load %arg13[%c4_307, %c0_308, %c0_309] : memref<6x1x384xf32, #tpu.memory_space<vmem>>, vector<1x1x384xf32>
    %699 = vector.shape_cast %698 : vector<1x1x384xf32> to vector<1x384xf32>
    %700 = vector.broadcast %699 : vector<1x384xf32> to vector<8x384xf32>
    %701 = arith.addf %697, %700 : vector<8x384xf32>
    %702 = vector.extract_strided_slice %701 {offsets = [0, 0], sizes = [8, 64], strides = [1, 1]} : vector<8x384xf32> to vector<8x64xf32>
    %703 = vector.extract_strided_slice %701 {offsets = [0, 128], sizes = [8, 64], strides = [1, 1]} : vector<8x384xf32> to vector<8x64xf32>
    %704 = vector.extract_strided_slice %701 {offsets = [0, 256], sizes = [8, 64], strides = [1, 1]} : vector<8x384xf32> to vector<8x64xf32>
    %705 = arith.truncf %702 : vector<8x64xf32> to vector<8x64xbf16>
    %706 = arith.truncf %703 : vector<8x64xf32> to vector<8x64xbf16>
    %cst_310 = arith.constant dense<0.000000e+00> : vector<8x8xf32>
    %707 = tpu.matmul %705, %706, %cst_310 {dimension_numbers = #tpu.dot_dimension_numbers<[1], [1], [0], [0], [0, 0, 1, 0], [], []>} : vector<8x64xbf16>, vector<8x64xbf16>, vector<8x8xf32> -> vector<8x8xf32>
    %cst_311 = arith.constant 1.250000e-01 : f32
    %708 = vector.broadcast %cst_311 : f32 to vector<8x8xf32>
    %709 = arith.mulf %707, %708 : vector<8x8xf32>
    %710 = vector.broadcast %7 : vector<1x8xf32> to vector<8x8xf32>
    %711 = arith.addf %709, %710 : vector<8x8xf32>
    %cst_312 = arith.constant dense<0xFF800000> : vector<8xf32>
    %712 = vector.multi_reduction <maximumf>, %711, %cst_312 [1] : vector<8x8xf32> to vector<8xf32>
    %713 = vector.shape_cast %712 : vector<8xf32> to vector<8x1xf32>
    %714 = vector.broadcast %713 : vector<8x1xf32> to vector<8x8xf32>
    %715 = arith.subf %711, %714 : vector<8x8xf32>
    %716 = math.exp %715 : vector<8x8xf32>
    %cst_313 = arith.constant dense<0.000000e+00> : vector<8xf32>
    %717 = vector.multi_reduction <add>, %716, %cst_313 [1] : vector<8x8xf32> to vector<8xf32>
    %718 = vector.shape_cast %717 : vector<8xf32> to vector<8x1xf32>
    %719 = tpu.reciprocal %718 {approx = true} : vector<8x1xf32> -> vector<8x1xf32>
    %720 = vector.broadcast %719 : vector<8x1xf32> to vector<8x8xf32>
    %721 = arith.mulf %716, %720 : vector<8x8xf32>
    %722 = arith.truncf %704 : vector<8x64xf32> to vector<8x64xbf16>
    %723 = arith.truncf %721 : vector<8x8xf32> to vector<8x8xbf16>
    %cst_314 = arith.constant dense<0.000000e+00> : vector<8x64xf32>
    %724 = tpu.matmul %723, %722, %cst_314 {dimension_numbers = #tpu.dot_dimension_numbers<[1], [0], [0], [1], [0, 0, 1, 1], [], []>} : vector<8x8xbf16>, vector<8x64xbf16>, vector<8x64xf32> -> vector<8x64xf32>
    %725 = vector.extract_strided_slice %701 {offsets = [0, 64], sizes = [8, 64], strides = [1, 1]} : vector<8x384xf32> to vector<8x64xf32>
    %726 = vector.extract_strided_slice %701 {offsets = [0, 192], sizes = [8, 64], strides = [1, 1]} : vector<8x384xf32> to vector<8x64xf32>
    %727 = vector.extract_strided_slice %701 {offsets = [0, 320], sizes = [8, 64], strides = [1, 1]} : vector<8x384xf32> to vector<8x64xf32>
    %728 = arith.truncf %725 : vector<8x64xf32> to vector<8x64xbf16>
    %729 = arith.truncf %726 : vector<8x64xf32> to vector<8x64xbf16>
    %cst_315 = arith.constant dense<0.000000e+00> : vector<8x8xf32>
    %730 = tpu.matmul %728, %729, %cst_315 {dimension_numbers = #tpu.dot_dimension_numbers<[1], [1], [0], [0], [0, 0, 1, 0], [], []>} : vector<8x64xbf16>, vector<8x64xbf16>, vector<8x8xf32> -> vector<8x8xf32>
    %cst_316 = arith.constant 1.250000e-01 : f32
    %731 = vector.broadcast %cst_316 : f32 to vector<8x8xf32>
    %732 = arith.mulf %730, %731 : vector<8x8xf32>
    %733 = vector.broadcast %7 : vector<1x8xf32> to vector<8x8xf32>
    %734 = arith.addf %732, %733 : vector<8x8xf32>
    %cst_317 = arith.constant dense<0xFF800000> : vector<8xf32>
    %735 = vector.multi_reduction <maximumf>, %734, %cst_317 [1] : vector<8x8xf32> to vector<8xf32>
    %736 = vector.shape_cast %735 : vector<8xf32> to vector<8x1xf32>
    %737 = vector.broadcast %736 : vector<8x1xf32> to vector<8x8xf32>
    %738 = arith.subf %734, %737 : vector<8x8xf32>
    %739 = math.exp %738 : vector<8x8xf32>
    %cst_318 = arith.constant dense<0.000000e+00> : vector<8xf32>
    %740 = vector.multi_reduction <add>, %739, %cst_318 [1] : vector<8x8xf32> to vector<8xf32>
    %741 = vector.shape_cast %740 : vector<8xf32> to vector<8x1xf32>
    %742 = tpu.reciprocal %741 {approx = true} : vector<8x1xf32> -> vector<8x1xf32>
    %743 = vector.broadcast %742 : vector<8x1xf32> to vector<8x8xf32>
    %744 = arith.mulf %739, %743 : vector<8x8xf32>
    %745 = arith.truncf %727 : vector<8x64xf32> to vector<8x64xbf16>
    %746 = arith.truncf %744 : vector<8x8xf32> to vector<8x8xbf16>
    %cst_319 = arith.constant dense<0.000000e+00> : vector<8x64xf32>
    %747 = tpu.matmul %746, %745, %cst_319 {dimension_numbers = #tpu.dot_dimension_numbers<[1], [0], [0], [1], [0, 0, 1, 1], [], []>} : vector<8x8xbf16>, vector<8x64xbf16>, vector<8x64xf32> -> vector<8x64xf32>
    %748 = tpu.concatenate %724, %747 in 1 : vector<8x64xf32>, vector<8x64xf32> -> vector<8x128xf32>
    %c4_320 = arith.constant 4 : index
    %c0_321 = arith.constant 0 : index
    %c0_322 = arith.constant 0 : index
    %749 = vector.load %arg14[%c4_320, %c0_321, %c0_322] : memref<6x128x128xbf16, #tpu.memory_space<vmem>>, vector<1x128x128xbf16>
    %750 = vector.shape_cast %749 : vector<1x128x128xbf16> to vector<128x128xbf16>
    %751 = arith.truncf %748 : vector<8x128xf32> to vector<8x128xbf16>
    %cst_323 = arith.constant dense<0.000000e+00> : vector<8x128xf32>
    %752 = tpu.matmul %751, %750, %cst_323 {dimension_numbers = #tpu.dot_dimension_numbers<[1], [0], [0], [1], [0, 0, 1, 1], [], []>} : vector<8x128xbf16>, vector<128x128xbf16>, vector<8x128xf32> -> vector<8x128xf32>
    %c4_324 = arith.constant 4 : index
    %c0_325 = arith.constant 0 : index
    %c0_326 = arith.constant 0 : index
    %753 = vector.load %arg15[%c4_324, %c0_325, %c0_326] : memref<6x1x128xf32, #tpu.memory_space<vmem>>, vector<1x1x128xf32>
    %754 = vector.shape_cast %753 : vector<1x1x128xf32> to vector<1x128xf32>
    %755 = vector.broadcast %754 : vector<1x128xf32> to vector<8x128xf32>
    %756 = arith.addf %752, %755 : vector<8x128xf32>
    %757 = arith.addf %756, %667 : vector<8x128xf32>
    %c4_327 = arith.constant 4 : index
    %c0_328 = arith.constant 0 : index
    %c0_329 = arith.constant 0 : index
    %758 = vector.load %arg16[%c4_327, %c0_328, %c0_329] : memref<6x1x128xf32, #tpu.memory_space<vmem>>, vector<1x1x128xf32>
    %759 = vector.shape_cast %758 : vector<1x1x128xf32> to vector<1x128xf32>
    %c4_330 = arith.constant 4 : index
    %c0_331 = arith.constant 0 : index
    %c0_332 = arith.constant 0 : index
    %760 = vector.load %arg17[%c4_330, %c0_331, %c0_332] : memref<6x1x128xf32, #tpu.memory_space<vmem>>, vector<1x1x128xf32>
    %761 = vector.shape_cast %760 : vector<1x1x128xf32> to vector<1x128xf32>
    %cst_333 = arith.constant dense<0.000000e+00> : vector<8xf32>
    %762 = vector.multi_reduction <add>, %757, %cst_333 [1] : vector<8x128xf32> to vector<8xf32>
    %763 = vector.shape_cast %762 : vector<8xf32> to vector<8x1xf32>
    %cst_334 = arith.constant 1.280000e+02 : f32
    %764 = vector.broadcast %cst_334 : f32 to vector<8x1xf32>
    %765 = arith.divf %763, %764 : vector<8x1xf32>
    %766 = vector.broadcast %765 : vector<8x1xf32> to vector<8x128xf32>
    %767 = arith.subf %757, %766 : vector<8x128xf32>
    %768 = arith.mulf %767, %767 : vector<8x128xf32>
    %cst_335 = arith.constant dense<0.000000e+00> : vector<8xf32>
    %769 = vector.multi_reduction <add>, %768, %cst_335 [1] : vector<8x128xf32> to vector<8xf32>
    %770 = vector.shape_cast %769 : vector<8xf32> to vector<8x1xf32>
    %cst_336 = arith.constant 1.280000e+02 : f32
    %771 = vector.broadcast %cst_336 : f32 to vector<8x1xf32>
    %772 = arith.divf %770, %771 : vector<8x1xf32>
    %773 = vector.broadcast %765 : vector<8x1xf32> to vector<8x128xf32>
    %774 = arith.subf %757, %773 : vector<8x128xf32>
    %cst_337 = arith.constant 9.99999997E-7 : f32
    %775 = vector.broadcast %cst_337 : f32 to vector<8x1xf32>
    %776 = arith.addf %772, %775 : vector<8x1xf32>
    %777 = math.rsqrt %776 : vector<8x1xf32>
    %778 = vector.broadcast %777 : vector<8x1xf32> to vector<8x128xf32>
    %779 = arith.mulf %774, %778 : vector<8x128xf32>
    %780 = vector.broadcast %759 : vector<1x128xf32> to vector<8x128xf32>
    %781 = arith.mulf %779, %780 : vector<8x128xf32>
    %782 = vector.broadcast %761 : vector<1x128xf32> to vector<8x128xf32>
    %783 = arith.addf %781, %782 : vector<8x128xf32>
    %c4_338 = arith.constant 4 : index
    %c0_339 = arith.constant 0 : index
    %c0_340 = arith.constant 0 : index
    %784 = vector.load %arg18[%c4_338, %c0_339, %c0_340] : memref<6x128x512xbf16, #tpu.memory_space<vmem>>, vector<1x128x512xbf16>
    %785 = vector.shape_cast %784 : vector<1x128x512xbf16> to vector<128x512xbf16>
    %786 = arith.truncf %783 : vector<8x128xf32> to vector<8x128xbf16>
    %cst_341 = arith.constant dense<0.000000e+00> : vector<8x512xf32>
    %787 = tpu.matmul %786, %785, %cst_341 {dimension_numbers = #tpu.dot_dimension_numbers<[1], [0], [0], [1], [0, 0, 1, 1], [], []>} : vector<8x128xbf16>, vector<128x512xbf16>, vector<8x512xf32> -> vector<8x512xf32>
    %c4_342 = arith.constant 4 : index
    %c0_343 = arith.constant 0 : index
    %c0_344 = arith.constant 0 : index
    %788 = vector.load %arg19[%c4_342, %c0_343, %c0_344] : memref<6x1x512xf32, #tpu.memory_space<vmem>>, vector<1x1x512xf32>
    %789 = vector.shape_cast %788 : vector<1x1x512xf32> to vector<1x512xf32>
    %790 = vector.broadcast %789 : vector<1x512xf32> to vector<8x512xf32>
    %791 = arith.addf %787, %790 : vector<8x512xf32>
    %792 = arith.mulf %791, %791 : vector<8x512xf32>
    %793 = arith.mulf %791, %792 : vector<8x512xf32>
    %cst_345 = arith.constant 4.471500e-02 : f32
    %794 = vector.broadcast %cst_345 : f32 to vector<8x512xf32>
    %795 = arith.mulf %794, %793 : vector<8x512xf32>
    %796 = arith.addf %791, %795 : vector<8x512xf32>
    %cst_346 = arith.constant 0.797884583 : f32
    %797 = vector.broadcast %cst_346 : f32 to vector<8x512xf32>
    %798 = arith.mulf %797, %796 : vector<8x512xf32>
    %799 = math.tanh %798 : vector<8x512xf32>
    %cst_347 = arith.constant 1.000000e+00 : f32
    %800 = vector.broadcast %cst_347 : f32 to vector<8x512xf32>
    %801 = arith.addf %800, %799 : vector<8x512xf32>
    %cst_348 = arith.constant 5.000000e-01 : f32
    %802 = vector.broadcast %cst_348 : f32 to vector<8x512xf32>
    %803 = arith.mulf %802, %801 : vector<8x512xf32>
    %804 = arith.mulf %791, %803 : vector<8x512xf32>
    %c4_349 = arith.constant 4 : index
    %c0_350 = arith.constant 0 : index
    %c0_351 = arith.constant 0 : index
    %805 = vector.load %arg20[%c4_349, %c0_350, %c0_351] : memref<6x512x128xbf16, #tpu.memory_space<vmem>>, vector<1x512x128xbf16>
    %806 = vector.shape_cast %805 : vector<1x512x128xbf16> to vector<512x128xbf16>
    %807 = arith.truncf %804 : vector<8x512xf32> to vector<8x512xbf16>
    %cst_352 = arith.constant dense<0.000000e+00> : vector<8x128xf32>
    %808 = tpu.matmul %807, %806, %cst_352 {dimension_numbers = #tpu.dot_dimension_numbers<[1], [0], [0], [1], [0, 0, 1, 1], [], []>} : vector<8x512xbf16>, vector<512x128xbf16>, vector<8x128xf32> -> vector<8x128xf32>
    %c4_353 = arith.constant 4 : index
    %c0_354 = arith.constant 0 : index
    %c0_355 = arith.constant 0 : index
    %809 = vector.load %arg21[%c4_353, %c0_354, %c0_355] : memref<6x1x128xf32, #tpu.memory_space<vmem>>, vector<1x1x128xf32>
    %810 = vector.shape_cast %809 : vector<1x1x128xf32> to vector<1x128xf32>
    %811 = vector.broadcast %810 : vector<1x128xf32> to vector<8x128xf32>
    %812 = arith.addf %808, %811 : vector<8x128xf32>
    %813 = arith.mulf %812, %812 : vector<8x128xf32>
    %814 = arith.mulf %812, %813 : vector<8x128xf32>
    %cst_356 = arith.constant 4.471500e-02 : f32
    %815 = vector.broadcast %cst_356 : f32 to vector<8x128xf32>
    %816 = arith.mulf %815, %814 : vector<8x128xf32>
    %817 = arith.addf %812, %816 : vector<8x128xf32>
    %cst_357 = arith.constant 0.797884583 : f32
    %818 = vector.broadcast %cst_357 : f32 to vector<8x128xf32>
    %819 = arith.mulf %818, %817 : vector<8x128xf32>
    %820 = math.tanh %819 : vector<8x128xf32>
    %cst_358 = arith.constant 1.000000e+00 : f32
    %821 = vector.broadcast %cst_358 : f32 to vector<8x128xf32>
    %822 = arith.addf %821, %820 : vector<8x128xf32>
    %cst_359 = arith.constant 5.000000e-01 : f32
    %823 = vector.broadcast %cst_359 : f32 to vector<8x128xf32>
    %824 = arith.mulf %823, %822 : vector<8x128xf32>
    %825 = arith.mulf %812, %824 : vector<8x128xf32>
    %826 = arith.addf %825, %757 : vector<8x128xf32>
    %c5 = arith.constant 5 : index
    %c0_360 = arith.constant 0 : index
    %c0_361 = arith.constant 0 : index
    %827 = vector.load %arg10[%c5, %c0_360, %c0_361] : memref<6x1x128xf32, #tpu.memory_space<vmem>>, vector<1x1x128xf32>
    %828 = vector.shape_cast %827 : vector<1x1x128xf32> to vector<1x128xf32>
    %c5_362 = arith.constant 5 : index
    %c0_363 = arith.constant 0 : index
    %c0_364 = arith.constant 0 : index
    %829 = vector.load %arg11[%c5_362, %c0_363, %c0_364] : memref<6x1x128xf32, #tpu.memory_space<vmem>>, vector<1x1x128xf32>
    %830 = vector.shape_cast %829 : vector<1x1x128xf32> to vector<1x128xf32>
    %cst_365 = arith.constant dense<0.000000e+00> : vector<8xf32>
    %831 = vector.multi_reduction <add>, %826, %cst_365 [1] : vector<8x128xf32> to vector<8xf32>
    %832 = vector.shape_cast %831 : vector<8xf32> to vector<8x1xf32>
    %cst_366 = arith.constant 1.280000e+02 : f32
    %833 = vector.broadcast %cst_366 : f32 to vector<8x1xf32>
    %834 = arith.divf %832, %833 : vector<8x1xf32>
    %835 = vector.broadcast %834 : vector<8x1xf32> to vector<8x128xf32>
    %836 = arith.subf %826, %835 : vector<8x128xf32>
    %837 = arith.mulf %836, %836 : vector<8x128xf32>
    %cst_367 = arith.constant dense<0.000000e+00> : vector<8xf32>
    %838 = vector.multi_reduction <add>, %837, %cst_367 [1] : vector<8x128xf32> to vector<8xf32>
    %839 = vector.shape_cast %838 : vector<8xf32> to vector<8x1xf32>
    %cst_368 = arith.constant 1.280000e+02 : f32
    %840 = vector.broadcast %cst_368 : f32 to vector<8x1xf32>
    %841 = arith.divf %839, %840 : vector<8x1xf32>
    %842 = vector.broadcast %834 : vector<8x1xf32> to vector<8x128xf32>
    %843 = arith.subf %826, %842 : vector<8x128xf32>
    %cst_369 = arith.constant 9.99999997E-7 : f32
    %844 = vector.broadcast %cst_369 : f32 to vector<8x1xf32>
    %845 = arith.addf %841, %844 : vector<8x1xf32>
    %846 = math.rsqrt %845 : vector<8x1xf32>
    %847 = vector.broadcast %846 : vector<8x1xf32> to vector<8x128xf32>
    %848 = arith.mulf %843, %847 : vector<8x128xf32>
    %849 = vector.broadcast %828 : vector<1x128xf32> to vector<8x128xf32>
    %850 = arith.mulf %848, %849 : vector<8x128xf32>
    %851 = vector.broadcast %830 : vector<1x128xf32> to vector<8x128xf32>
    %852 = arith.addf %850, %851 : vector<8x128xf32>
    %c5_370 = arith.constant 5 : index
    %c0_371 = arith.constant 0 : index
    %c0_372 = arith.constant 0 : index
    %853 = vector.load %arg12[%c5_370, %c0_371, %c0_372] : memref<6x128x384xbf16, #tpu.memory_space<vmem>>, vector<1x128x384xbf16>
    %854 = vector.shape_cast %853 : vector<1x128x384xbf16> to vector<128x384xbf16>
    %855 = arith.truncf %852 : vector<8x128xf32> to vector<8x128xbf16>
    %cst_373 = arith.constant dense<0.000000e+00> : vector<8x384xf32>
    %856 = tpu.matmul %855, %854, %cst_373 {dimension_numbers = #tpu.dot_dimension_numbers<[1], [0], [0], [1], [0, 0, 1, 1], [], []>} : vector<8x128xbf16>, vector<128x384xbf16>, vector<8x384xf32> -> vector<8x384xf32>
    %c5_374 = arith.constant 5 : index
    %c0_375 = arith.constant 0 : index
    %c0_376 = arith.constant 0 : index
    %857 = vector.load %arg13[%c5_374, %c0_375, %c0_376] : memref<6x1x384xf32, #tpu.memory_space<vmem>>, vector<1x1x384xf32>
    %858 = vector.shape_cast %857 : vector<1x1x384xf32> to vector<1x384xf32>
    %859 = vector.broadcast %858 : vector<1x384xf32> to vector<8x384xf32>
    %860 = arith.addf %856, %859 : vector<8x384xf32>
    %861 = vector.extract_strided_slice %860 {offsets = [0, 0], sizes = [8, 64], strides = [1, 1]} : vector<8x384xf32> to vector<8x64xf32>
    %862 = vector.extract_strided_slice %860 {offsets = [0, 128], sizes = [8, 64], strides = [1, 1]} : vector<8x384xf32> to vector<8x64xf32>
    %863 = vector.extract_strided_slice %860 {offsets = [0, 256], sizes = [8, 64], strides = [1, 1]} : vector<8x384xf32> to vector<8x64xf32>
    %864 = arith.truncf %861 : vector<8x64xf32> to vector<8x64xbf16>
    %865 = arith.truncf %862 : vector<8x64xf32> to vector<8x64xbf16>
    %cst_377 = arith.constant dense<0.000000e+00> : vector<8x8xf32>
    %866 = tpu.matmul %864, %865, %cst_377 {dimension_numbers = #tpu.dot_dimension_numbers<[1], [1], [0], [0], [0, 0, 1, 0], [], []>} : vector<8x64xbf16>, vector<8x64xbf16>, vector<8x8xf32> -> vector<8x8xf32>
    %cst_378 = arith.constant 1.250000e-01 : f32
    %867 = vector.broadcast %cst_378 : f32 to vector<8x8xf32>
    %868 = arith.mulf %866, %867 : vector<8x8xf32>
    %869 = vector.broadcast %7 : vector<1x8xf32> to vector<8x8xf32>
    %870 = arith.addf %868, %869 : vector<8x8xf32>
    %cst_379 = arith.constant dense<0xFF800000> : vector<8xf32>
    %871 = vector.multi_reduction <maximumf>, %870, %cst_379 [1] : vector<8x8xf32> to vector<8xf32>
    %872 = vector.shape_cast %871 : vector<8xf32> to vector<8x1xf32>
    %873 = vector.broadcast %872 : vector<8x1xf32> to vector<8x8xf32>
    %874 = arith.subf %870, %873 : vector<8x8xf32>
    %875 = math.exp %874 : vector<8x8xf32>
    %cst_380 = arith.constant dense<0.000000e+00> : vector<8xf32>
    %876 = vector.multi_reduction <add>, %875, %cst_380 [1] : vector<8x8xf32> to vector<8xf32>
    %877 = vector.shape_cast %876 : vector<8xf32> to vector<8x1xf32>
    %878 = tpu.reciprocal %877 {approx = true} : vector<8x1xf32> -> vector<8x1xf32>
    %879 = vector.broadcast %878 : vector<8x1xf32> to vector<8x8xf32>
    %880 = arith.mulf %875, %879 : vector<8x8xf32>
    %881 = arith.truncf %863 : vector<8x64xf32> to vector<8x64xbf16>
    %882 = arith.truncf %880 : vector<8x8xf32> to vector<8x8xbf16>
    %cst_381 = arith.constant dense<0.000000e+00> : vector<8x64xf32>
    %883 = tpu.matmul %882, %881, %cst_381 {dimension_numbers = #tpu.dot_dimension_numbers<[1], [0], [0], [1], [0, 0, 1, 1], [], []>} : vector<8x8xbf16>, vector<8x64xbf16>, vector<8x64xf32> -> vector<8x64xf32>
    %884 = vector.extract_strided_slice %860 {offsets = [0, 64], sizes = [8, 64], strides = [1, 1]} : vector<8x384xf32> to vector<8x64xf32>
    %885 = vector.extract_strided_slice %860 {offsets = [0, 192], sizes = [8, 64], strides = [1, 1]} : vector<8x384xf32> to vector<8x64xf32>
    %886 = vector.extract_strided_slice %860 {offsets = [0, 320], sizes = [8, 64], strides = [1, 1]} : vector<8x384xf32> to vector<8x64xf32>
    %887 = arith.truncf %884 : vector<8x64xf32> to vector<8x64xbf16>
    %888 = arith.truncf %885 : vector<8x64xf32> to vector<8x64xbf16>
    %cst_382 = arith.constant dense<0.000000e+00> : vector<8x8xf32>
    %889 = tpu.matmul %887, %888, %cst_382 {dimension_numbers = #tpu.dot_dimension_numbers<[1], [1], [0], [0], [0, 0, 1, 0], [], []>} : vector<8x64xbf16>, vector<8x64xbf16>, vector<8x8xf32> -> vector<8x8xf32>
    %cst_383 = arith.constant 1.250000e-01 : f32
    %890 = vector.broadcast %cst_383 : f32 to vector<8x8xf32>
    %891 = arith.mulf %889, %890 : vector<8x8xf32>
    %892 = vector.broadcast %7 : vector<1x8xf32> to vector<8x8xf32>
    %893 = arith.addf %891, %892 : vector<8x8xf32>
    %cst_384 = arith.constant dense<0xFF800000> : vector<8xf32>
    %894 = vector.multi_reduction <maximumf>, %893, %cst_384 [1] : vector<8x8xf32> to vector<8xf32>
    %895 = vector.shape_cast %894 : vector<8xf32> to vector<8x1xf32>
    %896 = vector.broadcast %895 : vector<8x1xf32> to vector<8x8xf32>
    %897 = arith.subf %893, %896 : vector<8x8xf32>
    %898 = math.exp %897 : vector<8x8xf32>
    %cst_385 = arith.constant dense<0.000000e+00> : vector<8xf32>
    %899 = vector.multi_reduction <add>, %898, %cst_385 [1] : vector<8x8xf32> to vector<8xf32>
    %900 = vector.shape_cast %899 : vector<8xf32> to vector<8x1xf32>
    %901 = tpu.reciprocal %900 {approx = true} : vector<8x1xf32> -> vector<8x1xf32>
    %902 = vector.broadcast %901 : vector<8x1xf32> to vector<8x8xf32>
    %903 = arith.mulf %898, %902 : vector<8x8xf32>
    %904 = arith.truncf %886 : vector<8x64xf32> to vector<8x64xbf16>
    %905 = arith.truncf %903 : vector<8x8xf32> to vector<8x8xbf16>
    %cst_386 = arith.constant dense<0.000000e+00> : vector<8x64xf32>
    %906 = tpu.matmul %905, %904, %cst_386 {dimension_numbers = #tpu.dot_dimension_numbers<[1], [0], [0], [1], [0, 0, 1, 1], [], []>} : vector<8x8xbf16>, vector<8x64xbf16>, vector<8x64xf32> -> vector<8x64xf32>
    %907 = tpu.concatenate %883, %906 in 1 : vector<8x64xf32>, vector<8x64xf32> -> vector<8x128xf32>
    %c5_387 = arith.constant 5 : index
    %c0_388 = arith.constant 0 : index
    %c0_389 = arith.constant 0 : index
    %908 = vector.load %arg14[%c5_387, %c0_388, %c0_389] : memref<6x128x128xbf16, #tpu.memory_space<vmem>>, vector<1x128x128xbf16>
    %909 = vector.shape_cast %908 : vector<1x128x128xbf16> to vector<128x128xbf16>
    %910 = arith.truncf %907 : vector<8x128xf32> to vector<8x128xbf16>
    %cst_390 = arith.constant dense<0.000000e+00> : vector<8x128xf32>
    %911 = tpu.matmul %910, %909, %cst_390 {dimension_numbers = #tpu.dot_dimension_numbers<[1], [0], [0], [1], [0, 0, 1, 1], [], []>} : vector<8x128xbf16>, vector<128x128xbf16>, vector<8x128xf32> -> vector<8x128xf32>
    %c5_391 = arith.constant 5 : index
    %c0_392 = arith.constant 0 : index
    %c0_393 = arith.constant 0 : index
    %912 = vector.load %arg15[%c5_391, %c0_392, %c0_393] : memref<6x1x128xf32, #tpu.memory_space<vmem>>, vector<1x1x128xf32>
    %913 = vector.shape_cast %912 : vector<1x1x128xf32> to vector<1x128xf32>
    %914 = vector.broadcast %913 : vector<1x128xf32> to vector<8x128xf32>
    %915 = arith.addf %911, %914 : vector<8x128xf32>
    %916 = arith.addf %915, %826 : vector<8x128xf32>
    %c5_394 = arith.constant 5 : index
    %c0_395 = arith.constant 0 : index
    %c0_396 = arith.constant 0 : index
    %917 = vector.load %arg16[%c5_394, %c0_395, %c0_396] : memref<6x1x128xf32, #tpu.memory_space<vmem>>, vector<1x1x128xf32>
    %918 = vector.shape_cast %917 : vector<1x1x128xf32> to vector<1x128xf32>
    %c5_397 = arith.constant 5 : index
    %c0_398 = arith.constant 0 : index
    %c0_399 = arith.constant 0 : index
    %919 = vector.load %arg17[%c5_397, %c0_398, %c0_399] : memref<6x1x128xf32, #tpu.memory_space<vmem>>, vector<1x1x128xf32>
    %920 = vector.shape_cast %919 : vector<1x1x128xf32> to vector<1x128xf32>
    %cst_400 = arith.constant dense<0.000000e+00> : vector<8xf32>
    %921 = vector.multi_reduction <add>, %916, %cst_400 [1] : vector<8x128xf32> to vector<8xf32>
    %922 = vector.shape_cast %921 : vector<8xf32> to vector<8x1xf32>
    %cst_401 = arith.constant 1.280000e+02 : f32
    %923 = vector.broadcast %cst_401 : f32 to vector<8x1xf32>
    %924 = arith.divf %922, %923 : vector<8x1xf32>
    %925 = vector.broadcast %924 : vector<8x1xf32> to vector<8x128xf32>
    %926 = arith.subf %916, %925 : vector<8x128xf32>
    %927 = arith.mulf %926, %926 : vector<8x128xf32>
    %cst_402 = arith.constant dense<0.000000e+00> : vector<8xf32>
    %928 = vector.multi_reduction <add>, %927, %cst_402 [1] : vector<8x128xf32> to vector<8xf32>
    %929 = vector.shape_cast %928 : vector<8xf32> to vector<8x1xf32>
    %cst_403 = arith.constant 1.280000e+02 : f32
    %930 = vector.broadcast %cst_403 : f32 to vector<8x1xf32>
    %931 = arith.divf %929, %930 : vector<8x1xf32>
    %932 = vector.broadcast %924 : vector<8x1xf32> to vector<8x128xf32>
    %933 = arith.subf %916, %932 : vector<8x128xf32>
    %cst_404 = arith.constant 9.99999997E-7 : f32
    %934 = vector.broadcast %cst_404 : f32 to vector<8x1xf32>
    %935 = arith.addf %931, %934 : vector<8x1xf32>
    %936 = math.rsqrt %935 : vector<8x1xf32>
    %937 = vector.broadcast %936 : vector<8x1xf32> to vector<8x128xf32>
    %938 = arith.mulf %933, %937 : vector<8x128xf32>
    %939 = vector.broadcast %918 : vector<1x128xf32> to vector<8x128xf32>
    %940 = arith.mulf %938, %939 : vector<8x128xf32>
    %941 = vector.broadcast %920 : vector<1x128xf32> to vector<8x128xf32>
    %942 = arith.addf %940, %941 : vector<8x128xf32>
    %c5_405 = arith.constant 5 : index
    %c0_406 = arith.constant 0 : index
    %c0_407 = arith.constant 0 : index
    %943 = vector.load %arg18[%c5_405, %c0_406, %c0_407] : memref<6x128x512xbf16, #tpu.memory_space<vmem>>, vector<1x128x512xbf16>
    %944 = vector.shape_cast %943 : vector<1x128x512xbf16> to vector<128x512xbf16>
    %945 = arith.truncf %942 : vector<8x128xf32> to vector<8x128xbf16>
    %cst_408 = arith.constant dense<0.000000e+00> : vector<8x512xf32>
    %946 = tpu.matmul %945, %944, %cst_408 {dimension_numbers = #tpu.dot_dimension_numbers<[1], [0], [0], [1], [0, 0, 1, 1], [], []>} : vector<8x128xbf16>, vector<128x512xbf16>, vector<8x512xf32> -> vector<8x512xf32>
    %c5_409 = arith.constant 5 : index
    %c0_410 = arith.constant 0 : index
    %c0_411 = arith.constant 0 : index
    %947 = vector.load %arg19[%c5_409, %c0_410, %c0_411] : memref<6x1x512xf32, #tpu.memory_space<vmem>>, vector<1x1x512xf32>
    %948 = vector.shape_cast %947 : vector<1x1x512xf32> to vector<1x512xf32>
    %949 = vector.broadcast %948 : vector<1x512xf32> to vector<8x512xf32>
    %950 = arith.addf %946, %949 : vector<8x512xf32>
    %951 = arith.mulf %950, %950 : vector<8x512xf32>
    %952 = arith.mulf %950, %951 : vector<8x512xf32>
    %cst_412 = arith.constant 4.471500e-02 : f32
    %953 = vector.broadcast %cst_412 : f32 to vector<8x512xf32>
    %954 = arith.mulf %953, %952 : vector<8x512xf32>
    %955 = arith.addf %950, %954 : vector<8x512xf32>
    %cst_413 = arith.constant 0.797884583 : f32
    %956 = vector.broadcast %cst_413 : f32 to vector<8x512xf32>
    %957 = arith.mulf %956, %955 : vector<8x512xf32>
    %958 = math.tanh %957 : vector<8x512xf32>
    %cst_414 = arith.constant 1.000000e+00 : f32
    %959 = vector.broadcast %cst_414 : f32 to vector<8x512xf32>
    %960 = arith.addf %959, %958 : vector<8x512xf32>
    %cst_415 = arith.constant 5.000000e-01 : f32
    %961 = vector.broadcast %cst_415 : f32 to vector<8x512xf32>
    %962 = arith.mulf %961, %960 : vector<8x512xf32>
    %963 = arith.mulf %950, %962 : vector<8x512xf32>
    %c5_416 = arith.constant 5 : index
    %c0_417 = arith.constant 0 : index
    %c0_418 = arith.constant 0 : index
    %964 = vector.load %arg20[%c5_416, %c0_417, %c0_418] : memref<6x512x128xbf16, #tpu.memory_space<vmem>>, vector<1x512x128xbf16>
    %965 = vector.shape_cast %964 : vector<1x512x128xbf16> to vector<512x128xbf16>
    %966 = arith.truncf %963 : vector<8x512xf32> to vector<8x512xbf16>
    %cst_419 = arith.constant dense<0.000000e+00> : vector<8x128xf32>
    %967 = tpu.matmul %966, %965, %cst_419 {dimension_numbers = #tpu.dot_dimension_numbers<[1], [0], [0], [1], [0, 0, 1, 1], [], []>} : vector<8x512xbf16>, vector<512x128xbf16>, vector<8x128xf32> -> vector<8x128xf32>
    %c5_420 = arith.constant 5 : index
    %c0_421 = arith.constant 0 : index
    %c0_422 = arith.constant 0 : index
    %968 = vector.load %arg21[%c5_420, %c0_421, %c0_422] : memref<6x1x128xf32, #tpu.memory_space<vmem>>, vector<1x1x128xf32>
    %969 = vector.shape_cast %968 : vector<1x1x128xf32> to vector<1x128xf32>
    %970 = vector.broadcast %969 : vector<1x128xf32> to vector<8x128xf32>
    %971 = arith.addf %967, %970 : vector<8x128xf32>
    %972 = arith.mulf %971, %971 : vector<8x128xf32>
    %973 = arith.mulf %971, %972 : vector<8x128xf32>
    %cst_423 = arith.constant 4.471500e-02 : f32
    %974 = vector.broadcast %cst_423 : f32 to vector<8x128xf32>
    %975 = arith.mulf %974, %973 : vector<8x128xf32>
    %976 = arith.addf %971, %975 : vector<8x128xf32>
    %cst_424 = arith.constant 0.797884583 : f32
    %977 = vector.broadcast %cst_424 : f32 to vector<8x128xf32>
    %978 = arith.mulf %977, %976 : vector<8x128xf32>
    %979 = math.tanh %978 : vector<8x128xf32>
    %cst_425 = arith.constant 1.000000e+00 : f32
    %980 = vector.broadcast %cst_425 : f32 to vector<8x128xf32>
    %981 = arith.addf %980, %979 : vector<8x128xf32>
    %cst_426 = arith.constant 5.000000e-01 : f32
    %982 = vector.broadcast %cst_426 : f32 to vector<8x128xf32>
    %983 = arith.mulf %982, %981 : vector<8x128xf32>
    %984 = arith.mulf %971, %983 : vector<8x128xf32>
    %985 = arith.addf %984, %916 : vector<8x128xf32>
    %c0_427 = arith.constant 0 : index
    %c0_428 = arith.constant 0 : index
    %986 = vector.load %arg22[%c0_427, %c0_428] : memref<1x128xf32, #tpu.memory_space<vmem>>, vector<1x128xf32>
    %c0_429 = arith.constant 0 : index
    %c0_430 = arith.constant 0 : index
    %987 = vector.load %arg23[%c0_429, %c0_430] : memref<1x128xf32, #tpu.memory_space<vmem>>, vector<1x128xf32>
    %cst_431 = arith.constant dense<0.000000e+00> : vector<8xf32>
    %988 = vector.multi_reduction <add>, %985, %cst_431 [1] : vector<8x128xf32> to vector<8xf32>
    %989 = vector.shape_cast %988 : vector<8xf32> to vector<8x1xf32>
    %cst_432 = arith.constant 1.280000e+02 : f32
    %990 = vector.broadcast %cst_432 : f32 to vector<8x1xf32>
    %991 = arith.divf %989, %990 : vector<8x1xf32>
    %992 = vector.broadcast %991 : vector<8x1xf32> to vector<8x128xf32>
    %993 = arith.subf %985, %992 : vector<8x128xf32>
    %994 = arith.mulf %993, %993 : vector<8x128xf32>
    %cst_433 = arith.constant dense<0.000000e+00> : vector<8xf32>
    %995 = vector.multi_reduction <add>, %994, %cst_433 [1] : vector<8x128xf32> to vector<8xf32>
    %996 = vector.shape_cast %995 : vector<8xf32> to vector<8x1xf32>
    %cst_434 = arith.constant 1.280000e+02 : f32
    %997 = vector.broadcast %cst_434 : f32 to vector<8x1xf32>
    %998 = arith.divf %996, %997 : vector<8x1xf32>
    %999 = vector.broadcast %991 : vector<8x1xf32> to vector<8x128xf32>
    %1000 = arith.subf %985, %999 : vector<8x128xf32>
    %cst_435 = arith.constant 9.99999997E-7 : f32
    %1001 = vector.broadcast %cst_435 : f32 to vector<8x1xf32>
    %1002 = arith.addf %998, %1001 : vector<8x1xf32>
    %1003 = math.rsqrt %1002 : vector<8x1xf32>
    %1004 = vector.broadcast %1003 : vector<8x1xf32> to vector<8x128xf32>
    %1005 = arith.mulf %1000, %1004 : vector<8x128xf32>
    %1006 = vector.broadcast %986 : vector<1x128xf32> to vector<8x128xf32>
    %1007 = arith.mulf %1005, %1006 : vector<8x128xf32>
    %1008 = vector.broadcast %987 : vector<1x128xf32> to vector<8x128xf32>
    %1009 = arith.addf %1007, %1008 : vector<8x128xf32>
    %c0_436 = arith.constant 0 : index
    %c0_437 = arith.constant 0 : index
    %1010 = vector.load %arg24[%c0_436, %c0_437] : memref<128x256xbf16, #tpu.memory_space<vmem>>, vector<128x256xbf16>
    %1011 = arith.truncf %1009 : vector<8x128xf32> to vector<8x128xbf16>
    %cst_438 = arith.constant dense<0.000000e+00> : vector<8x256xf32>
    %1012 = tpu.matmul %1011, %1010, %cst_438 {dimension_numbers = #tpu.dot_dimension_numbers<[1], [0], [0], [1], [0, 0, 1, 1], [], []>} : vector<8x128xbf16>, vector<128x256xbf16>, vector<8x256xf32> -> vector<8x256xf32>
    %c0_439 = arith.constant 0 : index
    %c0_440 = arith.constant 0 : index
    %c0_441 = arith.constant 0 : index
    %1013 = vector.load %arg4[%c0_439, %c0_440, %c0_441] : memref<1x1x256xf32, #tpu.memory_space<vmem>>, vector<1x1x256xf32>
    %1014 = vector.shape_cast %1013 : vector<1x1x256xf32> to vector<1x256xf32>
    %1015 = vector.broadcast %1014 : vector<1x256xf32> to vector<8x256xf32>
    %1016 = arith.addf %1012, %1015 : vector<8x256xf32>
    %cst_442 = arith.constant 0.000000e+00 : f32
    %1017 = vector.broadcast %cst_442 : f32 to vector<8x256xf32>
    %1018 = arith.cmpf ogt, %1016, %1017 : vector<8x256xf32>
    %cst_443 = arith.constant 0.00999999977 : f32
    %1019 = vector.broadcast %cst_443 : f32 to vector<8x256xf32>
    %1020 = arith.mulf %1019, %1016 : vector<8x256xf32>
    %1021 = arith.select %1018, %1016, %1020 : vector<8x256xi1>, vector<8x256xf32>
    %c0_444 = arith.constant 0 : index
    %c0_445 = arith.constant 0 : index
    %1022 = vector.load %arg25[%c0_444, %c0_445] : memref<256x3xbf16, #tpu.memory_space<vmem>>, vector<256x3xbf16>
    %1023 = arith.truncf %1021 : vector<8x256xf32> to vector<8x256xbf16>
    %cst_446 = arith.constant dense<0.000000e+00> : vector<8x3xf32>
    %1024 = tpu.matmul %1023, %1022, %cst_446 {dimension_numbers = #tpu.dot_dimension_numbers<[1], [0], [0], [1], [0, 0, 1, 1], [], []>} : vector<8x256xbf16>, vector<256x3xbf16>, vector<8x3xf32> -> vector<8x3xf32>
    %c0_447 = arith.constant 0 : index
    %c0_448 = arith.constant 0 : index
    %1025 = vector.load %arg26[%c0_447, %c0_448] : memref<1x3xf32, #tpu.memory_space<vmem>>, vector<1x3xf32>
    %1026 = vector.broadcast %1025 : vector<1x3xf32> to vector<8x3xf32>
    %1027 = arith.addf %1024, %1026 : vector<8x3xf32>
    %c0_449 = arith.constant 0 : index
    %c0_450 = arith.constant 0 : index
    %c0_451 = arith.constant 0 : index
    %1028 = vector.load %arg27[%c0_449, %c0_450, %c0_451] : memref<1x8x3xf32, #tpu.memory_space<vmem>>, vector<1x8x3xf32>
    %1029 = vector.shape_cast %1028 : vector<1x8x3xf32> to vector<8x3xf32>
    %1030 = vector.shape_cast %1027 : vector<8x3xf32> to vector<1x8x3xf32>
    tpu.vector_store %arg27[%c0_449, %c0_450, %c0_451], %1030 {strides = array<i32>} : memref<1x8x3xf32, #tpu.memory_space<vmem>>, vector<1x8x3xf32>,
    return
  }
  func.func @transform_0(%arg0: i32) -> (i32, i32, i32) {
    %c0_i32 = arith.constant 0 : i32
    %c0_i32_0 = arith.constant 0 : i32
    %c0_i32_1 = arith.constant 0 : i32
    return %arg0, %c0_i32, %c0_i32_0 : i32, i32, i32
  }
  func.func @transform_1(%arg0: i32) -> (i32, i32, i32) {
    %c0_i32 = arith.constant 0 : i32
    %c0_i32_0 = arith.constant 0 : i32
    %c0_i32_1 = arith.constant 0 : i32
    return %arg0, %c0_i32, %c0_i32_0 : i32, i32, i32
  }
  func.func @transform_2(%arg0: i32) -> (i32, i32, i32) {
    %c0_i32 = arith.constant 0 : i32
    %c0_i32_0 = arith.constant 0 : i32
    %c0_i32_1 = arith.constant 0 : i32
    return %arg0, %c0_i32, %c0_i32_0 : i32, i32, i32
  }
  func.func @transform_3(%arg0: i32) -> (i32, i32, i32) {
    %c0_i32 = arith.constant 0 : i32
    %c0_i32_0 = arith.constant 0 : i32
    %c0_i32_1 = arith.constant 0 : i32
    return %arg0, %c0_i32, %c0_i32_0 : i32, i32, i32
  }
  func.func @transform_4(%arg0: i32) -> (i32, i32) {
    %c0_i32 = arith.constant 0 : i32
    %c0_i32_0 = arith.constant 0 : i32
    %c0_i32_1 = arith.constant 0 : i32
    return %c0_i32, %c0_i32_0 : i32, i32
  }
  func.func @transform_5(%arg0: i32) -> (i32, i32) {
    %c0_i32 = arith.constant 0 : i32
    %c0_i32_0 = arith.constant 0 : i32
    %c0_i32_1 = arith.constant 0 : i32
    return %c0_i32, %c0_i32_0 : i32, i32
  }
  func.func @transform_6(%arg0: i32) -> (i32, i32) {
    %c0_i32 = arith.constant 0 : i32
    %c0_i32_0 = arith.constant 0 : i32
    %c0_i32_1 = arith.constant 0 : i32
    return %c0_i32, %c0_i32_0 : i32, i32
  }
  func.func @transform_7(%arg0: i32) -> (i32, i32) {
    %c0_i32 = arith.constant 0 : i32
    %c0_i32_0 = arith.constant 0 : i32
    %c0_i32_1 = arith.constant 0 : i32
    return %c0_i32, %c0_i32_0 : i32, i32
  }
  func.func @transform_8(%arg0: i32) -> (i32, i32) {
    %c0_i32 = arith.constant 0 : i32
    %c0_i32_0 = arith.constant 0 : i32
    %c0_i32_1 = arith.constant 0 : i32
    return %c0_i32, %c0_i32_0 : i32, i32
  }
  func.func @transform_9(%arg0: i32) -> (i32, i32, i32) {
    %c0_i32 = arith.constant 0 : i32
    %c0_i32_0 = arith.constant 0 : i32
    %c0_i32_1 = arith.constant 0 : i32
    %c0_i32_2 = arith.constant 0 : i32
    return %c0_i32, %c0_i32_0, %c0_i32_1 : i32, i32, i32
  }
  func.func @transform_10(%arg0: i32) -> (i32, i32, i32) {
    %c0_i32 = arith.constant 0 : i32
    %c0_i32_0 = arith.constant 0 : i32
    %c0_i32_1 = arith.constant 0 : i32
    %c0_i32_2 = arith.constant 0 : i32
    return %c0_i32, %c0_i32_0, %c0_i32_1 : i32, i32, i32
  }
  func.func @transform_11(%arg0: i32) -> (i32, i32, i32) {
    %c0_i32 = arith.constant 0 : i32
    %c0_i32_0 = arith.constant 0 : i32
    %c0_i32_1 = arith.constant 0 : i32
    %c0_i32_2 = arith.constant 0 : i32
    return %c0_i32, %c0_i32_0, %c0_i32_1 : i32, i32, i32
  }
  func.func @transform_12(%arg0: i32) -> (i32, i32, i32) {
    %c0_i32 = arith.constant 0 : i32
    %c0_i32_0 = arith.constant 0 : i32
    %c0_i32_1 = arith.constant 0 : i32
    %c0_i32_2 = arith.constant 0 : i32
    return %c0_i32, %c0_i32_0, %c0_i32_1 : i32, i32, i32
  }
  func.func @transform_13(%arg0: i32) -> (i32, i32, i32) {
    %c0_i32 = arith.constant 0 : i32
    %c0_i32_0 = arith.constant 0 : i32
    %c0_i32_1 = arith.constant 0 : i32
    %c0_i32_2 = arith.constant 0 : i32
    return %c0_i32, %c0_i32_0, %c0_i32_1 : i32, i32, i32
  }
  func.func @transform_14(%arg0: i32) -> (i32, i32, i32) {
    %c0_i32 = arith.constant 0 : i32
    %c0_i32_0 = arith.constant 0 : i32
    %c0_i32_1 = arith.constant 0 : i32
    %c0_i32_2 = arith.constant 0 : i32
    return %c0_i32, %c0_i32_0, %c0_i32_1 : i32, i32, i32
  }
  func.func @transform_15(%arg0: i32) -> (i32, i32, i32) {
    %c0_i32 = arith.constant 0 : i32
    %c0_i32_0 = arith.constant 0 : i32
    %c0_i32_1 = arith.constant 0 : i32
    %c0_i32_2 = arith.constant 0 : i32
    return %c0_i32, %c0_i32_0, %c0_i32_1 : i32, i32, i32
  }
  func.func @transform_16(%arg0: i32) -> (i32, i32, i32) {
    %c0_i32 = arith.constant 0 : i32
    %c0_i32_0 = arith.constant 0 : i32
    %c0_i32_1 = arith.constant 0 : i32
    %c0_i32_2 = arith.constant 0 : i32
    return %c0_i32, %c0_i32_0, %c0_i32_1 : i32, i32, i32
  }
  func.func @transform_17(%arg0: i32) -> (i32, i32, i32) {
    %c0_i32 = arith.constant 0 : i32
    %c0_i32_0 = arith.constant 0 : i32
    %c0_i32_1 = arith.constant 0 : i32
    %c0_i32_2 = arith.constant 0 : i32
    return %c0_i32, %c0_i32_0, %c0_i32_1 : i32, i32, i32
  }
  func.func @transform_18(%arg0: i32) -> (i32, i32, i32) {
    %c0_i32 = arith.constant 0 : i32
    %c0_i32_0 = arith.constant 0 : i32
    %c0_i32_1 = arith.constant 0 : i32
    %c0_i32_2 = arith.constant 0 : i32
    return %c0_i32, %c0_i32_0, %c0_i32_1 : i32, i32, i32
  }
  func.func @transform_19(%arg0: i32) -> (i32, i32, i32) {
    %c0_i32 = arith.constant 0 : i32
    %c0_i32_0 = arith.constant 0 : i32
    %c0_i32_1 = arith.constant 0 : i32
    %c0_i32_2 = arith.constant 0 : i32
    return %c0_i32, %c0_i32_0, %c0_i32_1 : i32, i32, i32
  }
  func.func @transform_20(%arg0: i32) -> (i32, i32, i32) {
    %c0_i32 = arith.constant 0 : i32
    %c0_i32_0 = arith.constant 0 : i32
    %c0_i32_1 = arith.constant 0 : i32
    %c0_i32_2 = arith.constant 0 : i32
    return %c0_i32, %c0_i32_0, %c0_i32_1 : i32, i32, i32
  }
  func.func @transform_21(%arg0: i32) -> (i32, i32) {
    %c0_i32 = arith.constant 0 : i32
    %c0_i32_0 = arith.constant 0 : i32
    %c0_i32_1 = arith.constant 0 : i32
    return %c0_i32, %c0_i32_0 : i32, i32
  }
  func.func @transform_22(%arg0: i32) -> (i32, i32) {
    %c0_i32 = arith.constant 0 : i32
    %c0_i32_0 = arith.constant 0 : i32
    %c0_i32_1 = arith.constant 0 : i32
    return %c0_i32, %c0_i32_0 : i32, i32
  }
  func.func @transform_23(%arg0: i32) -> (i32, i32) {
    %c0_i32 = arith.constant 0 : i32
    %c0_i32_0 = arith.constant 0 : i32
    %c0_i32_1 = arith.constant 0 : i32
    return %c0_i32, %c0_i32_0 : i32, i32
  }
  func.func @transform_24(%arg0: i32) -> (i32, i32) {
    %c0_i32 = arith.constant 0 : i32
    %c0_i32_0 = arith.constant 0 : i32
    %c0_i32_1 = arith.constant 0 : i32
    return %c0_i32, %c0_i32_0 : i32, i32
  }
  func.func @transform_25(%arg0: i32) -> (i32, i32) {
    %c0_i32 = arith.constant 0 : i32
    %c0_i32_0 = arith.constant 0 : i32
    %c0_i32_1 = arith.constant 0 : i32
    return %c0_i32, %c0_i32_0 : i32, i32
  }
  func.func @transform_26(%arg0: i32) -> (i32, i32, i32) {
    %c0_i32 = arith.constant 0 : i32
    %c0_i32_0 = arith.constant 0 : i32
    %c0_i32_1 = arith.constant 0 : i32
    return %arg0, %c0_i32, %c0_i32_0 : i32, i32, i32
  }
}

</mosaic_0001>

<llo_original>
// kernel: tile.13
$region0: #{tile.13}
  %s0 = inlined_call_operand.vmem [shape: f32[2,4,2], index: 0, kind: input, shape index: {}]
  %s1 = inlined_call_operand.vmem [shape: f32[2,8], index: 1, kind: output, shape index: {}]
  $region1: #{tile.13} parent=0
    #allocation0 [shape = 'u8[4096]{0}', space=vmem, size = 0x1000, scoped, tag = 'scoped mem for output reshape']
    #allocation1 [shape = 'u8[8192]{0}', space=vmem, size = 0x2000, scoped, tag = 'scoped mem for input reshape']
    %s3 = sshllo.u32 0, 4
    %s4 = scalar_lea.vmem %s0, 4
    %v5 = vld [vmem:[%s4] sm:%s3]
    %s6 = scalar_lea.vmem [#allocation1], 8
    %7 = vst [vmem:[%s6] sm:%s3] %v5
    %v8 = vld [vmem:[%s0] sm:%s3]
    %9 = vst [vmem:[#allocation1] sm:%s3] %v8
    %s10 = smov 3
    %v11 = vld [vmem:[#allocation1] ss:$8 sm:%s10]
    %vm12 = vcmask 15360
    %13 = vst.msk [vmem:[#allocation0] sm:$0x3] %vm12, %v11
    %s14 = scalar_lea.vmem [#allocation1], 3
    %s15 = smov 3
    %v16 = vld [vmem:[%s14] ss:$8 sm:%s15]
    %17 = vrot.lane.b32.xlu0 %v16, 6
    %v18 = vpop.permute.xlu0 %17
    %vm19 = vcmask 64560
    %20 = vst.msk [vmem:[#allocation0] sm:$0x3] %vm19, %v18
    %s21 = scalar_lea.vmem [#allocation1], 2
    %s22 = smov 3
    %v23 = vld [vmem:[%s21] ss:$8 sm:%s22]
    %24 = vrot.lane.b32.xlu0 %v23, 4
    %v25 = vpop.permute.xlu0 %24
    %vm26 = vcmask 48160
    %27 = vst.msk [vmem:[#allocation0] sm:$0x3] %vm26, %v25
    %s28 = scalar_lea.vmem [#allocation1], 1
    %s29 = smov 3
    %v30 = vld [vmem:[%s28] ss:$8 sm:%s29]
    %31 = vrot.lane.b32.xlu0 %v30, 2
    %v32 = vpop.permute.xlu0 %31
    %vm33 = vcmask 31760
    %34 = vst.msk [vmem:[#allocation0] sm:$0x3] %vm33, %v32
    %s36 = sshllo.u32 0, 2
    %v38 = vld [vmem:[#allocation0] sm:%s36]
    %s39 = sshllo.u32 0, 2
    %40 = vst [vmem:[%s1] sm:%s39] %v38

// kernel: model_part_forward.1
$region0: #{model_part_forward.1}
  #allocation0 [shape = 'u32[]', space=smem, size = 0x4, offset = 0x4, fixed_abs, tag = 'smem constant byte address 0x4 - core index']
  #allocation1 [shape = 'u32[144,128]{1,0:T(1,128)}', space=vmem, size = 0x12000, scoped, tag = 'internal scratch']
  %s0 = inlined_call_operand.vmem [shape: f32[2,8,3], index: 0, kind: input, shape index: {}]
  %s1 = inlined_call_operand.vmem [shape: f32[2,1,8], index: 1, kind: input, shape index: {}]
  %s2 = inlined_call_operand.vmem [shape: f32[2,1,128], index: 2, kind: input, shape index: {}]
  %s3 = inlined_call_operand.vmem [shape: f32[2,1,256], index: 3, kind: input, shape index: {}]
  %s4 = inlined_call_operand.vmem [shape: bf16[3,128], index: 4, kind: input, shape index: {}]
  %s5 = inlined_call_operand.vmem [shape: f32[1,128], index: 5, kind: input, shape index: {}, may-alias: {5,8,22}]
  %s6 = inlined_call_operand.vmem [shape: bf16[128,128], index: 6, kind: input, shape index: {}]
  %s7 = inlined_call_operand.vmem [shape: bf16[128,128], index: 7, kind: input, shape index: {}]
  %s8 = inlined_call_operand.vmem [shape: f32[1,128], index: 8, kind: input, shape index: {}, may-alias: {5,8,22}]
  %s9 = inlined_call_operand.vmem [shape: f32[6,1,128], index: 9, kind: input, shape index: {}, may-alias: {9,15}]
  %s10 = inlined_call_operand.vmem [shape: f32[6,1,128], index: 10, kind: input, shape index: {}, may-alias: {10,14,16,20}]
  %s11 = inlined_call_operand.vmem [shape: bf16[6,128,384], index: 11, kind: input, shape index: {}]
  %s12 = inlined_call_operand.vmem [shape: f32[6,1,384], index: 12, kind: input, shape index: {}]
  %s13 = inlined_call_operand.vmem [shape: bf16[6,128,128], index: 13, kind: input, shape index: {}]
  %s14 = inlined_call_operand.vmem [shape: f32[6,1,128], index: 14, kind: input, shape index: {}, may-alias: {10,14,16,20}]
  %s15 = inlined_call_operand.vmem [shape: f32[6,1,128], index: 15, kind: input, shape index: {}, may-alias: {9,15}]
  %s16 = inlined_call_operand.vmem [shape: f32[6,1,128], index: 16, kind: input, shape index: {}, may-alias: {10,14,16,20}]
  %s17 = inlined_call_operand.vmem [shape: bf16[6,128,512], index: 17, kind: input, shape index: {}]
  %s18 = inlined_call_operand.vmem [shape: f32[6,1,512], index: 18, kind: input, shape index: {}]
  %s19 = inlined_call_operand.vmem [shape: bf16[6,512,128], index: 19, kind: input, shape index: {}]
  %s20 = inlined_call_operand.vmem [shape: f32[6,1,128], index: 20, kind: input, shape index: {}, may-alias: {10,14,16,20}]
  %s21 = inlined_call_operand.vmem [shape: f32[1,128], index: 21, kind: input, shape index: {}]
  %s22 = inlined_call_operand.vmem [shape: f32[1,128], index: 22, kind: input, shape index: {}, may-alias: {5,8,22}]
  %s23 = inlined_call_operand.vmem [shape: bf16[128,256], index: 23, kind: input, shape index: {}]
  %s24 = inlined_call_operand.vmem [shape: bf16[256,3], index: 24, kind: input, shape index: {}]
  %s25 = inlined_call_operand.vmem [shape: f32[1,3], index: 25, kind: input, shape index: {}]
  %s26 = inlined_call_operand.vmem [shape: f32[2,8,3], index: 26, kind: output, shape index: {}]
  %s27 = sld [smem:[#allocation0]]
  $region137: #{model_part_forward.1} parent=0
    _
  %s29 = ssub.s32 1, %s27
  %s30 = scalar_select 0, %s29, %s27
  loop: start=0, step=1, limit=4
  $region2: #{model_part_forward.1} parent=0 // loop_pre_header
    _
  $region3: #{model_part_forward.1} parent=0 // loop_header
    %s32 = sphi 0, %s36
    %p33 = scmp.ge.s32.totalorder %s32, 4
    %s42 = sphi 0, %s44
    %s45 = sphi 0, %s42
    %s46 = sphi 0, %s45
    %s62 = sphi 0, %s46
    %s68 = sphi 0, %s70
    %s71 = sphi 0, %s68
    %s72 = sphi 0, %s71
    %s88 = sphi 0, %s72
    %s94 = sphi 0, %s96
    %s97 = sphi 0, %s94
    %s98 = sphi 0, %s97
    %s114 = sphi 0, %s98
    %s120 = sphi 0, %s122
    %s123 = sphi 0, %s120
    %s124 = sphi 0, %s123
    %s140 = sphi 0, %s124
    %s144 = sphi 0, %s144
    %s146 = sphi 0, %s144
    %s147 = sphi 0, %s146
    %s161 = sphi 0, %s147
    %s165 = sphi 0, %s165
    %s167 = sphi 0, %s165
    %s168 = sphi 0, %s167
    %s182 = sphi 0, %s168
    %s186 = sphi 0, %s186
    %s188 = sphi 0, %s186
    %s189 = sphi 0, %s188
    %s203 = sphi 0, %s189
    %s207 = sphi 0, %s207
    %s209 = sphi 0, %s207
    %s210 = sphi 0, %s209
    %s224 = sphi 0, %s210
    %s228 = sphi 0, %s228
    %s230 = sphi 0, %s228
    %s231 = sphi 0, %s230
    %s245 = sphi 0, %s231
    %s249 = sphi 0, %s249
    %s251 = sphi 0, %s249
    %s252 = sphi 0, %s251
    %s266 = sphi 0, %s252
    %s270 = sphi 0, %s270
    %s272 = sphi 0, %s270
    %s273 = sphi 0, %s272
    %s287 = sphi 0, %s273
    %s291 = sphi 0, %s291
    %s293 = sphi 0, %s291
    %s294 = sphi 0, %s293
    %s308 = sphi 0, %s294
    %s312 = sphi 0, %s312
    %s314 = sphi 0, %s312
    %s315 = sphi 0, %s314
    %s329 = sphi 0, %s315
    %s333 = sphi 0, %s333
    %s335 = sphi 0, %s333
    %s336 = sphi 0, %s335
    %s350 = sphi 0, %s336
    %s354 = sphi 0, %s354
    %s356 = sphi 0, %s354
    %s357 = sphi 0, %s356
    %s371 = sphi 0, %s357
    %s375 = sphi 0, %s375
    %s377 = sphi 0, %s375
    %s378 = sphi 0, %s377
    %s392 = sphi 0, %s378
    %s396 = sphi 0, %s396
    %s398 = sphi 0, %s396
    %s399 = sphi 0, %s398
    %s413 = sphi 0, %s399
    %s417 = sphi 0, %s417
    %s419 = sphi 0, %s417
    %s420 = sphi 0, %s419
    %s434 = sphi 0, %s420
    %s438 = sphi 0, %s438
    %s440 = sphi 0, %s438
    %s441 = sphi 0, %s440
    %s455 = sphi 0, %s441
    %s459 = sphi 0, %s459
    %s461 = sphi 0, %s459
    %s462 = sphi 0, %s461
    %s476 = sphi 0, %s462
    %s480 = sphi 0, %s480
    %s482 = sphi 0, %s480
    %s483 = sphi 0, %s482
    %s497 = sphi 0, %s483
    %s501 = sphi 0, %s501
    %s503 = sphi 0, %s501
    %s504 = sphi 0, %s503
    %s518 = sphi 0, %s504
    %s522 = sphi 0, %s522
    %s524 = sphi 0, %s522
    %s525 = sphi 0, %s524
    %s539 = sphi 0, %s525
    %s543 = sphi 0, %s543
    %s545 = sphi 0, %s543
    %s546 = sphi 0, %s545
    %s560 = sphi 0, %s546
    %s564 = sphi 0, %s564
    %s566 = sphi 0, %s564
    %s567 = sphi 0, %s566
    %s581 = sphi 0, %s567
    %s585 = sphi 0, %s585
    %s587 = sphi 0, %s585
    %s588 = sphi 0, %s587
    %s602 = sphi 0, %s588
    %s608 = sphi 0, %s610
    %s611 = sphi 0, %s608
    %s612 = sphi 0, %s611
    %s628 = sphi 0, %s612
  $region4: #{model_part_forward.1} parent=0 // loop_header_branch
    %35 = sbr.rel (%p33) target = $region8
  $region5: #{model_part_forward.1} parent=0 // loop_body
    %s37 = ssub.s32 %s32, 1
    %s38 = ssub.s32 %s32, 2
    %s39 = sadd.s32 %s32, 1
    %s40 = ssub.s32 %s32, %s39
    %p41 = scmp.eq.s32.totalorder %s40, 0
    %s43 = sadd.s32 %s42, 1
    %s44 = scalar_select %p41, %s42, %s43
    %p47 = pneg %p41
    %p48 = scmp.eq.s32.totalorder %s32, 1
    %p49 = por %p47, %p48
    %p50 = scmp.ne.s32.totalorder %s42, %s45
    %p51 = scmp.eq.s32.totalorder %s32, 0
    %p52 = por %p50, %p51
    %p53 = scmp.ne.s32.totalorder %s42, %s45
    %p54 = scmp.eq.s32.totalorder %s37, 1
    %p55 = por %p53, %p54
    %p56 = scmp.ne.s32.totalorder %s45, %s46
    %p57 = scmp.eq.s32.totalorder %s37, 0
    %p58 = por %p56, %p57
    %p59 = scmp.ne.s32.totalorder %s45, %s46
    %p60 = scmp.eq.s32.totalorder %s38, 1
    %p61 = por %p59, %p60
    %p63 = scmp.ne.s32.totalorder %s46, %s62
    %p64 = scmp.eq.s32.totalorder %s38, 0
    %p65 = por %p63, %p64
    %s66 = ssub.s32 %s32, %s39
    %p67 = scmp.eq.s32.totalorder %s66, 0
    %s69 = sadd.s32 %s68, 1
    %s70 = scalar_select %p67, %s68, %s69
    %p73 = pneg %p67
    %p74 = scmp.eq.s32.totalorder %s32, 1
    %p75 = por %p73, %p74
    %p76 = scmp.ne.s32.totalorder %s68, %s71
    %p77 = scmp.eq.s32.totalorder %s32, 0
    %p78 = por %p76, %p77
    %p79 = scmp.ne.s32.totalorder %s68, %s71
    %p80 = scmp.eq.s32.totalorder %s37, 1
    %p81 = por %p79, %p80
    %p82 = scmp.ne.s32.totalorder %s71, %s72
    %p83 = scmp.eq.s32.totalorder %s37, 0
    %p84 = por %p82, %p83
    %p85 = scmp.ne.s32.totalorder %s71, %s72
    %p86 = scmp.eq.s32.totalorder %s38, 1
    %p87 = por %p85, %p86
    %p89 = scmp.ne.s32.totalorder %s72, %s88
    %p90 = scmp.eq.s32.totalorder %s38, 0
    %p91 = por %p89, %p90
    %s92 = ssub.s32 %s32, %s39
    %p93 = scmp.eq.s32.totalorder %s92, 0
    %s95 = sadd.s32 %s94, 1
    %s96 = scalar_select %p93, %s94, %s95
    %p99 = pneg %p93
    %p100 = scmp.eq.s32.totalorder %s32, 1
    %p101 = por %p99, %p100
    %p102 = scmp.ne.s32.totalorder %s94, %s97
    %p103 = scmp.eq.s32.totalorder %s32, 0
    %p104 = por %p102, %p103
    %p105 = scmp.ne.s32.totalorder %s94, %s97
    %p106 = scmp.eq.s32.totalorder %s37, 1
    %p107 = por %p105, %p106
    %p108 = scmp.ne.s32.totalorder %s97, %s98
    %p109 = scmp.eq.s32.totalorder %s37, 0
    %p110 = por %p108, %p109
    %p111 = scmp.ne.s32.totalorder %s97, %s98
    %p112 = scmp.eq.s32.totalorder %s38, 1
    %p113 = por %p111, %p112
    %p115 = scmp.ne.s32.totalorder %s98, %s114
    %p116 = scmp.eq.s32.totalorder %s38, 0
    %p117 = por %p115, %p116
    %s118 = ssub.s32 %s32, %s39
    %p119 = scmp.eq.s32.totalorder %s118, 0
    %s121 = sadd.s32 %s120, 1
    %s122 = scalar_select %p119, %s120, %s121
    %p125 = pneg %p119
    %p126 = scmp.eq.s32.totalorder %s32, 1
    %p127 = por %p125, %p126
    %p128 = scmp.ne.s32.totalorder %s120, %s123
    %p129 = scmp.eq.s32.totalorder %s32, 0
    %p130 = por %p128, %p129
    %p131 = scmp.ne.s32.totalorder %s120, %s123
    %p132 = scmp.eq.s32.totalorder %s37, 1
    %p133 = por %p131, %p132
    %p134 = scmp.ne.s32.totalorder %s123, %s124
    %p135 = scmp.eq.s32.totalorder %s37, 0
    %p136 = por %p134, %p135
    %p137 = scmp.ne.s32.totalorder %s123, %s124
    %p138 = scmp.eq.s32.totalorder %s38, 1
    %p139 = por %p137, %p138
    %p141 = scmp.ne.s32.totalorder %s124, %s140
    %p142 = scmp.eq.s32.totalorder %s38, 0
    %p143 = por %p141, %p142
    %s145 = sadd.s32 %s144, 1
    %p148 = scmp.eq.s32.totalorder %s32, 1
    %p149 = scmp.ne.s32.totalorder %s144, %s146
    %p150 = scmp.eq.s32.totalorder %s32, 0
    %p151 = por %p149, %p150
    %p152 = scmp.ne.s32.totalorder %s144, %s146
    %p153 = scmp.eq.s32.totalorder %s37, 1
    %p154 = por %p152, %p153
    %p155 = scmp.ne.s32.totalorder %s146, %s147
    %p156 = scmp.eq.s32.totalorder %s37, 0
    %p157 = por %p155, %p156
    %p158 = scmp.ne.s32.totalorder %s146, %s147
    %p159 = scmp.eq.s32.totalorder %s38, 1
    %p160 = por %p158, %p159
    %p162 = scmp.ne.s32.totalorder %s147, %s161
    %p163 = scmp.eq.s32.totalorder %s38, 0
    %p164 = por %p162, %p163
    %s166 = sadd.s32 %s165, 1
    %p169 = scmp.eq.s32.totalorder %s32, 1
    %p170 = scmp.ne.s32.totalorder %s165, %s167
    %p171 = scmp.eq.s32.totalorder %s32, 0
    %p172 = por %p170, %p171
    %p173 = scmp.ne.s32.totalorder %s165, %s167
    %p174 = scmp.eq.s32.totalorder %s37, 1
    %p175 = por %p173, %p174
    %p176 = scmp.ne.s32.totalorder %s167, %s168
    %p177 = scmp.eq.s32.totalorder %s37, 0
    %p178 = por %p176, %p177
    %p179 = scmp.ne.s32.totalorder %s167, %s168
    %p180 = scmp.eq.s32.totalorder %s38, 1
    %p181 = por %p179, %p180
    %p183 = scmp.ne.s32.totalorder %s168, %s182
    %p184 = scmp.eq.s32.totalorder %s38, 0
    %p185 = por %p183, %p184
    %s187 = sadd.s32 %s186, 1
    %p190 = scmp.eq.s32.totalorder %s32, 1
    %p191 = scmp.ne.s32.totalorder %s186, %s188
    %p192 = scmp.eq.s32.totalorder %s32, 0
    %p193 = por %p191, %p192
    %p194 = scmp.ne.s32.totalorder %s186, %s188
    %p195 = scmp.eq.s32.totalorder %s37, 1
    %p196 = por %p194, %p195
    %p197 = scmp.ne.s32.totalorder %s188, %s189
    %p198 = scmp.eq.s32.totalorder %s37, 0
    %p199 = por %p197, %p198
    %p200 = scmp.ne.s32.totalorder %s188, %s189
    %p201 = scmp.eq.s32.totalorder %s38, 1
    %p202 = por %p200, %p201
    %p204 = scmp.ne.s32.totalorder %s189, %s203
    %p205 = scmp.eq.s32.totalorder %s38, 0
    %p206 = por %p204, %p205
    %s208 = sadd.s32 %s207, 1
    %p211 = scmp.eq.s32.totalorder %s32, 1
    %p212 = scmp.ne.s32.totalorder %s207, %s209
    %p213 = scmp.eq.s32.totalorder %s32, 0
    %p214 = por %p212, %p213
    %p215 = scmp.ne.s32.totalorder %s207, %s209
    %p216 = scmp.eq.s32.totalorder %s37, 1
    %p217 = por %p215, %p216
    %p218 = scmp.ne.s32.totalorder %s209, %s210
    %p219 = scmp.eq.s32.totalorder %s37, 0
    %p220 = por %p218, %p219
    %p221 = scmp.ne.s32.totalorder %s209, %s210
    %p222 = scmp.eq.s32.totalorder %s38, 1
    %p223 = por %p221, %p222
    %p225 = scmp.ne.s32.totalorder %s210, %s224
    %p226 = scmp.eq.s32.totalorder %s38, 0
    %p227 = por %p225, %p226
    %s229 = sadd.s32 %s228, 1
    %p232 = scmp.eq.s32.totalorder %s32, 1
    %p233 = scmp.ne.s32.totalorder %s228, %s230
    %p234 = scmp.eq.s32.totalorder %s32, 0
    %p235 = por %p233, %p234
    %p236 = scmp.ne.s32.totalorder %s228, %s230
    %p237 = scmp.eq.s32.totalorder %s37, 1
    %p238 = por %p236, %p237
    %p239 = scmp.ne.s32.totalorder %s230, %s231
    %p240 = scmp.eq.s32.totalorder %s37, 0
    %p241 = por %p239, %p240
    %p242 = scmp.ne.s32.totalorder %s230, %s231
    %p243 = scmp.eq.s32.totalorder %s38, 1
    %p244 = por %p242, %p243
    %p246 = scmp.ne.s32.totalorder %s231, %s245
    %p247 = scmp.eq.s32.totalorder %s38, 0
    %p248 = por %p246, %p247
    %s250 = sadd.s32 %s249, 1
    %p253 = scmp.eq.s32.totalorder %s32, 1
    %p254 = scmp.ne.s32.totalorder %s249, %s251
    %p255 = scmp.eq.s32.totalorder %s32, 0
    %p256 = por %p254, %p255
    %p257 = scmp.ne.s32.totalorder %s249, %s251
    %p258 = scmp.eq.s32.totalorder %s37, 1
    %p259 = por %p257, %p258
    %p260 = scmp.ne.s32.totalorder %s251, %s252
    %p261 = scmp.eq.s32.totalorder %s37, 0
    %p262 = por %p260, %p261
    %p263 = scmp.ne.s32.totalorder %s251, %s252
    %p264 = scmp.eq.s32.totalorder %s38, 1
    %p265 = por %p263, %p264
    %p267 = scmp.ne.s32.totalorder %s252, %s266
    %p268 = scmp.eq.s32.totalorder %s38, 0
    %p269 = por %p267, %p268
    %s271 = sadd.s32 %s270, 1
    %p274 = scmp.eq.s32.totalorder %s32, 1
    %p275 = scmp.ne.s32.totalorder %s270, %s272
    %p276 = scmp.eq.s32.totalorder %s32, 0
    %p277 = por %p275, %p276
    %p278 = scmp.ne.s32.totalorder %s270, %s272
    %p279 = scmp.eq.s32.totalorder %s37, 1
    %p280 = por %p278, %p279
    %p281 = scmp.ne.s32.totalorder %s272, %s273
    %p282 = scmp.eq.s32.totalorder %s37, 0
    %p283 = por %p281, %p282
    %p284 = scmp.ne.s32.totalorder %s272, %s273
    %p285 = scmp.eq.s32.totalorder %s38, 1
    %p286 = por %p284, %p285
    %p288 = scmp.ne.s32.totalorder %s273, %s287
    %p289 = scmp.eq.s32.totalorder %s38, 0
    %p290 = por %p288, %p289
    %s292 = sadd.s32 %s291, 1
    %p295 = scmp.eq.s32.totalorder %s32, 1
    %p296 = scmp.ne.s32.totalorder %s291, %s293
    %p297 = scmp.eq.s32.totalorder %s32, 0
    %p298 = por %p296, %p297
    %p299 = scmp.ne.s32.totalorder %s291, %s293
    %p300 = scmp.eq.s32.totalorder %s37, 1
    %p301 = por %p299, %p300
    %p302 = scmp.ne.s32.totalorder %s293, %s294
    %p303 = scmp.eq.s32.totalorder %s37, 0
    %p304 = por %p302, %p303
    %p305 = scmp.ne.s32.totalorder %s293, %s294
    %p306 = scmp.eq.s32.totalorder %s38, 1
    %p307 = por %p305, %p306
    %p309 = scmp.ne.s32.totalorder %s294, %s308
    %p310 = scmp.eq.s32.totalorder %s38, 0
    %p311 = por %p309, %p310
    %s313 = sadd.s32 %s312, 1
    %p316 = scmp.eq.s32.totalorder %s32, 1
    %p317 = scmp.ne.s32.totalorder %s312, %s314
    %p318 = scmp.eq.s32.totalorder %s32, 0
    %p319 = por %p317, %p318
    %p320 = scmp.ne.s32.totalorder %s312, %s314
    %p321 = scmp.eq.s32.totalorder %s37, 1
    %p322 = por %p320, %p321
    %p323 = scmp.ne.s32.totalorder %s314, %s315
    %p324 = scmp.eq.s32.totalorder %s37, 0
    %p325 = por %p323, %p324
    %p326 = scmp.ne.s32.totalorder %s314, %s315
    %p327 = scmp.eq.s32.totalorder %s38, 1
    %p328 = por %p326, %p327
    %p330 = scmp.ne.s32.totalorder %s315, %s329
    %p331 = scmp.eq.s32.totalorder %s38, 0
    %p332 = por %p330, %p331
    %s334 = sadd.s32 %s333, 1
    %p337 = scmp.eq.s32.totalorder %s32, 1
    %p338 = scmp.ne.s32.totalorder %s333, %s335
    %p339 = scmp.eq.s32.totalorder %s32, 0
    %p340 = por %p338, %p339
    %p341 = scmp.ne.s32.totalorder %s333, %s335
    %p342 = scmp.eq.s32.totalorder %s37, 1
    %p343 = por %p341, %p342
    %p344 = scmp.ne.s32.totalorder %s335, %s336
    %p345 = scmp.eq.s32.totalorder %s37, 0
    %p346 = por %p344, %p345
    %p347 = scmp.ne.s32.totalorder %s335, %s336
    %p348 = scmp.eq.s32.totalorder %s38, 1
    %p349 = por %p347, %p348
    %p351 = scmp.ne.s32.totalorder %s336, %s350
    %p352 = scmp.eq.s32.totalorder %s38, 0
    %p353 = por %p351, %p352
    %s355 = sadd.s32 %s354, 1
    %p358 = scmp.eq.s32.totalorder %s32, 1
    %p359 = scmp.ne.s32.totalorder %s354, %s356
    %p360 = scmp.eq.s32.totalorder %s32, 0
    %p361 = por %p359, %p360
    %p362 = scmp.ne.s32.totalorder %s354, %s356
    %p363 = scmp.eq.s32.totalorder %s37, 1
    %p364 = por %p362, %p363
    %p365 = scmp.ne.s32.totalorder %s356, %s357
    %p366 = scmp.eq.s32.totalorder %s37, 0
    %p367 = por %p365, %p366
    %p368 = scmp.ne.s32.totalorder %s356, %s357
    %p369 = scmp.eq.s32.totalorder %s38, 1
    %p370 = por %p368, %p369
    %p372 = scmp.ne.s32.totalorder %s357, %s371
    %p373 = scmp.eq.s32.totalorder %s38, 0
    %p374 = por %p372, %p373
    %s376 = sadd.s32 %s375, 1
    %p379 = scmp.eq.s32.totalorder %s32, 1
    %p380 = scmp.ne.s32.totalorder %s375, %s377
    %p381 = scmp.eq.s32.totalorder %s32, 0
    %p382 = por %p380, %p381
    %p383 = scmp.ne.s32.totalorder %s375, %s377
    %p384 = scmp.eq.s32.totalorder %s37, 1
    %p385 = por %p383, %p384
    %p386 = scmp.ne.s32.totalorder %s377, %s378
    %p387 = scmp.eq.s32.totalorder %s37, 0
    %p388 = por %p386, %p387
    %p389 = scmp.ne.s32.totalorder %s377, %s378
    %p390 = scmp.eq.s32.totalorder %s38, 1
    %p391 = por %p389, %p390
    %p393 = scmp.ne.s32.totalorder %s378, %s392
    %p394 = scmp.eq.s32.totalorder %s38, 0
    %p395 = por %p393, %p394
    %s397 = sadd.s32 %s396, 1
    %p400 = scmp.eq.s32.totalorder %s32, 1
    %p401 = scmp.ne.s32.totalorder %s396, %s398
    %p402 = scmp.eq.s32.totalorder %s32, 0
    %p403 = por %p401, %p402
    %p404 = scmp.ne.s32.totalorder %s396, %s398
    %p405 = scmp.eq.s32.totalorder %s37, 1
    %p406 = por %p404, %p405
    %p407 = scmp.ne.s32.totalorder %s398, %s399
    %p408 = scmp.eq.s32.totalorder %s37, 0
    %p409 = por %p407, %p408
    %p410 = scmp.ne.s32.totalorder %s398, %s399
    %p411 = scmp.eq.s32.totalorder %s38, 1
    %p412 = por %p410, %p411
    %p414 = scmp.ne.s32.totalorder %s399, %s413
    %p415 = scmp.eq.s32.totalorder %s38, 0
    %p416 = por %p414, %p415
    %s418 = sadd.s32 %s417, 1
    %p421 = scmp.eq.s32.totalorder %s32, 1
    %p422 = scmp.ne.s32.totalorder %s417, %s419
    %p423 = scmp.eq.s32.totalorder %s32, 0
    %p424 = por %p422, %p423
    %p425 = scmp.ne.s32.totalorder %s417, %s419
    %p426 = scmp.eq.s32.totalorder %s37, 1
    %p427 = por %p425, %p426
    %p428 = scmp.ne.s32.totalorder %s419, %s420
    %p429 = scmp.eq.s32.totalorder %s37, 0
    %p430 = por %p428, %p429
    %p431 = scmp.ne.s32.totalorder %s419, %s420
    %p432 = scmp.eq.s32.totalorder %s38, 1
    %p433 = por %p431, %p432
    %p435 = scmp.ne.s32.totalorder %s420, %s434
    %p436 = scmp.eq.s32.totalorder %s38, 0
    %p437 = por %p435, %p436
    %s439 = sadd.s32 %s438, 1
    %p442 = scmp.eq.s32.totalorder %s32, 1
    %p443 = scmp.ne.s32.totalorder %s438, %s440
    %p444 = scmp.eq.s32.totalorder %s32, 0
    %p445 = por %p443, %p444
    %p446 = scmp.ne.s32.totalorder %s438, %s440
    %p447 = scmp.eq.s32.totalorder %s37, 1
    %p448 = por %p446, %p447
    %p449 = scmp.ne.s32.totalorder %s440, %s441
    %p450 = scmp.eq.s32.totalorder %s37, 0
    %p451 = por %p449, %p450
    %p452 = scmp.ne.s32.totalorder %s440, %s441
    %p453 = scmp.eq.s32.totalorder %s38, 1
    %p454 = por %p452, %p453
    %p456 = scmp.ne.s32.totalorder %s441, %s455
    %p457 = scmp.eq.s32.totalorder %s38, 0
    %p458 = por %p456, %p457
    %s460 = sadd.s32 %s459, 1
    %p463 = scmp.eq.s32.totalorder %s32, 1
    %p464 = scmp.ne.s32.totalorder %s459, %s461
    %p465 = scmp.eq.s32.totalorder %s32, 0
    %p466 = por %p464, %p465
    %p467 = scmp.ne.s32.totalorder %s459, %s461
    %p468 = scmp.eq.s32.totalorder %s37, 1
    %p469 = por %p467, %p468
    %p470 = scmp.ne.s32.totalorder %s461, %s462
    %p471 = scmp.eq.s32.totalorder %s37, 0
    %p472 = por %p470, %p471
    %p473 = scmp.ne.s32.totalorder %s461, %s462
    %p474 = scmp.eq.s32.totalorder %s38, 1
    %p475 = por %p473, %p474
    %p477 = scmp.ne.s32.totalorder %s462, %s476
    %p478 = scmp.eq.s32.totalorder %s38, 0
    %p479 = por %p477, %p478
    %s481 = sadd.s32 %s480, 1
    %p484 = scmp.eq.s32.totalorder %s32, 1
    %p485 = scmp.ne.s32.totalorder %s480, %s482
    %p486 = scmp.eq.s32.totalorder %s32, 0
    %p487 = por %p485, %p486
    %p488 = scmp.ne.s32.totalorder %s480, %s482
    %p489 = scmp.eq.s32.totalorder %s37, 1
    %p490 = por %p488, %p489
    %p491 = scmp.ne.s32.totalorder %s482, %s483
    %p492 = scmp.eq.s32.totalorder %s37, 0
    %p493 = por %p491, %p492
    %p494 = scmp.ne.s32.totalorder %s482, %s483
    %p495 = scmp.eq.s32.totalorder %s38, 1
    %p496 = por %p494, %p495
    %p498 = scmp.ne.s32.totalorder %s483, %s497
    %p499 = scmp.eq.s32.totalorder %s38, 0
    %p500 = por %p498, %p499
    %s502 = sadd.s32 %s501, 1
    %p505 = scmp.eq.s32.totalorder %s32, 1
    %p506 = scmp.ne.s32.totalorder %s501, %s503
    %p507 = scmp.eq.s32.totalorder %s32, 0
    %p508 = por %p506, %p507
    %p509 = scmp.ne.s32.totalorder %s501, %s503
    %p510 = scmp.eq.s32.totalorder %s37, 1
    %p511 = por %p509, %p510
    %p512 = scmp.ne.s32.totalorder %s503, %s504
    %p513 = scmp.eq.s32.totalorder %s37, 0
    %p514 = por %p512, %p513
    %p515 = scmp.ne.s32.totalorder %s503, %s504
    %p516 = scmp.eq.s32.totalorder %s38, 1
    %p517 = por %p515, %p516
    %p519 = scmp.ne.s32.totalorder %s504, %s518
    %p520 = scmp.eq.s32.totalorder %s38, 0
    %p521 = por %p519, %p520
    %s523 = sadd.s32 %s522, 1
    %p526 = scmp.eq.s32.totalorder %s32, 1
    %p527 = scmp.ne.s32.totalorder %s522, %s524
    %p528 = scmp.eq.s32.totalorder %s32, 0
    %p529 = por %p527, %p528
    %p530 = scmp.ne.s32.totalorder %s522, %s524
    %p531 = scmp.eq.s32.totalorder %s37, 1
    %p532 = por %p530, %p531
    %p533 = scmp.ne.s32.totalorder %s524, %s525
    %p534 = scmp.eq.s32.totalorder %s37, 0
    %p535 = por %p533, %p534
    %p536 = scmp.ne.s32.totalorder %s524, %s525
    %p537 = scmp.eq.s32.totalorder %s38, 1
    %p538 = por %p536, %p537
    %p540 = scmp.ne.s32.totalorder %s525, %s539
    %p541 = scmp.eq.s32.totalorder %s38, 0
    %p542 = por %p540, %p541
    %s544 = sadd.s32 %s543, 1
    %p547 = scmp.eq.s32.totalorder %s32, 1
    %p548 = scmp.ne.s32.totalorder %s543, %s545
    %p549 = scmp.eq.s32.totalorder %s32, 0
    %p550 = por %p548, %p549
    %p551 = scmp.ne.s32.totalorder %s543, %s545
    %p552 = scmp.eq.s32.totalorder %s37, 1
    %p553 = por %p551, %p552
    %p554 = scmp.ne.s32.totalorder %s545, %s546
    %p555 = scmp.eq.s32.totalorder %s37, 0
    %p556 = por %p554, %p555
    %p557 = scmp.ne.s32.totalorder %s545, %s546
    %p558 = scmp.eq.s32.totalorder %s38, 1
    %p559 = por %p557, %p558
    %p561 = scmp.ne.s32.totalorder %s546, %s560
    %p562 = scmp.eq.s32.totalorder %s38, 0
    %p563 = por %p561, %p562
    %s565 = sadd.s32 %s564, 1
    %p568 = scmp.eq.s32.totalorder %s32, 1
    %p569 = scmp.ne.s32.totalorder %s564, %s566
    %p570 = scmp.eq.s32.totalorder %s32, 0
    %p571 = por %p569, %p570
    %p572 = scmp.ne.s32.totalorder %s564, %s566
    %p573 = scmp.eq.s32.totalorder %s37, 1
    %p574 = por %p572, %p573
    %p575 = scmp.ne.s32.totalorder %s566, %s567
    %p576 = scmp.eq.s32.totalorder %s37, 0
    %p577 = por %p575, %p576
    %p578 = scmp.ne.s32.totalorder %s566, %s567
    %p579 = scmp.eq.s32.totalorder %s38, 1
    %p580 = por %p578, %p579
    %p582 = scmp.ne.s32.totalorder %s567, %s581
    %p583 = scmp.eq.s32.totalorder %s38, 0
    %p584 = por %p582, %p583
    %s586 = sadd.s32 %s585, 1
    %p589 = scmp.eq.s32.totalorder %s32, 1
    %p590 = scmp.ne.s32.totalorder %s585, %s587
    %p591 = scmp.eq.s32.totalorder %s32, 0
    %p592 = por %p590, %p591
    %p593 = scmp.ne.s32.totalorder %s585, %s587
    %p594 = scmp.eq.s32.totalorder %s37, 1
    %p595 = por %p593, %p594
    %p596 = scmp.ne.s32.totalorder %s587, %s588
    %p597 = scmp.eq.s32.totalorder %s37, 0
    %p598 = por %p596, %p597
    %p599 = scmp.ne.s32.totalorder %s587, %s588
    %p600 = scmp.eq.s32.totalorder %s38, 1
    %p601 = por %p599, %p600
    %p603 = scmp.ne.s32.totalorder %s588, %s602
    %p604 = scmp.eq.s32.totalorder %s38, 0
    %p605 = por %p603, %p604
    %s606 = ssub.s32 %s32, %s39
    %p607 = scmp.eq.s32.totalorder %s606, 0
    %s609 = sadd.s32 %s608, 1
    %s610 = scalar_select %p607, %s608, %s609
    %p613 = pneg %p607
    %p614 = scmp.eq.s32.totalorder %s32, 1
    %p615 = por %p613, %p614
    %p616 = scmp.ne.s32.totalorder %s608, %s611
    %p617 = scmp.eq.s32.totalorder %s32, 0
    %p618 = por %p616, %p617
    %p619 = scmp.ne.s32.totalorder %s608, %s611
    %p620 = scmp.eq.s32.totalorder %s37, 1
    %p621 = por %p619, %p620
    %p622 = scmp.ne.s32.totalorder %s611, %s612
    %p623 = scmp.eq.s32.totalorder %s37, 0
    %p624 = por %p622, %p623
    %p625 = scmp.ne.s32.totalorder %s611, %s612
    %p626 = scmp.eq.s32.totalorder %s38, 1
    %p627 = por %p625, %p626
    %p629 = scmp.ne.s32.totalorder %s612, %s628
    %p630 = scmp.eq.s32.totalorder %s38, 0
    %p631 = por %p629, %p630
    %p632 = scmp.le.s32.totalorder 1, %s32
    %p633 = scmp.lt.s32.totalorder %s32, 3
    %p634 = pnand %p632, %p633
    %p635 = pneg %p634
    // Predicated region
    $region9: #{model_part_forward.1} parent=5 // pred_check
      _
    $region10: #{model_part_forward.1} parent=5 // pred_check_branch
      %637 = sbr.rel (%p634) target = $region12
    $region11: #{model_part_forward.1} parent=5 // pred_region
      %s638 = ssub.s32 %s32, 1
      // Predicated region
      $region13: #{model_part_forward.1} parent=11 // pred_check
        %p639 = pneg %p157
      $region14: #{model_part_forward.1} parent=11 // pred_check_branch
        %641 = sbr.rel (%p639) target = $region16
      $region15: #{model_part_forward.1} parent=11 // pred_region
        _
      $region16: #{model_part_forward.1} parent=11 // pred_fallthru
        _
      // Predicated region
      $region17: #{model_part_forward.1} parent=11 // pred_check
        %p642 = pneg %p178
      $region18: #{model_part_forward.1} parent=11 // pred_check_branch
        %644 = sbr.rel (%p642) target = $region20
      $region19: #{model_part_forward.1} parent=11 // pred_region
        _
      $region20: #{model_part_forward.1} parent=11 // pred_fallthru
        _
      // Predicated region
      $region21: #{model_part_forward.1} parent=11 // pred_check
        %p645 = pneg %p199
      $region22: #{model_part_forward.1} parent=11 // pred_check_branch
        %647 = sbr.rel (%p645) target = $region24
      $region23: #{model_part_forward.1} parent=11 // pred_region
        _
      $region24: #{model_part_forward.1} parent=11 // pred_fallthru
        _
      // Predicated region
      $region25: #{model_part_forward.1} parent=11 // pred_check
        %p648 = pneg %p220
      $region26: #{model_part_forward.1} parent=11 // pred_check_branch
        %650 = sbr.rel (%p648) target = $region28
      $region27: #{model_part_forward.1} parent=11 // pred_region
        _
      $region28: #{model_part_forward.1} parent=11 // pred_fallthru
        _
      // Predicated region
      $region29: #{model_part_forward.1} parent=11 // pred_check
        %p651 = pneg %p241
      $region30: #{model_part_forward.1} parent=11 // pred_check_branch
        %653 = sbr.rel (%p651) target = $region32
      $region31: #{model_part_forward.1} parent=11 // pred_region
        _
      $region32: #{model_part_forward.1} parent=11 // pred_fallthru
        _
      // Predicated region
      $region33: #{model_part_forward.1} parent=11 // pred_check
        %p654 = pneg %p262
      $region34: #{model_part_forward.1} parent=11 // pred_check_branch
        %656 = sbr.rel (%p654) target = $region36
      $region35: #{model_part_forward.1} parent=11 // pred_region
        _
      $region36: #{model_part_forward.1} parent=11 // pred_fallthru
        _
      // Predicated region
      $region37: #{model_part_forward.1} parent=11 // pred_check
        %p657 = pneg %p283
      $region38: #{model_part_forward.1} parent=11 // pred_check_branch
        %659 = sbr.rel (%p657) target = $region40
      $region39: #{model_part_forward.1} parent=11 // pred_region
        _
      $region40: #{model_part_forward.1} parent=11 // pred_fallthru
        _
      // Predicated region
      $region41: #{model_part_forward.1} parent=11 // pred_check
        %p660 = pneg %p304
      $region42: #{model_part_forward.1} parent=11 // pred_check_branch
        %662 = sbr.rel (%p660) target = $region44
      $region43: #{model_part_forward.1} parent=11 // pred_region
        _
      $region44: #{model_part_forward.1} parent=11 // pred_fallthru
        _
      // Predicated region
      $region45: #{model_part_forward.1} parent=11 // pred_check
        %p663 = pneg %p325
      $region46: #{model_part_forward.1} parent=11 // pred_check_branch
        %665 = sbr.rel (%p663) target = $region48
      $region47: #{model_part_forward.1} parent=11 // pred_region
        _
      $region48: #{model_part_forward.1} parent=11 // pred_fallthru
        _
      // Predicated region
      $region49: #{model_part_forward.1} parent=11 // pred_check
        %p666 = pneg %p346
      $region50: #{model_part_forward.1} parent=11 // pred_check_branch
        %668 = sbr.rel (%p666) target = $region52
      $region51: #{model_part_forward.1} parent=11 // pred_region
        _
      $region52: #{model_part_forward.1} parent=11 // pred_fallthru
        _
      // Predicated region
      $region53: #{model_part_forward.1} parent=11 // pred_check
        %p669 = pneg %p367
      $region54: #{model_part_forward.1} parent=11 // pred_check_branch
        %671 = sbr.rel (%p669) target = $region56
      $region55: #{model_part_forward.1} parent=11 // pred_region
        _
      $region56: #{model_part_forward.1} parent=11 // pred_fallthru
        _
      // Predicated region
      $region57: #{model_part_forward.1} parent=11 // pred_check
        %p672 = pneg %p388
      $region58: #{model_part_forward.1} parent=11 // pred_check_branch
        %674 = sbr.rel (%p672) target = $region60
      $region59: #{model_part_forward.1} parent=11 // pred_region
        _
      $region60: #{model_part_forward.1} parent=11 // pred_fallthru
        _
      // Predicated region
      $region61: #{model_part_forward.1} parent=11 // pred_check
        %p675 = pneg %p409
      $region62: #{model_part_forward.1} parent=11 // pred_check_branch
        %677 = sbr.rel (%p675) target = $region64
      $region63: #{model_part_forward.1} parent=11 // pred_region
        _
      $region64: #{model_part_forward.1} parent=11 // pred_fallthru
        _
      // Predicated region
      $region65: #{model_part_forward.1} parent=11 // pred_check
        %p678 = pneg %p430
      $region66: #{model_part_forward.1} parent=11 // pred_check_branch
        %680 = sbr.rel (%p678) target = $region68
      $region67: #{model_part_forward.1} parent=11 // pred_region
        _
      $region68: #{model_part_forward.1} parent=11 // pred_fallthru
        _
      // Predicated region
      $region69: #{model_part_forward.1} parent=11 // pred_check
        %p681 = pneg %p451
      $region70: #{model_part_forward.1} parent=11 // pred_check_branch
        %683 = sbr.rel (%p681) target = $region72
      $region71: #{model_part_forward.1} parent=11 // pred_region
        _
      $region72: #{model_part_forward.1} parent=11 // pred_fallthru
        _
      // Predicated region
      $region73: #{model_part_forward.1} parent=11 // pred_check
        %p684 = pneg %p472
      $region74: #{model_part_forward.1} parent=11 // pred_check_branch
        %686 = sbr.rel (%p684) target = $region76
      $region75: #{model_part_forward.1} parent=11 // pred_region
        _
      $region76: #{model_part_forward.1} parent=11 // pred_fallthru
        _
      // Predicated region
      $region77: #{model_part_forward.1} parent=11 // pred_check
        %p687 = pneg %p493
      $region78: #{model_part_forward.1} parent=11 // pred_check_branch
        %689 = sbr.rel (%p687) target = $region80
      $region79: #{model_part_forward.1} parent=11 // pred_region
        _
      $region80: #{model_part_forward.1} parent=11 // pred_fallthru
        _
      // Predicated region
      $region81: #{model_part_forward.1} parent=11 // pred_check
        %p690 = pneg %p514
      $region82: #{model_part_forward.1} parent=11 // pred_check_branch
        %692 = sbr.rel (%p690) target = $region84
      $region83: #{model_part_forward.1} parent=11 // pred_region
        _
      $region84: #{model_part_forward.1} parent=11 // pred_fallthru
        _
      // Predicated region
      $region85: #{model_part_forward.1} parent=11 // pred_check
        %p693 = pneg %p535
      $region86: #{model_part_forward.1} parent=11 // pred_check_branch
        %695 = sbr.rel (%p693) target = $region88
      $region87: #{model_part_forward.1} parent=11 // pred_region
        _
      $region88: #{model_part_forward.1} parent=11 // pred_fallthru
        _
      // Predicated region
      $region89: #{model_part_forward.1} parent=11 // pred_check
        %p696 = pneg %p556
      $region90: #{model_part_forward.1} parent=11 // pred_check_branch
        %698 = sbr.rel (%p696) target = $region92
      $region91: #{model_part_forward.1} parent=11 // pred_region
        _
      $region92: #{model_part_forward.1} parent=11 // pred_fallthru
        _
      // Predicated region
      $region93: #{model_part_forward.1} parent=11 // pred_check
        %p699 = pneg %p577
      $region94: #{model_part_forward.1} parent=11 // pred_check_branch
        %701 = sbr.rel (%p699) target = $region96
      $region95: #{model_part_forward.1} parent=11 // pred_region
        _
      $region96: #{model_part_forward.1} parent=11 // pred_fallthru
        _
      // Predicated region
      $region97: #{model_part_forward.1} parent=11 // pred_check
        %p702 = pneg %p598
      $region98: #{model_part_forward.1} parent=11 // pred_check_branch
        %704 = sbr.rel (%p702) target = $region100
      $region99: #{model_part_forward.1} parent=11 // pred_region
        _
      $region100: #{model_part_forward.1} parent=11 // pred_fallthru
        _
    $region12: #{model_part_forward.1} parent=5 // pred_fallthru
      _
    %p705 = scmp.lt.s32.totalorder %s32, 2
    // Predicated region
    $region101: #{model_part_forward.1} parent=5 // pred_check
      %p706 = pneg %p705
    $region102: #{model_part_forward.1} parent=5 // pred_check_branch
      %708 = sbr.rel (%p706) target = $region104
    $region103: #{model_part_forward.1} parent=5 // pred_region
      // Predicated region
      $region105: #{model_part_forward.1} parent=103 // pred_check
        %p709 = pneg %p52
      $region106: #{model_part_forward.1} parent=103 // pred_check_branch
        %711 = sbr.rel (%p709) target = $region108
      $region107: #{model_part_forward.1} parent=103 // pred_region
        %p712 = scmp.lt.s32.totalorder %s32, 1
        %s713 = scalar_select %p712, %s32, 1
        %s714 = smul.addr %s713, 8
        %s715 = scalar_lea.vmem %s0, %s714
      $region108: #{model_part_forward.1} parent=103 // pred_fallthru
        _
      // Predicated region
      $region109: #{model_part_forward.1} parent=103 // pred_check
        %p716 = pneg %p78
      $region110: #{model_part_forward.1} parent=103 // pred_check_branch
        %718 = sbr.rel (%p716) target = $region112
      $region111: #{model_part_forward.1} parent=103 // pred_region
        %p719 = scmp.lt.s32.totalorder %s32, 1
        %s720 = scalar_select %p719, %s32, 1
        %s721 = scalar_lea.vmem %s1, %s720
      $region112: #{model_part_forward.1} parent=103 // pred_fallthru
        _
      // Predicated region
      $region113: #{model_part_forward.1} parent=103 // pred_check
        %p722 = pneg %p104
      $region114: #{model_part_forward.1} parent=103 // pred_check_branch
        %724 = sbr.rel (%p722) target = $region116
      $region115: #{model_part_forward.1} parent=103 // pred_region
        %p725 = scmp.lt.s32.totalorder %s32, 1
        %s726 = scalar_select %p725, %s32, 1
        %s727 = scalar_lea.vmem %s2, %s726
      $region116: #{model_part_forward.1} parent=103 // pred_fallthru
        _
      // Predicated region
      $region117: #{model_part_forward.1} parent=103 // pred_check
        %p728 = pneg %p130
      $region118: #{model_part_forward.1} parent=103 // pred_check_branch
        %730 = sbr.rel (%p728) target = $region120
      $region119: #{model_part_forward.1} parent=103 // pred_region
        %p731 = scmp.lt.s32.totalorder %s32, 1
        %s732 = scalar_select %p731, %s32, 1
        %s733 = smul.addr %s732, 2
        %s734 = scalar_lea.vmem %s3, %s733
      $region120: #{model_part_forward.1} parent=103 // pred_fallthru
        _
    $region104: #{model_part_forward.1} parent=5 // pred_fallthru
      _
    %p735 = scmp.le.s32.totalorder 1, %s32
    %p736 = scmp.lt.s32.totalorder %s32, 3
    %p737 = pnand %p735, %p736
    %p738 = pneg %p737
    // Predicated region
    $region121: #{model_part_forward.1} parent=5 // pred_check
      _
    $region122: #{model_part_forward.1} parent=5 // pred_check_branch
      %740 = sbr.rel (%p737) target = $region124
    $region123: #{model_part_forward.1} parent=5 // pred_region
      %s741 = ssub.s32 %s32, 1
      %p742 = scmp.lt.s32.totalorder %s37, 1
      %s743 = scalar_select %p742, %s37, 1
      %s744 = smul.addr %s743, 8
      %s745 = scalar_lea.vmem %s0, %s744
      %p746 = pneg %p58
      %p747 = pneg %p55
      %p748 = scmp.lt.s32.totalorder %s37, 1
      %s749 = scalar_select %p748, %s37, 1
      %s750 = scalar_lea.vmem %s1, %s749
      %p751 = pneg %p84
      %p752 = pneg %p81
      %p753 = scmp.lt.s32.totalorder %s37, 1
      %s754 = scalar_select %p753, %s37, 1
      %s755 = scalar_lea.vmem %s2, %s754
      %p756 = pneg %p110
      %p757 = pneg %p107
      %p758 = scmp.lt.s32.totalorder %s37, 1
      %s759 = scalar_select %p758, %s37, 1
      %s760 = smul.addr %s759, 2
      %s761 = scalar_lea.vmem %s3, %s760
      %p762 = pneg %p136
      %p763 = pneg %p133
      %p764 = pneg %p157
      %p765 = pneg %p154
      %p766 = pneg %p178
      %p767 = pneg %p175
      %p768 = pneg %p199
      %p769 = pneg %p196
      %p770 = pneg %p220
      %p771 = pneg %p217
      %p772 = pneg %p241
      %p773 = pneg %p238
      %p774 = pneg %p262
      %p775 = pneg %p259
      %p776 = pneg %p283
      %p777 = pneg %p280
      %p778 = pneg %p304
      %p779 = pneg %p301
      %p780 = pneg %p325
      %p781 = pneg %p322
      %p782 = pneg %p346
      %p783 = pneg %p343
      %p784 = pneg %p367
      %p785 = pneg %p364
      %p786 = pneg %p388
      %p787 = pneg %p385
      %p788 = pneg %p409
      %p789 = pneg %p406
      %p790 = pneg %p430
      %p791 = pneg %p427
      %p792 = pneg %p451
      %p793 = pneg %p448
      %p794 = pneg %p472
      %p795 = pneg %p469
      %p796 = pneg %p493
      %p797 = pneg %p490
      %p798 = pneg %p514
      %p799 = pneg %p511
      %p800 = pneg %p535
      %p801 = pneg %p532
      %p802 = pneg %p556
      %p803 = pneg %p553
      %p804 = pneg %p577
      %p805 = pneg %p574
      %p806 = pneg %p598
      %p807 = pneg %p595
      %p808 = pneg %p624
      %p809 = pneg %p621
      %p810 = scmp.lt.s32.totalorder %s37, 1
      %s811 = scalar_select %p810, %s37, 1
      %s812 = smul.addr %s811, 8
      %s813 = scalar_lea.vmem %s26, %s812
      %p814 = scmp.lt.s32.totalorder %s37, 1
      %s815 = scalar_select %p814, %s37, 1
      %s816 = smul.addr %s815, 8
      %s817 = scalar_lea.vmem %s0, %s816
      %p818 = scmp.lt.s32.totalorder %s37, 1
      %s819 = scalar_select %p818, %s37, 1
      %s820 = scalar_lea.vmem %s1, %s819
      %p821 = scmp.lt.s32.totalorder %s37, 1
      %s822 = scalar_select %p821, %s37, 1
      %s823 = scalar_lea.vmem %s2, %s822
      %p824 = scmp.lt.s32.totalorder %s37, 1
      %s825 = scalar_select %p824, %s37, 1
      %s826 = smul.addr %s825, 2
      %s827 = scalar_lea.vmem %s3, %s826
      %p828 = scmp.lt.s32.totalorder %s37, 1
      %s829 = scalar_select %p828, %s37, 1
      %s830 = smul.addr %s829, 8
      %s831 = scalar_lea.vmem %s26, %s830
      %v833 = vld [vmem:[%s817] sm:$0xff]
      %v834 = vld [vmem:[%s820] sm:$0x1]
      %v835 = vsub.f32 1.0, %v834
      %v836 = vmul.f32 %v835, -1e+09
      %v837 = vld [vmem:[%s4] sm:$0x3]
      %v838 = vpack.c.bf16 %v833, %v833
      %v839 = vld [vmem:[%s5] sm:$0x1]
      %v841 = vlaneseq
      %v842 = vshrl.u32 %v841, 7
      %v843 = vsub.s32 0, %v842
      %v844 = vrot.slane %v839, %v843
      %vm846 = vcmask 23552
      %v848 = vsel %vm846, %v838, 0
      %vm850 = vcmask 1040384
      %vm851 = vcmask 1041408
      %v852 = vsel %vm850, 4294967295, 65535
      %v853 = vsel %vm851, %v852, 0
      %v855 = vand.u32 %v837, %v853
      %857 = vmatprep.subr.bf16.mxu0 0
      %858 = vmatpush1.bf16.msra.mxu0 %v855
      %859 = vmatprep.subr.bf16.mxu0 0
      %860 = vmatpush1.bf16.msra.mxu0 0
      %861 = vmatprep.subr.bf16.mxu0 0
      %862 = vmatpush1.bf16.msra.mxu0 0
      %863 = vmatprep.subr.bf16.mxu0 0
      %864 = vmatpush1.bf16.msra.mxu0 0
      %865 = vmatprep.subr.bf16.mxu0 0
      %866 = vmatpush1.bf16.msra.mxu0 0
      %867 = vmatprep.subr.bf16.mxu0 0
      %868 = vmatpush1.bf16.msra.mxu0 0
      %869 = vmatprep.subr.bf16.mxu0 0
      %870 = vmatpush1.bf16.msra.mxu0 0
      %871 = vmatprep.subr.bf16.mxu0 0
      %872 = vmatpush1.bf16.msra.mxu0 0
      %873 = vmatprep.subr.bf16.mxu0 0
      %874 = vmatpush1.bf16.msra.mxu0 0
      %875 = vmatprep.subr.bf16.mxu0 0
      %876 = vmatpush1.bf16.msra.mxu0 0
      %877 = vmatprep.subr.bf16.mxu0 0
      %878 = vmatpush1.bf16.msra.mxu0 0
      %879 = vmatprep.subr.bf16.mxu0 0
      %880 = vmatpush1.bf16.msra.mxu0 0
      %881 = vmatprep.subr.bf16.mxu0 0
      %882 = vmatpush1.bf16.msra.mxu0 0
      %883 = vmatprep.subr.bf16.mxu0 0
      %884 = vmatpush1.bf16.msra.mxu0 0
      %885 = vmatprep.subr.bf16.mxu0 0
      %886 = vmatpush1.bf16.msra.mxu0 0
      %887 = vmatprep.subr.bf16.mxu0 0
      %888 = vmatpush1.bf16.msra.mxu0 0
      %889 = vmatprep.mubr.bf16.mxu0 0
      %890 = vmatmul.mubr.bf16.gmra.mrb[0].mxu0 %v848
      %v891 = vpop.f32.mrb[0].mxu0
      %v892 = vadd.f32 %v844, %v891
      %v893 = vpop.f32.mrb[0].mxu0
      %v894 = vpop.f32.mrb[0].mxu0
      %v895 = vpop.f32.mrb[0].mxu0
      %896 = vdwg.mxu0
      %v897 = vld [vmem:[%s6] sm:$0xf]
      %v898 = vld [vmem:[%s6 + $0x4] sm:$0xf]
      %v899 = vld [vmem:[%s6 + $0x8] sm:$0xf]
      %v900 = vld [vmem:[%s6 + $0xc] sm:$0xf]
      %v901 = vld [vmem:[%s6 + $0x10] sm:$0xf]
      %v902 = vld [vmem:[%s6 + $0x14] sm:$0xf]
      %v903 = vld [vmem:[%s6 + $0x18] sm:$0xf]
      %v904 = vld [vmem:[%s6 + $0x1c] sm:$0xf]
      %v905 = vld [vmem:[%s6 + $0x20] sm:$0xf]
      %v906 = vld [vmem:[%s6 + $0x24] sm:$0xf]
      %v907 = vld [vmem:[%s6 + $0x28] sm:$0xf]
      %v908 = vld [vmem:[%s6 + $0x2c] sm:$0xf]
      %v909 = vld [vmem:[%s6 + $0x30] sm:$0xf]
      %v910 = vld [vmem:[%s6 + $0x34] sm:$0xf]
      %v911 = vld [vmem:[%s6 + $0x38] sm:$0xf]
      %v912 = vld [vmem:[%s6 + $0x3c] sm:$0xf]
      %v913 = vpack.c.bf16 %v892, %v892
      %v914 = vld [vmem:[%s823] sm:$0x1]
      %v916 = vlaneseq
      %v917 = vshrl.u32 %v916, 7
      %v918 = vsub.s32 0, %v917
      %v919 = vrot.slane %v914, %v918
      %v937 = vunpack.c.l.b16 %v897
      %v938 = vunpack.c.l.b16 %v898
      %v939 = vunpack.c.l.b16 %v899
      %v940 = vunpack.c.l.b16 %v900
      %v941 = vunpack.c.l.b16 %v901
      %v942 = vunpack.c.l.b16 %v902
      %v943 = vunpack.c.l.b16 %v903
      %v944 = vunpack.c.l.b16 %v904
      %v945 = vunpack.c.l.b16 %v905
      %v946 = vunpack.c.l.b16 %v906
      %v947 = vunpack.c.l.b16 %v907
      %v948 = vunpack.c.l.b16 %v908
      %v949 = vunpack.c.l.b16 %v909
      %v950 = vunpack.c.l.b16 %v910
      %v951 = vunpack.c.l.b16 %v911
      %v952 = vunpack.c.l.b16 %v912
      %v953 = vpack.c.b16 %v938, %v937
      %v954 = vpack.c.b16 %v940, %v939
      %v955 = vpack.c.b16 %v942, %v941
      %v956 = vpack.c.b16 %v944, %v943
      %v957 = vpack.c.b16 %v946, %v945
      %v958 = vpack.c.b16 %v948, %v947
      %v959 = vpack.c.b16 %v950, %v949
      %v960 = vpack.c.b16 %v952, %v951
      %969 = vmatprep.subr.bf16.mxu0 0
      %970 = vmatpush1.bf16.msra.mxu0 %v953
      %971 = vmatprep.subr.bf16.mxu0 0
      %972 = vmatpush1.bf16.msra.mxu0 %v954
      %973 = vmatprep.subr.bf16.mxu0 0
      %974 = vmatpush1.bf16.msra.mxu0 %v955
      %975 = vmatprep.subr.bf16.mxu0 0
      %976 = vmatpush1.bf16.msra.mxu0 %v956
      %977 = vmatprep.subr.bf16.mxu0 0
      %978 = vmatpush1.bf16.msra.mxu0 %v957
      %979 = vmatprep.subr.bf16.mxu0 0
      %980 = vmatpush1.bf16.msra.mxu0 %v958
      %981 = vmatprep.subr.bf16.mxu0 0
      %982 = vmatpush1.bf16.msra.mxu0 %v959
      %983 = vmatprep.subr.bf16.mxu0 0
      %984 = vmatpush1.bf16.msra.mxu0 %v960
      %985 = vmatprep.subr.bf16.mxu0 0
      %986 = vmatpush1.bf16.msra.mxu0 0
      %987 = vmatprep.subr.bf16.mxu0 0
      %988 = vmatpush1.bf16.msra.mxu0 0
      %989 = vmatprep.subr.bf16.mxu0 0
      %990 = vmatpush1.bf16.msra.mxu0 0
      %991 = vmatprep.subr.bf16.mxu0 0
      %992 = vmatpush1.bf16.msra.mxu0 0
      %993 = vmatprep.subr.bf16.mxu0 0
      %994 = vmatpush1.bf16.msra.mxu0 0
      %995 = vmatprep.subr.bf16.mxu0 0
      %996 = vmatpush1.bf16.msra.mxu0 0
      %997 = vmatprep.subr.bf16.mxu0 0
      %998 = vmatpush1.bf16.msra.mxu0 0
      %999 = vmatprep.subr.bf16.mxu0 0
      %1000 = vmatpush1.bf16.msra.mxu0 0
      %1001 = vmatprep.mubr.bf16.mxu0 0
      %1002 = vmatmul.mubr.bf16.gmra.mrb[0].mxu0 %v913
      %v1003 = vpop.f32.mrb[0].mxu0
      %v1004 = vadd.f32 %v919, %v1003
      %v1005 = vpop.f32.mrb[0].mxu0
      %v1006 = vpop.f32.mrb[0].mxu0
      %v1007 = vpop.f32.mrb[0].mxu0
      %1008 = vdwg.mxu0
      %vm1009 = vcmp.gt.f32.partialorder %v1004, 0.0
      %v1010 = vmul.f32 %v1004, 0.01
      %v1011 = vsel %vm1009, %v1004, %v1010
      %v1012 = vld [vmem:[%s7] sm:$0xf]
      %v1013 = vld [vmem:[%s7 + $0x4] sm:$0xf]
      %v1014 = vld [vmem:[%s7 + $0x8] sm:$0xf]
      %v1015 = vld [vmem:[%s7 + $0xc] sm:$0xf]
      %v1016 = vld [vmem:[%s7 + $0x10] sm:$0xf]
      %v1017 = vld [vmem:[%s7 + $0x14] sm:$0xf]
      %v1018 = vld [vmem:[%s7 + $0x18] sm:$0xf]
      %v1019 = vld [vmem:[%s7 + $0x1c] sm:$0xf]
      %v1020 = vld [vmem:[%s7 + $0x20] sm:$0xf]
      %v1021 = vld [vmem:[%s7 + $0x24] sm:$0xf]
      %v1022 = vld [vmem:[%s7 + $0x28] sm:$0xf]
      %v1023 = vld [vmem:[%s7 + $0x2c] sm:$0xf]
      %v1024 = vld [vmem:[%s7 + $0x30] sm:$0xf]
      %v1025 = vld [vmem:[%s7 + $0x34] sm:$0xf]
      %v1026 = vld [vmem:[%s7 + $0x38] sm:$0xf]
      %v1027 = vld [vmem:[%s7 + $0x3c] sm:$0xf]
      %v1028 = vpack.c.bf16 %v1011, %v1011
      %v1029 = vld [vmem:[%s8] sm:$0x1]
      %v1031 = vlaneseq
      %v1032 = vshrl.u32 %v1031, 7
      %v1033 = vsub.s32 0, %v1032
      %v1034 = vrot.slane %v1029, %v1033
      %v1052 = vunpack.c.l.b16 %v1012
      %v1053 = vunpack.c.l.b16 %v1013
      %v1054 = vunpack.c.l.b16 %v1014
      %v1055 = vunpack.c.l.b16 %v1015
      %v1056 = vunpack.c.l.b16 %v1016
      %v1057 = vunpack.c.l.b16 %v1017
      %v1058 = vunpack.c.l.b16 %v1018
      %v1059 = vunpack.c.l.b16 %v1019
      %v1060 = vunpack.c.l.b16 %v1020
      %v1061 = vunpack.c.l.b16 %v1021
      %v1062 = vunpack.c.l.b16 %v1022
      %v1063 = vunpack.c.l.b16 %v1023
      %v1064 = vunpack.c.l.b16 %v1024
      %v1065 = vunpack.c.l.b16 %v1025
      %v1066 = vunpack.c.l.b16 %v1026
      %v1067 = vunpack.c.l.b16 %v1027
      %v1068 = vpack.c.b16 %v1053, %v1052
      %v1069 = vpack.c.b16 %v1055, %v1054
      %v1070 = vpack.c.b16 %v1057, %v1056
      %v1071 = vpack.c.b16 %v1059, %v1058
      %v1072 = vpack.c.b16 %v1061, %v1060
      %v1073 = vpack.c.b16 %v1063, %v1062
      %v1074 = vpack.c.b16 %v1065, %v1064
      %v1075 = vpack.c.b16 %v1067, %v1066
      %1084 = vmatprep.subr.bf16.mxu0 0
      %1085 = vmatpush1.bf16.msra.mxu0 %v1068
      %1086 = vmatprep.subr.bf16.mxu0 0
      %1087 = vmatpush1.bf16.msra.mxu0 %v1069
      %1088 = vmatprep.subr.bf16.mxu0 0
      %1089 = vmatpush1.bf16.msra.mxu0 %v1070
      %1090 = vmatprep.subr.bf16.mxu0 0
      %1091 = vmatpush1.bf16.msra.mxu0 %v1071
      %1092 = vmatprep.subr.bf16.mxu0 0
      %1093 = vmatpush1.bf16.msra.mxu0 %v1072
      %1094 = vmatprep.subr.bf16.mxu0 0
      %1095 = vmatpush1.bf16.msra.mxu0 %v1073
      %1096 = vmatprep.subr.bf16.mxu0 0
      %1097 = vmatpush1.bf16.msra.mxu0 %v1074
      %1098 = vmatprep.subr.bf16.mxu0 0
      %1099 = vmatpush1.bf16.msra.mxu0 %v1075
      %1100 = vmatprep.subr.bf16.mxu0 0
      %1101 = vmatpush1.bf16.msra.mxu0 0
      %1102 = vmatprep.subr.bf16.mxu0 0
      %1103 = vmatpush1.bf16.msra.mxu0 0
      %1104 = vmatprep.subr.bf16.mxu0 0
      %1105 = vmatpush1.bf16.msra.mxu0 0
      %1106 = vmatprep.subr.bf16.mxu0 0
      %1107 = vmatpush1.bf16.msra.mxu0 0
      %1108 = vmatprep.subr.bf16.mxu0 0
      %1109 = vmatpush1.bf16.msra.mxu0 0
      %1110 = vmatprep.subr.bf16.mxu0 0
      %1111 = vmatpush1.bf16.msra.mxu0 0
      %1112 = vmatprep.subr.bf16.mxu0 0
      %1113 = vmatpush1.bf16.msra.mxu0 0
      %1114 = vmatprep.subr.bf16.mxu0 0
      %1115 = vmatpush1.bf16.msra.mxu0 0
      %1116 = vmatprep.mubr.bf16.mxu0 0
      %1117 = vmatmul.mubr.bf16.gmra.mrb[0].mxu0 %v1028
      %v1118 = vpop.f32.mrb[0].mxu0
      %v1119 = vadd.f32 %v1034, %v1118
      %v1120 = vpop.f32.mrb[0].mxu0
      %v1121 = vpop.f32.mrb[0].mxu0
      %v1122 = vpop.f32.mrb[0].mxu0
      %1123 = vdwg.mxu0
      %v1124 = vld [vmem:[%s9] sm:$0x1]
      %v1125 = vld [vmem:[%s10] sm:$0x1]
      %1126 = vadd.xlane.f32.xlu0 %v1119
      %v1127 = vpop.xlane.xlu0 %1126
      %v1128 = vrcp.pop 128.0
      %v1129 = vmul.f32 %v1127, %v1128
      %v1130 = vsub.f32 %v1119, %v1129
      %v1131 = vmul.f32 %v1130, %v1130
      %1132 = vadd.xlane.f32.xlu0 %v1131
      %v1133 = vpop.xlane.xlu0 %1132
      %v1134 = vmul.f32 %v1133, %v1128
      %v1135 = vadd.f32 %v1134, 1e-06
      %v1136 = vrsqrt.pop %v1135
      %v1137 = vmul.f32 %v1130, %v1136
      %v1139 = vlaneseq
      %v1140 = vshrl.u32 %v1139, 7
      %v1141 = vsub.s32 0, %v1140
      %v1142 = vrot.slane %v1124, %v1141
      %v1144 = vmul.f32 %v1137, %v1142
      %v1146 = vlaneseq
      %v1147 = vshrl.u32 %v1146, 7
      %v1148 = vsub.s32 0, %v1147
      %v1149 = vrot.slane %v1125, %v1148
      %v1151 = vadd.f32 %v1144, %v1149
      %v1152 = vld [vmem:[%s11] sm:$0xff]
      %v1153 = vld [vmem:[%s11 + $0x8] sm:$0xf]
      %v1154 = vld [vmem:[%s11 + $0xc] sm:$0xff]
      %v1155 = vld [vmem:[%s11 + $0x14] sm:$0xf]
      %v1156 = vld [vmem:[%s11 + $0x18] sm:$0xff]
      %v1157 = vld [vmem:[%s11 + $0x20] sm:$0xf]
      %v1158 = vld [vmem:[%s11 + $0x24] sm:$0xff]
      %v1159 = vld [vmem:[%s11 + $0x2c] sm:$0xf]
      %v1160 = vld [vmem:[%s11 + $0x30] sm:$0xff]
      %v1161 = vld [vmem:[%s11 + $0x38] sm:$0xf]
      %v1162 = vld [vmem:[%s11 + $0x3c] sm:$0xff]
      %v1163 = vld [vmem:[%s11 + $0x44] sm:$0xf]
      %v1164 = vld [vmem:[%s11 + $0x48] sm:$0xff]
      %v1165 = vld [vmem:[%s11 + $0x50] sm:$0xf]
      %v1166 = vld [vmem:[%s11 + $0x54] sm:$0xff]
      %v1167 = vld [vmem:[%s11 + $0x5c] sm:$0xf]
      %v1168 = vld [vmem:[%s11 + $0x60] sm:$0xff]
      %v1169 = vld [vmem:[%s11 + $0x68] sm:$0xf]
      %v1170 = vld [vmem:[%s11 + $0x6c] sm:$0xff]
      %v1171 = vld [vmem:[%s11 + $0x74] sm:$0xf]
      %v1172 = vld [vmem:[%s11 + $0x78] sm:$0xff]
      %v1173 = vld [vmem:[%s11 + $0x80] sm:$0xf]
      %v1174 = vld [vmem:[%s11 + $0x84] sm:$0xff]
      %v1175 = vld [vmem:[%s11 + $0x8c] sm:$0xf]
      %v1176 = vld [vmem:[%s11 + $0x90] sm:$0xff]
      %v1177 = vld [vmem:[%s11 + $0x98] sm:$0xf]
      %v1178 = vld [vmem:[%s11 + $0x9c] sm:$0xff]
      %v1179 = vld [vmem:[%s11 + $0xa4] sm:$0xf]
      %v1180 = vld [vmem:[%s11 + $0xa8] sm:$0xff]
      %v1181 = vld [vmem:[%s11 + $0xb0] sm:$0xf]
      %v1182 = vld [vmem:[%s11 + $0xb4] sm:$0xff]
      %v1183 = vld [vmem:[%s11 + $0xbc] sm:$0xf]
      %v1184 = vpack.c.bf16 %v1151, %v1151
      %v1185 = vld [vmem:[%s12] sm:$0x7]
      %v1187 = vlaneseq
      %v1188 = vshrl.u32 %v1187, 7
      %v1189 = vsub.s32 0, %v1188
      %v1190 = vrot.slane %v1185, %v1189
      %v1191 = vlaneseq
      %v1192 = vshrl.u32 %v1191, 7
      %v1193 = vsub.s32 1, %v1192
      %v1194 = vrot.slane %v1185, %v1193
      %v1195 = vlaneseq
      %v1196 = vshrl.u32 %v1195, 7
      %v1197 = vsub.s32 2, %v1196
      %v1198 = vrot.slane %v1185, %v1197
      %v1234 = vunpack.c.l.b16 %v1152
      %v1235 = vunpack.c.h.b16 %v1152
      %v1236 = vunpack.c.l.b16 %v1153
      %v1237 = vunpack.c.l.b16 %v1154
      %v1238 = vunpack.c.h.b16 %v1154
      %v1239 = vunpack.c.l.b16 %v1155
      %v1240 = vunpack.c.l.b16 %v1156
      %v1241 = vunpack.c.h.b16 %v1156
      %v1242 = vunpack.c.l.b16 %v1157
      %v1243 = vunpack.c.l.b16 %v1158
      %v1244 = vunpack.c.h.b16 %v1158
      %v1245 = vunpack.c.l.b16 %v1159
      %v1246 = vunpack.c.l.b16 %v1160
      %v1247 = vunpack.c.h.b16 %v1160
      %v1248 = vunpack.c.l.b16 %v1161
      %v1249 = vunpack.c.l.b16 %v1162
      %v1250 = vunpack.c.h.b16 %v1162
      %v1251 = vunpack.c.l.b16 %v1163
      %v1252 = vunpack.c.l.b16 %v1164
      %v1253 = vunpack.c.h.b16 %v1164
      %v1254 = vunpack.c.l.b16 %v1165
      %v1255 = vunpack.c.l.b16 %v1166
      %v1256 = vunpack.c.h.b16 %v1166
      %v1257 = vunpack.c.l.b16 %v1167
      %v1258 = vunpack.c.l.b16 %v1168
      %v1259 = vunpack.c.h.b16 %v1168
      %v1260 = vunpack.c.l.b16 %v1169
      %v1261 = vunpack.c.l.b16 %v1170
      %v1262 = vunpack.c.h.b16 %v1170
      %v1263 = vunpack.c.l.b16 %v1171
      %v1264 = vunpack.c.l.b16 %v1172
      %v1265 = vunpack.c.h.b16 %v1172
      %v1266 = vunpack.c.l.b16 %v1173
      %v1267 = vunpack.c.l.b16 %v1174
      %v1268 = vunpack.c.h.b16 %v1174
      %v1269 = vunpack.c.l.b16 %v1175
      %v1270 = vunpack.c.l.b16 %v1176
      %v1271 = vunpack.c.h.b16 %v1176
      %v1272 = vunpack.c.l.b16 %v1177
      %v1273 = vunpack.c.l.b16 %v1178
      %v1274 = vunpack.c.h.b16 %v1178
      %v1275 = vunpack.c.l.b16 %v1179
      %v1276 = vunpack.c.l.b16 %v1180
      %v1277 = vunpack.c.h.b16 %v1180
      %v1278 = vunpack.c.l.b16 %v1181
      %v1279 = vunpack.c.l.b16 %v1182
      %v1280 = vunpack.c.h.b16 %v1182
      %v1281 = vunpack.c.l.b16 %v1183
      %v1282 = vpack.c.b16 %v1237, %v1234
      %v1283 = vpack.c.b16 %v1238, %v1235
      %v1284 = vpack.c.b16 %v1239, %v1236
      %v1285 = vpack.c.b16 %v1243, %v1240
      %v1286 = vpack.c.b16 %v1244, %v1241
      %v1287 = vpack.c.b16 %v1245, %v1242
      %v1288 = vpack.c.b16 %v1249, %v1246
      %v1289 = vpack.c.b16 %v1250, %v1247
      %v1290 = vpack.c.b16 %v1251, %v1248
      %v1291 = vpack.c.b16 %v1255, %v1252
      %v1292 = vpack.c.b16 %v1256, %v1253
      %v1293 = vpack.c.b16 %v1257, %v1254
      %v1294 = vpack.c.b16 %v1261, %v1258
      %v1295 = vpack.c.b16 %v1262, %v1259
      %v1296 = vpack.c.b16 %v1263, %v1260
      %v1297 = vpack.c.b16 %v1267, %v1264
      %v1298 = vpack.c.b16 %v1268, %v1265
      %v1299 = vpack.c.b16 %v1269, %v1266
      %v1300 = vpack.c.b16 %v1273, %v1270
      %v1301 = vpack.c.b16 %v1274, %v1271
      %v1302 = vpack.c.b16 %v1275, %v1272
      %v1303 = vpack.c.b16 %v1279, %v1276
      %v1304 = vpack.c.b16 %v1280, %v1277
      %v1305 = vpack.c.b16 %v1281, %v1278
      %1330 = vmatprep.subr.bf16.mxu0 %v1283
      %1331 = vmatpush1.bf16.msra.mxu0 %v1282
      %1332 = vmatprep.subr.bf16.mxu0 %v1286
      %1333 = vmatpush1.bf16.msra.mxu0 %v1285
      %1334 = vmatprep.subr.bf16.mxu0 %v1289
      %1335 = vmatpush1.bf16.msra.mxu0 %v1288
      %1336 = vmatprep.subr.bf16.mxu0 %v1292
      %1337 = vmatpush1.bf16.msra.mxu0 %v1291
      %1338 = vmatprep.subr.bf16.mxu0 %v1295
      %1339 = vmatpush1.bf16.msra.mxu0 %v1294
      %1340 = vmatprep.subr.bf16.mxu0 %v1298
      %1341 = vmatpush1.bf16.msra.mxu0 %v1297
      %1342 = vmatprep.subr.bf16.mxu0 %v1301
      %1343 = vmatpush1.bf16.msra.mxu0 %v1300
      %1344 = vmatprep.subr.bf16.mxu0 %v1304
      %1345 = vmatpush1.bf16.msra.mxu0 %v1303
      %1346 = vmatprep.subr.bf16.mxu0 0
      %1347 = vmatpush1.bf16.msra.mxu0 0
      %1348 = vmatprep.subr.bf16.mxu0 0
      %1349 = vmatpush1.bf16.msra.mxu0 0
      %1350 = vmatprep.subr.bf16.mxu0 0
      %1351 = vmatpush1.bf16.msra.mxu0 0
      %1352 = vmatprep.subr.bf16.mxu0 0
      %1353 = vmatpush1.bf16.msra.mxu0 0
      %1354 = vmatprep.subr.bf16.mxu0 0
      %1355 = vmatpush1.bf16.msra.mxu0 0
      %1356 = vmatprep.subr.bf16.mxu0 0
      %1357 = vmatpush1.bf16.msra.mxu0 0
      %1358 = vmatprep.subr.bf16.mxu0 0
      %1359 = vmatpush1.bf16.msra.mxu0 0
      %1360 = vmatprep.subr.bf16.mxu0 0
      %1361 = vmatpush1.bf16.msra.mxu0 0
      %1362 = vmatprep.mubr.bf16.mxu0 0
      %1363 = vmatmul.mubr.bf16.gmra.mrb[0].mxu0 %v1184
      %v1364 = vpop.f32.mrb[0].mxu0
      %v1365 = vadd.f32 %v1190, %v1364
      %v1366 = vpop.f32.mrb[0].mxu0
      %v1367 = vadd.f32 %v1194, %v1366
      %v1368 = vpop.f32.mrb[0].mxu0
      %v1369 = vpop.f32.mrb[0].mxu0
      %1370 = vdwg.mxu0
      %1371 = vmatprep.subr.bf16.mxu0 0
      %1372 = vmatpush1.bf16.msra.mxu0 %v1284
      %1373 = vmatprep.subr.bf16.mxu0 0
      %1374 = vmatpush1.bf16.msra.mxu0 %v1287
      %1375 = vmatprep.subr.bf16.mxu0 0
      %1376 = vmatpush1.bf16.msra.mxu0 %v1290
      %1377 = vmatprep.subr.bf16.mxu0 0
      %1378 = vmatpush1.bf16.msra.mxu0 %v1293
      %1379 = vmatprep.subr.bf16.mxu0 0
      %1380 = vmatpush1.bf16.msra.mxu0 %v1296
      %1381 = vmatprep.subr.bf16.mxu0 0
      %1382 = vmatpush1.bf16.msra.mxu0 %v1299
      %1383 = vmatprep.subr.bf16.mxu0 0
      %1384 = vmatpush1.bf16.msra.mxu0 %v1302
      %1385 = vmatprep.subr.bf16.mxu0 0
      %1386 = vmatpush1.bf16.msra.mxu0 %v1305
      %1387 = vmatprep.subr.bf16.mxu0 0
      %1388 = vmatpush1.bf16.msra.mxu0 0
      %1389 = vmatprep.subr.bf16.mxu0 0
      %1390 = vmatpush1.bf16.msra.mxu0 0
      %1391 = vmatprep.subr.bf16.mxu0 0
      %1392 = vmatpush1.bf16.msra.mxu0 0
      %1393 = vmatprep.subr.bf16.mxu0 0
      %1394 = vmatpush1.bf16.msra.mxu0 0
      %1395 = vmatprep.subr.bf16.mxu0 0
      %1396 = vmatpush1.bf16.msra.mxu0 0
      %1397 = vmatprep.subr.bf16.mxu0 0
      %1398 = vmatpush1.bf16.msra.mxu0 0
      %1399 = vmatprep.subr.bf16.mxu0 0
      %1400 = vmatpush1.bf16.msra.mxu0 0
      %1401 = vmatprep.subr.bf16.mxu0 0
      %1402 = vmatpush1.bf16.msra.mxu0 0
      %1403 = vmatprep.mubr.bf16.mxu0 0
      %1404 = vmatmul.mubr.bf16.gmra.mrb[0].mxu0 %v1184
      %v1405 = vpop.f32.mrb[0].mxu0
      %v1406 = vadd.f32 %v1198, %v1405
      %v1407 = vpop.f32.mrb[0].mxu0
      %v1408 = vpop.f32.mrb[0].mxu0
      %v1409 = vpop.f32.mrb[0].mxu0
      %1410 = vdwg.mxu0
      %v1411 = vpack.c.bf16 %v1365, %v1365
      %v1412 = vpack.c.bf16 %v1367, %v1367
      %vm1413 = vcmask 523264
      %v1415 = vsel %vm1413, %v1411, 0
      %v1418 = vsel %vm1413, %v1412, 0
      %1420 = vmatprep.subr.bf16.mxu0 0
      %1421 = vmatpush1.bf16.xpose.msra.mxu0 %v1418
      %1422 = vmatprep.subr.bf16.mxu0 0
      %1423 = vmatpush1.bf16.xpose.msra.mxu0 0
      %1424 = vmatprep.subr.bf16.mxu0 0
      %1425 = vmatpush1.bf16.xpose.msra.mxu0 0
      %1426 = vmatprep.subr.bf16.mxu0 0
      %1427 = vmatpush1.bf16.xpose.msra.mxu0 0
      %1428 = vmatprep.subr.bf16.mxu0 0
      %1429 = vmatpush1.bf16.xpose.msra.mxu0 0
      %1430 = vmatprep.subr.bf16.mxu0 0
      %1431 = vmatpush1.bf16.xpose.msra.mxu0 0
      %1432 = vmatprep.subr.bf16.mxu0 0
      %1433 = vmatpush1.bf16.xpose.msra.mxu0 0
      %1434 = vmatprep.subr.bf16.mxu0 0
      %1435 = vmatpush1.bf16.xpose.msra.mxu0 0
      %1436 = vmatprep.subr.bf16.mxu0 0
      %1437 = vmatpush1.bf16.xpose.msra.mxu0 0
      %1438 = vmatprep.subr.bf16.mxu0 0
      %1439 = vmatpush1.bf16.xpose.msra.mxu0 0
      %1440 = vmatprep.subr.bf16.mxu0 0
      %1441 = vmatpush1.bf16.xpose.msra.mxu0 0
      %1442 = vmatprep.subr.bf16.mxu0 0
      %1443 = vmatpush1.bf16.xpose.msra.mxu0 0
      %1444 = vmatprep.subr.bf16.mxu0 0
      %1445 = vmatpush1.bf16.xpose.msra.mxu0 0
      %1446 = vmatprep.subr.bf16.mxu0 0
      %1447 = vmatpush1.bf16.xpose.msra.mxu0 0
      %1448 = vmatprep.subr.bf16.mxu0 0
      %1449 = vmatpush1.bf16.xpose.msra.mxu0 0
      %1450 = vmatprep.subr.bf16.mxu0 0
      %1451 = vmatpush1.bf16.xpose.msra.mxu0 0
      %1452 = vmatprep.mubr.bf16.mxu0 0
      %1453 = vmatmul.mubr.bf16.gmra.mrb[0].mxu0 %v1415
      %v1454 = vpop.f32.mrb[0].mxu0
      %v1455 = vadd.f32 0.0, %v1454
      %v1456 = vpop.f32.mrb[0].mxu0
      %v1457 = vpop.f32.mrb[0].mxu0
      %v1458 = vpop.f32.mrb[0].mxu0
      %1459 = vdwg.mxu0
      %v1460 = vmul.f32 %v1455, 0.125
      %v1462 = vlaneseq
      %v1463 = vshrl.u32 %v1462, 7
      %v1464 = vsub.s32 0, %v1463
      %v1465 = vrot.slane %v836, %v1464
      %v1467 = vadd.f32 %v1460, %v1465
      %vm1468 = vcmask 64512
      %v1469 = vsel %vm1468, %v1467, -inf
      %1470 = vmax.xlane.f32.xlu0 %v1469
      %v1471 = vpop.xlane.xlu0 %1470
      %v1472 = vsub.f32 %v1467, %v1471
      %v1473 = vmul.f32 %v1472, 1.442695
      %v1474 = vpow.pop %v1473
      %v1475 = vsel %vm1468, %v1474, 0.0
      %1476 = vadd.xlane.f32.xlu0 %v1475
      %v1477 = vpop.xlane.xlu0 %1476
      %v1478 = vrcp.pop %v1477
      %v1479 = vmul.f32 %v1474, %v1478
      %v1480 = vpack.c.bf16 %v1406, %v1406
      %v1481 = vpack.c.bf16 %v1479, %v1479
      %v1483 = vsel %vm1468, %v1481, 0
      %vm1485 = vcmask 1043456
      %v1487 = vsel %vm1485, %v1480, 0
      %1489 = vmatprep.subr.bf16.mxu0 0
      %1490 = vmatpush1.bf16.msra.mxu0 %v1487
      %1491 = vmatprep.subr.bf16.mxu0 0
      %1492 = vmatpush1.bf16.msra.mxu0 0
      %1493 = vmatprep.subr.bf16.mxu0 0
      %1494 = vmatpush1.bf16.msra.mxu0 0
      %1495 = vmatprep.subr.bf16.mxu0 0
      %1496 = vmatpush1.bf16.msra.mxu0 0
      %1497 = vmatprep.subr.bf16.mxu0 0
      %1498 = vmatpush1.bf16.msra.mxu0 0
      %1499 = vmatprep.subr.bf16.mxu0 0
      %1500 = vmatpush1.bf16.msra.mxu0 0
      %1501 = vmatprep.subr.bf16.mxu0 0
      %1502 = vmatpush1.bf16.msra.mxu0 0
      %1503 = vmatprep.subr.bf16.mxu0 0
      %1504 = vmatpush1.bf16.msra.mxu0 0
      %1505 = vmatprep.subr.bf16.mxu0 0
      %1506 = vmatpush1.bf16.msra.mxu0 0
      %1507 = vmatprep.subr.bf16.mxu0 0
      %1508 = vmatpush1.bf16.msra.mxu0 0
      %1509 = vmatprep.subr.bf16.mxu0 0
      %1510 = vmatpush1.bf16.msra.mxu0 0
      %1511 = vmatprep.subr.bf16.mxu0 0
      %1512 = vmatpush1.bf16.msra.mxu0 0
      %1513 = vmatprep.subr.bf16.mxu0 0
      %1514 = vmatpush1.bf16.msra.mxu0 0
      %1515 = vmatprep.subr.bf16.mxu0 0
      %1516 = vmatpush1.bf16.msra.mxu0 0
      %1517 = vmatprep.subr.bf16.mxu0 0
      %1518 = vmatpush1.bf16.msra.mxu0 0
      %1519 = vmatprep.subr.bf16.mxu0 0
      %1520 = vmatpush1.bf16.msra.mxu0 0
      %1521 = vmatprep.mubr.bf16.mxu0 0
      %1522 = vmatmul.mubr.bf16.gmra.mrb[0].mxu0 %v1483
      %v1523 = vpop.f32.mrb[0].mxu0
      %v1524 = vadd.f32 0.0, %v1523
      %v1525 = vpop.f32.mrb[0].mxu0
      %v1526 = vpop.f32.mrb[0].mxu0
      %v1527 = vpop.f32.mrb[0].mxu0
      %1528 = vdwg.mxu0
      %1530 = vrot.lane.b32.xlu0 %v1411, 64
      %v1531 = vpop.permute.xlu0 %1530
      %1533 = vrot.lane.b32.xlu0 %v1412, 64
      %v1534 = vpop.permute.xlu0 %1533
      %v1536 = vsel %vm1413, %v1531, 0
      %v1539 = vsel %vm1413, %v1534, 0
      %1541 = vmatprep.subr.bf16.mxu0 0
      %1542 = vmatpush1.bf16.xpose.msra.mxu0 %v1539
      %1543 = vmatprep.subr.bf16.mxu0 0
      %1544 = vmatpush1.bf16.xpose.msra.mxu0 0
      %1545 = vmatprep.subr.bf16.mxu0 0
      %1546 = vmatpush1.bf16.xpose.msra.mxu0 0
      %1547 = vmatprep.subr.bf16.mxu0 0
      %1548 = vmatpush1.bf16.xpose.msra.mxu0 0
      %1549 = vmatprep.subr.bf16.mxu0 0
      %1550 = vmatpush1.bf16.xpose.msra.mxu0 0
      %1551 = vmatprep.subr.bf16.mxu0 0
      %1552 = vmatpush1.bf16.xpose.msra.mxu0 0
      %1553 = vmatprep.subr.bf16.mxu0 0
      %1554 = vmatpush1.bf16.xpose.msra.mxu0 0
      %1555 = vmatprep.subr.bf16.mxu0 0
      %1556 = vmatpush1.bf16.xpose.msra.mxu0 0
      %1557 = vmatprep.subr.bf16.mxu0 0
      %1558 = vmatpush1.bf16.xpose.msra.mxu0 0
      %1559 = vmatprep.subr.bf16.mxu0 0
      %1560 = vmatpush1.bf16.xpose.msra.mxu0 0
      %1561 = vmatprep.subr.bf16.mxu0 0
      %1562 = vmatpush1.bf16.xpose.msra.mxu0 0
      %1563 = vmatprep.subr.bf16.mxu0 0
      %1564 = vmatpush1.bf16.xpose.msra.mxu0 0
      %1565 = vmatprep.subr.bf16.mxu0 0
      %1566 = vmatpush1.bf16.xpose.msra.mxu0 0
      %1567 = vmatprep.subr.bf16.mxu0 0
      %1568 = vmatpush1.bf16.xpose.msra.mxu0 0
      %1569 = vmatprep.subr.bf16.mxu0 0
      %1570 = vmatpush1.bf16.xpose.msra.mxu0 0
      %1571 = vmatprep.subr.bf16.mxu0 0
      %1572 = vmatpush1.bf16.xpose.msra.mxu0 0
      %1573 = vmatprep.mubr.bf16.mxu0 0
      %1574 = vmatmul.mubr.bf16.gmra.mrb[0].mxu0 %v1536
      %v1575 = vpop.f32.mrb[0].mxu0
      %v1576 = vadd.f32 0.0, %v1575
      %v1577 = vpop.f32.mrb[0].mxu0
      %v1578 = vpop.f32.mrb[0].mxu0
      %v1579 = vpop.f32.mrb[0].mxu0
      %1580 = vdwg.mxu0
      %v1581 = vmul.f32 %v1576, 0.125
      %v1582 = vadd.f32 %v1581, %v1465
      %v1583 = vsel %vm1468, %v1582, -inf
      %1584 = vmax.xlane.f32.xlu0 %v1583
      %v1585 = vpop.xlane.xlu0 %1584
      %v1586 = vsub.f32 %v1582, %v1585
      %v1587 = vmul.f32 %v1586, 1.442695
      %v1588 = vpow.pop %v1587
      %v1589 = vsel %vm1468, %v1588, 0.0
      %1590 = vadd.xlane.f32.xlu0 %v1589
      %v1591 = vpop.xlane.xlu0 %1590
      %v1592 = vrcp.pop %v1591
      %v1593 = vmul.f32 %v1588, %v1592
      %v1594 = vpack.c.bf16 %v1593, %v1593
      %1596 = vrot.lane.b32.xlu0 %v1480, 64
      %v1597 = vpop.permute.xlu0 %1596
      %v1599 = vsel %vm1468, %v1594, 0
      %v1602 = vsel %vm1485, %v1597, 0
      %1604 = vmatprep.subr.bf16.mxu0 0
      %1605 = vmatpush1.bf16.msra.mxu0 %v1602
      %1606 = vmatprep.subr.bf16.mxu0 0
      %1607 = vmatpush1.bf16.msra.mxu0 0
      %1608 = vmatprep.subr.bf16.mxu0 0
      %1609 = vmatpush1.bf16.msra.mxu0 0
      %1610 = vmatprep.subr.bf16.mxu0 0
      %1611 = vmatpush1.bf16.msra.mxu0 0
      %1612 = vmatprep.subr.bf16.mxu0 0
      %1613 = vmatpush1.bf16.msra.mxu0 0
      %1614 = vmatprep.subr.bf16.mxu0 0
      %1615 = vmatpush1.bf16.msra.mxu0 0
      %1616 = vmatprep.subr.bf16.mxu0 0
      %1617 = vmatpush1.bf16.msra.mxu0 0
      %1618 = vmatprep.subr.bf16.mxu0 0
      %1619 = vmatpush1.bf16.msra.mxu0 0
      %1620 = vmatprep.subr.bf16.mxu0 0
      %1621 = vmatpush1.bf16.msra.mxu0 0
      %1622 = vmatprep.subr.bf16.mxu0 0
      %1623 = vmatpush1.bf16.msra.mxu0 0
      %1624 = vmatprep.subr.bf16.mxu0 0
      %1625 = vmatpush1.bf16.msra.mxu0 0
      %1626 = vmatprep.subr.bf16.mxu0 0
      %1627 = vmatpush1.bf16.msra.mxu0 0
      %1628 = vmatprep.subr.bf16.mxu0 0
      %1629 = vmatpush1.bf16.msra.mxu0 0
      %1630 = vmatprep.subr.bf16.mxu0 0
      %1631 = vmatpush1.bf16.msra.mxu0 0
      %1632 = vmatprep.subr.bf16.mxu0 0
      %1633 = vmatpush1.bf16.msra.mxu0 0
      %1634 = vmatprep.subr.bf16.mxu0 0
      %1635 = vmatpush1.bf16.msra.mxu0 0
      %1636 = vmatprep.mubr.bf16.mxu0 0
      %1637 = vmatmul.mubr.bf16.gmra.mrb[0].mxu0 %v1599
      %v1638 = vpop.f32.mrb[0].mxu0
      %v1639 = vadd.f32 0.0, %v1638
      %v1640 = vpop.f32.mrb[0].mxu0
      %v1641 = vpop.f32.mrb[0].mxu0
      %v1642 = vpop.f32.mrb[0].mxu0
      %1643 = vdwg.mxu0
      %1645 = vrot.lane.b32.xlu0 %v1639, 64
      %v1646 = vpop.permute.xlu0 %1645
      %v1648 = vsel %vm1413, %v1524, %v1646
      %v1649 = vld [vmem:[%s13] sm:$0xf]
      %v1650 = vld [vmem:[%s13 + $0x4] sm:$0xf]
      %v1651 = vld [vmem:[%s13 + $0x8] sm:$0xf]
      %v1652 = vld [vmem:[%s13 + $0xc] sm:$0xf]
      %v1653 = vld [vmem:[%s13 + $0x10] sm:$0xf]
      %v1654 = vld [vmem:[%s13 + $0x14] sm:$0xf]
      %v1655 = vld [vmem:[%s13 + $0x18] sm:$0xf]
      %v1656 = vld [vmem:[%s13 + $0x1c] sm:$0xf]
      %v1657 = vld [vmem:[%s13 + $0x20] sm:$0xf]
      %v1658 = vld [vmem:[%s13 + $0x24] sm:$0xf]
      %v1659 = vld [vmem:[%s13 + $0x28] sm:$0xf]
      %v1660 = vld [vmem:[%s13 + $0x2c] sm:$0xf]
      %v1661 = vld [vmem:[%s13 + $0x30] sm:$0xf]
      %v1662 = vld [vmem:[%s13 + $0x34] sm:$0xf]
      %v1663 = vld [vmem:[%s13 + $0x38] sm:$0xf]
      %v1664 = vld [vmem:[%s13 + $0x3c] sm:$0xf]
      %v1665 = vpack.c.bf16 %v1648, %v1648
      %v1666 = vld [vmem:[%s14] sm:$0x1]
      %v1668 = vlaneseq
      %v1669 = vshrl.u32 %v1668, 7
      %v1670 = vsub.s32 0, %v1669
      %v1671 = vrot.slane %v1666, %v1670
      %v1689 = vunpack.c.l.b16 %v1649
      %v1690 = vunpack.c.l.b16 %v1650
      %v1691 = vunpack.c.l.b16 %v1651
      %v1692 = vunpack.c.l.b16 %v1652
      %v1693 = vunpack.c.l.b16 %v1653
      %v1694 = vunpack.c.l.b16 %v1654
      %v1695 = vunpack.c.l.b16 %v1655
      %v1696 = vunpack.c.l.b16 %v1656
      %v1697 = vunpack.c.l.b16 %v1657
      %v1698 = vunpack.c.l.b16 %v1658
      %v1699 = vunpack.c.l.b16 %v1659
      %v1700 = vunpack.c.l.b16 %v1660
      %v1701 = vunpack.c.l.b16 %v1661
      %v1702 = vunpack.c.l.b16 %v1662
      %v1703 = vunpack.c.l.b16 %v1663
      %v1704 = vunpack.c.l.b16 %v1664
      %v1705 = vpack.c.b16 %v1690, %v1689
      %v1706 = vpack.c.b16 %v1692, %v1691
      %v1707 = vpack.c.b16 %v1694, %v1693
      %v1708 = vpack.c.b16 %v1696, %v1695
      %v1709 = vpack.c.b16 %v1698, %v1697
      %v1710 = vpack.c.b16 %v1700, %v1699
      %v1711 = vpack.c.b16 %v1702, %v1701
      %v1712 = vpack.c.b16 %v1704, %v1703
      %1721 = vmatprep.subr.bf16.mxu0 0
      %1722 = vmatpush1.bf16.msra.mxu0 %v1705
      %1723 = vmatprep.subr.bf16.mxu0 0
      %1724 = vmatpush1.bf16.msra.mxu0 %v1706
      %1725 = vmatprep.subr.bf16.mxu0 0
      %1726 = vmatpush1.bf16.msra.mxu0 %v1707
      %1727 = vmatprep.subr.bf16.mxu0 0
      %1728 = vmatpush1.bf16.msra.mxu0 %v1708
      %1729 = vmatprep.subr.bf16.mxu0 0
      %1730 = vmatpush1.bf16.msra.mxu0 %v1709
      %1731 = vmatprep.subr.bf16.mxu0 0
      %1732 = vmatpush1.bf16.msra.mxu0 %v1710
      %1733 = vmatprep.subr.bf16.mxu0 0
      %1734 = vmatpush1.bf16.msra.mxu0 %v1711
      %1735 = vmatprep.subr.bf16.mxu0 0
      %1736 = vmatpush1.bf16.msra.mxu0 %v1712
      %1737 = vmatprep.subr.bf16.mxu0 0
      %1738 = vmatpush1.bf16.msra.mxu0 0
      %1739 = vmatprep.subr.bf16.mxu0 0
      %1740 = vmatpush1.bf16.msra.mxu0 0
      %1741 = vmatprep.subr.bf16.mxu0 0
      %1742 = vmatpush1.bf16.msra.mxu0 0
      %1743 = vmatprep.subr.bf16.mxu0 0
      %1744 = vmatpush1.bf16.msra.mxu0 0
      %1745 = vmatprep.subr.bf16.mxu0 0
      %1746 = vmatpush1.bf16.msra.mxu0 0
      %1747 = vmatprep.subr.bf16.mxu0 0
      %1748 = vmatpush1.bf16.msra.mxu0 0
      %1749 = vmatprep.subr.bf16.mxu0 0
      %1750 = vmatpush1.bf16.msra.mxu0 0
      %1751 = vmatprep.subr.bf16.mxu0 0
      %1752 = vmatpush1.bf16.msra.mxu0 0
      %1753 = vmatprep.mubr.bf16.mxu0 0
      %1754 = vmatmul.mubr.bf16.gmra.mrb[0].mxu0 %v1665
      %v1755 = vpop.f32.mrb[0].mxu0
      %v1756 = vadd.f32 %v1671, %v1755
      %v1757 = vpop.f32.mrb[0].mxu0
      %v1758 = vpop.f32.mrb[0].mxu0
      %v1759 = vpop.f32.mrb[0].mxu0
      %1760 = vdwg.mxu0
      %v1761 = vadd.f32 %v1756, %v1119
      %v1762 = vld [vmem:[%s15] sm:$0x1]
      %v1763 = vld [vmem:[%s16] sm:$0x1]
      %1764 = vadd.xlane.f32.xlu0 %v1761
      %v1765 = vpop.xlane.xlu0 %1764
      %v1766 = vmul.f32 %v1765, %v1128
      %v1767 = vsub.f32 %v1761, %v1766
      %v1768 = vmul.f32 %v1767, %v1767
      %1769 = vadd.xlane.f32.xlu0 %v1768
      %v1770 = vpop.xlane.xlu0 %1769
      %v1771 = vmul.f32 %v1770, %v1128
      %v1772 = vadd.f32 %v1771, 1e-06
      %v1773 = vrsqrt.pop %v1772
      %v1774 = vmul.f32 %v1767, %v1773
      %v1776 = vlaneseq
      %v1777 = vshrl.u32 %v1776, 7
      %v1778 = vsub.s32 0, %v1777
      %v1779 = vrot.slane %v1762, %v1778
      %v1781 = vmul.f32 %v1774, %v1779
      %v1783 = vlaneseq
      %v1784 = vshrl.u32 %v1783, 7
      %v1785 = vsub.s32 0, %v1784
      %v1786 = vrot.slane %v1763, %v1785
      %v1788 = vadd.f32 %v1781, %v1786
      %v1789 = vld [vmem:[%s17] sm:$0xff]
      %v1790 = vld [vmem:[%s17 + $0x8] sm:$0xff]
      %v1791 = vld [vmem:[%s17 + $0x10] sm:$0xff]
      %v1792 = vld [vmem:[%s17 + $0x18] sm:$0xff]
      %v1793 = vld [vmem:[%s17 + $0x20] sm:$0xff]
      %v1794 = vld [vmem:[%s17 + $0x28] sm:$0xff]
      %v1795 = vld [vmem:[%s17 + $0x30] sm:$0xff]
      %v1796 = vld [vmem:[%s17 + $0x38] sm:$0xff]
      %v1797 = vld [vmem:[%s17 + $0x40] sm:$0xff]
      %v1798 = vld [vmem:[%s17 + $0x48] sm:$0xff]
      %v1799 = vld [vmem:[%s17 + $0x50] sm:$0xff]
      %v1800 = vld [vmem:[%s17 + $0x58] sm:$0xff]
      %v1801 = vld [vmem:[%s17 + $0x60] sm:$0xff]
      %v1802 = vld [vmem:[%s17 + $0x68] sm:$0xff]
      %v1803 = vld [vmem:[%s17 + $0x70] sm:$0xff]
      %v1804 = vld [vmem:[%s17 + $0x78] sm:$0xff]
      %v1805 = vld [vmem:[%s17 + $0x80] sm:$0xff]
      %v1806 = vld [vmem:[%s17 + $0x88] sm:$0xff]
      %v1807 = vld [vmem:[%s17 + $0x90] sm:$0xff]
      %v1808 = vld [vmem:[%s17 + $0x98] sm:$0xff]
      %v1809 = vld [vmem:[%s17 + $0xa0] sm:$0xff]
      %v1810 = vld [vmem:[%s17 + $0xa8] sm:$0xff]
      %v1811 = vld [vmem:[%s17 + $0xb0] sm:$0xff]
      %v1812 = vld [vmem:[%s17 + $0xb8] sm:$0xff]
      %v1813 = vld [vmem:[%s17 + $0xc0] sm:$0xff]
      %v1814 = vld [vmem:[%s17 + $0xc8] sm:$0xff]
      %v1815 = vld [vmem:[%s17 + $0xd0] sm:$0xff]
      %v1816 = vld [vmem:[%s17 + $0xd8] sm:$0xff]
      %v1817 = vld [vmem:[%s17 + $0xe0] sm:$0xff]
      %v1818 = vld [vmem:[%s17 + $0xe8] sm:$0xff]
      %v1819 = vld [vmem:[%s17 + $0xf0] sm:$0xff]
      %v1820 = vld [vmem:[%s17 + $0xf8] sm:$0xff]
      %v1821 = vpack.c.bf16 %v1788, %v1788
      %v1822 = vld [vmem:[%s18] sm:$0xf]
      %v1824 = vlaneseq
      %v1825 = vshrl.u32 %v1824, 7
      %v1826 = vsub.s32 0, %v1825
      %v1827 = vrot.slane %v1822, %v1826
      %v1828 = vlaneseq
      %v1829 = vshrl.u32 %v1828, 7
      %v1830 = vsub.s32 1, %v1829
      %v1831 = vrot.slane %v1822, %v1830
      %v1832 = vlaneseq
      %v1833 = vshrl.u32 %v1832, 7
      %v1834 = vsub.s32 2, %v1833
      %v1835 = vrot.slane %v1822, %v1834
      %v1836 = vlaneseq
      %v1837 = vshrl.u32 %v1836, 7
      %v1838 = vsub.s32 3, %v1837
      %v1839 = vrot.slane %v1822, %v1838
      %v1876 = vunpack.c.l.b16 %v1789
      %v1877 = vunpack.c.h.b16 %v1789
      %v1878 = vunpack.c.l.b16 %v1790
      %v1879 = vunpack.c.h.b16 %v1790
      %v1880 = vunpack.c.l.b16 %v1791
      %v1881 = vunpack.c.h.b16 %v1791
      %v1882 = vunpack.c.l.b16 %v1792
      %v1883 = vunpack.c.h.b16 %v1792
      %v1884 = vunpack.c.l.b16 %v1793
      %v1885 = vunpack.c.h.b16 %v1793
      %v1886 = vunpack.c.l.b16 %v1794
      %v1887 = vunpack.c.h.b16 %v1794
      %v1888 = vunpack.c.l.b16 %v1795
      %v1889 = vunpack.c.h.b16 %v1795
      %v1890 = vunpack.c.l.b16 %v1796
      %v1891 = vunpack.c.h.b16 %v1796
      %v1892 = vunpack.c.l.b16 %v1797
      %v1893 = vunpack.c.h.b16 %v1797
      %v1894 = vunpack.c.l.b16 %v1798
      %v1895 = vunpack.c.h.b16 %v1798
      %v1896 = vunpack.c.l.b16 %v1799
      %v1897 = vunpack.c.h.b16 %v1799
      %v1898 = vunpack.c.l.b16 %v1800
      %v1899 = vunpack.c.h.b16 %v1800
      %v1900 = vunpack.c.l.b16 %v1801
      %v1901 = vunpack.c.h.b16 %v1801
      %v1902 = vunpack.c.l.b16 %v1802
      %v1903 = vunpack.c.h.b16 %v1802
      %v1904 = vunpack.c.l.b16 %v1803
      %v1905 = vunpack.c.h.b16 %v1803
      %v1906 = vunpack.c.l.b16 %v1804
      %v1907 = vunpack.c.h.b16 %v1804
      %v1908 = vunpack.c.l.b16 %v1805
      %v1909 = vunpack.c.h.b16 %v1805
      %v1910 = vunpack.c.l.b16 %v1806
      %v1911 = vunpack.c.h.b16 %v1806
      %v1912 = vunpack.c.l.b16 %v1807
      %v1913 = vunpack.c.h.b16 %v1807
      %v1914 = vunpack.c.l.b16 %v1808
      %v1915 = vunpack.c.h.b16 %v1808
      %v1916 = vunpack.c.l.b16 %v1809
      %v1917 = vunpack.c.h.b16 %v1809
      %v1918 = vunpack.c.l.b16 %v1810
      %v1919 = vunpack.c.h.b16 %v1810
      %v1920 = vunpack.c.l.b16 %v1811
      %v1921 = vunpack.c.h.b16 %v1811
      %v1922 = vunpack.c.l.b16 %v1812
      %v1923 = vunpack.c.h.b16 %v1812
      %v1924 = vunpack.c.l.b16 %v1813
      %v1925 = vunpack.c.h.b16 %v1813
      %v1926 = vunpack.c.l.b16 %v1814
      %v1927 = vunpack.c.h.b16 %v1814
      %v1928 = vunpack.c.l.b16 %v1815
      %v1929 = vunpack.c.h.b16 %v1815
      %v1930 = vunpack.c.l.b16 %v1816
      %v1931 = vunpack.c.h.b16 %v1816
      %v1932 = vunpack.c.l.b16 %v1817
      %v1933 = vunpack.c.h.b16 %v1817
      %v1934 = vunpack.c.l.b16 %v1818
      %v1935 = vunpack.c.h.b16 %v1818
      %v1936 = vunpack.c.l.b16 %v1819
      %v1937 = vunpack.c.h.b16 %v1819
      %v1938 = vunpack.c.l.b16 %v1820
      %v1939 = vunpack.c.h.b16 %v1820
      %v1940 = vpack.c.b16 %v1880, %v1876
      %v1941 = vpack.c.b16 %v1881, %v1877
      %v1942 = vpack.c.b16 %v1882, %v1878
      %v1943 = vpack.c.b16 %v1883, %v1879
      %v1944 = vpack.c.b16 %v1888, %v1884
      %v1945 = vpack.c.b16 %v1889, %v1885
      %v1946 = vpack.c.b16 %v1890, %v1886
      %v1947 = vpack.c.b16 %v1891, %v1887
      %v1948 = vpack.c.b16 %v1896, %v1892
      %v1949 = vpack.c.b16 %v1897, %v1893
      %v1950 = vpack.c.b16 %v1898, %v1894
      %v1951 = vpack.c.b16 %v1899, %v1895
      %v1952 = vpack.c.b16 %v1904, %v1900
      %v1953 = vpack.c.b16 %v1905, %v1901
      %v1954 = vpack.c.b16 %v1906, %v1902
      %v1955 = vpack.c.b16 %v1907, %v1903
      %v1956 = vpack.c.b16 %v1912, %v1908
      %v1957 = vpack.c.b16 %v1913, %v1909
      %v1958 = vpack.c.b16 %v1914, %v1910
      %v1959 = vpack.c.b16 %v1915, %v1911
      %v1960 = vpack.c.b16 %v1920, %v1916
      %v1961 = vpack.c.b16 %v1921, %v1917
      %v1962 = vpack.c.b16 %v1922, %v1918
      %v1963 = vpack.c.b16 %v1923, %v1919
      %v1964 = vpack.c.b16 %v1928, %v1924
      %v1965 = vpack.c.b16 %v1929, %v1925
      %v1966 = vpack.c.b16 %v1930, %v1926
      %v1967 = vpack.c.b16 %v1931, %v1927
      %v1968 = vpack.c.b16 %v1936, %v1932
      %v1969 = vpack.c.b16 %v1937, %v1933
      %v1970 = vpack.c.b16 %v1938, %v1934
      %v1971 = vpack.c.b16 %v1939, %v1935
      %2004 = vmatprep.subr.bf16.mxu0 %v1941
      %2005 = vmatpush1.bf16.msra.mxu0 %v1940
      %2006 = vmatprep.subr.bf16.mxu0 %v1945
      %2007 = vmatpush1.bf16.msra.mxu0 %v1944
      %2008 = vmatprep.subr.bf16.mxu0 %v1949
      %2009 = vmatpush1.bf16.msra.mxu0 %v1948
      %2010 = vmatprep.subr.bf16.mxu0 %v1953
      %2011 = vmatpush1.bf16.msra.mxu0 %v1952
      %2012 = vmatprep.subr.bf16.mxu0 %v1957
      %2013 = vmatpush1.bf16.msra.mxu0 %v1956
      %2014 = vmatprep.subr.bf16.mxu0 %v1961
      %2015 = vmatpush1.bf16.msra.mxu0 %v1960
      %2016 = vmatprep.subr.bf16.mxu0 %v1965
      %2017 = vmatpush1.bf16.msra.mxu0 %v1964
      %2018 = vmatprep.subr.bf16.mxu0 %v1969
      %2019 = vmatpush1.bf16.msra.mxu0 %v1968
      %2020 = vmatprep.subr.bf16.mxu0 0
      %2021 = vmatpush1.bf16.msra.mxu0 0
      %2022 = vmatprep.subr.bf16.mxu0 0
      %2023 = vmatpush1.bf16.msra.mxu0 0
      %2024 = vmatprep.subr.bf16.mxu0 0
      %2025 = vmatpush1.bf16.msra.mxu0 0
      %2026 = vmatprep.subr.bf16.mxu0 0
      %2027 = vmatpush1.bf16.msra.mxu0 0
      %2028 = vmatprep.subr.bf16.mxu0 0
      %2029 = vmatpush1.bf16.msra.mxu0 0
      %2030 = vmatprep.subr.bf16.mxu0 0
      %2031 = vmatpush1.bf16.msra.mxu0 0
      %2032 = vmatprep.subr.bf16.mxu0 0
      %2033 = vmatpush1.bf16.msra.mxu0 0
      %2034 = vmatprep.subr.bf16.mxu0 0
      %2035 = vmatpush1.bf16.msra.mxu0 0
      %2036 = vmatprep.mubr.bf16.mxu0 0
      %2037 = vmatmul.mubr.bf16.gmra.mrb[0].mxu0 %v1821
      %v2038 = vpop.f32.mrb[0].mxu0
      %v2039 = vadd.f32 %v1827, %v2038
      %v2040 = vpop.f32.mrb[0].mxu0
      %v2041 = vadd.f32 %v1831, %v2040
      %v2042 = vpop.f32.mrb[0].mxu0
      %v2043 = vpop.f32.mrb[0].mxu0
      %2044 = vdwg.mxu0
      %2045 = vmatprep.subr.bf16.mxu0 %v1943
      %2046 = vmatpush1.bf16.msra.mxu0 %v1942
      %2047 = vmatprep.subr.bf16.mxu0 %v1947
      %2048 = vmatpush1.bf16.msra.mxu0 %v1946
      %2049 = vmatprep.subr.bf16.mxu0 %v1951
      %2050 = vmatpush1.bf16.msra.mxu0 %v1950
      %2051 = vmatprep.subr.bf16.mxu0 %v1955
      %2052 = vmatpush1.bf16.msra.mxu0 %v1954
      %2053 = vmatprep.subr.bf16.mxu0 %v1959
      %2054 = vmatpush1.bf16.msra.mxu0 %v1958
      %2055 = vmatprep.subr.bf16.mxu0 %v1963
      %2056 = vmatpush1.bf16.msra.mxu0 %v1962
      %2057 = vmatprep.subr.bf16.mxu0 %v1967
      %2058 = vmatpush1.bf16.msra.mxu0 %v1966
      %2059 = vmatprep.subr.bf16.mxu0 %v1971
      %2060 = vmatpush1.bf16.msra.mxu0 %v1970
      %2061 = vmatprep.subr.bf16.mxu0 0
      %2062 = vmatpush1.bf16.msra.mxu0 0
      %2063 = vmatprep.subr.bf16.mxu0 0
      %2064 = vmatpush1.bf16.msra.mxu0 0
      %2065 = vmatprep.subr.bf16.mxu0 0
      %2066 = vmatpush1.bf16.msra.mxu0 0
      %2067 = vmatprep.subr.bf16.mxu0 0
      %2068 = vmatpush1.bf16.msra.mxu0 0
      %2069 = vmatprep.subr.bf16.mxu0 0
      %2070 = vmatpush1.bf16.msra.mxu0 0
      %2071 = vmatprep.subr.bf16.mxu0 0
      %2072 = vmatpush1.bf16.msra.mxu0 0
      %2073 = vmatprep.subr.bf16.mxu0 0
      %2074 = vmatpush1.bf16.msra.mxu0 0
      %2075 = vmatprep.subr.bf16.mxu0 0
      %2076 = vmatpush1.bf16.msra.mxu0 0
      %2077 = vmatprep.mubr.bf16.mxu0 0
      %2078 = vmatmul.mubr.bf16.gmra.mrb[0].mxu0 %v1821
      %v2079 = vpop.f32.mrb[0].mxu0
      %v2080 = vadd.f32 %v1835, %v2079
      %v2081 = vpop.f32.mrb[0].mxu0
      %v2082 = vadd.f32 %v1839, %v2081
      %v2083 = vpop.f32.mrb[0].mxu0
      %v2084 = vpop.f32.mrb[0].mxu0
      %2085 = vdwg.mxu0
      %v2086 = vmul.f32 %v2039, %v2039
      %v2087 = vmul.f32 %v2041, %v2041
      %v2088 = vmul.f32 %v2080, %v2080
      %v2089 = vmul.f32 %v2082, %v2082
      %v2090 = vmul.f32 %v2039, %v2086
      %v2091 = vmul.f32 %v2041, %v2087
      %v2092 = vmul.f32 %v2080, %v2088
      %v2093 = vmul.f32 %v2082, %v2089
      %v2094 = vmul.f32 %v2090, 0.044715
      %v2095 = vmul.f32 %v2091, 0.044715
      %v2096 = vmul.f32 %v2092, 0.044715
      %v2097 = vmul.f32 %v2093, 0.044715
      %v2098 = vadd.f32 %v2039, %v2094
      %v2099 = vadd.f32 %v2041, %v2095
      %v2100 = vadd.f32 %v2080, %v2096
      %v2101 = vadd.f32 %v2082, %v2097
      %v2102 = vmul.f32 %v2098, 0.7978846
      %v2103 = vmul.f32 %v2099, 0.7978846
      %v2104 = vmul.f32 %v2100, 0.7978846
      %v2105 = vmul.f32 %v2101, 0.7978846
      %v2106 = vtanh.pop %v2102
      %v2107 = vtanh.pop %v2103
      %v2108 = vtanh.pop %v2104
      %v2109 = vtanh.pop %v2105
      %v2110 = vadd.f32 %v2106, 1.0
      %v2111 = vadd.f32 %v2107, 1.0
      %v2112 = vadd.f32 %v2108, 1.0
      %v2113 = vadd.f32 %v2109, 1.0
      %v2114 = vmul.f32 %v2110, 0.5
      %v2115 = vmul.f32 %v2111, 0.5
      %v2116 = vmul.f32 %v2112, 0.5
      %v2117 = vmul.f32 %v2113, 0.5
      %v2118 = vmul.f32 %v2039, %v2114
      %v2119 = vmul.f32 %v2041, %v2115
      %v2120 = vmul.f32 %v2080, %v2116
      %v2121 = vmul.f32 %v2082, %v2117
      %v2122 = vld [vmem:[%s19] sm:$0xf]
      %v2123 = vld [vmem:[%s19 + $0x4] sm:$0xf]
      %v2124 = vld [vmem:[%s19 + $0x8] sm:$0xf]
      %v2125 = vld [vmem:[%s19 + $0xc] sm:$0xf]
      %v2126 = vld [vmem:[%s19 + $0x10] sm:$0xf]
      %v2127 = vld [vmem:[%s19 + $0x14] sm:$0xf]
      %v2128 = vld [vmem:[%s19 + $0x18] sm:$0xf]
      %v2129 = vld [vmem:[%s19 + $0x1c] sm:$0xf]
      %v2130 = vld [vmem:[%s19 + $0x20] sm:$0xf]
      %v2131 = vld [vmem:[%s19 + $0x24] sm:$0xf]
      %v2132 = vld [vmem:[%s19 + $0x28] sm:$0xf]
      %v2133 = vld [vmem:[%s19 + $0x2c] sm:$0xf]
      %v2134 = vld [vmem:[%s19 + $0x30] sm:$0xf]
      %v2135 = vld [vmem:[%s19 + $0x34] sm:$0xf]
      %v2136 = vld [vmem:[%s19 + $0x38] sm:$0xf]
      %v2137 = vld [vmem:[%s19 + $0x3c] sm:$0xf]
      %v2138 = vld [vmem:[%s19 + $0x40] sm:$0xf]
      %v2139 = vld [vmem:[%s19 + $0x44] sm:$0xf]
      %v2140 = vld [vmem:[%s19 + $0x48] sm:$0xf]
      %v2141 = vld [vmem:[%s19 + $0x4c] sm:$0xf]
      %v2142 = vld [vmem:[%s19 + $0x50] sm:$0xf]
      %v2143 = vld [vmem:[%s19 + $0x54] sm:$0xf]
      %v2144 = vld [vmem:[%s19 + $0x58] sm:$0xf]
      %v2145 = vld [vmem:[%s19 + $0x5c] sm:$0xf]
      %v2146 = vld [vmem:[%s19 + $0x60] sm:$0xf]
      %v2147 = vld [vmem:[%s19 + $0x64] sm:$0xf]
      %v2148 = vld [vmem:[%s19 + $0x68] sm:$0xf]
      %v2149 = vld [vmem:[%s19 + $0x6c] sm:$0xf]
      %v2150 = vld [vmem:[%s19 + $0x70] sm:$0xf]
      %v2151 = vld [vmem:[%s19 + $0x74] sm:$0xf]
      %v2152 = vld [vmem:[%s19 + $0x78] sm:$0xf]
      %v2153 = vld [vmem:[%s19 + $0x7c] sm:$0xf]
      %v2154 = vld [vmem:[%s19 + $0x80] sm:$0xf]
      %v2155 = vld [vmem:[%s19 + $0x84] sm:$0xf]
      %v2156 = vld [vmem:[%s19 + $0x88] sm:$0xf]
      %v2157 = vld [vmem:[%s19 + $0x8c] sm:$0xf]
      %v2158 = vld [vmem:[%s19 + $0x90] sm:$0xf]
      %v2159 = vld [vmem:[%s19 + $0x94] sm:$0xf]
      %v2160 = vld [vmem:[%s19 + $0x98] sm:$0xf]
      %v2161 = vld [vmem:[%s19 + $0x9c] sm:$0xf]
      %v2162 = vld [vmem:[%s19 + $0xa0] sm:$0xf]
      %v2163 = vld [vmem:[%s19 + $0xa4] sm:$0xf]
      %v2164 = vld [vmem:[%s19 + $0xa8] sm:$0xf]
      %v2165 = vld [vmem:[%s19 + $0xac] sm:$0xf]
      %v2166 = vld [vmem:[%s19 + $0xb0] sm:$0xf]
      %v2167 = vld [vmem:[%s19 + $0xb4] sm:$0xf]
      %v2168 = vld [vmem:[%s19 + $0xb8] sm:$0xf]
      %v2169 = vld [vmem:[%s19 + $0xbc] sm:$0xf]
      %v2170 = vld [vmem:[%s19 + $0xc0] sm:$0xf]
      %v2171 = vld [vmem:[%s19 + $0xc4] sm:$0xf]
      %v2172 = vld [vmem:[%s19 + $0xc8] sm:$0xf]
      %v2173 = vld [vmem:[%s19 + $0xcc] sm:$0xf]
      %v2174 = vld [vmem:[%s19 + $0xd0] sm:$0xf]
      %v2175 = vld [vmem:[%s19 + $0xd4] sm:$0xf]
      %v2176 = vld [vmem:[%s19 + $0xd8] sm:$0xf]
      %v2177 = vld [vmem:[%s19 + $0xdc] sm:$0xf]
      %v2178 = vld [vmem:[%s19 + $0xe0] sm:$0xf]
      %v2179 = vld [vmem:[%s19 + $0xe4] sm:$0xf]
      %v2180 = vld [vmem:[%s19 + $0xe8] sm:$0xf]
      %v2181 = vld [vmem:[%s19 + $0xec] sm:$0xf]
      %v2182 = vld [vmem:[%s19 + $0xf0] sm:$0xf]
      %v2183 = vld [vmem:[%s19 + $0xf4] sm:$0xf]
      %v2184 = vld [vmem:[%s19 + $0xf8] sm:$0xf]
      %v2185 = vld [vmem:[%s19 + $0xfc] sm:$0xf]
      %v2186 = vpack.c.bf16 %v2118, %v2118
      %v2187 = vpack.c.bf16 %v2119, %v2119
      %v2188 = vpack.c.bf16 %v2120, %v2120
      %v2189 = vpack.c.bf16 %v2121, %v2121
      %v2190 = vld [vmem:[%s20] sm:$0x1]
      %v2192 = vlaneseq
      %v2193 = vshrl.u32 %v2192, 7
      %v2194 = vsub.s32 0, %v2193
      %v2195 = vrot.slane %v2190, %v2194
      %v2261 = vunpack.c.l.b16 %v2122
      %v2262 = vunpack.c.l.b16 %v2123
      %v2263 = vunpack.c.l.b16 %v2124
      %v2264 = vunpack.c.l.b16 %v2125
      %v2265 = vunpack.c.l.b16 %v2126
      %v2266 = vunpack.c.l.b16 %v2127
      %v2267 = vunpack.c.l.b16 %v2128
      %v2268 = vunpack.c.l.b16 %v2129
      %v2269 = vunpack.c.l.b16 %v2130
      %v2270 = vunpack.c.l.b16 %v2131
      %v2271 = vunpack.c.l.b16 %v2132
      %v2272 = vunpack.c.l.b16 %v2133
      %v2273 = vunpack.c.l.b16 %v2134
      %v2274 = vunpack.c.l.b16 %v2135
      %v2275 = vunpack.c.l.b16 %v2136
      %v2276 = vunpack.c.l.b16 %v2137
      %v2277 = vunpack.c.l.b16 %v2138
      %v2278 = vunpack.c.l.b16 %v2139
      %v2279 = vunpack.c.l.b16 %v2140
      %v2280 = vunpack.c.l.b16 %v2141
      %v2281 = vunpack.c.l.b16 %v2142
      %v2282 = vunpack.c.l.b16 %v2143
      %v2283 = vunpack.c.l.b16 %v2144
      %v2284 = vunpack.c.l.b16 %v2145
      %v2285 = vunpack.c.l.b16 %v2146
      %v2286 = vunpack.c.l.b16 %v2147
      %v2287 = vunpack.c.l.b16 %v2148
      %v2288 = vunpack.c.l.b16 %v2149
      %v2289 = vunpack.c.l.b16 %v2150
      %v2290 = vunpack.c.l.b16 %v2151
      %v2291 = vunpack.c.l.b16 %v2152
      %v2292 = vunpack.c.l.b16 %v2153
      %v2293 = vunpack.c.l.b16 %v2154
      %v2294 = vunpack.c.l.b16 %v2155
      %v2295 = vunpack.c.l.b16 %v2156
      %v2296 = vunpack.c.l.b16 %v2157
      %v2297 = vunpack.c.l.b16 %v2158
      %v2298 = vunpack.c.l.b16 %v2159
      %v2299 = vunpack.c.l.b16 %v2160
      %v2300 = vunpack.c.l.b16 %v2161
      %v2301 = vunpack.c.l.b16 %v2162
      %v2302 = vunpack.c.l.b16 %v2163
      %v2303 = vunpack.c.l.b16 %v2164
      %v2304 = vunpack.c.l.b16 %v2165
      %v2305 = vunpack.c.l.b16 %v2166
      %v2306 = vunpack.c.l.b16 %v2167
      %v2307 = vunpack.c.l.b16 %v2168
      %v2308 = vunpack.c.l.b16 %v2169
      %v2309 = vunpack.c.l.b16 %v2170
      %v2310 = vunpack.c.l.b16 %v2171
      %v2311 = vunpack.c.l.b16 %v2172
      %v2312 = vunpack.c.l.b16 %v2173
      %v2313 = vunpack.c.l.b16 %v2174
      %v2314 = vunpack.c.l.b16 %v2175
      %v2315 = vunpack.c.l.b16 %v2176
      %v2316 = vunpack.c.l.b16 %v2177
      %v2317 = vunpack.c.l.b16 %v2178
      %v2318 = vunpack.c.l.b16 %v2179
      %v2319 = vunpack.c.l.b16 %v2180
      %v2320 = vunpack.c.l.b16 %v2181
      %v2321 = vunpack.c.l.b16 %v2182
      %v2322 = vunpack.c.l.b16 %v2183
      %v2323 = vunpack.c.l.b16 %v2184
      %v2324 = vunpack.c.l.b16 %v2185
      %v2325 = vpack.c.b16 %v2262, %v2261
      %v2326 = vpack.c.b16 %v2264, %v2263
      %v2327 = vpack.c.b16 %v2266, %v2265
      %v2328 = vpack.c.b16 %v2268, %v2267
      %v2329 = vpack.c.b16 %v2270, %v2269
      %v2330 = vpack.c.b16 %v2272, %v2271
      %v2331 = vpack.c.b16 %v2274, %v2273
      %v2332 = vpack.c.b16 %v2276, %v2275
      %v2333 = vpack.c.b16 %v2278, %v2277
      %v2334 = vpack.c.b16 %v2280, %v2279
      %v2335 = vpack.c.b16 %v2282, %v2281
      %v2336 = vpack.c.b16 %v2284, %v2283
      %v2337 = vpack.c.b16 %v2286, %v2285
      %v2338 = vpack.c.b16 %v2288, %v2287
      %v2339 = vpack.c.b16 %v2290, %v2289
      %v2340 = vpack.c.b16 %v2292, %v2291
      %v2341 = vpack.c.b16 %v2294, %v2293
      %v2342 = vpack.c.b16 %v2296, %v2295
      %v2343 = vpack.c.b16 %v2298, %v2297
      %v2344 = vpack.c.b16 %v2300, %v2299
      %v2345 = vpack.c.b16 %v2302, %v2301
      %v2346 = vpack.c.b16 %v2304, %v2303
      %v2347 = vpack.c.b16 %v2306, %v2305
      %v2348 = vpack.c.b16 %v2308, %v2307
      %v2349 = vpack.c.b16 %v2310, %v2309
      %v2350 = vpack.c.b16 %v2312, %v2311
      %v2351 = vpack.c.b16 %v2314, %v2313
      %v2352 = vpack.c.b16 %v2316, %v2315
      %v2353 = vpack.c.b16 %v2318, %v2317
      %v2354 = vpack.c.b16 %v2320, %v2319
      %v2355 = vpack.c.b16 %v2322, %v2321
      %v2356 = vpack.c.b16 %v2324, %v2323
      %2389 = vmatprep.subr.bf16.mxu0 0
      %2390 = vmatpush1.bf16.msra.mxu0 %v2325
      %2391 = vmatprep.subr.bf16.mxu0 0
      %2392 = vmatpush1.bf16.msra.mxu0 %v2326
      %2393 = vmatprep.subr.bf16.mxu0 0
      %2394 = vmatpush1.bf16.msra.mxu0 %v2327
      %2395 = vmatprep.subr.bf16.mxu0 0
      %2396 = vmatpush1.bf16.msra.mxu0 %v2328
      %2397 = vmatprep.subr.bf16.mxu0 0
      %2398 = vmatpush1.bf16.msra.mxu0 %v2329
      %2399 = vmatprep.subr.bf16.mxu0 0
      %2400 = vmatpush1.bf16.msra.mxu0 %v2330
      %2401 = vmatprep.subr.bf16.mxu0 0
      %2402 = vmatpush1.bf16.msra.mxu0 %v2331
      %2403 = vmatprep.subr.bf16.mxu0 0
      %2404 = vmatpush1.bf16.msra.mxu0 %v2332
      %2405 = vmatprep.subr.bf16.mxu0 0
      %2406 = vmatpush1.bf16.msra.mxu0 %v2333
      %2407 = vmatprep.subr.bf16.mxu0 0
      %2408 = vmatpush1.bf16.msra.mxu0 %v2334
      %2409 = vmatprep.subr.bf16.mxu0 0
      %2410 = vmatpush1.bf16.msra.mxu0 %v2335
      %2411 = vmatprep.subr.bf16.mxu0 0
      %2412 = vmatpush1.bf16.msra.mxu0 %v2336
      %2413 = vmatprep.subr.bf16.mxu0 0
      %2414 = vmatpush1.bf16.msra.mxu0 %v2337
      %2415 = vmatprep.subr.bf16.mxu0 0
      %2416 = vmatpush1.bf16.msra.mxu0 %v2338
      %2417 = vmatprep.subr.bf16.mxu0 0
      %2418 = vmatpush1.bf16.msra.mxu0 %v2339
      %2419 = vmatprep.subr.bf16.mxu0 0
      %2420 = vmatpush1.bf16.msra.mxu0 %v2340
      %2421 = vmatprep.mubr.bf16.mxu0 %v2187
      %2422 = vmatmul.mubr.bf16.gmra.mrb[0].mxu0 %v2186
      %v2423 = vpop.f32.mrb[0].mxu0
      %v2424 = vadd.f32 %v2195, %v2423
      %v2425 = vpop.f32.mrb[0].mxu0
      %v2426 = vpop.f32.mrb[0].mxu0
      %v2427 = vpop.f32.mrb[0].mxu0
      %2428 = vdwg.mxu0
      %2429 = vmatprep.subr.bf16.mxu0 0
      %2430 = vmatpush1.bf16.msra.mxu0 %v2341
      %2431 = vmatprep.subr.bf16.mxu0 0
      %2432 = vmatpush1.bf16.msra.mxu0 %v2342
      %2433 = vmatprep.subr.bf16.mxu0 0
      %2434 = vmatpush1.bf16.msra.mxu0 %v2343
      %2435 = vmatprep.subr.bf16.mxu0 0
      %2436 = vmatpush1.bf16.msra.mxu0 %v2344
      %2437 = vmatprep.subr.bf16.mxu0 0
      %2438 = vmatpush1.bf16.msra.mxu0 %v2345
      %2439 = vmatprep.subr.bf16.mxu0 0
      %2440 = vmatpush1.bf16.msra.mxu0 %v2346
      %2441 = vmatprep.subr.bf16.mxu0 0
      %2442 = vmatpush1.bf16.msra.mxu0 %v2347
      %2443 = vmatprep.subr.bf16.mxu0 0
      %2444 = vmatpush1.bf16.msra.mxu0 %v2348
      %2445 = vmatprep.subr.bf16.mxu0 0
      %2446 = vmatpush1.bf16.msra.mxu0 %v2349
      %2447 = vmatprep.subr.bf16.mxu0 0
      %2448 = vmatpush1.bf16.msra.mxu0 %v2350
      %2449 = vmatprep.subr.bf16.mxu0 0
      %2450 = vmatpush1.bf16.msra.mxu0 %v2351
      %2451 = vmatprep.subr.bf16.mxu0 0
      %2452 = vmatpush1.bf16.msra.mxu0 %v2352
      %2453 = vmatprep.subr.bf16.mxu0 0
      %2454 = vmatpush1.bf16.msra.mxu0 %v2353
      %2455 = vmatprep.subr.bf16.mxu0 0
      %2456 = vmatpush1.bf16.msra.mxu0 %v2354
      %2457 = vmatprep.subr.bf16.mxu0 0
      %2458 = vmatpush1.bf16.msra.mxu0 %v2355
      %2459 = vmatprep.subr.bf16.mxu0 0
      %2460 = vmatpush1.bf16.msra.mxu0 %v2356
      %2461 = vmatprep.mubr.bf16.mxu0 %v2189
      %2462 = vmatmul.mubr.bf16.gmra.mrb[0].mxu0 %v2188
      %v2463 = vpop.f32.mrb[0].mxu0
      %v2464 = vadd.f32 %v2424, %v2463
      %v2465 = vpop.f32.mrb[0].mxu0
      %v2466 = vpop.f32.mrb[0].mxu0
      %v2467 = vpop.f32.mrb[0].mxu0
      %2468 = vdwg.mxu0
      %v2469 = vmul.f32 %v2464, %v2464
      %v2470 = vmul.f32 %v2464, %v2469
      %v2471 = vmul.f32 %v2470, 0.044715
      %v2472 = vadd.f32 %v2464, %v2471
      %v2473 = vmul.f32 %v2472, 0.7978846
      %v2474 = vtanh.pop %v2473
      %v2475 = vadd.f32 %v2474, 1.0
      %v2476 = vmul.f32 %v2475, 0.5
      %v2477 = vmul.f32 %v2464, %v2476
      %v2478 = vadd.f32 %v2477, %v1761
      %s2479 = scalar_lea.vmem %s9, 1
      %v2480 = vld [vmem:[%s2479] sm:$0x1]
      %s2481 = scalar_lea.vmem %s10, 1
      %v2482 = vld [vmem:[%s2481] sm:$0x1]
      %2483 = vadd.xlane.f32.xlu0 %v2478
      %v2484 = vpop.xlane.xlu0 %2483
      %v2485 = vmul.f32 %v2484, %v1128
      %v2486 = vsub.f32 %v2478, %v2485
      %v2487 = vmul.f32 %v2486, %v2486
      %2488 = vadd.xlane.f32.xlu0 %v2487
      %v2489 = vpop.xlane.xlu0 %2488
      %v2490 = vmul.f32 %v2489, %v1128
      %v2491 = vadd.f32 %v2490, 1e-06
      %v2492 = vrsqrt.pop %v2491
      %v2493 = vmul.f32 %v2486, %v2492
      %v2495 = vlaneseq
      %v2496 = vshrl.u32 %v2495, 7
      %v2497 = vsub.s32 0, %v2496
      %v2498 = vrot.slane %v2480, %v2497
      %v2500 = vmul.f32 %v2493, %v2498
      %v2502 = vlaneseq
      %v2503 = vshrl.u32 %v2502, 7
      %v2504 = vsub.s32 0, %v2503
      %v2505 = vrot.slane %v2482, %v2504
      %v2507 = vadd.f32 %v2500, %v2505
      %s2508 = scalar_lea.vmem %s11, 192
      %v2509 = vld [vmem:[%s2508] sm:$0xff]
      %v2510 = vld [vmem:[%s2508 + $0x8] sm:$0xf]
      %v2511 = vld [vmem:[%s2508 + $0xc] sm:$0xff]
      %v2512 = vld [vmem:[%s2508 + $0x14] sm:$0xf]
      %v2513 = vld [vmem:[%s2508 + $0x18] sm:$0xff]
      %v2514 = vld [vmem:[%s2508 + $0x20] sm:$0xf]
      %v2515 = vld [vmem:[%s2508 + $0x24] sm:$0xff]
      %v2516 = vld [vmem:[%s2508 + $0x2c] sm:$0xf]
      %v2517 = vld [vmem:[%s2508 + $0x30] sm:$0xff]
      %v2518 = vld [vmem:[%s2508 + $0x38] sm:$0xf]
      %v2519 = vld [vmem:[%s2508 + $0x3c] sm:$0xff]
      %v2520 = vld [vmem:[%s2508 + $0x44] sm:$0xf]
      %v2521 = vld [vmem:[%s2508 + $0x48] sm:$0xff]
      %v2522 = vld [vmem:[%s2508 + $0x50] sm:$0xf]
      %v2523 = vld [vmem:[%s2508 + $0x54] sm:$0xff]
      %v2524 = vld [vmem:[%s2508 + $0x5c] sm:$0xf]
      %v2525 = vld [vmem:[%s2508 + $0x60] sm:$0xff]
      %v2526 = vld [vmem:[%s2508 + $0x68] sm:$0xf]
      %v2527 = vld [vmem:[%s2508 + $0x6c] sm:$0xff]
      %v2528 = vld [vmem:[%s2508 + $0x74] sm:$0xf]
      %v2529 = vld [vmem:[%s2508 + $0x78] sm:$0xff]
      %v2530 = vld [vmem:[%s2508 + $0x80] sm:$0xf]
      %v2531 = vld [vmem:[%s2508 + $0x84] sm:$0xff]
      %v2532 = vld [vmem:[%s2508 + $0x8c] sm:$0xf]
      %v2533 = vld [vmem:[%s2508 + $0x90] sm:$0xff]
      %v2534 = vld [vmem:[%s2508 + $0x98] sm:$0xf]
      %v2535 = vld [vmem:[%s2508 + $0x9c] sm:$0xff]
      %v2536 = vld [vmem:[%s2508 + $0xa4] sm:$0xf]
      %v2537 = vld [vmem:[%s2508 + $0xa8] sm:$0xff]
      %v2538 = vld [vmem:[%s2508 + $0xb0] sm:$0xf]
      %v2539 = vld [vmem:[%s2508 + $0xb4] sm:$0xff]
      %v2540 = vld [vmem:[%s2508 + $0xbc] sm:$0xf]
      %v2541 = vpack.c.bf16 %v2507, %v2507
      %s2542 = scalar_lea.vmem %s12, 3
      %v2543 = vld [vmem:[%s2542] sm:$0x7]
      %v2545 = vlaneseq
      %v2546 = vshrl.u32 %v2545, 7
      %v2547 = vsub.s32 0, %v2546
      %v2548 = vrot.slane %v2543, %v2547
      %v2549 = vlaneseq
      %v2550 = vshrl.u32 %v2549, 7
      %v2551 = vsub.s32 1, %v2550
      %v2552 = vrot.slane %v2543, %v2551
      %v2553 = vlaneseq
      %v2554 = vshrl.u32 %v2553, 7
      %v2555 = vsub.s32 2, %v2554
      %v2556 = vrot.slane %v2543, %v2555
      %v2592 = vunpack.c.l.b16 %v2509
      %v2593 = vunpack.c.h.b16 %v2509
      %v2594 = vunpack.c.l.b16 %v2510
      %v2595 = vunpack.c.l.b16 %v2511
      %v2596 = vunpack.c.h.b16 %v2511
      %v2597 = vunpack.c.l.b16 %v2512
      %v2598 = vunpack.c.l.b16 %v2513
      %v2599 = vunpack.c.h.b16 %v2513
      %v2600 = vunpack.c.l.b16 %v2514
      %v2601 = vunpack.c.l.b16 %v2515
      %v2602 = vunpack.c.h.b16 %v2515
      %v2603 = vunpack.c.l.b16 %v2516
      %v2604 = vunpack.c.l.b16 %v2517
      %v2605 = vunpack.c.h.b16 %v2517
      %v2606 = vunpack.c.l.b16 %v2518
      %v2607 = vunpack.c.l.b16 %v2519
      %v2608 = vunpack.c.h.b16 %v2519
      %v2609 = vunpack.c.l.b16 %v2520
      %v2610 = vunpack.c.l.b16 %v2521
      %v2611 = vunpack.c.h.b16 %v2521
      %v2612 = vunpack.c.l.b16 %v2522
      %v2613 = vunpack.c.l.b16 %v2523
      %v2614 = vunpack.c.h.b16 %v2523
      %v2615 = vunpack.c.l.b16 %v2524
      %v2616 = vunpack.c.l.b16 %v2525
      %v2617 = vunpack.c.h.b16 %v2525
      %v2618 = vunpack.c.l.b16 %v2526
      %v2619 = vunpack.c.l.b16 %v2527
      %v2620 = vunpack.c.h.b16 %v2527
      %v2621 = vunpack.c.l.b16 %v2528
      %v2622 = vunpack.c.l.b16 %v2529
      %v2623 = vunpack.c.h.b16 %v2529
      %v2624 = vunpack.c.l.b16 %v2530
      %v2625 = vunpack.c.l.b16 %v2531
      %v2626 = vunpack.c.h.b16 %v2531
      %v2627 = vunpack.c.l.b16 %v2532
      %v2628 = vunpack.c.l.b16 %v2533
      %v2629 = vunpack.c.h.b16 %v2533
      %v2630 = vunpack.c.l.b16 %v2534
      %v2631 = vunpack.c.l.b16 %v2535
      %v2632 = vunpack.c.h.b16 %v2535
      %v2633 = vunpack.c.l.b16 %v2536
      %v2634 = vunpack.c.l.b16 %v2537
      %v2635 = vunpack.c.h.b16 %v2537
      %v2636 = vunpack.c.l.b16 %v2538
      %v2637 = vunpack.c.l.b16 %v2539
      %v2638 = vunpack.c.h.b16 %v2539
      %v2639 = vunpack.c.l.b16 %v2540
      %v2640 = vpack.c.b16 %v2595, %v2592
      %v2641 = vpack.c.b16 %v2596, %v2593
      %v2642 = vpack.c.b16 %v2597, %v2594
      %v2643 = vpack.c.b16 %v2601, %v2598
      %v2644 = vpack.c.b16 %v2602, %v2599
      %v2645 = vpack.c.b16 %v2603, %v2600
      %v2646 = vpack.c.b16 %v2607, %v2604
      %v2647 = vpack.c.b16 %v2608, %v2605
      %v2648 = vpack.c.b16 %v2609, %v2606
      %v2649 = vpack.c.b16 %v2613, %v2610
      %v2650 = vpack.c.b16 %v2614, %v2611
      %v2651 = vpack.c.b16 %v2615, %v2612
      %v2652 = vpack.c.b16 %v2619, %v2616
      %v2653 = vpack.c.b16 %v2620, %v2617
      %v2654 = vpack.c.b16 %v2621, %v2618
      %v2655 = vpack.c.b16 %v2625, %v2622
      %v2656 = vpack.c.b16 %v2626, %v2623
      %v2657 = vpack.c.b16 %v2627, %v2624
      %v2658 = vpack.c.b16 %v2631, %v2628
      %v2659 = vpack.c.b16 %v2632, %v2629
      %v2660 = vpack.c.b16 %v2633, %v2630
      %v2661 = vpack.c.b16 %v2637, %v2634
      %v2662 = vpack.c.b16 %v2638, %v2635
      %v2663 = vpack.c.b16 %v2639, %v2636
      %2688 = vmatprep.subr.bf16.mxu0 %v2641
      %2689 = vmatpush1.bf16.msra.mxu0 %v2640
      %2690 = vmatprep.subr.bf16.mxu0 %v2644
      %2691 = vmatpush1.bf16.msra.mxu0 %v2643
      %2692 = vmatprep.subr.bf16.mxu0 %v2647
      %2693 = vmatpush1.bf16.msra.mxu0 %v2646
      %2694 = vmatprep.subr.bf16.mxu0 %v2650
      %2695 = vmatpush1.bf16.msra.mxu0 %v2649
      %2696 = vmatprep.subr.bf16.mxu0 %v2653
      %2697 = vmatpush1.bf16.msra.mxu0 %v2652
      %2698 = vmatprep.subr.bf16.mxu0 %v2656
      %2699 = vmatpush1.bf16.msra.mxu0 %v2655
      %2700 = vmatprep.subr.bf16.mxu0 %v2659
      %2701 = vmatpush1.bf16.msra.mxu0 %v2658
      %2702 = vmatprep.subr.bf16.mxu0 %v2662
      %2703 = vmatpush1.bf16.msra.mxu0 %v2661
      %2704 = vmatprep.subr.bf16.mxu0 0
      %2705 = vmatpush1.bf16.msra.mxu0 0
      %2706 = vmatprep.subr.bf16.mxu0 0
      %2707 = vmatpush1.bf16.msra.mxu0 0
      %2708 = vmatprep.subr.bf16.mxu0 0
      %2709 = vmatpush1.bf16.msra.mxu0 0
      %2710 = vmatprep.subr.bf16.mxu0 0
      %2711 = vmatpush1.bf16.msra.mxu0 0
      %2712 = vmatprep.subr.bf16.mxu0 0
      %2713 = vmatpush1.bf16.msra.mxu0 0
      %2714 = vmatprep.subr.bf16.mxu0 0
      %2715 = vmatpush1.bf16.msra.mxu0 0
      %2716 = vmatprep.subr.bf16.mxu0 0
      %2717 = vmatpush1.bf16.msra.mxu0 0
      %2718 = vmatprep.subr.bf16.mxu0 0
      %2719 = vmatpush1.bf16.msra.mxu0 0
      %2720 = vmatprep.mubr.bf16.mxu0 0
      %2721 = vmatmul.mubr.bf16.gmra.mrb[0].mxu0 %v2541
      %v2722 = vpop.f32.mrb[0].mxu0
      %v2723 = vadd.f32 %v2548, %v2722
      %v2724 = vpop.f32.mrb[0].mxu0
      %v2725 = vadd.f32 %v2552, %v2724
      %v2726 = vpop.f32.mrb[0].mxu0
      %v2727 = vpop.f32.mrb[0].mxu0
      %2728 = vdwg.mxu0
      %2729 = vmatprep.subr.bf16.mxu0 0
      %2730 = vmatpush1.bf16.msra.mxu0 %v2642
      %2731 = vmatprep.subr.bf16.mxu0 0
      %2732 = vmatpush1.bf16.msra.mxu0 %v2645
      %2733 = vmatprep.subr.bf16.mxu0 0
      %2734 = vmatpush1.bf16.msra.mxu0 %v2648
      %2735 = vmatprep.subr.bf16.mxu0 0
      %2736 = vmatpush1.bf16.msra.mxu0 %v2651
      %2737 = vmatprep.subr.bf16.mxu0 0
      %2738 = vmatpush1.bf16.msra.mxu0 %v2654
      %2739 = vmatprep.subr.bf16.mxu0 0
      %2740 = vmatpush1.bf16.msra.mxu0 %v2657
      %2741 = vmatprep.subr.bf16.mxu0 0
      %2742 = vmatpush1.bf16.msra.mxu0 %v2660
      %2743 = vmatprep.subr.bf16.mxu0 0
      %2744 = vmatpush1.bf16.msra.mxu0 %v2663
      %2745 = vmatprep.subr.bf16.mxu0 0
      %2746 = vmatpush1.bf16.msra.mxu0 0
      %2747 = vmatprep.subr.bf16.mxu0 0
      %2748 = vmatpush1.bf16.msra.mxu0 0
      %2749 = vmatprep.subr.bf16.mxu0 0
      %2750 = vmatpush1.bf16.msra.mxu0 0
      %2751 = vmatprep.subr.bf16.mxu0 0
      %2752 = vmatpush1.bf16.msra.mxu0 0
      %2753 = vmatprep.subr.bf16.mxu0 0
      %2754 = vmatpush1.bf16.msra.mxu0 0
      %2755 = vmatprep.subr.bf16.mxu0 0
      %2756 = vmatpush1.bf16.msra.mxu0 0
      %2757 = vmatprep.subr.bf16.mxu0 0
      %2758 = vmatpush1.bf16.msra.mxu0 0
      %2759 = vmatprep.subr.bf16.mxu0 0
      %2760 = vmatpush1.bf16.msra.mxu0 0
      %2761 = vmatprep.mubr.bf16.mxu0 0
      %2762 = vmatmul.mubr.bf16.gmra.mrb[0].mxu0 %v2541
      %v2763 = vpop.f32.mrb[0].mxu0
      %v2764 = vadd.f32 %v2556, %v2763
      %v2765 = vpop.f32.mrb[0].mxu0
      %v2766 = vpop.f32.mrb[0].mxu0
      %v2767 = vpop.f32.mrb[0].mxu0
      %2768 = vdwg.mxu0
      %v2769 = vpack.c.bf16 %v2723, %v2723
      %v2770 = vpack.c.bf16 %v2725, %v2725
      %v2772 = vsel %vm1413, %v2769, 0
      %v2775 = vsel %vm1413, %v2770, 0
      %2777 = vmatprep.subr.bf16.mxu0 0
      %2778 = vmatpush1.bf16.xpose.msra.mxu0 %v2775
      %2779 = vmatprep.subr.bf16.mxu0 0
      %2780 = vmatpush1.bf16.xpose.msra.mxu0 0
      %2781 = vmatprep.subr.bf16.mxu0 0
      %2782 = vmatpush1.bf16.xpose.msra.mxu0 0
      %2783 = vmatprep.subr.bf16.mxu0 0
      %2784 = vmatpush1.bf16.xpose.msra.mxu0 0
      %2785 = vmatprep.subr.bf16.mxu0 0
      %2786 = vmatpush1.bf16.xpose.msra.mxu0 0
      %2787 = vmatprep.subr.bf16.mxu0 0
      %2788 = vmatpush1.bf16.xpose.msra.mxu0 0
      %2789 = vmatprep.subr.bf16.mxu0 0
      %2790 = vmatpush1.bf16.xpose.msra.mxu0 0
      %2791 = vmatprep.subr.bf16.mxu0 0
      %2792 = vmatpush1.bf16.xpose.msra.mxu0 0
      %2793 = vmatprep.subr.bf16.mxu0 0
      %2794 = vmatpush1.bf16.xpose.msra.mxu0 0
      %2795 = vmatprep.subr.bf16.mxu0 0
      %2796 = vmatpush1.bf16.xpose.msra.mxu0 0
      %2797 = vmatprep.subr.bf16.mxu0 0
      %2798 = vmatpush1.bf16.xpose.msra.mxu0 0
      %2799 = vmatprep.subr.bf16.mxu0 0
      %2800 = vmatpush1.bf16.xpose.msra.mxu0 0
      %2801 = vmatprep.subr.bf16.mxu0 0
      %2802 = vmatpush1.bf16.xpose.msra.mxu0 0
      %2803 = vmatprep.subr.bf16.mxu0 0
      %2804 = vmatpush1.bf16.xpose.msra.mxu0 0
      %2805 = vmatprep.subr.bf16.mxu0 0
      %2806 = vmatpush1.bf16.xpose.msra.mxu0 0
      %2807 = vmatprep.subr.bf16.mxu0 0
      %2808 = vmatpush1.bf16.xpose.msra.mxu0 0
      %2809 = vmatprep.mubr.bf16.mxu0 0
      %2810 = vmatmul.mubr.bf16.gmra.mrb[0].mxu0 %v2772
      %v2811 = vpop.f32.mrb[0].mxu0
      %v2812 = vadd.f32 0.0, %v2811
      %v2813 = vpop.f32.mrb[0].mxu0
      %v2814 = vpop.f32.mrb[0].mxu0
      %v2815 = vpop.f32.mrb[0].mxu0
      %2816 = vdwg.mxu0
      %v2817 = vmul.f32 %v2812, 0.125
      %v2818 = vadd.f32 %v2817, %v1465
      %v2819 = vsel %vm1468, %v2818, -inf
      %2820 = vmax.xlane.f32.xlu0 %v2819
      %v2821 = vpop.xlane.xlu0 %2820
      %v2822 = vsub.f32 %v2818, %v2821
      %v2823 = vmul.f32 %v2822, 1.442695
      %v2824 = vpow.pop %v2823
      %v2825 = vsel %vm1468, %v2824, 0.0
      %2826 = vadd.xlane.f32.xlu0 %v2825
      %v2827 = vpop.xlane.xlu0 %2826
      %v2828 = vrcp.pop %v2827
      %v2829 = vmul.f32 %v2824, %v2828
      %v2830 = vpack.c.bf16 %v2764, %v2764
      %v2831 = vpack.c.bf16 %v2829, %v2829
      %v2833 = vsel %vm1468, %v2831, 0
      %v2836 = vsel %vm1485, %v2830, 0
      %2838 = vmatprep.subr.bf16.mxu0 0
      %2839 = vmatpush1.bf16.msra.mxu0 %v2836
      %2840 = vmatprep.subr.bf16.mxu0 0
      %2841 = vmatpush1.bf16.msra.mxu0 0
      %2842 = vmatprep.subr.bf16.mxu0 0
      %2843 = vmatpush1.bf16.msra.mxu0 0
      %2844 = vmatprep.subr.bf16.mxu0 0
      %2845 = vmatpush1.bf16.msra.mxu0 0
      %2846 = vmatprep.subr.bf16.mxu0 0
      %2847 = vmatpush1.bf16.msra.mxu0 0
      %2848 = vmatprep.subr.bf16.mxu0 0
      %2849 = vmatpush1.bf16.msra.mxu0 0
      %2850 = vmatprep.subr.bf16.mxu0 0
      %2851 = vmatpush1.bf16.msra.mxu0 0
      %2852 = vmatprep.subr.bf16.mxu0 0
      %2853 = vmatpush1.bf16.msra.mxu0 0
      %2854 = vmatprep.subr.bf16.mxu0 0
      %2855 = vmatpush1.bf16.msra.mxu0 0
      %2856 = vmatprep.subr.bf16.mxu0 0
      %2857 = vmatpush1.bf16.msra.mxu0 0
      %2858 = vmatprep.subr.bf16.mxu0 0
      %2859 = vmatpush1.bf16.msra.mxu0 0
      %2860 = vmatprep.subr.bf16.mxu0 0
      %2861 = vmatpush1.bf16.msra.mxu0 0
      %2862 = vmatprep.subr.bf16.mxu0 0
      %2863 = vmatpush1.bf16.msra.mxu0 0
      %2864 = vmatprep.subr.bf16.mxu0 0
      %2865 = vmatpush1.bf16.msra.mxu0 0
      %2866 = vmatprep.subr.bf16.mxu0 0
      %2867 = vmatpush1.bf16.msra.mxu0 0
      %2868 = vmatprep.subr.bf16.mxu0 0
      %2869 = vmatpush1.bf16.msra.mxu0 0
      %2870 = vmatprep.mubr.bf16.mxu0 0
      %2871 = vmatmul.mubr.bf16.gmra.mrb[0].mxu0 %v2833
      %v2872 = vpop.f32.mrb[0].mxu0
      %v2873 = vadd.f32 0.0, %v2872
      %v2874 = vpop.f32.mrb[0].mxu0
      %v2875 = vpop.f32.mrb[0].mxu0
      %v2876 = vpop.f32.mrb[0].mxu0
      %2877 = vdwg.mxu0
      %2879 = vrot.lane.b32.xlu0 %v2769, 64
      %v2880 = vpop.permute.xlu0 %2879
      %2882 = vrot.lane.b32.xlu0 %v2770, 64
      %v2883 = vpop.permute.xlu0 %2882
      %v2885 = vsel %vm1413, %v2880, 0
      %v2888 = vsel %vm1413, %v2883, 0
      %2890 = vmatprep.subr.bf16.mxu0 0
      %2891 = vmatpush1.bf16.xpose.msra.mxu0 %v2888
      %2892 = vmatprep.subr.bf16.mxu0 0
      %2893 = vmatpush1.bf16.xpose.msra.mxu0 0
      %2894 = vmatprep.subr.bf16.mxu0 0
      %2895 = vmatpush1.bf16.xpose.msra.mxu0 0
      %2896 = vmatprep.subr.bf16.mxu0 0
      %2897 = vmatpush1.bf16.xpose.msra.mxu0 0
      %2898 = vmatprep.subr.bf16.mxu0 0
      %2899 = vmatpush1.bf16.xpose.msra.mxu0 0
      %2900 = vmatprep.subr.bf16.mxu0 0
      %2901 = vmatpush1.bf16.xpose.msra.mxu0 0
      %2902 = vmatprep.subr.bf16.mxu0 0
      %2903 = vmatpush1.bf16.xpose.msra.mxu0 0
      %2904 = vmatprep.subr.bf16.mxu0 0
      %2905 = vmatpush1.bf16.xpose.msra.mxu0 0
      %2906 = vmatprep.subr.bf16.mxu0 0
      %2907 = vmatpush1.bf16.xpose.msra.mxu0 0
      %2908 = vmatprep.subr.bf16.mxu0 0
      %2909 = vmatpush1.bf16.xpose.msra.mxu0 0
      %2910 = vmatprep.subr.bf16.mxu0 0
      %2911 = vmatpush1.bf16.xpose.msra.mxu0 0
      %2912 = vmatprep.subr.bf16.mxu0 0
      %2913 = vmatpush1.bf16.xpose.msra.mxu0 0
      %2914 = vmatprep.subr.bf16.mxu0 0
      %2915 = vmatpush1.bf16.xpose.msra.mxu0 0
      %2916 = vmatprep.subr.bf16.mxu0 0
      %2917 = vmatpush1.bf16.xpose.msra.mxu0 0
      %2918 = vmatprep.subr.bf16.mxu0 0
      %2919 = vmatpush1.bf16.xpose.msra.mxu0 0
      %2920 = vmatprep.subr.bf16.mxu0 0
      %2921 = vmatpush1.bf16.xpose.msra.mxu0 0
      %2922 = vmatprep.mubr.bf16.mxu0 0
      %2923 = vmatmul.mubr.bf16.gmra.mrb[0].mxu0 %v2885
      %v2924 = vpop.f32.mrb[0].mxu0
      %v2925 = vadd.f32 0.0, %v2924
      %v2926 = vpop.f32.mrb[0].mxu0
      %v2927 = vpop.f32.mrb[0].mxu0
      %v2928 = vpop.f32.mrb[0].mxu0
      %2929 = vdwg.mxu0
      %v2930 = vmul.f32 %v2925, 0.125
      %v2931 = vadd.f32 %v2930, %v1465
      %v2932 = vsel %vm1468, %v2931, -inf
      %2933 = vmax.xlane.f32.xlu0 %v2932
      %v2934 = vpop.xlane.xlu0 %2933
      %v2935 = vsub.f32 %v2931, %v2934
      %v2936 = vmul.f32 %v2935, 1.442695
      %v2937 = vpow.pop %v2936
      %v2938 = vsel %vm1468, %v2937, 0.0
      %2939 = vadd.xlane.f32.xlu0 %v2938
      %v2940 = vpop.xlane.xlu0 %2939
      %v2941 = vrcp.pop %v2940
      %v2942 = vmul.f32 %v2937, %v2941
      %v2943 = vpack.c.bf16 %v2942, %v2942
      %2945 = vrot.lane.b32.xlu0 %v2830, 64
      %v2946 = vpop.permute.xlu0 %2945
      %v2948 = vsel %vm1468, %v2943, 0
      %v2951 = vsel %vm1485, %v2946, 0
      %2953 = vmatprep.subr.bf16.mxu0 0
      %2954 = vmatpush1.bf16.msra.mxu0 %v2951
      %2955 = vmatprep.subr.bf16.mxu0 0
      %2956 = vmatpush1.bf16.msra.mxu0 0
      %2957 = vmatprep.subr.bf16.mxu0 0
      %2958 = vmatpush1.bf16.msra.mxu0 0
      %2959 = vmatprep.subr.bf16.mxu0 0
      %2960 = vmatpush1.bf16.msra.mxu0 0
      %2961 = vmatprep.subr.bf16.mxu0 0
      %2962 = vmatpush1.bf16.msra.mxu0 0
      %2963 = vmatprep.subr.bf16.mxu0 0
      %2964 = vmatpush1.bf16.msra.mxu0 0
      %2965 = vmatprep.subr.bf16.mxu0 0
      %2966 = vmatpush1.bf16.msra.mxu0 0
      %2967 = vmatprep.subr.bf16.mxu0 0
      %2968 = vmatpush1.bf16.msra.mxu0 0
      %2969 = vmatprep.subr.bf16.mxu0 0
      %2970 = vmatpush1.bf16.msra.mxu0 0
      %2971 = vmatprep.subr.bf16.mxu0 0
      %2972 = vmatpush1.bf16.msra.mxu0 0
      %2973 = vmatprep.subr.bf16.mxu0 0
      %2974 = vmatpush1.bf16.msra.mxu0 0
      %2975 = vmatprep.subr.bf16.mxu0 0
      %2976 = vmatpush1.bf16.msra.mxu0 0
      %2977 = vmatprep.subr.bf16.mxu0 0
      %2978 = vmatpush1.bf16.msra.mxu0 0
      %2979 = vmatprep.subr.bf16.mxu0 0
      %2980 = vmatpush1.bf16.msra.mxu0 0
      %2981 = vmatprep.subr.bf16.mxu0 0
      %2982 = vmatpush1.bf16.msra.mxu0 0
      %2983 = vmatprep.subr.bf16.mxu0 0
      %2984 = vmatpush1.bf16.msra.mxu0 0
      %2985 = vmatprep.mubr.bf16.mxu0 0
      %2986 = vmatmul.mubr.bf16.gmra.mrb[0].mxu0 %v2948
      %v2987 = vpop.f32.mrb[0].mxu0
      %v2988 = vadd.f32 0.0, %v2987
      %v2989 = vpop.f32.mrb[0].mxu0
      %v2990 = vpop.f32.mrb[0].mxu0
      %v2991 = vpop.f32.mrb[0].mxu0
      %2992 = vdwg.mxu0
      %2994 = vrot.lane.b32.xlu0 %v2988, 64
      %v2995 = vpop.permute.xlu0 %2994
      %v2997 = vsel %vm1413, %v2873, %v2995
      %s2998 = scalar_lea.vmem %s13, 64
      %v2999 = vld [vmem:[%s2998] sm:$0xf]
      %v3000 = vld [vmem:[%s2998 + $0x4] sm:$0xf]
      %v3001 = vld [vmem:[%s2998 + $0x8] sm:$0xf]
      %v3002 = vld [vmem:[%s2998 + $0xc] sm:$0xf]
      %v3003 = vld [vmem:[%s2998 + $0x10] sm:$0xf]
      %v3004 = vld [vmem:[%s2998 + $0x14] sm:$0xf]
      %v3005 = vld [vmem:[%s2998 + $0x18] sm:$0xf]
      %v3006 = vld [vmem:[%s2998 + $0x1c] sm:$0xf]
      %v3007 = vld [vmem:[%s2998 + $0x20] sm:$0xf]
      %v3008 = vld [vmem:[%s2998 + $0x24] sm:$0xf]
      %v3009 = vld [vmem:[%s2998 + $0x28] sm:$0xf]
      %v3010 = vld [vmem:[%s2998 + $0x2c] sm:$0xf]
      %v3011 = vld [vmem:[%s2998 + $0x30] sm:$0xf]
      %v3012 = vld [vmem:[%s2998 + $0x34] sm:$0xf]
      %v3013 = vld [vmem:[%s2998 + $0x38] sm:$0xf]
      %v3014 = vld [vmem:[%s2998 + $0x3c] sm:$0xf]
      %v3015 = vpack.c.bf16 %v2997, %v2997
      %s3016 = scalar_lea.vmem %s14, 1
      %v3017 = vld [vmem:[%s3016] sm:$0x1]
      %v3019 = vlaneseq
      %v3020 = vshrl.u32 %v3019, 7
      %v3021 = vsub.s32 0, %v3020
      %v3022 = vrot.slane %v3017, %v3021
      %v3040 = vunpack.c.l.b16 %v2999
      %v3041 = vunpack.c.l.b16 %v3000
      %v3042 = vunpack.c.l.b16 %v3001
      %v3043 = vunpack.c.l.b16 %v3002
      %v3044 = vunpack.c.l.b16 %v3003
      %v3045 = vunpack.c.l.b16 %v3004
      %v3046 = vunpack.c.l.b16 %v3005
      %v3047 = vunpack.c.l.b16 %v3006
      %v3048 = vunpack.c.l.b16 %v3007
      %v3049 = vunpack.c.l.b16 %v3008
      %v3050 = vunpack.c.l.b16 %v3009
      %v3051 = vunpack.c.l.b16 %v3010
      %v3052 = vunpack.c.l.b16 %v3011
      %v3053 = vunpack.c.l.b16 %v3012
      %v3054 = vunpack.c.l.b16 %v3013
      %v3055 = vunpack.c.l.b16 %v3014
      %v3056 = vpack.c.b16 %v3041, %v3040
      %v3057 = vpack.c.b16 %v3043, %v3042
      %v3058 = vpack.c.b16 %v3045, %v3044
      %v3059 = vpack.c.b16 %v3047, %v3046
      %v3060 = vpack.c.b16 %v3049, %v3048
      %v3061 = vpack.c.b16 %v3051, %v3050
      %v3062 = vpack.c.b16 %v3053, %v3052
      %v3063 = vpack.c.b16 %v3055, %v3054
      %3072 = vmatprep.subr.bf16.mxu0 0
      %3073 = vmatpush1.bf16.msra.mxu0 %v3056
      %3074 = vmatprep.subr.bf16.mxu0 0
      %3075 = vmatpush1.bf16.msra.mxu0 %v3057
      %3076 = vmatprep.subr.bf16.mxu0 0
      %3077 = vmatpush1.bf16.msra.mxu0 %v3058
      %3078 = vmatprep.subr.bf16.mxu0 0
      %3079 = vmatpush1.bf16.msra.mxu0 %v3059
      %3080 = vmatprep.subr.bf16.mxu0 0
      %3081 = vmatpush1.bf16.msra.mxu0 %v3060
      %3082 = vmatprep.subr.bf16.mxu0 0
      %3083 = vmatpush1.bf16.msra.mxu0 %v3061
      %3084 = vmatprep.subr.bf16.mxu0 0
      %3085 = vmatpush1.bf16.msra.mxu0 %v3062
      %3086 = vmatprep.subr.bf16.mxu0 0
      %3087 = vmatpush1.bf16.msra.mxu0 %v3063
      %3088 = vmatprep.subr.bf16.mxu0 0
      %3089 = vmatpush1.bf16.msra.mxu0 0
      %3090 = vmatprep.subr.bf16.mxu0 0
      %3091 = vmatpush1.bf16.msra.mxu0 0
      %3092 = vmatprep.subr.bf16.mxu0 0
      %3093 = vmatpush1.bf16.msra.mxu0 0
      %3094 = vmatprep.subr.bf16.mxu0 0
      %3095 = vmatpush1.bf16.msra.mxu0 0
      %3096 = vmatprep.subr.bf16.mxu0 0
      %3097 = vmatpush1.bf16.msra.mxu0 0
      %3098 = vmatprep.subr.bf16.mxu0 0
      %3099 = vmatpush1.bf16.msra.mxu0 0
      %3100 = vmatprep.subr.bf16.mxu0 0
      %3101 = vmatpush1.bf16.msra.mxu0 0
      %3102 = vmatprep.subr.bf16.mxu0 0
      %3103 = vmatpush1.bf16.msra.mxu0 0
      %3104 = vmatprep.mubr.bf16.mxu0 0
      %3105 = vmatmul.mubr.bf16.gmra.mrb[0].mxu0 %v3015
      %v3106 = vpop.f32.mrb[0].mxu0
      %v3107 = vadd.f32 %v3022, %v3106
      %v3108 = vpop.f32.mrb[0].mxu0
      %v3109 = vpop.f32.mrb[0].mxu0
      %v3110 = vpop.f32.mrb[0].mxu0
      %3111 = vdwg.mxu0
      %v3112 = vadd.f32 %v3107, %v2478
      %s3113 = scalar_lea.vmem %s15, 1
      %v3114 = vld [vmem:[%s3113] sm:$0x1]
      %s3115 = scalar_lea.vmem %s16, 1
      %v3116 = vld [vmem:[%s3115] sm:$0x1]
      %3117 = vadd.xlane.f32.xlu0 %v3112
      %v3118 = vpop.xlane.xlu0 %3117
      %v3119 = vmul.f32 %v3118, %v1128
      %v3120 = vsub.f32 %v3112, %v3119
      %v3121 = vmul.f32 %v3120, %v3120
      %3122 = vadd.xlane.f32.xlu0 %v3121
      %v3123 = vpop.xlane.xlu0 %3122
      %v3124 = vmul.f32 %v3123, %v1128
      %v3125 = vadd.f32 %v3124, 1e-06
      %v3126 = vrsqrt.pop %v3125
      %v3127 = vmul.f32 %v3120, %v3126
      %v3129 = vlaneseq
      %v3130 = vshrl.u32 %v3129, 7
      %v3131 = vsub.s32 0, %v3130
      %v3132 = vrot.slane %v3114, %v3131
      %v3134 = vmul.f32 %v3127, %v3132
      %v3136 = vlaneseq
      %v3137 = vshrl.u32 %v3136, 7
      %v3138 = vsub.s32 0, %v3137
      %v3139 = vrot.slane %v3116, %v3138
      %v3141 = vadd.f32 %v3134, %v3139
      %s3142 = scalar_lea.vmem %s17, 256
      %v3143 = vld [vmem:[%s3142] sm:$0xff]
      %v3144 = vld [vmem:[%s3142 + $0x8] sm:$0xff]
      %v3145 = vld [vmem:[%s3142 + $0x10] sm:$0xff]
      %v3146 = vld [vmem:[%s3142 + $0x18] sm:$0xff]
      %v3147 = vld [vmem:[%s3142 + $0x20] sm:$0xff]
      %v3148 = vld [vmem:[%s3142 + $0x28] sm:$0xff]
      %v3149 = vld [vmem:[%s3142 + $0x30] sm:$0xff]
      %v3150 = vld [vmem:[%s3142 + $0x38] sm:$0xff]
      %v3151 = vld [vmem:[%s3142 + $0x40] sm:$0xff]
      %v3152 = vld [vmem:[%s3142 + $0x48] sm:$0xff]
      %v3153 = vld [vmem:[%s3142 + $0x50] sm:$0xff]
      %v3154 = vld [vmem:[%s3142 + $0x58] sm:$0xff]
      %v3155 = vld [vmem:[%s3142 + $0x60] sm:$0xff]
      %v3156 = vld [vmem:[%s3142 + $0x68] sm:$0xff]
      %v3157 = vld [vmem:[%s3142 + $0x70] sm:$0xff]
      %v3158 = vld [vmem:[%s3142 + $0x78] sm:$0xff]
      %v3159 = vld [vmem:[%s3142 + $0x80] sm:$0xff]
      %v3160 = vld [vmem:[%s3142 + $0x88] sm:$0xff]
      %v3161 = vld [vmem:[%s3142 + $0x90] sm:$0xff]
      %v3162 = vld [vmem:[%s3142 + $0x98] sm:$0xff]
      %v3163 = vld [vmem:[%s3142 + $0xa0] sm:$0xff]
      %v3164 = vld [vmem:[%s3142 + $0xa8] sm:$0xff]
      %v3165 = vld [vmem:[%s3142 + $0xb0] sm:$0xff]
      %v3166 = vld [vmem:[%s3142 + $0xb8] sm:$0xff]
      %v3167 = vld [vmem:[%s3142 + $0xc0] sm:$0xff]
      %v3168 = vld [vmem:[%s3142 + $0xc8] sm:$0xff]
      %v3169 = vld [vmem:[%s3142 + $0xd0] sm:$0xff]
      %v3170 = vld [vmem:[%s3142 + $0xd8] sm:$0xff]
      %v3171 = vld [vmem:[%s3142 + $0xe0] sm:$0xff]
      %v3172 = vld [vmem:[%s3142 + $0xe8] sm:$0xff]
      %v3173 = vld [vmem:[%s3142 + $0xf0] sm:$0xff]
      %v3174 = vld [vmem:[%s3142 + $0xf8] sm:$0xff]
      %v3175 = vpack.c.bf16 %v3141, %v3141
      %s3176 = scalar_lea.vmem %s18, 4
      %v3177 = vld [vmem:[%s3176] sm:$0xf]
      %v3179 = vlaneseq
      %v3180 = vshrl.u32 %v3179, 7
      %v3181 = vsub.s32 0, %v3180
      %v3182 = vrot.slane %v3177, %v3181
      %v3183 = vlaneseq
      %v3184 = vshrl.u32 %v3183, 7
      %v3185 = vsub.s32 1, %v3184
      %v3186 = vrot.slane %v3177, %v3185
      %v3187 = vlaneseq
      %v3188 = vshrl.u32 %v3187, 7
      %v3189 = vsub.s32 2, %v3188
      %v3190 = vrot.slane %v3177, %v3189
      %v3191 = vlaneseq
      %v3192 = vshrl.u32 %v3191, 7
      %v3193 = vsub.s32 3, %v3192
      %v3194 = vrot.slane %v3177, %v3193
      %v3231 = vunpack.c.l.b16 %v3143
      %v3232 = vunpack.c.h.b16 %v3143
      %v3233 = vunpack.c.l.b16 %v3144
      %v3234 = vunpack.c.h.b16 %v3144
      %v3235 = vunpack.c.l.b16 %v3145
      %v3236 = vunpack.c.h.b16 %v3145
      %v3237 = vunpack.c.l.b16 %v3146
      %v3238 = vunpack.c.h.b16 %v3146
      %v3239 = vunpack.c.l.b16 %v3147
      %v3240 = vunpack.c.h.b16 %v3147
      %v3241 = vunpack.c.l.b16 %v3148
      %v3242 = vunpack.c.h.b16 %v3148
      %v3243 = vunpack.c.l.b16 %v3149
      %v3244 = vunpack.c.h.b16 %v3149
      %v3245 = vunpack.c.l.b16 %v3150
      %v3246 = vunpack.c.h.b16 %v3150
      %v3247 = vunpack.c.l.b16 %v3151
      %v3248 = vunpack.c.h.b16 %v3151
      %v3249 = vunpack.c.l.b16 %v3152
      %v3250 = vunpack.c.h.b16 %v3152
      %v3251 = vunpack.c.l.b16 %v3153
      %v3252 = vunpack.c.h.b16 %v3153
      %v3253 = vunpack.c.l.b16 %v3154
      %v3254 = vunpack.c.h.b16 %v3154
      %v3255 = vunpack.c.l.b16 %v3155
      %v3256 = vunpack.c.h.b16 %v3155
      %v3257 = vunpack.c.l.b16 %v3156
      %v3258 = vunpack.c.h.b16 %v3156
      %v3259 = vunpack.c.l.b16 %v3157
      %v3260 = vunpack.c.h.b16 %v3157
      %v3261 = vunpack.c.l.b16 %v3158
      %v3262 = vunpack.c.h.b16 %v3158
      %v3263 = vunpack.c.l.b16 %v3159
      %v3264 = vunpack.c.h.b16 %v3159
      %v3265 = vunpack.c.l.b16 %v3160
      %v3266 = vunpack.c.h.b16 %v3160
      %v3267 = vunpack.c.l.b16 %v3161
      %v3268 = vunpack.c.h.b16 %v3161
      %v3269 = vunpack.c.l.b16 %v3162
      %v3270 = vunpack.c.h.b16 %v3162
      %v3271 = vunpack.c.l.b16 %v3163
      %v3272 = vunpack.c.h.b16 %v3163
      %v3273 = vunpack.c.l.b16 %v3164
      %v3274 = vunpack.c.h.b16 %v3164
      %v3275 = vunpack.c.l.b16 %v3165
      %v3276 = vunpack.c.h.b16 %v3165
      %v3277 = vunpack.c.l.b16 %v3166
      %v3278 = vunpack.c.h.b16 %v3166
      %v3279 = vunpack.c.l.b16 %v3167
      %v3280 = vunpack.c.h.b16 %v3167
      %v3281 = vunpack.c.l.b16 %v3168
      %v3282 = vunpack.c.h.b16 %v3168
      %v3283 = vunpack.c.l.b16 %v3169
      %v3284 = vunpack.c.h.b16 %v3169
      %v3285 = vunpack.c.l.b16 %v3170
      %v3286 = vunpack.c.h.b16 %v3170
      %v3287 = vunpack.c.l.b16 %v3171
      %v3288 = vunpack.c.h.b16 %v3171
      %v3289 = vunpack.c.l.b16 %v3172
      %v3290 = vunpack.c.h.b16 %v3172
      %v3291 = vunpack.c.l.b16 %v3173
      %v3292 = vunpack.c.h.b16 %v3173
      %v3293 = vunpack.c.l.b16 %v3174
      %v3294 = vunpack.c.h.b16 %v3174
      %v3295 = vpack.c.b16 %v3235, %v3231
      %v3296 = vpack.c.b16 %v3236, %v3232
      %v3297 = vpack.c.b16 %v3237, %v3233
      %v3298 = vpack.c.b16 %v3238, %v3234
      %v3299 = vpack.c.b16 %v3243, %v3239
      %v3300 = vpack.c.b16 %v3244, %v3240
      %v3301 = vpack.c.b16 %v3245, %v3241
      %v3302 = vpack.c.b16 %v3246, %v3242
      %v3303 = vpack.c.b16 %v3251, %v3247
      %v3304 = vpack.c.b16 %v3252, %v3248
      %v3305 = vpack.c.b16 %v3253, %v3249
      %v3306 = vpack.c.b16 %v3254, %v3250
      %v3307 = vpack.c.b16 %v3259, %v3255
      %v3308 = vpack.c.b16 %v3260, %v3256
      %v3309 = vpack.c.b16 %v3261, %v3257
      %v3310 = vpack.c.b16 %v3262, %v3258
      %v3311 = vpack.c.b16 %v3267, %v3263
      %v3312 = vpack.c.b16 %v3268, %v3264
      %v3313 = vpack.c.b16 %v3269, %v3265
      %v3314 = vpack.c.b16 %v3270, %v3266
      %v3315 = vpack.c.b16 %v3275, %v3271
      %v3316 = vpack.c.b16 %v3276, %v3272
      %v3317 = vpack.c.b16 %v3277, %v3273
      %v3318 = vpack.c.b16 %v3278, %v3274
      %v3319 = vpack.c.b16 %v3283, %v3279
      %v3320 = vpack.c.b16 %v3284, %v3280
      %v3321 = vpack.c.b16 %v3285, %v3281
      %v3322 = vpack.c.b16 %v3286, %v3282
      %v3323 = vpack.c.b16 %v3291, %v3287
      %v3324 = vpack.c.b16 %v3292, %v3288
      %v3325 = vpack.c.b16 %v3293, %v3289
      %v3326 = vpack.c.b16 %v3294, %v3290
      %3359 = vmatprep.subr.bf16.mxu0 %v3296
      %3360 = vmatpush1.bf16.msra.mxu0 %v3295
      %3361 = vmatprep.subr.bf16.mxu0 %v3300
      %3362 = vmatpush1.bf16.msra.mxu0 %v3299
      %3363 = vmatprep.subr.bf16.mxu0 %v3304
      %3364 = vmatpush1.bf16.msra.mxu0 %v3303
      %3365 = vmatprep.subr.bf16.mxu0 %v3308
      %3366 = vmatpush1.bf16.msra.mxu0 %v3307
      %3367 = vmatprep.subr.bf16.mxu0 %v3312
      %3368 = vmatpush1.bf16.msra.mxu0 %v3311
      %3369 = vmatprep.subr.bf16.mxu0 %v3316
      %3370 = vmatpush1.bf16.msra.mxu0 %v3315
      %3371 = vmatprep.subr.bf16.mxu0 %v3320
      %3372 = vmatpush1.bf16.msra.mxu0 %v3319
      %3373 = vmatprep.subr.bf16.mxu0 %v3324
      %3374 = vmatpush1.bf16.msra.mxu0 %v3323
      %3375 = vmatprep.subr.bf16.mxu0 0
      %3376 = vmatpush1.bf16.msra.mxu0 0
      %3377 = vmatprep.subr.bf16.mxu0 0
      %3378 = vmatpush1.bf16.msra.mxu0 0
      %3379 = vmatprep.subr.bf16.mxu0 0
      %3380 = vmatpush1.bf16.msra.mxu0 0
      %3381 = vmatprep.subr.bf16.mxu0 0
      %3382 = vmatpush1.bf16.msra.mxu0 0
      %3383 = vmatprep.subr.bf16.mxu0 0
      %3384 = vmatpush1.bf16.msra.mxu0 0
      %3385 = vmatprep.subr.bf16.mxu0 0
      %3386 = vmatpush1.bf16.msra.mxu0 0
      %3387 = vmatprep.subr.bf16.mxu0 0
      %3388 = vmatpush1.bf16.msra.mxu0 0
      %3389 = vmatprep.subr.bf16.mxu0 0
      %3390 = vmatpush1.bf16.msra.mxu0 0
      %3391 = vmatprep.mubr.bf16.mxu0 0
      %3392 = vmatmul.mubr.bf16.gmra.mrb[0].mxu0 %v3175
      %v3393 = vpop.f32.mrb[0].mxu0
      %v3394 = vadd.f32 %v3182, %v3393
      %v3395 = vpop.f32.mrb[0].mxu0
      %v3396 = vadd.f32 %v3186, %v3395
      %v3397 = vpop.f32.mrb[0].mxu0
      %v3398 = vpop.f32.mrb[0].mxu0
      %3399 = vdwg.mxu0
      %3400 = vmatprep.subr.bf16.mxu0 %v3298
      %3401 = vmatpush1.bf16.msra.mxu0 %v3297
      %3402 = vmatprep.subr.bf16.mxu0 %v3302
      %3403 = vmatpush1.bf16.msra.mxu0 %v3301
      %3404 = vmatprep.subr.bf16.mxu0 %v3306
      %3405 = vmatpush1.bf16.msra.mxu0 %v3305
      %3406 = vmatprep.subr.bf16.mxu0 %v3310
      %3407 = vmatpush1.bf16.msra.mxu0 %v3309
      %3408 = vmatprep.subr.bf16.mxu0 %v3314
      %3409 = vmatpush1.bf16.msra.mxu0 %v3313
      %3410 = vmatprep.subr.bf16.mxu0 %v3318
      %3411 = vmatpush1.bf16.msra.mxu0 %v3317
      %3412 = vmatprep.subr.bf16.mxu0 %v3322
      %3413 = vmatpush1.bf16.msra.mxu0 %v3321
      %3414 = vmatprep.subr.bf16.mxu0 %v3326
      %3415 = vmatpush1.bf16.msra.mxu0 %v3325
      %3416 = vmatprep.subr.bf16.mxu0 0
      %3417 = vmatpush1.bf16.msra.mxu0 0
      %3418 = vmatprep.subr.bf16.mxu0 0
      %3419 = vmatpush1.bf16.msra.mxu0 0
      %3420 = vmatprep.subr.bf16.mxu0 0
      %3421 = vmatpush1.bf16.msra.mxu0 0
      %3422 = vmatprep.subr.bf16.mxu0 0
      %3423 = vmatpush1.bf16.msra.mxu0 0
      %3424 = vmatprep.subr.bf16.mxu0 0
      %3425 = vmatpush1.bf16.msra.mxu0 0
      %3426 = vmatprep.subr.bf16.mxu0 0
      %3427 = vmatpush1.bf16.msra.mxu0 0
      %3428 = vmatprep.subr.bf16.mxu0 0
      %3429 = vmatpush1.bf16.msra.mxu0 0
      %3430 = vmatprep.subr.bf16.mxu0 0
      %3431 = vmatpush1.bf16.msra.mxu0 0
      %3432 = vmatprep.mubr.bf16.mxu0 0
      %3433 = vmatmul.mubr.bf16.gmra.mrb[0].mxu0 %v3175
      %v3434 = vpop.f32.mrb[0].mxu0
      %v3435 = vadd.f32 %v3190, %v3434
      %v3436 = vpop.f32.mrb[0].mxu0
      %v3437 = vadd.f32 %v3194, %v3436
      %v3438 = vpop.f32.mrb[0].mxu0
      %v3439 = vpop.f32.mrb[0].mxu0
      %3440 = vdwg.mxu0
      %v3441 = vmul.f32 %v3394, %v3394
      %v3442 = vmul.f32 %v3396, %v3396
      %v3443 = vmul.f32 %v3435, %v3435
      %v3444 = vmul.f32 %v3437, %v3437
      %v3445 = vmul.f32 %v3394, %v3441
      %v3446 = vmul.f32 %v3396, %v3442
      %v3447 = vmul.f32 %v3435, %v3443
      %v3448 = vmul.f32 %v3437, %v3444
      %v3449 = vmul.f32 %v3445, 0.044715
      %v3450 = vmul.f32 %v3446, 0.044715
      %v3451 = vmul.f32 %v3447, 0.044715
      %v3452 = vmul.f32 %v3448, 0.044715
      %v3453 = vadd.f32 %v3394, %v3449
      %v3454 = vadd.f32 %v3396, %v3450
      %v3455 = vadd.f32 %v3435, %v3451
      %v3456 = vadd.f32 %v3437, %v3452
      %v3457 = vmul.f32 %v3453, 0.7978846
      %v3458 = vmul.f32 %v3454, 0.7978846
      %v3459 = vmul.f32 %v3455, 0.7978846
      %v3460 = vmul.f32 %v3456, 0.7978846
      %v3461 = vtanh.pop %v3457
      %v3462 = vtanh.pop %v3458
      %v3463 = vtanh.pop %v3459
      %v3464 = vtanh.pop %v3460
      %v3465 = vadd.f32 %v3461, 1.0
      %v3466 = vadd.f32 %v3462, 1.0
      %v3467 = vadd.f32 %v3463, 1.0
      %v3468 = vadd.f32 %v3464, 1.0
      %v3469 = vmul.f32 %v3465, 0.5
      %v3470 = vmul.f32 %v3466, 0.5
      %v3471 = vmul.f32 %v3467, 0.5
      %v3472 = vmul.f32 %v3468, 0.5
      %v3473 = vmul.f32 %v3394, %v3469
      %v3474 = vmul.f32 %v3396, %v3470
      %v3475 = vmul.f32 %v3435, %v3471
      %v3476 = vmul.f32 %v3437, %v3472
      %s3477 = scalar_lea.vmem %s19, 256
      %v3478 = vld [vmem:[%s3477] sm:$0xf]
      %v3479 = vld [vmem:[%s3477 + $0x4] sm:$0xf]
      %v3480 = vld [vmem:[%s3477 + $0x8] sm:$0xf]
      %v3481 = vld [vmem:[%s3477 + $0xc] sm:$0xf]
      %v3482 = vld [vmem:[%s3477 + $0x10] sm:$0xf]
      %v3483 = vld [vmem:[%s3477 + $0x14] sm:$0xf]
      %v3484 = vld [vmem:[%s3477 + $0x18] sm:$0xf]
      %v3485 = vld [vmem:[%s3477 + $0x1c] sm:$0xf]
      %v3486 = vld [vmem:[%s3477 + $0x20] sm:$0xf]
      %v3487 = vld [vmem:[%s3477 + $0x24] sm:$0xf]
      %v3488 = vld [vmem:[%s3477 + $0x28] sm:$0xf]
      %v3489 = vld [vmem:[%s3477 + $0x2c] sm:$0xf]
      %v3490 = vld [vmem:[%s3477 + $0x30] sm:$0xf]
      %v3491 = vld [vmem:[%s3477 + $0x34] sm:$0xf]
      %v3492 = vld [vmem:[%s3477 + $0x38] sm:$0xf]
      %v3493 = vld [vmem:[%s3477 + $0x3c] sm:$0xf]
      %v3494 = vld [vmem:[%s3477 + $0x40] sm:$0xf]
      %v3495 = vld [vmem:[%s3477 + $0x44] sm:$0xf]
      %v3496 = vld [vmem:[%s3477 + $0x48] sm:$0xf]
      %v3497 = vld [vmem:[%s3477 + $0x4c] sm:$0xf]
      %v3498 = vld [vmem:[%s3477 + $0x50] sm:$0xf]
      %v3499 = vld [vmem:[%s3477 + $0x54] sm:$0xf]
      %v3500 = vld [vmem:[%s3477 + $0x58] sm:$0xf]
      %v3501 = vld [vmem:[%s3477 + $0x5c] sm:$0xf]
      %v3502 = vld [vmem:[%s3477 + $0x60] sm:$0xf]
      %v3503 = vld [vmem:[%s3477 + $0x64] sm:$0xf]
      %v3504 = vld [vmem:[%s3477 + $0x68] sm:$0xf]
      %v3505 = vld [vmem:[%s3477 + $0x6c] sm:$0xf]
      %v3506 = vld [vmem:[%s3477 + $0x70] sm:$0xf]
      %v3507 = vld [vmem:[%s3477 + $0x74] sm:$0xf]
      %v3508 = vld [vmem:[%s3477 + $0x78] sm:$0xf]
      %v3509 = vld [vmem:[%s3477 + $0x7c] sm:$0xf]
      %v3510 = vld [vmem:[%s3477 + $0x80] sm:$0xf]
      %v3511 = vld [vmem:[%s3477 + $0x84] sm:$0xf]
      %v3512 = vld [vmem:[%s3477 + $0x88] sm:$0xf]
      %v3513 = vld [vmem:[%s3477 + $0x8c] sm:$0xf]
      %v3514 = vld [vmem:[%s3477 + $0x90] sm:$0xf]
      %v3515 = vld [vmem:[%s3477 + $0x94] sm:$0xf]
      %v3516 = vld [vmem:[%s3477 + $0x98] sm:$0xf]
      %v3517 = vld [vmem:[%s3477 + $0x9c] sm:$0xf]
      %v3518 = vld [vmem:[%s3477 + $0xa0] sm:$0xf]
      %v3519 = vld [vmem:[%s3477 + $0xa4] sm:$0xf]
      %v3520 = vld [vmem:[%s3477 + $0xa8] sm:$0xf]
      %v3521 = vld [vmem:[%s3477 + $0xac] sm:$0xf]
      %v3522 = vld [vmem:[%s3477 + $0xb0] sm:$0xf]
      %v3523 = vld [vmem:[%s3477 + $0xb4] sm:$0xf]
      %v3524 = vld [vmem:[%s3477 + $0xb8] sm:$0xf]
      %v3525 = vld [vmem:[%s3477 + $0xbc] sm:$0xf]
      %v3526 = vld [vmem:[%s3477 + $0xc0] sm:$0xf]
      %v3527 = vld [vmem:[%s3477 + $0xc4] sm:$0xf]
      %v3528 = vld [vmem:[%s3477 + $0xc8] sm:$0xf]
      %v3529 = vld [vmem:[%s3477 + $0xcc] sm:$0xf]
      %v3530 = vld [vmem:[%s3477 + $0xd0] sm:$0xf]
      %v3531 = vld [vmem:[%s3477 + $0xd4] sm:$0xf]
      %v3532 = vld [vmem:[%s3477 + $0xd8] sm:$0xf]
      %v3533 = vld [vmem:[%s3477 + $0xdc] sm:$0xf]
      %v3534 = vld [vmem:[%s3477 + $0xe0] sm:$0xf]
      %v3535 = vld [vmem:[%s3477 + $0xe4] sm:$0xf]
      %v3536 = vld [vmem:[%s3477 + $0xe8] sm:$0xf]
      %v3537 = vld [vmem:[%s3477 + $0xec] sm:$0xf]
      %v3538 = vld [vmem:[%s3477 + $0xf0] sm:$0xf]
      %v3539 = vld [vmem:[%s3477 + $0xf4] sm:$0xf]
      %v3540 = vld [vmem:[%s3477 + $0xf8] sm:$0xf]
      %v3541 = vld [vmem:[%s3477 + $0xfc] sm:$0xf]
      %v3542 = vpack.c.bf16 %v3473, %v3473
      %v3543 = vpack.c.bf16 %v3474, %v3474
      %v3544 = vpack.c.bf16 %v3475, %v3475
      %v3545 = vpack.c.bf16 %v3476, %v3476
      %s3546 = scalar_lea.vmem %s20, 1
      %v3547 = vld [vmem:[%s3546] sm:$0x1]
      %v3549 = vlaneseq
      %v3550 = vshrl.u32 %v3549, 7
      %v3551 = vsub.s32 0, %v3550
      %v3552 = vrot.slane %v3547, %v3551
      %v3618 = vunpack.c.l.b16 %v3478
      %v3619 = vunpack.c.l.b16 %v3479
      %v3620 = vunpack.c.l.b16 %v3480
      %v3621 = vunpack.c.l.b16 %v3481
      %v3622 = vunpack.c.l.b16 %v3482
      %v3623 = vunpack.c.l.b16 %v3483
      %v3624 = vunpack.c.l.b16 %v3484
      %v3625 = vunpack.c.l.b16 %v3485
      %v3626 = vunpack.c.l.b16 %v3486
      %v3627 = vunpack.c.l.b16 %v3487
      %v3628 = vunpack.c.l.b16 %v3488
      %v3629 = vunpack.c.l.b16 %v3489
      %v3630 = vunpack.c.l.b16 %v3490
      %v3631 = vunpack.c.l.b16 %v3491
      %v3632 = vunpack.c.l.b16 %v3492
      %v3633 = vunpack.c.l.b16 %v3493
      %v3634 = vunpack.c.l.b16 %v3494
      %v3635 = vunpack.c.l.b16 %v3495
      %v3636 = vunpack.c.l.b16 %v3496
      %v3637 = vunpack.c.l.b16 %v3497
      %v3638 = vunpack.c.l.b16 %v3498
      %v3639 = vunpack.c.l.b16 %v3499
      %v3640 = vunpack.c.l.b16 %v3500
      %v3641 = vunpack.c.l.b16 %v3501
      %v3642 = vunpack.c.l.b16 %v3502
      %v3643 = vunpack.c.l.b16 %v3503
      %v3644 = vunpack.c.l.b16 %v3504
      %v3645 = vunpack.c.l.b16 %v3505
      %v3646 = vunpack.c.l.b16 %v3506
      %v3647 = vunpack.c.l.b16 %v3507
      %v3648 = vunpack.c.l.b16 %v3508
      %v3649 = vunpack.c.l.b16 %v3509
      %v3650 = vunpack.c.l.b16 %v3510
      %v3651 = vunpack.c.l.b16 %v3511
      %v3652 = vunpack.c.l.b16 %v3512
      %v3653 = vunpack.c.l.b16 %v3513
      %v3654 = vunpack.c.l.b16 %v3514
      %v3655 = vunpack.c.l.b16 %v3515
      %v3656 = vunpack.c.l.b16 %v3516
      %v3657 = vunpack.c.l.b16 %v3517
      %v3658 = vunpack.c.l.b16 %v3518
      %v3659 = vunpack.c.l.b16 %v3519
      %v3660 = vunpack.c.l.b16 %v3520
      %v3661 = vunpack.c.l.b16 %v3521
      %v3662 = vunpack.c.l.b16 %v3522
      %v3663 = vunpack.c.l.b16 %v3523
      %v3664 = vunpack.c.l.b16 %v3524
      %v3665 = vunpack.c.l.b16 %v3525
      %v3666 = vunpack.c.l.b16 %v3526
      %v3667 = vunpack.c.l.b16 %v3527
      %v3668 = vunpack.c.l.b16 %v3528
      %v3669 = vunpack.c.l.b16 %v3529
      %v3670 = vunpack.c.l.b16 %v3530
      %v3671 = vunpack.c.l.b16 %v3531
      %v3672 = vunpack.c.l.b16 %v3532
      %v3673 = vunpack.c.l.b16 %v3533
      %v3674 = vunpack.c.l.b16 %v3534
      %v3675 = vunpack.c.l.b16 %v3535
      %v3676 = vunpack.c.l.b16 %v3536
      %v3677 = vunpack.c.l.b16 %v3537
      %v3678 = vunpack.c.l.b16 %v3538
      %v3679 = vunpack.c.l.b16 %v3539
      %v3680 = vunpack.c.l.b16 %v3540
      %v3681 = vunpack.c.l.b16 %v3541
      %v3682 = vpack.c.b16 %v3619, %v3618
      %v3683 = vpack.c.b16 %v3621, %v3620
      %v3684 = vpack.c.b16 %v3623, %v3622
      %v3685 = vpack.c.b16 %v3625, %v3624
      %v3686 = vpack.c.b16 %v3627, %v3626
      %v3687 = vpack.c.b16 %v3629, %v3628
      %v3688 = vpack.c.b16 %v3631, %v3630
      %v3689 = vpack.c.b16 %v3633, %v3632
      %v3690 = vpack.c.b16 %v3635, %v3634
      %v3691 = vpack.c.b16 %v3637, %v3636
      %v3692 = vpack.c.b16 %v3639, %v3638
      %v3693 = vpack.c.b16 %v3641, %v3640
      %v3694 = vpack.c.b16 %v3643, %v3642
      %v3695 = vpack.c.b16 %v3645, %v3644
      %v3696 = vpack.c.b16 %v3647, %v3646
      %v3697 = vpack.c.b16 %v3649, %v3648
      %v3698 = vpack.c.b16 %v3651, %v3650
      %v3699 = vpack.c.b16 %v3653, %v3652
      %v3700 = vpack.c.b16 %v3655, %v3654
      %v3701 = vpack.c.b16 %v3657, %v3656
      %v3702 = vpack.c.b16 %v3659, %v3658
      %v3703 = vpack.c.b16 %v3661, %v3660
      %v3704 = vpack.c.b16 %v3663, %v3662
      %v3705 = vpack.c.b16 %v3665, %v3664
      %v3706 = vpack.c.b16 %v3667, %v3666
      %v3707 = vpack.c.b16 %v3669, %v3668
      %v3708 = vpack.c.b16 %v3671, %v3670
      %v3709 = vpack.c.b16 %v3673, %v3672
      %v3710 = vpack.c.b16 %v3675, %v3674
      %v3711 = vpack.c.b16 %v3677, %v3676
      %v3712 = vpack.c.b16 %v3679, %v3678
      %v3713 = vpack.c.b16 %v3681, %v3680
      %3746 = vmatprep.subr.bf16.mxu0 0
      %3747 = vmatpush1.bf16.msra.mxu0 %v3682
      %3748 = vmatprep.subr.bf16.mxu0 0
      %3749 = vmatpush1.bf16.msra.mxu0 %v3683
      %3750 = vmatprep.subr.bf16.mxu0 0
      %3751 = vmatpush1.bf16.msra.mxu0 %v3684
      %3752 = vmatprep.subr.bf16.mxu0 0
      %3753 = vmatpush1.bf16.msra.mxu0 %v3685
      %3754 = vmatprep.subr.bf16.mxu0 0
      %3755 = vmatpush1.bf16.msra.mxu0 %v3686
      %3756 = vmatprep.subr.bf16.mxu0 0
      %3757 = vmatpush1.bf16.msra.mxu0 %v3687
      %3758 = vmatprep.subr.bf16.mxu0 0
      %3759 = vmatpush1.bf16.msra.mxu0 %v3688
      %3760 = vmatprep.subr.bf16.mxu0 0
      %3761 = vmatpush1.bf16.msra.mxu0 %v3689
      %3762 = vmatprep.subr.bf16.mxu0 0
      %3763 = vmatpush1.bf16.msra.mxu0 %v3690
      %3764 = vmatprep.subr.bf16.mxu0 0
      %3765 = vmatpush1.bf16.msra.mxu0 %v3691
      %3766 = vmatprep.subr.bf16.mxu0 0
      %3767 = vmatpush1.bf16.msra.mxu0 %v3692
      %3768 = vmatprep.subr.bf16.mxu0 0
      %3769 = vmatpush1.bf16.msra.mxu0 %v3693
      %3770 = vmatprep.subr.bf16.mxu0 0
      %3771 = vmatpush1.bf16.msra.mxu0 %v3694
      %3772 = vmatprep.subr.bf16.mxu0 0
      %3773 = vmatpush1.bf16.msra.mxu0 %v3695
      %3774 = vmatprep.subr.bf16.mxu0 0
      %3775 = vmatpush1.bf16.msra.mxu0 %v3696
      %3776 = vmatprep.subr.bf16.mxu0 0
      %3777 = vmatpush1.bf16.msra.mxu0 %v3697
      %3778 = vmatprep.mubr.bf16.mxu0 %v3543
      %3779 = vmatmul.mubr.bf16.gmra.mrb[0].mxu0 %v3542
      %v3780 = vpop.f32.mrb[0].mxu0
      %v3781 = vadd.f32 %v3552, %v3780
      %v3782 = vpop.f32.mrb[0].mxu0
      %v3783 = vpop.f32.mrb[0].mxu0
      %v3784 = vpop.f32.mrb[0].mxu0
      %3785 = vdwg.mxu0
      %3786 = vmatprep.subr.bf16.mxu0 0
      %3787 = vmatpush1.bf16.msra.mxu0 %v3698
      %3788 = vmatprep.subr.bf16.mxu0 0
      %3789 = vmatpush1.bf16.msra.mxu0 %v3699
      %3790 = vmatprep.subr.bf16.mxu0 0
      %3791 = vmatpush1.bf16.msra.mxu0 %v3700
      %3792 = vmatprep.subr.bf16.mxu0 0
      %3793 = vmatpush1.bf16.msra.mxu0 %v3701
      %3794 = vmatprep.subr.bf16.mxu0 0
      %3795 = vmatpush1.bf16.msra.mxu0 %v3702
      %3796 = vmatprep.subr.bf16.mxu0 0
      %3797 = vmatpush1.bf16.msra.mxu0 %v3703
      %3798 = vmatprep.subr.bf16.mxu0 0
      %3799 = vmatpush1.bf16.msra.mxu0 %v3704
      %3800 = vmatprep.subr.bf16.mxu0 0
      %3801 = vmatpush1.bf16.msra.mxu0 %v3705
      %3802 = vmatprep.subr.bf16.mxu0 0
      %3803 = vmatpush1.bf16.msra.mxu0 %v3706
      %3804 = vmatprep.subr.bf16.mxu0 0
      %3805 = vmatpush1.bf16.msra.mxu0 %v3707
      %3806 = vmatprep.subr.bf16.mxu0 0
      %3807 = vmatpush1.bf16.msra.mxu0 %v3708
      %3808 = vmatprep.subr.bf16.mxu0 0
      %3809 = vmatpush1.bf16.msra.mxu0 %v3709
      %3810 = vmatprep.subr.bf16.mxu0 0
      %3811 = vmatpush1.bf16.msra.mxu0 %v3710
      %3812 = vmatprep.subr.bf16.mxu0 0
      %3813 = vmatpush1.bf16.msra.mxu0 %v3711
      %3814 = vmatprep.subr.bf16.mxu0 0
      %3815 = vmatpush1.bf16.msra.mxu0 %v3712
      %3816 = vmatprep.subr.bf16.mxu0 0
      %3817 = vmatpush1.bf16.msra.mxu0 %v3713
      %3818 = vmatprep.mubr.bf16.mxu0 %v3545
      %3819 = vmatmul.mubr.bf16.gmra.mrb[0].mxu0 %v3544
      %v3820 = vpop.f32.mrb[0].mxu0
      %v3821 = vadd.f32 %v3781, %v3820
      %v3822 = vpop.f32.mrb[0].mxu0
      %v3823 = vpop.f32.mrb[0].mxu0
      %v3824 = vpop.f32.mrb[0].mxu0
      %3825 = vdwg.mxu0
      %v3826 = vmul.f32 %v3821, %v3821
      %v3827 = vmul.f32 %v3821, %v3826
      %v3828 = vmul.f32 %v3827, 0.044715
      %v3829 = vadd.f32 %v3821, %v3828
      %v3830 = vmul.f32 %v3829, 0.7978846
      %v3831 = vtanh.pop %v3830
      %v3832 = vadd.f32 %v3831, 1.0
      %v3833 = vmul.f32 %v3832, 0.5
      %v3834 = vmul.f32 %v3821, %v3833
      %v3835 = vadd.f32 %v3834, %v3112
      %s3836 = scalar_lea.vmem %s9, 2
      %v3837 = vld [vmem:[%s3836] sm:$0x1]
      %s3838 = scalar_lea.vmem %s10, 2
      %v3839 = vld [vmem:[%s3838] sm:$0x1]
      %3840 = vadd.xlane.f32.xlu0 %v3835
      %v3841 = vpop.xlane.xlu0 %3840
      %v3842 = vmul.f32 %v3841, %v1128
      %v3843 = vsub.f32 %v3835, %v3842
      %v3844 = vmul.f32 %v3843, %v3843
      %3845 = vadd.xlane.f32.xlu0 %v3844
      %v3846 = vpop.xlane.xlu0 %3845
      %v3847 = vmul.f32 %v3846, %v1128
      %v3848 = vadd.f32 %v3847, 1e-06
      %v3849 = vrsqrt.pop %v3848
      %v3850 = vmul.f32 %v3843, %v3849
      %v3852 = vlaneseq
      %v3853 = vshrl.u32 %v3852, 7
      %v3854 = vsub.s32 0, %v3853
      %v3855 = vrot.slane %v3837, %v3854
      %v3857 = vmul.f32 %v3850, %v3855
      %v3859 = vlaneseq
      %v3860 = vshrl.u32 %v3859, 7
      %v3861 = vsub.s32 0, %v3860
      %v3862 = vrot.slane %v3839, %v3861
      %v3864 = vadd.f32 %v3857, %v3862
      %s3865 = scalar_lea.vmem %s11, 384
      %v3866 = vld [vmem:[%s3865] sm:$0xff]
      %v3867 = vld [vmem:[%s3865 + $0x8] sm:$0xf]
      %v3868 = vld [vmem:[%s3865 + $0xc] sm:$0xff]
      %v3869 = vld [vmem:[%s3865 + $0x14] sm:$0xf]
      %v3870 = vld [vmem:[%s3865 + $0x18] sm:$0xff]
      %v3871 = vld [vmem:[%s3865 + $0x20] sm:$0xf]
      %v3872 = vld [vmem:[%s3865 + $0x24] sm:$0xff]
      %v3873 = vld [vmem:[%s3865 + $0x2c] sm:$0xf]
      %v3874 = vld [vmem:[%s3865 + $0x30] sm:$0xff]
      %v3875 = vld [vmem:[%s3865 + $0x38] sm:$0xf]
      %v3876 = vld [vmem:[%s3865 + $0x3c] sm:$0xff]
      %v3877 = vld [vmem:[%s3865 + $0x44] sm:$0xf]
      %v3878 = vld [vmem:[%s3865 + $0x48] sm:$0xff]
      %v3879 = vld [vmem:[%s3865 + $0x50] sm:$0xf]
      %v3880 = vld [vmem:[%s3865 + $0x54] sm:$0xff]
      %v3881 = vld [vmem:[%s3865 + $0x5c] sm:$0xf]
      %v3882 = vld [vmem:[%s3865 + $0x60] sm:$0xff]
      %v3883 = vld [vmem:[%s3865 + $0x68] sm:$0xf]
      %v3884 = vld [vmem:[%s3865 + $0x6c] sm:$0xff]
      %v3885 = vld [vmem:[%s3865 + $0x74] sm:$0xf]
      %v3886 = vld [vmem:[%s3865 + $0x78] sm:$0xff]
      %v3887 = vld [vmem:[%s3865 + $0x80] sm:$0xf]
      %v3888 = vld [vmem:[%s3865 + $0x84] sm:$0xff]
      %v3889 = vld [vmem:[%s3865 + $0x8c] sm:$0xf]
      %v3890 = vld [vmem:[%s3865 + $0x90] sm:$0xff]
      %v3891 = vld [vmem:[%s3865 + $0x98] sm:$0xf]
      %v3892 = vld [vmem:[%s3865 + $0x9c] sm:$0xff]
      %v3893 = vld [vmem:[%s3865 + $0xa4] sm:$0xf]
      %v3894 = vld [vmem:[%s3865 + $0xa8] sm:$0xff]
      %v3895 = vld [vmem:[%s3865 + $0xb0] sm:$0xf]
      %v3896 = vld [vmem:[%s3865 + $0xb4] sm:$0xff]
      %v3897 = vld [vmem:[%s3865 + $0xbc] sm:$0xf]
      %v3898 = vpack.c.bf16 %v3864, %v3864
      %s3899 = scalar_lea.vmem %s12, 6
      %v3900 = vld [vmem:[%s3899] sm:$0x7]
      %v3902 = vlaneseq
      %v3903 = vshrl.u32 %v3902, 7
      %v3904 = vsub.s32 0, %v3903
      %v3905 = vrot.slane %v3900, %v3904
      %v3906 = vlaneseq
      %v3907 = vshrl.u32 %v3906, 7
      %v3908 = vsub.s32 1, %v3907
      %v3909 = vrot.slane %v3900, %v3908
      %v3910 = vlaneseq
      %v3911 = vshrl.u32 %v3910, 7
      %v3912 = vsub.s32 2, %v3911
      %v3913 = vrot.slane %v3900, %v3912
      %v3949 = vunpack.c.l.b16 %v3866
      %v3950 = vunpack.c.h.b16 %v3866
      %v3951 = vunpack.c.l.b16 %v3867
      %v3952 = vunpack.c.l.b16 %v3868
      %v3953 = vunpack.c.h.b16 %v3868
      %v3954 = vunpack.c.l.b16 %v3869
      %v3955 = vunpack.c.l.b16 %v3870
      %v3956 = vunpack.c.h.b16 %v3870
      %v3957 = vunpack.c.l.b16 %v3871
      %v3958 = vunpack.c.l.b16 %v3872
      %v3959 = vunpack.c.h.b16 %v3872
      %v3960 = vunpack.c.l.b16 %v3873
      %v3961 = vunpack.c.l.b16 %v3874
      %v3962 = vunpack.c.h.b16 %v3874
      %v3963 = vunpack.c.l.b16 %v3875
      %v3964 = vunpack.c.l.b16 %v3876
      %v3965 = vunpack.c.h.b16 %v3876
      %v3966 = vunpack.c.l.b16 %v3877
      %v3967 = vunpack.c.l.b16 %v3878
      %v3968 = vunpack.c.h.b16 %v3878
      %v3969 = vunpack.c.l.b16 %v3879
      %v3970 = vunpack.c.l.b16 %v3880
      %v3971 = vunpack.c.h.b16 %v3880
      %v3972 = vunpack.c.l.b16 %v3881
      %v3973 = vunpack.c.l.b16 %v3882
      %v3974 = vunpack.c.h.b16 %v3882
      %v3975 = vunpack.c.l.b16 %v3883
      %v3976 = vunpack.c.l.b16 %v3884
      %v3977 = vunpack.c.h.b16 %v3884
      %v3978 = vunpack.c.l.b16 %v3885
      %v3979 = vunpack.c.l.b16 %v3886
      %v3980 = vunpack.c.h.b16 %v3886
      %v3981 = vunpack.c.l.b16 %v3887
      %v3982 = vunpack.c.l.b16 %v3888
      %v3983 = vunpack.c.h.b16 %v3888
      %v3984 = vunpack.c.l.b16 %v3889
      %v3985 = vunpack.c.l.b16 %v3890
      %v3986 = vunpack.c.h.b16 %v3890
      %v3987 = vunpack.c.l.b16 %v3891
      %v3988 = vunpack.c.l.b16 %v3892
      %v3989 = vunpack.c.h.b16 %v3892
      %v3990 = vunpack.c.l.b16 %v3893
      %v3991 = vunpack.c.l.b16 %v3894
      %v3992 = vunpack.c.h.b16 %v3894
      %v3993 = vunpack.c.l.b16 %v3895
      %v3994 = vunpack.c.l.b16 %v3896
      %v3995 = vunpack.c.h.b16 %v3896
      %v3996 = vunpack.c.l.b16 %v3897
      %v3997 = vpack.c.b16 %v3952, %v3949
      %v3998 = vpack.c.b16 %v3953, %v3950
      %v3999 = vpack.c.b16 %v3954, %v3951
      %v4000 = vpack.c.b16 %v3958, %v3955
      %v4001 = vpack.c.b16 %v3959, %v3956
      %v4002 = vpack.c.b16 %v3960, %v3957
      %v4003 = vpack.c.b16 %v3964, %v3961
      %v4004 = vpack.c.b16 %v3965, %v3962
      %v4005 = vpack.c.b16 %v3966, %v3963
      %v4006 = vpack.c.b16 %v3970, %v3967
      %v4007 = vpack.c.b16 %v3971, %v3968
      %v4008 = vpack.c.b16 %v3972, %v3969
      %v4009 = vpack.c.b16 %v3976, %v3973
      %v4010 = vpack.c.b16 %v3977, %v3974
      %v4011 = vpack.c.b16 %v3978, %v3975
      %v4012 = vpack.c.b16 %v3982, %v3979
      %v4013 = vpack.c.b16 %v3983, %v3980
      %v4014 = vpack.c.b16 %v3984, %v3981
      %v4015 = vpack.c.b16 %v3988, %v3985
      %v4016 = vpack.c.b16 %v3989, %v3986
      %v4017 = vpack.c.b16 %v3990, %v3987
      %v4018 = vpack.c.b16 %v3994, %v3991
      %v4019 = vpack.c.b16 %v3995, %v3992
      %v4020 = vpack.c.b16 %v3996, %v3993
      %4045 = vmatprep.subr.bf16.mxu0 %v3998
      %4046 = vmatpush1.bf16.msra.mxu0 %v3997
      %4047 = vmatprep.subr.bf16.mxu0 %v4001
      %4048 = vmatpush1.bf16.msra.mxu0 %v4000
      %4049 = vmatprep.subr.bf16.mxu0 %v4004
      %4050 = vmatpush1.bf16.msra.mxu0 %v4003
      %4051 = vmatprep.subr.bf16.mxu0 %v4007
      %4052 = vmatpush1.bf16.msra.mxu0 %v4006
      %4053 = vmatprep.subr.bf16.mxu0 %v4010
      %4054 = vmatpush1.bf16.msra.mxu0 %v4009
      %4055 = vmatprep.subr.bf16.mxu0 %v4013
      %4056 = vmatpush1.bf16.msra.mxu0 %v4012
      %4057 = vmatprep.subr.bf16.mxu0 %v4016
      %4058 = vmatpush1.bf16.msra.mxu0 %v4015
      %4059 = vmatprep.subr.bf16.mxu0 %v4019
      %4060 = vmatpush1.bf16.msra.mxu0 %v4018
      %4061 = vmatprep.subr.bf16.mxu0 0
      %4062 = vmatpush1.bf16.msra.mxu0 0
      %4063 = vmatprep.subr.bf16.mxu0 0
      %4064 = vmatpush1.bf16.msra.mxu0 0
      %4065 = vmatprep.subr.bf16.mxu0 0
      %4066 = vmatpush1.bf16.msra.mxu0 0
      %4067 = vmatprep.subr.bf16.mxu0 0
      %4068 = vmatpush1.bf16.msra.mxu0 0
      %4069 = vmatprep.subr.bf16.mxu0 0
      %4070 = vmatpush1.bf16.msra.mxu0 0
      %4071 = vmatprep.subr.bf16.mxu0 0
      %4072 = vmatpush1.bf16.msra.mxu0 0
      %4073 = vmatprep.subr.bf16.mxu0 0
      %4074 = vmatpush1.bf16.msra.mxu0 0
      %4075 = vmatprep.subr.bf16.mxu0 0
      %4076 = vmatpush1.bf16.msra.mxu0 0
      %4077 = vmatprep.mubr.bf16.mxu0 0
      %4078 = vmatmul.mubr.bf16.gmra.mrb[0].mxu0 %v3898
      %v4079 = vpop.f32.mrb[0].mxu0
      %v4080 = vadd.f32 %v3905, %v4079
      %v4081 = vpop.f32.mrb[0].mxu0
      %v4082 = vadd.f32 %v3909, %v4081
      %v4083 = vpop.f32.mrb[0].mxu0
      %v4084 = vpop.f32.mrb[0].mxu0
      %4085 = vdwg.mxu0
      %4086 = vmatprep.subr.bf16.mxu0 0
      %4087 = vmatpush1.bf16.msra.mxu0 %v3999
      %4088 = vmatprep.subr.bf16.mxu0 0
      %4089 = vmatpush1.bf16.msra.mxu0 %v4002
      %4090 = vmatprep.subr.bf16.mxu0 0
      %4091 = vmatpush1.bf16.msra.mxu0 %v4005
      %4092 = vmatprep.subr.bf16.mxu0 0
      %4093 = vmatpush1.bf16.msra.mxu0 %v4008
      %4094 = vmatprep.subr.bf16.mxu0 0
      %4095 = vmatpush1.bf16.msra.mxu0 %v4011
      %4096 = vmatprep.subr.bf16.mxu0 0
      %4097 = vmatpush1.bf16.msra.mxu0 %v4014
      %4098 = vmatprep.subr.bf16.mxu0 0
      %4099 = vmatpush1.bf16.msra.mxu0 %v4017
      %4100 = vmatprep.subr.bf16.mxu0 0
      %4101 = vmatpush1.bf16.msra.mxu0 %v4020
      %4102 = vmatprep.subr.bf16.mxu0 0
      %4103 = vmatpush1.bf16.msra.mxu0 0
      %4104 = vmatprep.subr.bf16.mxu0 0
      %4105 = vmatpush1.bf16.msra.mxu0 0
      %4106 = vmatprep.subr.bf16.mxu0 0
      %4107 = vmatpush1.bf16.msra.mxu0 0
      %4108 = vmatprep.subr.bf16.mxu0 0
      %4109 = vmatpush1.bf16.msra.mxu0 0
      %4110 = vmatprep.subr.bf16.mxu0 0
      %4111 = vmatpush1.bf16.msra.mxu0 0
      %4112 = vmatprep.subr.bf16.mxu0 0
      %4113 = vmatpush1.bf16.msra.mxu0 0
      %4114 = vmatprep.subr.bf16.mxu0 0
      %4115 = vmatpush1.bf16.msra.mxu0 0
      %4116 = vmatprep.subr.bf16.mxu0 0
      %4117 = vmatpush1.bf16.msra.mxu0 0
      %4118 = vmatprep.mubr.bf16.mxu0 0
      %4119 = vmatmul.mubr.bf16.gmra.mrb[0].mxu0 %v3898
      %v4120 = vpop.f32.mrb[0].mxu0
      %v4121 = vadd.f32 %v3913, %v4120
      %v4122 = vpop.f32.mrb[0].mxu0
      %v4123 = vpop.f32.mrb[0].mxu0
      %v4124 = vpop.f32.mrb[0].mxu0
      %4125 = vdwg.mxu0
      %v4126 = vpack.c.bf16 %v4080, %v4080
      %v4127 = vpack.c.bf16 %v4082, %v4082
      %v4129 = vsel %vm1413, %v4126, 0
      %v4132 = vsel %vm1413, %v4127, 0
      %4134 = vmatprep.subr.bf16.mxu0 0
      %4135 = vmatpush1.bf16.xpose.msra.mxu0 %v4132
      %4136 = vmatprep.subr.bf16.mxu0 0
      %4137 = vmatpush1.bf16.xpose.msra.mxu0 0
      %4138 = vmatprep.subr.bf16.mxu0 0
      %4139 = vmatpush1.bf16.xpose.msra.mxu0 0
      %4140 = vmatprep.subr.bf16.mxu0 0
      %4141 = vmatpush1.bf16.xpose.msra.mxu0 0
      %4142 = vmatprep.subr.bf16.mxu0 0
      %4143 = vmatpush1.bf16.xpose.msra.mxu0 0
      %4144 = vmatprep.subr.bf16.mxu0 0
      %4145 = vmatpush1.bf16.xpose.msra.mxu0 0
      %4146 = vmatprep.subr.bf16.mxu0 0
      %4147 = vmatpush1.bf16.xpose.msra.mxu0 0
      %4148 = vmatprep.subr.bf16.mxu0 0
      %4149 = vmatpush1.bf16.xpose.msra.mxu0 0
      %4150 = vmatprep.subr.bf16.mxu0 0
      %4151 = vmatpush1.bf16.xpose.msra.mxu0 0
      %4152 = vmatprep.subr.bf16.mxu0 0
      %4153 = vmatpush1.bf16.xpose.msra.mxu0 0
      %4154 = vmatprep.subr.bf16.mxu0 0
      %4155 = vmatpush1.bf16.xpose.msra.mxu0 0
      %4156 = vmatprep.subr.bf16.mxu0 0
      %4157 = vmatpush1.bf16.xpose.msra.mxu0 0
      %4158 = vmatprep.subr.bf16.mxu0 0
      %4159 = vmatpush1.bf16.xpose.msra.mxu0 0
      %4160 = vmatprep.subr.bf16.mxu0 0
      %4161 = vmatpush1.bf16.xpose.msra.mxu0 0
      %4162 = vmatprep.subr.bf16.mxu0 0
      %4163 = vmatpush1.bf16.xpose.msra.mxu0 0
      %4164 = vmatprep.subr.bf16.mxu0 0
      %4165 = vmatpush1.bf16.xpose.msra.mxu0 0
      %4166 = vmatprep.mubr.bf16.mxu0 0
      %4167 = vmatmul.mubr.bf16.gmra.mrb[0].mxu0 %v4129
      %v4168 = vpop.f32.mrb[0].mxu0
      %v4169 = vadd.f32 0.0, %v4168
      %v4170 = vpop.f32.mrb[0].mxu0
      %v4171 = vpop.f32.mrb[0].mxu0
      %v4172 = vpop.f32.mrb[0].mxu0
      %4173 = vdwg.mxu0
      %v4174 = vmul.f32 %v4169, 0.125
      %v4175 = vadd.f32 %v4174, %v1465
      %v4176 = vsel %vm1468, %v4175, -inf
      %4177 = vmax.xlane.f32.xlu0 %v4176
      %v4178 = vpop.xlane.xlu0 %4177
      %v4179 = vsub.f32 %v4175, %v4178
      %v4180 = vmul.f32 %v4179, 1.442695
      %v4181 = vpow.pop %v4180
      %v4182 = vsel %vm1468, %v4181, 0.0
      %4183 = vadd.xlane.f32.xlu0 %v4182
      %v4184 = vpop.xlane.xlu0 %4183
      %v4185 = vrcp.pop %v4184
      %v4186 = vmul.f32 %v4181, %v4185
      %v4187 = vpack.c.bf16 %v4121, %v4121
      %v4188 = vpack.c.bf16 %v4186, %v4186
      %v4190 = vsel %vm1468, %v4188, 0
      %v4193 = vsel %vm1485, %v4187, 0
      %4195 = vmatprep.subr.bf16.mxu0 0
      %4196 = vmatpush1.bf16.msra.mxu0 %v4193
      %4197 = vmatprep.subr.bf16.mxu0 0
      %4198 = vmatpush1.bf16.msra.mxu0 0
      %4199 = vmatprep.subr.bf16.mxu0 0
      %4200 = vmatpush1.bf16.msra.mxu0 0
      %4201 = vmatprep.subr.bf16.mxu0 0
      %4202 = vmatpush1.bf16.msra.mxu0 0
      %4203 = vmatprep.subr.bf16.mxu0 0
      %4204 = vmatpush1.bf16.msra.mxu0 0
      %4205 = vmatprep.subr.bf16.mxu0 0
      %4206 = vmatpush1.bf16.msra.mxu0 0
      %4207 = vmatprep.subr.bf16.mxu0 0
      %4208 = vmatpush1.bf16.msra.mxu0 0
      %4209 = vmatprep.subr.bf16.mxu0 0
      %4210 = vmatpush1.bf16.msra.mxu0 0
      %4211 = vmatprep.subr.bf16.mxu0 0
      %4212 = vmatpush1.bf16.msra.mxu0 0
      %4213 = vmatprep.subr.bf16.mxu0 0
      %4214 = vmatpush1.bf16.msra.mxu0 0
      %4215 = vmatprep.subr.bf16.mxu0 0
      %4216 = vmatpush1.bf16.msra.mxu0 0
      %4217 = vmatprep.subr.bf16.mxu0 0
      %4218 = vmatpush1.bf16.msra.mxu0 0
      %4219 = vmatprep.subr.bf16.mxu0 0
      %4220 = vmatpush1.bf16.msra.mxu0 0
      %4221 = vmatprep.subr.bf16.mxu0 0
      %4222 = vmatpush1.bf16.msra.mxu0 0
      %4223 = vmatprep.subr.bf16.mxu0 0
      %4224 = vmatpush1.bf16.msra.mxu0 0
      %4225 = vmatprep.subr.bf16.mxu0 0
      %4226 = vmatpush1.bf16.msra.mxu0 0
      %4227 = vmatprep.mubr.bf16.mxu0 0
      %4228 = vmatmul.mubr.bf16.gmra.mrb[0].mxu0 %v4190
      %v4229 = vpop.f32.mrb[0].mxu0
      %v4230 = vadd.f32 0.0, %v4229
      %v4231 = vpop.f32.mrb[0].mxu0
      %v4232 = vpop.f32.mrb[0].mxu0
      %v4233 = vpop.f32.mrb[0].mxu0
      %4234 = vdwg.mxu0
      %4236 = vrot.lane.b32.xlu0 %v4126, 64
      %v4237 = vpop.permute.xlu0 %4236
      %4239 = vrot.lane.b32.xlu0 %v4127, 64
      %v4240 = vpop.permute.xlu0 %4239
      %v4242 = vsel %vm1413, %v4237, 0
      %v4245 = vsel %vm1413, %v4240, 0
      %4247 = vmatprep.subr.bf16.mxu0 0
      %4248 = vmatpush1.bf16.xpose.msra.mxu0 %v4245
      %4249 = vmatprep.subr.bf16.mxu0 0
      %4250 = vmatpush1.bf16.xpose.msra.mxu0 0
      %4251 = vmatprep.subr.bf16.mxu0 0
      %4252 = vmatpush1.bf16.xpose.msra.mxu0 0
      %4253 = vmatprep.subr.bf16.mxu0 0
      %4254 = vmatpush1.bf16.xpose.msra.mxu0 0
      %4255 = vmatprep.subr.bf16.mxu0 0
      %4256 = vmatpush1.bf16.xpose.msra.mxu0 0
      %4257 = vmatprep.subr.bf16.mxu0 0
      %4258 = vmatpush1.bf16.xpose.msra.mxu0 0
      %4259 = vmatprep.subr.bf16.mxu0 0
      %4260 = vmatpush1.bf16.xpose.msra.mxu0 0
      %4261 = vmatprep.subr.bf16.mxu0 0
      %4262 = vmatpush1.bf16.xpose.msra.mxu0 0
      %4263 = vmatprep.subr.bf16.mxu0 0
      %4264 = vmatpush1.bf16.xpose.msra.mxu0 0
      %4265 = vmatprep.subr.bf16.mxu0 0
      %4266 = vmatpush1.bf16.xpose.msra.mxu0 0
      %4267 = vmatprep.subr.bf16.mxu0 0
      %4268 = vmatpush1.bf16.xpose.msra.mxu0 0
      %4269 = vmatprep.subr.bf16.mxu0 0
      %4270 = vmatpush1.bf16.xpose.msra.mxu0 0
      %4271 = vmatprep.subr.bf16.mxu0 0
      %4272 = vmatpush1.bf16.xpose.msra.mxu0 0
      %4273 = vmatprep.subr.bf16.mxu0 0
      %4274 = vmatpush1.bf16.xpose.msra.mxu0 0
      %4275 = vmatprep.subr.bf16.mxu0 0
      %4276 = vmatpush1.bf16.xpose.msra.mxu0 0
      %4277 = vmatprep.subr.bf16.mxu0 0
      %4278 = vmatpush1.bf16.xpose.msra.mxu0 0
      %4279 = vmatprep.mubr.bf16.mxu0 0
      %4280 = vmatmul.mubr.bf16.gmra.mrb[0].mxu0 %v4242
      %v4281 = vpop.f32.mrb[0].mxu0
      %v4282 = vadd.f32 0.0, %v4281
      %v4283 = vpop.f32.mrb[0].mxu0
      %v4284 = vpop.f32.mrb[0].mxu0
      %v4285 = vpop.f32.mrb[0].mxu0
      %4286 = vdwg.mxu0
      %v4287 = vmul.f32 %v4282, 0.125
      %v4288 = vadd.f32 %v4287, %v1465
      %v4289 = vsel %vm1468, %v4288, -inf
      %4290 = vmax.xlane.f32.xlu0 %v4289
      %v4291 = vpop.xlane.xlu0 %4290
      %v4292 = vsub.f32 %v4288, %v4291
      %v4293 = vmul.f32 %v4292, 1.442695
      %v4294 = vpow.pop %v4293
      %v4295 = vsel %vm1468, %v4294, 0.0
      %4296 = vadd.xlane.f32.xlu0 %v4295
      %v4297 = vpop.xlane.xlu0 %4296
      %v4298 = vrcp.pop %v4297
      %v4299 = vmul.f32 %v4294, %v4298
      %v4300 = vpack.c.bf16 %v4299, %v4299
      %4302 = vrot.lane.b32.xlu0 %v4187, 64
      %v4303 = vpop.permute.xlu0 %4302
      %v4305 = vsel %vm1468, %v4300, 0
      %v4308 = vsel %vm1485, %v4303, 0
      %4310 = vmatprep.subr.bf16.mxu0 0
      %4311 = vmatpush1.bf16.msra.mxu0 %v4308
      %4312 = vmatprep.subr.bf16.mxu0 0
      %4313 = vmatpush1.bf16.msra.mxu0 0
      %4314 = vmatprep.subr.bf16.mxu0 0
      %4315 = vmatpush1.bf16.msra.mxu0 0
      %4316 = vmatprep.subr.bf16.mxu0 0
      %4317 = vmatpush1.bf16.msra.mxu0 0
      %4318 = vmatprep.subr.bf16.mxu0 0
      %4319 = vmatpush1.bf16.msra.mxu0 0
      %4320 = vmatprep.subr.bf16.mxu0 0
      %4321 = vmatpush1.bf16.msra.mxu0 0
      %4322 = vmatprep.subr.bf16.mxu0 0
      %4323 = vmatpush1.bf16.msra.mxu0 0
      %4324 = vmatprep.subr.bf16.mxu0 0
      %4325 = vmatpush1.bf16.msra.mxu0 0
      %4326 = vmatprep.subr.bf16.mxu0 0
      %4327 = vmatpush1.bf16.msra.mxu0 0
      %4328 = vmatprep.subr.bf16.mxu0 0
      %4329 = vmatpush1.bf16.msra.mxu0 0
      %4330 = vmatprep.subr.bf16.mxu0 0
      %4331 = vmatpush1.bf16.msra.mxu0 0
      %4332 = vmatprep.subr.bf16.mxu0 0
      %4333 = vmatpush1.bf16.msra.mxu0 0
      %4334 = vmatprep.subr.bf16.mxu0 0
      %4335 = vmatpush1.bf16.msra.mxu0 0
      %4336 = vmatprep.subr.bf16.mxu0 0
      %4337 = vmatpush1.bf16.msra.mxu0 0
      %4338 = vmatprep.subr.bf16.mxu0 0
      %4339 = vmatpush1.bf16.msra.mxu0 0
      %4340 = vmatprep.subr.bf16.mxu0 0
      %4341 = vmatpush1.bf16.msra.mxu0 0
      %4342 = vmatprep.mubr.bf16.mxu0 0
      %4343 = vmatmul.mubr.bf16.gmra.mrb[0].mxu0 %v4305
      %v4344 = vpop.f32.mrb[0].mxu0
      %v4345 = vadd.f32 0.0, %v4344
      %v4346 = vpop.f32.mrb[0].mxu0
      %v4347 = vpop.f32.mrb[0].mxu0
      %v4348 = vpop.f32.mrb[0].mxu0
      %4349 = vdwg.mxu0
      %4351 = vrot.lane.b32.xlu0 %v4345, 64
      %v4352 = vpop.permute.xlu0 %4351
      %v4354 = vsel %vm1413, %v4230, %v4352
      %s4355 = scalar_lea.vmem %s13, 128
      %v4356 = vld [vmem:[%s4355] sm:$0xf]
      %v4357 = vld [vmem:[%s4355 + $0x4] sm:$0xf]
      %v4358 = vld [vmem:[%s4355 + $0x8] sm:$0xf]
      %v4359 = vld [vmem:[%s4355 + $0xc] sm:$0xf]
      %v4360 = vld [vmem:[%s4355 + $0x10] sm:$0xf]
      %v4361 = vld [vmem:[%s4355 + $0x14] sm:$0xf]
      %v4362 = vld [vmem:[%s4355 + $0x18] sm:$0xf]
      %v4363 = vld [vmem:[%s4355 + $0x1c] sm:$0xf]
      %v4364 = vld [vmem:[%s4355 + $0x20] sm:$0xf]
      %v4365 = vld [vmem:[%s4355 + $0x24] sm:$0xf]
      %v4366 = vld [vmem:[%s4355 + $0x28] sm:$0xf]
      %v4367 = vld [vmem:[%s4355 + $0x2c] sm:$0xf]
      %v4368 = vld [vmem:[%s4355 + $0x30] sm:$0xf]
      %v4369 = vld [vmem:[%s4355 + $0x34] sm:$0xf]
      %v4370 = vld [vmem:[%s4355 + $0x38] sm:$0xf]
      %v4371 = vld [vmem:[%s4355 + $0x3c] sm:$0xf]
      %v4372 = vpack.c.bf16 %v4354, %v4354
      %s4373 = scalar_lea.vmem %s14, 2
      %v4374 = vld [vmem:[%s4373] sm:$0x1]
      %v4376 = vlaneseq
      %v4377 = vshrl.u32 %v4376, 7
      %v4378 = vsub.s32 0, %v4377
      %v4379 = vrot.slane %v4374, %v4378
      %v4397 = vunpack.c.l.b16 %v4356
      %v4398 = vunpack.c.l.b16 %v4357
      %v4399 = vunpack.c.l.b16 %v4358
      %v4400 = vunpack.c.l.b16 %v4359
      %v4401 = vunpack.c.l.b16 %v4360
      %v4402 = vunpack.c.l.b16 %v4361
      %v4403 = vunpack.c.l.b16 %v4362
      %v4404 = vunpack.c.l.b16 %v4363
      %v4405 = vunpack.c.l.b16 %v4364
      %v4406 = vunpack.c.l.b16 %v4365
      %v4407 = vunpack.c.l.b16 %v4366
      %v4408 = vunpack.c.l.b16 %v4367
      %v4409 = vunpack.c.l.b16 %v4368
      %v4410 = vunpack.c.l.b16 %v4369
      %v4411 = vunpack.c.l.b16 %v4370
      %v4412 = vunpack.c.l.b16 %v4371
      %v4413 = vpack.c.b16 %v4398, %v4397
      %v4414 = vpack.c.b16 %v4400, %v4399
      %v4415 = vpack.c.b16 %v4402, %v4401
      %v4416 = vpack.c.b16 %v4404, %v4403
      %v4417 = vpack.c.b16 %v4406, %v4405
      %v4418 = vpack.c.b16 %v4408, %v4407
      %v4419 = vpack.c.b16 %v4410, %v4409
      %v4420 = vpack.c.b16 %v4412, %v4411
      %4429 = vmatprep.subr.bf16.mxu0 0
      %4430 = vmatpush1.bf16.msra.mxu0 %v4413
      %4431 = vmatprep.subr.bf16.mxu0 0
      %4432 = vmatpush1.bf16.msra.mxu0 %v4414
      %4433 = vmatprep.subr.bf16.mxu0 0
      %4434 = vmatpush1.bf16.msra.mxu0 %v4415
      %4435 = vmatprep.subr.bf16.mxu0 0
      %4436 = vmatpush1.bf16.msra.mxu0 %v4416
      %4437 = vmatprep.subr.bf16.mxu0 0
      %4438 = vmatpush1.bf16.msra.mxu0 %v4417
      %4439 = vmatprep.subr.bf16.mxu0 0
      %4440 = vmatpush1.bf16.msra.mxu0 %v4418
      %4441 = vmatprep.subr.bf16.mxu0 0
      %4442 = vmatpush1.bf16.msra.mxu0 %v4419
      %4443 = vmatprep.subr.bf16.mxu0 0
      %4444 = vmatpush1.bf16.msra.mxu0 %v4420
      %4445 = vmatprep.subr.bf16.mxu0 0
      %4446 = vmatpush1.bf16.msra.mxu0 0
      %4447 = vmatprep.subr.bf16.mxu0 0
      %4448 = vmatpush1.bf16.msra.mxu0 0
      %4449 = vmatprep.subr.bf16.mxu0 0
      %4450 = vmatpush1.bf16.msra.mxu0 0
      %4451 = vmatprep.subr.bf16.mxu0 0
      %4452 = vmatpush1.bf16.msra.mxu0 0
      %4453 = vmatprep.subr.bf16.mxu0 0
      %4454 = vmatpush1.bf16.msra.mxu0 0
      %4455 = vmatprep.subr.bf16.mxu0 0
      %4456 = vmatpush1.bf16.msra.mxu0 0
      %4457 = vmatprep.subr.bf16.mxu0 0
      %4458 = vmatpush1.bf16.msra.mxu0 0
      %4459 = vmatprep.subr.bf16.mxu0 0
      %4460 = vmatpush1.bf16.msra.mxu0 0
      %4461 = vmatprep.mubr.bf16.mxu0 0
      %4462 = vmatmul.mubr.bf16.gmra.mrb[0].mxu0 %v4372
      %v4463 = vpop.f32.mrb[0].mxu0
      %v4464 = vadd.f32 %v4379, %v4463
      %v4465 = vpop.f32.mrb[0].mxu0
      %v4466 = vpop.f32.mrb[0].mxu0
      %v4467 = vpop.f32.mrb[0].mxu0
      %4468 = vdwg.mxu0
      %v4469 = vadd.f32 %v4464, %v3835
      %s4470 = scalar_lea.vmem %s15, 2
      %v4471 = vld [vmem:[%s4470] sm:$0x1]
      %s4472 = scalar_lea.vmem %s16, 2
      %v4473 = vld [vmem:[%s4472] sm:$0x1]
      %4474 = vadd.xlane.f32.xlu0 %v4469
      %v4475 = vpop.xlane.xlu0 %4474
      %v4476 = vmul.f32 %v4475, %v1128
      %v4477 = vsub.f32 %v4469, %v4476
      %v4478 = vmul.f32 %v4477, %v4477
      %4479 = vadd.xlane.f32.xlu0 %v4478
      %v4480 = vpop.xlane.xlu0 %4479
      %v4481 = vmul.f32 %v4480, %v1128
      %v4482 = vadd.f32 %v4481, 1e-06
      %v4483 = vrsqrt.pop %v4482
      %v4484 = vmul.f32 %v4477, %v4483
      %v4486 = vlaneseq
      %v4487 = vshrl.u32 %v4486, 7
      %v4488 = vsub.s32 0, %v4487
      %v4489 = vrot.slane %v4471, %v4488
      %v4491 = vmul.f32 %v4484, %v4489
      %v4493 = vlaneseq
      %v4494 = vshrl.u32 %v4493, 7
      %v4495 = vsub.s32 0, %v4494
      %v4496 = vrot.slane %v4473, %v4495
      %v4498 = vadd.f32 %v4491, %v4496
      %s4499 = scalar_lea.vmem %s17, 512
      %v4500 = vld [vmem:[%s4499] sm:$0xff]
      %v4501 = vld [vmem:[%s4499 + $0x8] sm:$0xff]
      %v4502 = vld [vmem:[%s4499 + $0x10] sm:$0xff]
      %v4503 = vld [vmem:[%s4499 + $0x18] sm:$0xff]
      %v4504 = vld [vmem:[%s4499 + $0x20] sm:$0xff]
      %v4505 = vld [vmem:[%s4499 + $0x28] sm:$0xff]
      %v4506 = vld [vmem:[%s4499 + $0x30] sm:$0xff]
      %v4507 = vld [vmem:[%s4499 + $0x38] sm:$0xff]
      %v4508 = vld [vmem:[%s4499 + $0x40] sm:$0xff]
      %v4509 = vld [vmem:[%s4499 + $0x48] sm:$0xff]
      %v4510 = vld [vmem:[%s4499 + $0x50] sm:$0xff]
      %v4511 = vld [vmem:[%s4499 + $0x58] sm:$0xff]
      %v4512 = vld [vmem:[%s4499 + $0x60] sm:$0xff]
      %v4513 = vld [vmem:[%s4499 + $0x68] sm:$0xff]
      %v4514 = vld [vmem:[%s4499 + $0x70] sm:$0xff]
      %v4515 = vld [vmem:[%s4499 + $0x78] sm:$0xff]
      %v4516 = vld [vmem:[%s4499 + $0x80] sm:$0xff]
      %v4517 = vld [vmem:[%s4499 + $0x88] sm:$0xff]
      %v4518 = vld [vmem:[%s4499 + $0x90] sm:$0xff]
      %v4519 = vld [vmem:[%s4499 + $0x98] sm:$0xff]
      %v4520 = vld [vmem:[%s4499 + $0xa0] sm:$0xff]
      %v4521 = vld [vmem:[%s4499 + $0xa8] sm:$0xff]
      %v4522 = vld [vmem:[%s4499 + $0xb0] sm:$0xff]
      %v4523 = vld [vmem:[%s4499 + $0xb8] sm:$0xff]
      %v4524 = vld [vmem:[%s4499 + $0xc0] sm:$0xff]
      %v4525 = vld [vmem:[%s4499 + $0xc8] sm:$0xff]
      %v4526 = vld [vmem:[%s4499 + $0xd0] sm:$0xff]
      %v4527 = vld [vmem:[%s4499 + $0xd8] sm:$0xff]
      %v4528 = vld [vmem:[%s4499 + $0xe0] sm:$0xff]
      %v4529 = vld [vmem:[%s4499 + $0xe8] sm:$0xff]
      %v4530 = vld [vmem:[%s4499 + $0xf0] sm:$0xff]
      %v4531 = vld [vmem:[%s4499 + $0xf8] sm:$0xff]
      %v4532 = vpack.c.bf16 %v4498, %v4498
      %s4533 = scalar_lea.vmem %s18, 8
      %v4534 = vld [vmem:[%s4533] sm:$0xf]
      %v4536 = vlaneseq
      %v4537 = vshrl.u32 %v4536, 7
      %v4538 = vsub.s32 0, %v4537
      %v4539 = vrot.slane %v4534, %v4538
      %v4540 = vlaneseq
      %v4541 = vshrl.u32 %v4540, 7
      %v4542 = vsub.s32 1, %v4541
      %v4543 = vrot.slane %v4534, %v4542
      %v4544 = vlaneseq
      %v4545 = vshrl.u32 %v4544, 7
      %v4546 = vsub.s32 2, %v4545
      %v4547 = vrot.slane %v4534, %v4546
      %v4548 = vlaneseq
      %v4549 = vshrl.u32 %v4548, 7
      %v4550 = vsub.s32 3, %v4549
      %v4551 = vrot.slane %v4534, %v4550
      %v4588 = vunpack.c.l.b16 %v4500
      %v4589 = vunpack.c.h.b16 %v4500
      %v4590 = vunpack.c.l.b16 %v4501
      %v4591 = vunpack.c.h.b16 %v4501
      %v4592 = vunpack.c.l.b16 %v4502
      %v4593 = vunpack.c.h.b16 %v4502
      %v4594 = vunpack.c.l.b16 %v4503
      %v4595 = vunpack.c.h.b16 %v4503
      %v4596 = vunpack.c.l.b16 %v4504
      %v4597 = vunpack.c.h.b16 %v4504
      %v4598 = vunpack.c.l.b16 %v4505
      %v4599 = vunpack.c.h.b16 %v4505
      %v4600 = vunpack.c.l.b16 %v4506
      %v4601 = vunpack.c.h.b16 %v4506
      %v4602 = vunpack.c.l.b16 %v4507
      %v4603 = vunpack.c.h.b16 %v4507
      %v4604 = vunpack.c.l.b16 %v4508
      %v4605 = vunpack.c.h.b16 %v4508
      %v4606 = vunpack.c.l.b16 %v4509
      %v4607 = vunpack.c.h.b16 %v4509
      %v4608 = vunpack.c.l.b16 %v4510
      %v4609 = vunpack.c.h.b16 %v4510
      %v4610 = vunpack.c.l.b16 %v4511
      %v4611 = vunpack.c.h.b16 %v4511
      %v4612 = vunpack.c.l.b16 %v4512
      %v4613 = vunpack.c.h.b16 %v4512
      %v4614 = vunpack.c.l.b16 %v4513
      %v4615 = vunpack.c.h.b16 %v4513
      %v4616 = vunpack.c.l.b16 %v4514
      %v4617 = vunpack.c.h.b16 %v4514
      %v4618 = vunpack.c.l.b16 %v4515
      %v4619 = vunpack.c.h.b16 %v4515
      %v4620 = vunpack.c.l.b16 %v4516
      %v4621 = vunpack.c.h.b16 %v4516
      %v4622 = vunpack.c.l.b16 %v4517
      %v4623 = vunpack.c.h.b16 %v4517
      %v4624 = vunpack.c.l.b16 %v4518
      %v4625 = vunpack.c.h.b16 %v4518
      %v4626 = vunpack.c.l.b16 %v4519
      %v4627 = vunpack.c.h.b16 %v4519
      %v4628 = vunpack.c.l.b16 %v4520
      %v4629 = vunpack.c.h.b16 %v4520
      %v4630 = vunpack.c.l.b16 %v4521
      %v4631 = vunpack.c.h.b16 %v4521
      %v4632 = vunpack.c.l.b16 %v4522
      %v4633 = vunpack.c.h.b16 %v4522
      %v4634 = vunpack.c.l.b16 %v4523
      %v4635 = vunpack.c.h.b16 %v4523
      %v4636 = vunpack.c.l.b16 %v4524
      %v4637 = vunpack.c.h.b16 %v4524
      %v4638 = vunpack.c.l.b16 %v4525
      %v4639 = vunpack.c.h.b16 %v4525
      %v4640 = vunpack.c.l.b16 %v4526
      %v4641 = vunpack.c.h.b16 %v4526
      %v4642 = vunpack.c.l.b16 %v4527
      %v4643 = vunpack.c.h.b16 %v4527
      %v4644 = vunpack.c.l.b16 %v4528
      %v4645 = vunpack.c.h.b16 %v4528
      %v4646 = vunpack.c.l.b16 %v4529
      %v4647 = vunpack.c.h.b16 %v4529
      %v4648 = vunpack.c.l.b16 %v4530
      %v4649 = vunpack.c.h.b16 %v4530
      %v4650 = vunpack.c.l.b16 %v4531
      %v4651 = vunpack.c.h.b16 %v4531
      %v4652 = vpack.c.b16 %v4592, %v4588
      %v4653 = vpack.c.b16 %v4593, %v4589
      %v4654 = vpack.c.b16 %v4594, %v4590
      %v4655 = vpack.c.b16 %v4595, %v4591
      %v4656 = vpack.c.b16 %v4600, %v4596
      %v4657 = vpack.c.b16 %v4601, %v4597
      %v4658 = vpack.c.b16 %v4602, %v4598
      %v4659 = vpack.c.b16 %v4603, %v4599
      %v4660 = vpack.c.b16 %v4608, %v4604
      %v4661 = vpack.c.b16 %v4609, %v4605
      %v4662 = vpack.c.b16 %v4610, %v4606
      %v4663 = vpack.c.b16 %v4611, %v4607
      %v4664 = vpack.c.b16 %v4616, %v4612
      %v4665 = vpack.c.b16 %v4617, %v4613
      %v4666 = vpack.c.b16 %v4618, %v4614
      %v4667 = vpack.c.b16 %v4619, %v4615
      %v4668 = vpack.c.b16 %v4624, %v4620
      %v4669 = vpack.c.b16 %v4625, %v4621
      %v4670 = vpack.c.b16 %v4626, %v4622
      %v4671 = vpack.c.b16 %v4627, %v4623
      %v4672 = vpack.c.b16 %v4632, %v4628
      %v4673 = vpack.c.b16 %v4633, %v4629
      %v4674 = vpack.c.b16 %v4634, %v4630
      %v4675 = vpack.c.b16 %v4635, %v4631
      %v4676 = vpack.c.b16 %v4640, %v4636
      %v4677 = vpack.c.b16 %v4641, %v4637
      %v4678 = vpack.c.b16 %v4642, %v4638
      %v4679 = vpack.c.b16 %v4643, %v4639
      %v4680 = vpack.c.b16 %v4648, %v4644
      %v4681 = vpack.c.b16 %v4649, %v4645
      %v4682 = vpack.c.b16 %v4650, %v4646
      %v4683 = vpack.c.b16 %v4651, %v4647
      %4716 = vmatprep.subr.bf16.mxu0 %v4653
      %4717 = vmatpush1.bf16.msra.mxu0 %v4652
      %4718 = vmatprep.subr.bf16.mxu0 %v4657
      %4719 = vmatpush1.bf16.msra.mxu0 %v4656
      %4720 = vmatprep.subr.bf16.mxu0 %v4661
      %4721 = vmatpush1.bf16.msra.mxu0 %v4660
      %4722 = vmatprep.subr.bf16.mxu0 %v4665
      %4723 = vmatpush1.bf16.msra.mxu0 %v4664
      %4724 = vmatprep.subr.bf16.mxu0 %v4669
      %4725 = vmatpush1.bf16.msra.mxu0 %v4668
      %4726 = vmatprep.subr.bf16.mxu0 %v4673
      %4727 = vmatpush1.bf16.msra.mxu0 %v4672
      %4728 = vmatprep.subr.bf16.mxu0 %v4677
      %4729 = vmatpush1.bf16.msra.mxu0 %v4676
      %4730 = vmatprep.subr.bf16.mxu0 %v4681
      %4731 = vmatpush1.bf16.msra.mxu0 %v4680
      %4732 = vmatprep.subr.bf16.mxu0 0
      %4733 = vmatpush1.bf16.msra.mxu0 0
      %4734 = vmatprep.subr.bf16.mxu0 0
      %4735 = vmatpush1.bf16.msra.mxu0 0
      %4736 = vmatprep.subr.bf16.mxu0 0
      %4737 = vmatpush1.bf16.msra.mxu0 0
      %4738 = vmatprep.subr.bf16.mxu0 0
      %4739 = vmatpush1.bf16.msra.mxu0 0
      %4740 = vmatprep.subr.bf16.mxu0 0
      %4741 = vmatpush1.bf16.msra.mxu0 0
      %4742 = vmatprep.subr.bf16.mxu0 0
      %4743 = vmatpush1.bf16.msra.mxu0 0
      %4744 = vmatprep.subr.bf16.mxu0 0
      %4745 = vmatpush1.bf16.msra.mxu0 0
      %4746 = vmatprep.subr.bf16.mxu0 0
      %4747 = vmatpush1.bf16.msra.mxu0 0
      %4748 = vmatprep.mubr.bf16.mxu0 0
      %4749 = vmatmul.mubr.bf16.gmra.mrb[0].mxu0 %v4532
      %v4750 = vpop.f32.mrb[0].mxu0
      %v4751 = vadd.f32 %v4539, %v4750
      %v4752 = vpop.f32.mrb[0].mxu0
      %v4753 = vadd.f32 %v4543, %v4752
      %v4754 = vpop.f32.mrb[0].mxu0
      %v4755 = vpop.f32.mrb[0].mxu0
      %4756 = vdwg.mxu0
      %4757 = vmatprep.subr.bf16.mxu0 %v4655
      %4758 = vmatpush1.bf16.msra.mxu0 %v4654
      %4759 = vmatprep.subr.bf16.mxu0 %v4659
      %4760 = vmatpush1.bf16.msra.mxu0 %v4658
      %4761 = vmatprep.subr.bf16.mxu0 %v4663
      %4762 = vmatpush1.bf16.msra.mxu0 %v4662
      %4763 = vmatprep.subr.bf16.mxu0 %v4667
      %4764 = vmatpush1.bf16.msra.mxu0 %v4666
      %4765 = vmatprep.subr.bf16.mxu0 %v4671
      %4766 = vmatpush1.bf16.msra.mxu0 %v4670
      %4767 = vmatprep.subr.bf16.mxu0 %v4675
      %4768 = vmatpush1.bf16.msra.mxu0 %v4674
      %4769 = vmatprep.subr.bf16.mxu0 %v4679
      %4770 = vmatpush1.bf16.msra.mxu0 %v4678
      %4771 = vmatprep.subr.bf16.mxu0 %v4683
      %4772 = vmatpush1.bf16.msra.mxu0 %v4682
      %4773 = vmatprep.subr.bf16.mxu0 0
      %4774 = vmatpush1.bf16.msra.mxu0 0
      %4775 = vmatprep.subr.bf16.mxu0 0
      %4776 = vmatpush1.bf16.msra.mxu0 0
      %4777 = vmatprep.subr.bf16.mxu0 0
      %4778 = vmatpush1.bf16.msra.mxu0 0
      %4779 = vmatprep.subr.bf16.mxu0 0
      %4780 = vmatpush1.bf16.msra.mxu0 0
      %4781 = vmatprep.subr.bf16.mxu0 0
      %4782 = vmatpush1.bf16.msra.mxu0 0
      %4783 = vmatprep.subr.bf16.mxu0 0
      %4784 = vmatpush1.bf16.msra.mxu0 0
      %4785 = vmatprep.subr.bf16.mxu0 0
      %4786 = vmatpush1.bf16.msra.mxu0 0
      %4787 = vmatprep.subr.bf16.mxu0 0
      %4788 = vmatpush1.bf16.msra.mxu0 0
      %4789 = vmatprep.mubr.bf16.mxu0 0
      %4790 = vmatmul.mubr.bf16.gmra.mrb[0].mxu0 %v4532
      %v4791 = vpop.f32.mrb[0].mxu0
      %v4792 = vadd.f32 %v4547, %v4791
      %v4793 = vpop.f32.mrb[0].mxu0
      %v4794 = vadd.f32 %v4551, %v4793
      %v4795 = vpop.f32.mrb[0].mxu0
      %v4796 = vpop.f32.mrb[0].mxu0
      %4797 = vdwg.mxu0
      %v4798 = vmul.f32 %v4751, %v4751
      %v4799 = vmul.f32 %v4753, %v4753
      %v4800 = vmul.f32 %v4792, %v4792
      %v4801 = vmul.f32 %v4794, %v4794
      %v4802 = vmul.f32 %v4751, %v4798
      %v4803 = vmul.f32 %v4753, %v4799
      %v4804 = vmul.f32 %v4792, %v4800
      %v4805 = vmul.f32 %v4794, %v4801
      %v4806 = vmul.f32 %v4802, 0.044715
      %v4807 = vmul.f32 %v4803, 0.044715
      %v4808 = vmul.f32 %v4804, 0.044715
      %v4809 = vmul.f32 %v4805, 0.044715
      %v4810 = vadd.f32 %v4751, %v4806
      %v4811 = vadd.f32 %v4753, %v4807
      %v4812 = vadd.f32 %v4792, %v4808
      %v4813 = vadd.f32 %v4794, %v4809
      %v4814 = vmul.f32 %v4810, 0.7978846
      %v4815 = vmul.f32 %v4811, 0.7978846
      %v4816 = vmul.f32 %v4812, 0.7978846
      %v4817 = vmul.f32 %v4813, 0.7978846
      %v4818 = vtanh.pop %v4814
      %v4819 = vtanh.pop %v4815
      %v4820 = vtanh.pop %v4816
      %v4821 = vtanh.pop %v4817
      %v4822 = vadd.f32 %v4818, 1.0
      %v4823 = vadd.f32 %v4819, 1.0
      %v4824 = vadd.f32 %v4820, 1.0
      %v4825 = vadd.f32 %v4821, 1.0
      %v4826 = vmul.f32 %v4822, 0.5
      %v4827 = vmul.f32 %v4823, 0.5
      %v4828 = vmul.f32 %v4824, 0.5
      %v4829 = vmul.f32 %v4825, 0.5
      %v4830 = vmul.f32 %v4751, %v4826
      %v4831 = vmul.f32 %v4753, %v4827
      %v4832 = vmul.f32 %v4792, %v4828
      %v4833 = vmul.f32 %v4794, %v4829
      %s4834 = scalar_lea.vmem %s19, 512
      %v4835 = vld [vmem:[%s4834] sm:$0xf]
      %v4836 = vld [vmem:[%s4834 + $0x4] sm:$0xf]
      %v4837 = vld [vmem:[%s4834 + $0x8] sm:$0xf]
      %v4838 = vld [vmem:[%s4834 + $0xc] sm:$0xf]
      %v4839 = vld [vmem:[%s4834 + $0x10] sm:$0xf]
      %v4840 = vld [vmem:[%s4834 + $0x14] sm:$0xf]
      %v4841 = vld [vmem:[%s4834 + $0x18] sm:$0xf]
      %v4842 = vld [vmem:[%s4834 + $0x1c] sm:$0xf]
      %v4843 = vld [vmem:[%s4834 + $0x20] sm:$0xf]
      %v4844 = vld [vmem:[%s4834 + $0x24] sm:$0xf]
      %v4845 = vld [vmem:[%s4834 + $0x28] sm:$0xf]
      %v4846 = vld [vmem:[%s4834 + $0x2c] sm:$0xf]
      %v4847 = vld [vmem:[%s4834 + $0x30] sm:$0xf]
      %v4848 = vld [vmem:[%s4834 + $0x34] sm:$0xf]
      %v4849 = vld [vmem:[%s4834 + $0x38] sm:$0xf]
      %v4850 = vld [vmem:[%s4834 + $0x3c] sm:$0xf]
      %v4851 = vld [vmem:[%s4834 + $0x40] sm:$0xf]
      %v4852 = vld [vmem:[%s4834 + $0x44] sm:$0xf]
      %v4853 = vld [vmem:[%s4834 + $0x48] sm:$0xf]
      %v4854 = vld [vmem:[%s4834 + $0x4c] sm:$0xf]
      %v4855 = vld [vmem:[%s4834 + $0x50] sm:$0xf]
      %v4856 = vld [vmem:[%s4834 + $0x54] sm:$0xf]
      %v4857 = vld [vmem:[%s4834 + $0x58] sm:$0xf]
      %v4858 = vld [vmem:[%s4834 + $0x5c] sm:$0xf]
      %v4859 = vld [vmem:[%s4834 + $0x60] sm:$0xf]
      %v4860 = vld [vmem:[%s4834 + $0x64] sm:$0xf]
      %v4861 = vld [vmem:[%s4834 + $0x68] sm:$0xf]
      %v4862 = vld [vmem:[%s4834 + $0x6c] sm:$0xf]
      %v4863 = vld [vmem:[%s4834 + $0x70] sm:$0xf]
      %v4864 = vld [vmem:[%s4834 + $0x74] sm:$0xf]
      %v4865 = vld [vmem:[%s4834 + $0x78] sm:$0xf]
      %v4866 = vld [vmem:[%s4834 + $0x7c] sm:$0xf]
      %v4867 = vld [vmem:[%s4834 + $0x80] sm:$0xf]
      %v4868 = vld [vmem:[%s4834 + $0x84] sm:$0xf]
      %v4869 = vld [vmem:[%s4834 + $0x88] sm:$0xf]
      %v4870 = vld [vmem:[%s4834 + $0x8c] sm:$0xf]
      %v4871 = vld [vmem:[%s4834 + $0x90] sm:$0xf]
      %v4872 = vld [vmem:[%s4834 + $0x94] sm:$0xf]
      %v4873 = vld [vmem:[%s4834 + $0x98] sm:$0xf]
      %v4874 = vld [vmem:[%s4834 + $0x9c] sm:$0xf]
      %v4875 = vld [vmem:[%s4834 + $0xa0] sm:$0xf]
      %v4876 = vld [vmem:[%s4834 + $0xa4] sm:$0xf]
      %v4877 = vld [vmem:[%s4834 + $0xa8] sm:$0xf]
      %v4878 = vld [vmem:[%s4834 + $0xac] sm:$0xf]
      %v4879 = vld [vmem:[%s4834 + $0xb0] sm:$0xf]
      %v4880 = vld [vmem:[%s4834 + $0xb4] sm:$0xf]
      %v4881 = vld [vmem:[%s4834 + $0xb8] sm:$0xf]
      %v4882 = vld [vmem:[%s4834 + $0xbc] sm:$0xf]
      %v4883 = vld [vmem:[%s4834 + $0xc0] sm:$0xf]
      %v4884 = vld [vmem:[%s4834 + $0xc4] sm:$0xf]
      %v4885 = vld [vmem:[%s4834 + $0xc8] sm:$0xf]
      %v4886 = vld [vmem:[%s4834 + $0xcc] sm:$0xf]
      %v4887 = vld [vmem:[%s4834 + $0xd0] sm:$0xf]
      %v4888 = vld [vmem:[%s4834 + $0xd4] sm:$0xf]
      %v4889 = vld [vmem:[%s4834 + $0xd8] sm:$0xf]
      %v4890 = vld [vmem:[%s4834 + $0xdc] sm:$0xf]
      %v4891 = vld [vmem:[%s4834 + $0xe0] sm:$0xf]
      %v4892 = vld [vmem:[%s4834 + $0xe4] sm:$0xf]
      %v4893 = vld [vmem:[%s4834 + $0xe8] sm:$0xf]
      %v4894 = vld [vmem:[%s4834 + $0xec] sm:$0xf]
      %v4895 = vld [vmem:[%s4834 + $0xf0] sm:$0xf]
      %v4896 = vld [vmem:[%s4834 + $0xf4] sm:$0xf]
      %v4897 = vld [vmem:[%s4834 + $0xf8] sm:$0xf]
      %v4898 = vld [vmem:[%s4834 + $0xfc] sm:$0xf]
      %v4899 = vpack.c.bf16 %v4830, %v4830
      %v4900 = vpack.c.bf16 %v4831, %v4831
      %v4901 = vpack.c.bf16 %v4832, %v4832
      %v4902 = vpack.c.bf16 %v4833, %v4833
      %s4903 = scalar_lea.vmem %s20, 2
      %v4904 = vld [vmem:[%s4903] sm:$0x1]
      %v4906 = vlaneseq
      %v4907 = vshrl.u32 %v4906, 7
      %v4908 = vsub.s32 0, %v4907
      %v4909 = vrot.slane %v4904, %v4908
      %v4975 = vunpack.c.l.b16 %v4835
      %v4976 = vunpack.c.l.b16 %v4836
      %v4977 = vunpack.c.l.b16 %v4837
      %v4978 = vunpack.c.l.b16 %v4838
      %v4979 = vunpack.c.l.b16 %v4839
      %v4980 = vunpack.c.l.b16 %v4840
      %v4981 = vunpack.c.l.b16 %v4841
      %v4982 = vunpack.c.l.b16 %v4842
      %v4983 = vunpack.c.l.b16 %v4843
      %v4984 = vunpack.c.l.b16 %v4844
      %v4985 = vunpack.c.l.b16 %v4845
      %v4986 = vunpack.c.l.b16 %v4846
      %v4987 = vunpack.c.l.b16 %v4847
      %v4988 = vunpack.c.l.b16 %v4848
      %v4989 = vunpack.c.l.b16 %v4849
      %v4990 = vunpack.c.l.b16 %v4850
      %v4991 = vunpack.c.l.b16 %v4851
      %v4992 = vunpack.c.l.b16 %v4852
      %v4993 = vunpack.c.l.b16 %v4853
      %v4994 = vunpack.c.l.b16 %v4854
      %v4995 = vunpack.c.l.b16 %v4855
      %v4996 = vunpack.c.l.b16 %v4856
      %v4997 = vunpack.c.l.b16 %v4857
      %v4998 = vunpack.c.l.b16 %v4858
      %v4999 = vunpack.c.l.b16 %v4859
      %v5000 = vunpack.c.l.b16 %v4860
      %v5001 = vunpack.c.l.b16 %v4861
      %v5002 = vunpack.c.l.b16 %v4862
      %v5003 = vunpack.c.l.b16 %v4863
      %v5004 = vunpack.c.l.b16 %v4864
      %v5005 = vunpack.c.l.b16 %v4865
      %v5006 = vunpack.c.l.b16 %v4866
      %v5007 = vunpack.c.l.b16 %v4867
      %v5008 = vunpack.c.l.b16 %v4868
      %v5009 = vunpack.c.l.b16 %v4869
      %v5010 = vunpack.c.l.b16 %v4870
      %v5011 = vunpack.c.l.b16 %v4871
      %v5012 = vunpack.c.l.b16 %v4872
      %v5013 = vunpack.c.l.b16 %v4873
      %v5014 = vunpack.c.l.b16 %v4874
      %v5015 = vunpack.c.l.b16 %v4875
      %v5016 = vunpack.c.l.b16 %v4876
      %v5017 = vunpack.c.l.b16 %v4877
      %v5018 = vunpack.c.l.b16 %v4878
      %v5019 = vunpack.c.l.b16 %v4879
      %v5020 = vunpack.c.l.b16 %v4880
      %v5021 = vunpack.c.l.b16 %v4881
      %v5022 = vunpack.c.l.b16 %v4882
      %v5023 = vunpack.c.l.b16 %v4883
      %v5024 = vunpack.c.l.b16 %v4884
      %v5025 = vunpack.c.l.b16 %v4885
      %v5026 = vunpack.c.l.b16 %v4886
      %v5027 = vunpack.c.l.b16 %v4887
      %v5028 = vunpack.c.l.b16 %v4888
      %v5029 = vunpack.c.l.b16 %v4889
      %v5030 = vunpack.c.l.b16 %v4890
      %v5031 = vunpack.c.l.b16 %v4891
      %v5032 = vunpack.c.l.b16 %v4892
      %v5033 = vunpack.c.l.b16 %v4893
      %v5034 = vunpack.c.l.b16 %v4894
      %v5035 = vunpack.c.l.b16 %v4895
      %v5036 = vunpack.c.l.b16 %v4896
      %v5037 = vunpack.c.l.b16 %v4897
      %v5038 = vunpack.c.l.b16 %v4898
      %v5039 = vpack.c.b16 %v4976, %v4975
      %v5040 = vpack.c.b16 %v4978, %v4977
      %v5041 = vpack.c.b16 %v4980, %v4979
      %v5042 = vpack.c.b16 %v4982, %v4981
      %v5043 = vpack.c.b16 %v4984, %v4983
      %v5044 = vpack.c.b16 %v4986, %v4985
      %v5045 = vpack.c.b16 %v4988, %v4987
      %v5046 = vpack.c.b16 %v4990, %v4989
      %v5047 = vpack.c.b16 %v4992, %v4991
      %v5048 = vpack.c.b16 %v4994, %v4993
      %v5049 = vpack.c.b16 %v4996, %v4995
      %v5050 = vpack.c.b16 %v4998, %v4997
      %v5051 = vpack.c.b16 %v5000, %v4999
      %v5052 = vpack.c.b16 %v5002, %v5001
      %v5053 = vpack.c.b16 %v5004, %v5003
      %v5054 = vpack.c.b16 %v5006, %v5005
      %v5055 = vpack.c.b16 %v5008, %v5007
      %v5056 = vpack.c.b16 %v5010, %v5009
      %v5057 = vpack.c.b16 %v5012, %v5011
      %v5058 = vpack.c.b16 %v5014, %v5013
      %v5059 = vpack.c.b16 %v5016, %v5015
      %v5060 = vpack.c.b16 %v5018, %v5017
      %v5061 = vpack.c.b16 %v5020, %v5019
      %v5062 = vpack.c.b16 %v5022, %v5021
      %v5063 = vpack.c.b16 %v5024, %v5023
      %v5064 = vpack.c.b16 %v5026, %v5025
      %v5065 = vpack.c.b16 %v5028, %v5027
      %v5066 = vpack.c.b16 %v5030, %v5029
      %v5067 = vpack.c.b16 %v5032, %v5031
      %v5068 = vpack.c.b16 %v5034, %v5033
      %v5069 = vpack.c.b16 %v5036, %v5035
      %v5070 = vpack.c.b16 %v5038, %v5037
      %5103 = vmatprep.subr.bf16.mxu0 0
      %5104 = vmatpush1.bf16.msra.mxu0 %v5039
      %5105 = vmatprep.subr.bf16.mxu0 0
      %5106 = vmatpush1.bf16.msra.mxu0 %v5040
      %5107 = vmatprep.subr.bf16.mxu0 0
      %5108 = vmatpush1.bf16.msra.mxu0 %v5041
      %5109 = vmatprep.subr.bf16.mxu0 0
      %5110 = vmatpush1.bf16.msra.mxu0 %v5042
      %5111 = vmatprep.subr.bf16.mxu0 0
      %5112 = vmatpush1.bf16.msra.mxu0 %v5043
      %5113 = vmatprep.subr.bf16.mxu0 0
      %5114 = vmatpush1.bf16.msra.mxu0 %v5044
      %5115 = vmatprep.subr.bf16.mxu0 0
      %5116 = vmatpush1.bf16.msra.mxu0 %v5045
      %5117 = vmatprep.subr.bf16.mxu0 0
      %5118 = vmatpush1.bf16.msra.mxu0 %v5046
      %5119 = vmatprep.subr.bf16.mxu0 0
      %5120 = vmatpush1.bf16.msra.mxu0 %v5047
      %5121 = vmatprep.subr.bf16.mxu0 0
      %5122 = vmatpush1.bf16.msra.mxu0 %v5048
      %5123 = vmatprep.subr.bf16.mxu0 0
      %5124 = vmatpush1.bf16.msra.mxu0 %v5049
      %5125 = vmatprep.subr.bf16.mxu0 0
      %5126 = vmatpush1.bf16.msra.mxu0 %v5050
      %5127 = vmatprep.subr.bf16.mxu0 0
      %5128 = vmatpush1.bf16.msra.mxu0 %v5051
      %5129 = vmatprep.subr.bf16.mxu0 0
      %5130 = vmatpush1.bf16.msra.mxu0 %v5052
      %5131 = vmatprep.subr.bf16.mxu0 0
      %5132 = vmatpush1.bf16.msra.mxu0 %v5053
      %5133 = vmatprep.subr.bf16.mxu0 0
      %5134 = vmatpush1.bf16.msra.mxu0 %v5054
      %5135 = vmatprep.mubr.bf16.mxu0 %v4900
      %5136 = vmatmul.mubr.bf16.gmra.mrb[0].mxu0 %v4899
      %v5137 = vpop.f32.mrb[0].mxu0
      %v5138 = vadd.f32 %v4909, %v5137
      %v5139 = vpop.f32.mrb[0].mxu0
      %v5140 = vpop.f32.mrb[0].mxu0
      %v5141 = vpop.f32.mrb[0].mxu0
      %5142 = vdwg.mxu0
      %5143 = vmatprep.subr.bf16.mxu0 0
      %5144 = vmatpush1.bf16.msra.mxu0 %v5055
      %5145 = vmatprep.subr.bf16.mxu0 0
      %5146 = vmatpush1.bf16.msra.mxu0 %v5056
      %5147 = vmatprep.subr.bf16.mxu0 0
      %5148 = vmatpush1.bf16.msra.mxu0 %v5057
      %5149 = vmatprep.subr.bf16.mxu0 0
      %5150 = vmatpush1.bf16.msra.mxu0 %v5058
      %5151 = vmatprep.subr.bf16.mxu0 0
      %5152 = vmatpush1.bf16.msra.mxu0 %v5059
      %5153 = vmatprep.subr.bf16.mxu0 0
      %5154 = vmatpush1.bf16.msra.mxu0 %v5060
      %5155 = vmatprep.subr.bf16.mxu0 0
      %5156 = vmatpush1.bf16.msra.mxu0 %v5061
      %5157 = vmatprep.subr.bf16.mxu0 0
      %5158 = vmatpush1.bf16.msra.mxu0 %v5062
      %5159 = vmatprep.subr.bf16.mxu0 0
      %5160 = vmatpush1.bf16.msra.mxu0 %v5063
      %5161 = vmatprep.subr.bf16.mxu0 0
      %5162 = vmatpush1.bf16.msra.mxu0 %v5064
      %5163 = vmatprep.subr.bf16.mxu0 0
      %5164 = vmatpush1.bf16.msra.mxu0 %v5065
      %5165 = vmatprep.subr.bf16.mxu0 0
      %5166 = vmatpush1.bf16.msra.mxu0 %v5066
      %5167 = vmatprep.subr.bf16.mxu0 0
      %5168 = vmatpush1.bf16.msra.mxu0 %v5067
      %5169 = vmatprep.subr.bf16.mxu0 0
      %5170 = vmatpush1.bf16.msra.mxu0 %v5068
      %5171 = vmatprep.subr.bf16.mxu0 0
      %5172 = vmatpush1.bf16.msra.mxu0 %v5069
      %5173 = vmatprep.subr.bf16.mxu0 0
      %5174 = vmatpush1.bf16.msra.mxu0 %v5070
      %5175 = vmatprep.mubr.bf16.mxu0 %v4902
      %5176 = vmatmul.mubr.bf16.gmra.mrb[0].mxu0 %v4901
      %v5177 = vpop.f32.mrb[0].mxu0
      %v5178 = vadd.f32 %v5138, %v5177
      %v5179 = vpop.f32.mrb[0].mxu0
      %v5180 = vpop.f32.mrb[0].mxu0
      %v5181 = vpop.f32.mrb[0].mxu0
      %5182 = vdwg.mxu0
      %v5183 = vmul.f32 %v5178, %v5178
      %v5184 = vmul.f32 %v5178, %v5183
      %v5185 = vmul.f32 %v5184, 0.044715
      %v5186 = vadd.f32 %v5178, %v5185
      %v5187 = vmul.f32 %v5186, 0.7978846
      %v5188 = vtanh.pop %v5187
      %v5189 = vadd.f32 %v5188, 1.0
      %v5190 = vmul.f32 %v5189, 0.5
      %v5191 = vmul.f32 %v5178, %v5190
      %v5192 = vadd.f32 %v5191, %v4469
      %s5193 = scalar_lea.vmem %s9, 3
      %v5194 = vld [vmem:[%s5193] sm:$0x1]
      %s5195 = scalar_lea.vmem %s10, 3
      %v5196 = vld [vmem:[%s5195] sm:$0x1]
      %5197 = vadd.xlane.f32.xlu0 %v5192
      %v5198 = vpop.xlane.xlu0 %5197
      %v5199 = vmul.f32 %v5198, %v1128
      %v5200 = vsub.f32 %v5192, %v5199
      %v5201 = vmul.f32 %v5200, %v5200
      %5202 = vadd.xlane.f32.xlu0 %v5201
      %v5203 = vpop.xlane.xlu0 %5202
      %v5204 = vmul.f32 %v5203, %v1128
      %v5205 = vadd.f32 %v5204, 1e-06
      %v5206 = vrsqrt.pop %v5205
      %v5207 = vmul.f32 %v5200, %v5206
      %v5209 = vlaneseq
      %v5210 = vshrl.u32 %v5209, 7
      %v5211 = vsub.s32 0, %v5210
      %v5212 = vrot.slane %v5194, %v5211
      %v5214 = vmul.f32 %v5207, %v5212
      %v5216 = vlaneseq
      %v5217 = vshrl.u32 %v5216, 7
      %v5218 = vsub.s32 0, %v5217
      %v5219 = vrot.slane %v5196, %v5218
      %v5221 = vadd.f32 %v5214, %v5219
      %s5222 = scalar_lea.vmem %s11, 576
      %v5223 = vld [vmem:[%s5222] sm:$0xff]
      %v5224 = vld [vmem:[%s5222 + $0x8] sm:$0xf]
      %v5225 = vld [vmem:[%s5222 + $0xc] sm:$0xff]
      %v5226 = vld [vmem:[%s5222 + $0x14] sm:$0xf]
      %v5227 = vld [vmem:[%s5222 + $0x18] sm:$0xff]
      %v5228 = vld [vmem:[%s5222 + $0x20] sm:$0xf]
      %v5229 = vld [vmem:[%s5222 + $0x24] sm:$0xff]
      %v5230 = vld [vmem:[%s5222 + $0x2c] sm:$0xf]
      %v5231 = vld [vmem:[%s5222 + $0x30] sm:$0xff]
      %v5232 = vld [vmem:[%s5222 + $0x38] sm:$0xf]
      %v5233 = vld [vmem:[%s5222 + $0x3c] sm:$0xff]
      %v5234 = vld [vmem:[%s5222 + $0x44] sm:$0xf]
      %v5235 = vld [vmem:[%s5222 + $0x48] sm:$0xff]
      %v5236 = vld [vmem:[%s5222 + $0x50] sm:$0xf]
      %v5237 = vld [vmem:[%s5222 + $0x54] sm:$0xff]
      %v5238 = vld [vmem:[%s5222 + $0x5c] sm:$0xf]
      %v5239 = vld [vmem:[%s5222 + $0x60] sm:$0xff]
      %v5240 = vld [vmem:[%s5222 + $0x68] sm:$0xf]
      %v5241 = vld [vmem:[%s5222 + $0x6c] sm:$0xff]
      %v5242 = vld [vmem:[%s5222 + $0x74] sm:$0xf]
      %v5243 = vld [vmem:[%s5222 + $0x78] sm:$0xff]
      %v5244 = vld [vmem:[%s5222 + $0x80] sm:$0xf]
      %v5245 = vld [vmem:[%s5222 + $0x84] sm:$0xff]
      %v5246 = vld [vmem:[%s5222 + $0x8c] sm:$0xf]
      %v5247 = vld [vmem:[%s5222 + $0x90] sm:$0xff]
      %v5248 = vld [vmem:[%s5222 + $0x98] sm:$0xf]
      %v5249 = vld [vmem:[%s5222 + $0x9c] sm:$0xff]
      %v5250 = vld [vmem:[%s5222 + $0xa4] sm:$0xf]
      %v5251 = vld [vmem:[%s5222 + $0xa8] sm:$0xff]
      %v5252 = vld [vmem:[%s5222 + $0xb0] sm:$0xf]
      %v5253 = vld [vmem:[%s5222 + $0xb4] sm:$0xff]
      %v5254 = vld [vmem:[%s5222 + $0xbc] sm:$0xf]
      %v5255 = vpack.c.bf16 %v5221, %v5221
      %s5256 = scalar_lea.vmem %s12, 9
      %v5257 = vld [vmem:[%s5256] sm:$0x7]
      %v5259 = vlaneseq
      %v5260 = vshrl.u32 %v5259, 7
      %v5261 = vsub.s32 0, %v5260
      %v5262 = vrot.slane %v5257, %v5261
      %v5263 = vlaneseq
      %v5264 = vshrl.u32 %v5263, 7
      %v5265 = vsub.s32 1, %v5264
      %v5266 = vrot.slane %v5257, %v5265
      %v5267 = vlaneseq
      %v5268 = vshrl.u32 %v5267, 7
      %v5269 = vsub.s32 2, %v5268
      %v5270 = vrot.slane %v5257, %v5269
      %v5306 = vunpack.c.l.b16 %v5223
      %v5307 = vunpack.c.h.b16 %v5223
      %v5308 = vunpack.c.l.b16 %v5224
      %v5309 = vunpack.c.l.b16 %v5225
      %v5310 = vunpack.c.h.b16 %v5225
      %v5311 = vunpack.c.l.b16 %v5226
      %v5312 = vunpack.c.l.b16 %v5227
      %v5313 = vunpack.c.h.b16 %v5227
      %v5314 = vunpack.c.l.b16 %v5228
      %v5315 = vunpack.c.l.b16 %v5229
      %v5316 = vunpack.c.h.b16 %v5229
      %v5317 = vunpack.c.l.b16 %v5230
      %v5318 = vunpack.c.l.b16 %v5231
      %v5319 = vunpack.c.h.b16 %v5231
      %v5320 = vunpack.c.l.b16 %v5232
      %v5321 = vunpack.c.l.b16 %v5233
      %v5322 = vunpack.c.h.b16 %v5233
      %v5323 = vunpack.c.l.b16 %v5234
      %v5324 = vunpack.c.l.b16 %v5235
      %v5325 = vunpack.c.h.b16 %v5235
      %v5326 = vunpack.c.l.b16 %v5236
      %v5327 = vunpack.c.l.b16 %v5237
      %v5328 = vunpack.c.h.b16 %v5237
      %v5329 = vunpack.c.l.b16 %v5238
      %v5330 = vunpack.c.l.b16 %v5239
      %v5331 = vunpack.c.h.b16 %v5239
      %v5332 = vunpack.c.l.b16 %v5240
      %v5333 = vunpack.c.l.b16 %v5241
      %v5334 = vunpack.c.h.b16 %v5241
      %v5335 = vunpack.c.l.b16 %v5242
      %v5336 = vunpack.c.l.b16 %v5243
      %v5337 = vunpack.c.h.b16 %v5243
      %v5338 = vunpack.c.l.b16 %v5244
      %v5339 = vunpack.c.l.b16 %v5245
      %v5340 = vunpack.c.h.b16 %v5245
      %v5341 = vunpack.c.l.b16 %v5246
      %v5342 = vunpack.c.l.b16 %v5247
      %v5343 = vunpack.c.h.b16 %v5247
      %v5344 = vunpack.c.l.b16 %v5248
      %v5345 = vunpack.c.l.b16 %v5249
      %v5346 = vunpack.c.h.b16 %v5249
      %v5347 = vunpack.c.l.b16 %v5250
      %v5348 = vunpack.c.l.b16 %v5251
      %v5349 = vunpack.c.h.b16 %v5251
      %v5350 = vunpack.c.l.b16 %v5252
      %v5351 = vunpack.c.l.b16 %v5253
      %v5352 = vunpack.c.h.b16 %v5253
      %v5353 = vunpack.c.l.b16 %v5254
      %v5354 = vpack.c.b16 %v5309, %v5306
      %v5355 = vpack.c.b16 %v5310, %v5307
      %v5356 = vpack.c.b16 %v5311, %v5308
      %v5357 = vpack.c.b16 %v5315, %v5312
      %v5358 = vpack.c.b16 %v5316, %v5313
      %v5359 = vpack.c.b16 %v5317, %v5314
      %v5360 = vpack.c.b16 %v5321, %v5318
      %v5361 = vpack.c.b16 %v5322, %v5319
      %v5362 = vpack.c.b16 %v5323, %v5320
      %v5363 = vpack.c.b16 %v5327, %v5324
      %v5364 = vpack.c.b16 %v5328, %v5325
      %v5365 = vpack.c.b16 %v5329, %v5326
      %v5366 = vpack.c.b16 %v5333, %v5330
      %v5367 = vpack.c.b16 %v5334, %v5331
      %v5368 = vpack.c.b16 %v5335, %v5332
      %v5369 = vpack.c.b16 %v5339, %v5336
      %v5370 = vpack.c.b16 %v5340, %v5337
      %v5371 = vpack.c.b16 %v5341, %v5338
      %v5372 = vpack.c.b16 %v5345, %v5342
      %v5373 = vpack.c.b16 %v5346, %v5343
      %v5374 = vpack.c.b16 %v5347, %v5344
      %v5375 = vpack.c.b16 %v5351, %v5348
      %v5376 = vpack.c.b16 %v5352, %v5349
      %v5377 = vpack.c.b16 %v5353, %v5350
      %5402 = vmatprep.subr.bf16.mxu0 %v5355
      %5403 = vmatpush1.bf16.msra.mxu0 %v5354
      %5404 = vmatprep.subr.bf16.mxu0 %v5358
      %5405 = vmatpush1.bf16.msra.mxu0 %v5357
      %5406 = vmatprep.subr.bf16.mxu0 %v5361
      %5407 = vmatpush1.bf16.msra.mxu0 %v5360
      %5408 = vmatprep.subr.bf16.mxu0 %v5364
      %5409 = vmatpush1.bf16.msra.mxu0 %v5363
      %5410 = vmatprep.subr.bf16.mxu0 %v5367
      %5411 = vmatpush1.bf16.msra.mxu0 %v5366
      %5412 = vmatprep.subr.bf16.mxu0 %v5370
      %5413 = vmatpush1.bf16.msra.mxu0 %v5369
      %5414 = vmatprep.subr.bf16.mxu0 %v5373
      %5415 = vmatpush1.bf16.msra.mxu0 %v5372
      %5416 = vmatprep.subr.bf16.mxu0 %v5376
      %5417 = vmatpush1.bf16.msra.mxu0 %v5375
      %5418 = vmatprep.subr.bf16.mxu0 0
      %5419 = vmatpush1.bf16.msra.mxu0 0
      %5420 = vmatprep.subr.bf16.mxu0 0
      %5421 = vmatpush1.bf16.msra.mxu0 0
      %5422 = vmatprep.subr.bf16.mxu0 0
      %5423 = vmatpush1.bf16.msra.mxu0 0
      %5424 = vmatprep.subr.bf16.mxu0 0
      %5425 = vmatpush1.bf16.msra.mxu0 0
      %5426 = vmatprep.subr.bf16.mxu0 0
      %5427 = vmatpush1.bf16.msra.mxu0 0
      %5428 = vmatprep.subr.bf16.mxu0 0
      %5429 = vmatpush1.bf16.msra.mxu0 0
      %5430 = vmatprep.subr.bf16.mxu0 0
      %5431 = vmatpush1.bf16.msra.mxu0 0
      %5432 = vmatprep.subr.bf16.mxu0 0
      %5433 = vmatpush1.bf16.msra.mxu0 0
      %5434 = vmatprep.mubr.bf16.mxu0 0
      %5435 = vmatmul.mubr.bf16.gmra.mrb[0].mxu0 %v5255
      %v5436 = vpop.f32.mrb[0].mxu0
      %v5437 = vadd.f32 %v5262, %v5436
      %v5438 = vpop.f32.mrb[0].mxu0
      %v5439 = vadd.f32 %v5266, %v5438
      %v5440 = vpop.f32.mrb[0].mxu0
      %v5441 = vpop.f32.mrb[0].mxu0
      %5442 = vdwg.mxu0
      %5443 = vmatprep.subr.bf16.mxu0 0
      %5444 = vmatpush1.bf16.msra.mxu0 %v5356
      %5445 = vmatprep.subr.bf16.mxu0 0
      %5446 = vmatpush1.bf16.msra.mxu0 %v5359
      %5447 = vmatprep.subr.bf16.mxu0 0
      %5448 = vmatpush1.bf16.msra.mxu0 %v5362
      %5449 = vmatprep.subr.bf16.mxu0 0
      %5450 = vmatpush1.bf16.msra.mxu0 %v5365
      %5451 = vmatprep.subr.bf16.mxu0 0
      %5452 = vmatpush1.bf16.msra.mxu0 %v5368
      %5453 = vmatprep.subr.bf16.mxu0 0
      %5454 = vmatpush1.bf16.msra.mxu0 %v5371
      %5455 = vmatprep.subr.bf16.mxu0 0
      %5456 = vmatpush1.bf16.msra.mxu0 %v5374
      %5457 = vmatprep.subr.bf16.mxu0 0
      %5458 = vmatpush1.bf16.msra.mxu0 %v5377
      %5459 = vmatprep.subr.bf16.mxu0 0
      %5460 = vmatpush1.bf16.msra.mxu0 0
      %5461 = vmatprep.subr.bf16.mxu0 0
      %5462 = vmatpush1.bf16.msra.mxu0 0
      %5463 = vmatprep.subr.bf16.mxu0 0
      %5464 = vmatpush1.bf16.msra.mxu0 0
      %5465 = vmatprep.subr.bf16.mxu0 0
      %5466 = vmatpush1.bf16.msra.mxu0 0
      %5467 = vmatprep.subr.bf16.mxu0 0
      %5468 = vmatpush1.bf16.msra.mxu0 0
      %5469 = vmatprep.subr.bf16.mxu0 0
      %5470 = vmatpush1.bf16.msra.mxu0 0
      %5471 = vmatprep.subr.bf16.mxu0 0
      %5472 = vmatpush1.bf16.msra.mxu0 0
      %5473 = vmatprep.subr.bf16.mxu0 0
      %5474 = vmatpush1.bf16.msra.mxu0 0
      %5475 = vmatprep.mubr.bf16.mxu0 0
      %5476 = vmatmul.mubr.bf16.gmra.mrb[0].mxu0 %v5255
      %v5477 = vpop.f32.mrb[0].mxu0
      %v5478 = vadd.f32 %v5270, %v5477
      %v5479 = vpop.f32.mrb[0].mxu0
      %v5480 = vpop.f32.mrb[0].mxu0
      %v5481 = vpop.f32.mrb[0].mxu0
      %5482 = vdwg.mxu0
      %v5483 = vpack.c.bf16 %v5437, %v5437
      %v5484 = vpack.c.bf16 %v5439, %v5439
      %v5486 = vsel %vm1413, %v5483, 0
      %v5489 = vsel %vm1413, %v5484, 0
      %5491 = vmatprep.subr.bf16.mxu0 0
      %5492 = vmatpush1.bf16.xpose.msra.mxu0 %v5489
      %5493 = vmatprep.subr.bf16.mxu0 0
      %5494 = vmatpush1.bf16.xpose.msra.mxu0 0
      %5495 = vmatprep.subr.bf16.mxu0 0
      %5496 = vmatpush1.bf16.xpose.msra.mxu0 0
      %5497 = vmatprep.subr.bf16.mxu0 0
      %5498 = vmatpush1.bf16.xpose.msra.mxu0 0
      %5499 = vmatprep.subr.bf16.mxu0 0
      %5500 = vmatpush1.bf16.xpose.msra.mxu0 0
      %5501 = vmatprep.subr.bf16.mxu0 0
      %5502 = vmatpush1.bf16.xpose.msra.mxu0 0
      %5503 = vmatprep.subr.bf16.mxu0 0
      %5504 = vmatpush1.bf16.xpose.msra.mxu0 0
      %5505 = vmatprep.subr.bf16.mxu0 0
      %5506 = vmatpush1.bf16.xpose.msra.mxu0 0
      %5507 = vmatprep.subr.bf16.mxu0 0
      %5508 = vmatpush1.bf16.xpose.msra.mxu0 0
      %5509 = vmatprep.subr.bf16.mxu0 0
      %5510 = vmatpush1.bf16.xpose.msra.mxu0 0
      %5511 = vmatprep.subr.bf16.mxu0 0
      %5512 = vmatpush1.bf16.xpose.msra.mxu0 0
      %5513 = vmatprep.subr.bf16.mxu0 0
      %5514 = vmatpush1.bf16.xpose.msra.mxu0 0
      %5515 = vmatprep.subr.bf16.mxu0 0
      %5516 = vmatpush1.bf16.xpose.msra.mxu0 0
      %5517 = vmatprep.subr.bf16.mxu0 0
      %5518 = vmatpush1.bf16.xpose.msra.mxu0 0
      %5519 = vmatprep.subr.bf16.mxu0 0
      %5520 = vmatpush1.bf16.xpose.msra.mxu0 0
      %5521 = vmatprep.subr.bf16.mxu0 0
      %5522 = vmatpush1.bf16.xpose.msra.mxu0 0
      %5523 = vmatprep.mubr.bf16.mxu0 0
      %5524 = vmatmul.mubr.bf16.gmra.mrb[0].mxu0 %v5486
      %v5525 = vpop.f32.mrb[0].mxu0
      %v5526 = vadd.f32 0.0, %v5525
      %v5527 = vpop.f32.mrb[0].mxu0
      %v5528 = vpop.f32.mrb[0].mxu0
      %v5529 = vpop.f32.mrb[0].mxu0
      %5530 = vdwg.mxu0
      %v5531 = vmul.f32 %v5526, 0.125
      %v5532 = vadd.f32 %v5531, %v1465
      %v5533 = vsel %vm1468, %v5532, -inf
      %5534 = vmax.xlane.f32.xlu0 %v5533
      %v5535 = vpop.xlane.xlu0 %5534
      %v5536 = vsub.f32 %v5532, %v5535
      %v5537 = vmul.f32 %v5536, 1.442695
      %v5538 = vpow.pop %v5537
      %v5539 = vsel %vm1468, %v5538, 0.0
      %5540 = vadd.xlane.f32.xlu0 %v5539
      %v5541 = vpop.xlane.xlu0 %5540
      %v5542 = vrcp.pop %v5541
      %v5543 = vmul.f32 %v5538, %v5542
      %v5544 = vpack.c.bf16 %v5478, %v5478
      %v5545 = vpack.c.bf16 %v5543, %v5543
      %v5547 = vsel %vm1468, %v5545, 0
      %v5550 = vsel %vm1485, %v5544, 0
      %5552 = vmatprep.subr.bf16.mxu0 0
      %5553 = vmatpush1.bf16.msra.mxu0 %v5550
      %5554 = vmatprep.subr.bf16.mxu0 0
      %5555 = vmatpush1.bf16.msra.mxu0 0
      %5556 = vmatprep.subr.bf16.mxu0 0
      %5557 = vmatpush1.bf16.msra.mxu0 0
      %5558 = vmatprep.subr.bf16.mxu0 0
      %5559 = vmatpush1.bf16.msra.mxu0 0
      %5560 = vmatprep.subr.bf16.mxu0 0
      %5561 = vmatpush1.bf16.msra.mxu0 0
      %5562 = vmatprep.subr.bf16.mxu0 0
      %5563 = vmatpush1.bf16.msra.mxu0 0
      %5564 = vmatprep.subr.bf16.mxu0 0
      %5565 = vmatpush1.bf16.msra.mxu0 0
      %5566 = vmatprep.subr.bf16.mxu0 0
      %5567 = vmatpush1.bf16.msra.mxu0 0
      %5568 = vmatprep.subr.bf16.mxu0 0
      %5569 = vmatpush1.bf16.msra.mxu0 0
      %5570 = vmatprep.subr.bf16.mxu0 0
      %5571 = vmatpush1.bf16.msra.mxu0 0
      %5572 = vmatprep.subr.bf16.mxu0 0
      %5573 = vmatpush1.bf16.msra.mxu0 0
      %5574 = vmatprep.subr.bf16.mxu0 0
      %5575 = vmatpush1.bf16.msra.mxu0 0
      %5576 = vmatprep.subr.bf16.mxu0 0
      %5577 = vmatpush1.bf16.msra.mxu0 0
      %5578 = vmatprep.subr.bf16.mxu0 0
      %5579 = vmatpush1.bf16.msra.mxu0 0
      %5580 = vmatprep.subr.bf16.mxu0 0
      %5581 = vmatpush1.bf16.msra.mxu0 0
      %5582 = vmatprep.subr.bf16.mxu0 0
      %5583 = vmatpush1.bf16.msra.mxu0 0
      %5584 = vmatprep.mubr.bf16.mxu0 0
      %5585 = vmatmul.mubr.bf16.gmra.mrb[0].mxu0 %v5547
      %v5586 = vpop.f32.mrb[0].mxu0
      %v5587 = vadd.f32 0.0, %v5586
      %v5588 = vpop.f32.mrb[0].mxu0
      %v5589 = vpop.f32.mrb[0].mxu0
      %v5590 = vpop.f32.mrb[0].mxu0
      %5591 = vdwg.mxu0
      %5593 = vrot.lane.b32.xlu0 %v5483, 64
      %v5594 = vpop.permute.xlu0 %5593
      %5596 = vrot.lane.b32.xlu0 %v5484, 64
      %v5597 = vpop.permute.xlu0 %5596
      %v5599 = vsel %vm1413, %v5594, 0
      %v5602 = vsel %vm1413, %v5597, 0
      %5604 = vmatprep.subr.bf16.mxu0 0
      %5605 = vmatpush1.bf16.xpose.msra.mxu0 %v5602
      %5606 = vmatprep.subr.bf16.mxu0 0
      %5607 = vmatpush1.bf16.xpose.msra.mxu0 0
      %5608 = vmatprep.subr.bf16.mxu0 0
      %5609 = vmatpush1.bf16.xpose.msra.mxu0 0
      %5610 = vmatprep.subr.bf16.mxu0 0
      %5611 = vmatpush1.bf16.xpose.msra.mxu0 0
      %5612 = vmatprep.subr.bf16.mxu0 0
      %5613 = vmatpush1.bf16.xpose.msra.mxu0 0
      %5614 = vmatprep.subr.bf16.mxu0 0
      %5615 = vmatpush1.bf16.xpose.msra.mxu0 0
      %5616 = vmatprep.subr.bf16.mxu0 0
      %5617 = vmatpush1.bf16.xpose.msra.mxu0 0
      %5618 = vmatprep.subr.bf16.mxu0 0
      %5619 = vmatpush1.bf16.xpose.msra.mxu0 0
      %5620 = vmatprep.subr.bf16.mxu0 0
      %5621 = vmatpush1.bf16.xpose.msra.mxu0 0
      %5622 = vmatprep.subr.bf16.mxu0 0
      %5623 = vmatpush1.bf16.xpose.msra.mxu0 0
      %5624 = vmatprep.subr.bf16.mxu0 0
      %5625 = vmatpush1.bf16.xpose.msra.mxu0 0
      %5626 = vmatprep.subr.bf16.mxu0 0
      %5627 = vmatpush1.bf16.xpose.msra.mxu0 0
      %5628 = vmatprep.subr.bf16.mxu0 0
      %5629 = vmatpush1.bf16.xpose.msra.mxu0 0
      %5630 = vmatprep.subr.bf16.mxu0 0
      %5631 = vmatpush1.bf16.xpose.msra.mxu0 0
      %5632 = vmatprep.subr.bf16.mxu0 0
      %5633 = vmatpush1.bf16.xpose.msra.mxu0 0
      %5634 = vmatprep.subr.bf16.mxu0 0
      %5635 = vmatpush1.bf16.xpose.msra.mxu0 0
      %5636 = vmatprep.mubr.bf16.mxu0 0
      %5637 = vmatmul.mubr.bf16.gmra.mrb[0].mxu0 %v5599
      %v5638 = vpop.f32.mrb[0].mxu0
      %v5639 = vadd.f32 0.0, %v5638
      %v5640 = vpop.f32.mrb[0].mxu0
      %v5641 = vpop.f32.mrb[0].mxu0
      %v5642 = vpop.f32.mrb[0].mxu0
      %5643 = vdwg.mxu0
      %v5644 = vmul.f32 %v5639, 0.125
      %v5645 = vadd.f32 %v5644, %v1465
      %v5646 = vsel %vm1468, %v5645, -inf
      %5647 = vmax.xlane.f32.xlu0 %v5646
      %v5648 = vpop.xlane.xlu0 %5647
      %v5649 = vsub.f32 %v5645, %v5648
      %v5650 = vmul.f32 %v5649, 1.442695
      %v5651 = vpow.pop %v5650
      %v5652 = vsel %vm1468, %v5651, 0.0
      %5653 = vadd.xlane.f32.xlu0 %v5652
      %v5654 = vpop.xlane.xlu0 %5653
      %v5655 = vrcp.pop %v5654
      %v5656 = vmul.f32 %v5651, %v5655
      %v5657 = vpack.c.bf16 %v5656, %v5656
      %5659 = vrot.lane.b32.xlu0 %v5544, 64
      %v5660 = vpop.permute.xlu0 %5659
      %v5662 = vsel %vm1468, %v5657, 0
      %v5665 = vsel %vm1485, %v5660, 0
      %5667 = vmatprep.subr.bf16.mxu0 0
      %5668 = vmatpush1.bf16.msra.mxu0 %v5665
      %5669 = vmatprep.subr.bf16.mxu0 0
      %5670 = vmatpush1.bf16.msra.mxu0 0
      %5671 = vmatprep.subr.bf16.mxu0 0
      %5672 = vmatpush1.bf16.msra.mxu0 0
      %5673 = vmatprep.subr.bf16.mxu0 0
      %5674 = vmatpush1.bf16.msra.mxu0 0
      %5675 = vmatprep.subr.bf16.mxu0 0
      %5676 = vmatpush1.bf16.msra.mxu0 0
      %5677 = vmatprep.subr.bf16.mxu0 0
      %5678 = vmatpush1.bf16.msra.mxu0 0
      %5679 = vmatprep.subr.bf16.mxu0 0
      %5680 = vmatpush1.bf16.msra.mxu0 0
      %5681 = vmatprep.subr.bf16.mxu0 0
      %5682 = vmatpush1.bf16.msra.mxu0 0
      %5683 = vmatprep.subr.bf16.mxu0 0
      %5684 = vmatpush1.bf16.msra.mxu0 0
      %5685 = vmatprep.subr.bf16.mxu0 0
      %5686 = vmatpush1.bf16.msra.mxu0 0
      %5687 = vmatprep.subr.bf16.mxu0 0
      %5688 = vmatpush1.bf16.msra.mxu0 0
      %5689 = vmatprep.subr.bf16.mxu0 0
      %5690 = vmatpush1.bf16.msra.mxu0 0
      %5691 = vmatprep.subr.bf16.mxu0 0
      %5692 = vmatpush1.bf16.msra.mxu0 0
      %5693 = vmatprep.subr.bf16.mxu0 0
      %5694 = vmatpush1.bf16.msra.mxu0 0
      %5695 = vmatprep.subr.bf16.mxu0 0
      %5696 = vmatpush1.bf16.msra.mxu0 0
      %5697 = vmatprep.subr.bf16.mxu0 0
      %5698 = vmatpush1.bf16.msra.mxu0 0
      %5699 = vmatprep.mubr.bf16.mxu0 0
      %5700 = vmatmul.mubr.bf16.gmra.mrb[0].mxu0 %v5662
      %v5701 = vpop.f32.mrb[0].mxu0
      %v5702 = vadd.f32 0.0, %v5701
      %v5703 = vpop.f32.mrb[0].mxu0
      %v5704 = vpop.f32.mrb[0].mxu0
      %v5705 = vpop.f32.mrb[0].mxu0
      %5706 = vdwg.mxu0
      %5708 = vrot.lane.b32.xlu0 %v5702, 64
      %v5709 = vpop.permute.xlu0 %5708
      %v5711 = vsel %vm1413, %v5587, %v5709
      %s5712 = scalar_lea.vmem %s13, 192
      %v5713 = vld [vmem:[%s5712] sm:$0xf]
      %v5714 = vld [vmem:[%s5712 + $0x4] sm:$0xf]
      %v5715 = vld [vmem:[%s5712 + $0x8] sm:$0xf]
      %v5716 = vld [vmem:[%s5712 + $0xc] sm:$0xf]
      %v5717 = vld [vmem:[%s5712 + $0x10] sm:$0xf]
      %v5718 = vld [vmem:[%s5712 + $0x14] sm:$0xf]
      %v5719 = vld [vmem:[%s5712 + $0x18] sm:$0xf]
      %v5720 = vld [vmem:[%s5712 + $0x1c] sm:$0xf]
      %v5721 = vld [vmem:[%s5712 + $0x20] sm:$0xf]
      %v5722 = vld [vmem:[%s5712 + $0x24] sm:$0xf]
      %v5723 = vld [vmem:[%s5712 + $0x28] sm:$0xf]
      %v5724 = vld [vmem:[%s5712 + $0x2c] sm:$0xf]
      %v5725 = vld [vmem:[%s5712 + $0x30] sm:$0xf]
      %v5726 = vld [vmem:[%s5712 + $0x34] sm:$0xf]
      %v5727 = vld [vmem:[%s5712 + $0x38] sm:$0xf]
      %v5728 = vld [vmem:[%s5712 + $0x3c] sm:$0xf]
      %v5729 = vpack.c.bf16 %v5711, %v5711
      %s5730 = scalar_lea.vmem %s14, 3
      %v5731 = vld [vmem:[%s5730] sm:$0x1]
      %v5733 = vlaneseq
      %v5734 = vshrl.u32 %v5733, 7
      %v5735 = vsub.s32 0, %v5734
      %v5736 = vrot.slane %v5731, %v5735
      %v5754 = vunpack.c.l.b16 %v5713
      %v5755 = vunpack.c.l.b16 %v5714
      %v5756 = vunpack.c.l.b16 %v5715
      %v5757 = vunpack.c.l.b16 %v5716
      %v5758 = vunpack.c.l.b16 %v5717
      %v5759 = vunpack.c.l.b16 %v5718
      %v5760 = vunpack.c.l.b16 %v5719
      %v5761 = vunpack.c.l.b16 %v5720
      %v5762 = vunpack.c.l.b16 %v5721
      %v5763 = vunpack.c.l.b16 %v5722
      %v5764 = vunpack.c.l.b16 %v5723
      %v5765 = vunpack.c.l.b16 %v5724
      %v5766 = vunpack.c.l.b16 %v5725
      %v5767 = vunpack.c.l.b16 %v5726
      %v5768 = vunpack.c.l.b16 %v5727
      %v5769 = vunpack.c.l.b16 %v5728
      %v5770 = vpack.c.b16 %v5755, %v5754
      %v5771 = vpack.c.b16 %v5757, %v5756
      %v5772 = vpack.c.b16 %v5759, %v5758
      %v5773 = vpack.c.b16 %v5761, %v5760
      %v5774 = vpack.c.b16 %v5763, %v5762
      %v5775 = vpack.c.b16 %v5765, %v5764
      %v5776 = vpack.c.b16 %v5767, %v5766
      %v5777 = vpack.c.b16 %v5769, %v5768
      %5786 = vmatprep.subr.bf16.mxu0 0
      %5787 = vmatpush1.bf16.msra.mxu0 %v5770
      %5788 = vmatprep.subr.bf16.mxu0 0
      %5789 = vmatpush1.bf16.msra.mxu0 %v5771
      %5790 = vmatprep.subr.bf16.mxu0 0
      %5791 = vmatpush1.bf16.msra.mxu0 %v5772
      %5792 = vmatprep.subr.bf16.mxu0 0
      %5793 = vmatpush1.bf16.msra.mxu0 %v5773
      %5794 = vmatprep.subr.bf16.mxu0 0
      %5795 = vmatpush1.bf16.msra.mxu0 %v5774
      %5796 = vmatprep.subr.bf16.mxu0 0
      %5797 = vmatpush1.bf16.msra.mxu0 %v5775
      %5798 = vmatprep.subr.bf16.mxu0 0
      %5799 = vmatpush1.bf16.msra.mxu0 %v5776
      %5800 = vmatprep.subr.bf16.mxu0 0
      %5801 = vmatpush1.bf16.msra.mxu0 %v5777
      %5802 = vmatprep.subr.bf16.mxu0 0
      %5803 = vmatpush1.bf16.msra.mxu0 0
      %5804 = vmatprep.subr.bf16.mxu0 0
      %5805 = vmatpush1.bf16.msra.mxu0 0
      %5806 = vmatprep.subr.bf16.mxu0 0
      %5807 = vmatpush1.bf16.msra.mxu0 0
      %5808 = vmatprep.subr.bf16.mxu0 0
      %5809 = vmatpush1.bf16.msra.mxu0 0
      %5810 = vmatprep.subr.bf16.mxu0 0
      %5811 = vmatpush1.bf16.msra.mxu0 0
      %5812 = vmatprep.subr.bf16.mxu0 0
      %5813 = vmatpush1.bf16.msra.mxu0 0
      %5814 = vmatprep.subr.bf16.mxu0 0
      %5815 = vmatpush1.bf16.msra.mxu0 0
      %5816 = vmatprep.subr.bf16.mxu0 0
      %5817 = vmatpush1.bf16.msra.mxu0 0
      %5818 = vmatprep.mubr.bf16.mxu0 0
      %5819 = vmatmul.mubr.bf16.gmra.mrb[0].mxu0 %v5729
      %v5820 = vpop.f32.mrb[0].mxu0
      %v5821 = vadd.f32 %v5736, %v5820
      %v5822 = vpop.f32.mrb[0].mxu0
      %v5823 = vpop.f32.mrb[0].mxu0
      %v5824 = vpop.f32.mrb[0].mxu0
      %5825 = vdwg.mxu0
      %v5826 = vadd.f32 %v5821, %v5192
      %s5827 = scalar_lea.vmem %s15, 3
      %v5828 = vld [vmem:[%s5827] sm:$0x1]
      %s5829 = scalar_lea.vmem %s16, 3
      %v5830 = vld [vmem:[%s5829] sm:$0x1]
      %5831 = vadd.xlane.f32.xlu0 %v5826
      %v5832 = vpop.xlane.xlu0 %5831
      %v5833 = vmul.f32 %v5832, %v1128
      %v5834 = vsub.f32 %v5826, %v5833
      %v5835 = vmul.f32 %v5834, %v5834
      %5836 = vadd.xlane.f32.xlu0 %v5835
      %v5837 = vpop.xlane.xlu0 %5836
      %v5838 = vmul.f32 %v5837, %v1128
      %v5839 = vadd.f32 %v5838, 1e-06
      %v5840 = vrsqrt.pop %v5839
      %v5841 = vmul.f32 %v5834, %v5840
      %v5843 = vlaneseq
      %v5844 = vshrl.u32 %v5843, 7
      %v5845 = vsub.s32 0, %v5844
      %v5846 = vrot.slane %v5828, %v5845
      %v5848 = vmul.f32 %v5841, %v5846
      %v5850 = vlaneseq
      %v5851 = vshrl.u32 %v5850, 7
      %v5852 = vsub.s32 0, %v5851
      %v5853 = vrot.slane %v5830, %v5852
      %v5855 = vadd.f32 %v5848, %v5853
      %s5856 = scalar_lea.vmem %s17, 768
      %v5857 = vld [vmem:[%s5856] sm:$0xff]
      %v5858 = vld [vmem:[%s5856 + $0x8] sm:$0xff]
      %v5859 = vld [vmem:[%s5856 + $0x10] sm:$0xff]
      %v5860 = vld [vmem:[%s5856 + $0x18] sm:$0xff]
      %v5861 = vld [vmem:[%s5856 + $0x20] sm:$0xff]
      %v5862 = vld [vmem:[%s5856 + $0x28] sm:$0xff]
      %v5863 = vld [vmem:[%s5856 + $0x30] sm:$0xff]
      %v5864 = vld [vmem:[%s5856 + $0x38] sm:$0xff]
      %v5865 = vld [vmem:[%s5856 + $0x40] sm:$0xff]
      %v5866 = vld [vmem:[%s5856 + $0x48] sm:$0xff]
      %v5867 = vld [vmem:[%s5856 + $0x50] sm:$0xff]
      %v5868 = vld [vmem:[%s5856 + $0x58] sm:$0xff]
      %v5869 = vld [vmem:[%s5856 + $0x60] sm:$0xff]
      %v5870 = vld [vmem:[%s5856 + $0x68] sm:$0xff]
      %v5871 = vld [vmem:[%s5856 + $0x70] sm:$0xff]
      %v5872 = vld [vmem:[%s5856 + $0x78] sm:$0xff]
      %v5873 = vld [vmem:[%s5856 + $0x80] sm:$0xff]
      %v5874 = vld [vmem:[%s5856 + $0x88] sm:$0xff]
      %v5875 = vld [vmem:[%s5856 + $0x90] sm:$0xff]
      %v5876 = vld [vmem:[%s5856 + $0x98] sm:$0xff]
      %v5877 = vld [vmem:[%s5856 + $0xa0] sm:$0xff]
      %v5878 = vld [vmem:[%s5856 + $0xa8] sm:$0xff]
      %v5879 = vld [vmem:[%s5856 + $0xb0] sm:$0xff]
      %v5880 = vld [vmem:[%s5856 + $0xb8] sm:$0xff]
      %v5881 = vld [vmem:[%s5856 + $0xc0] sm:$0xff]
      %v5882 = vld [vmem:[%s5856 + $0xc8] sm:$0xff]
      %v5883 = vld [vmem:[%s5856 + $0xd0] sm:$0xff]
      %v5884 = vld [vmem:[%s5856 + $0xd8] sm:$0xff]
      %v5885 = vld [vmem:[%s5856 + $0xe0] sm:$0xff]
      %v5886 = vld [vmem:[%s5856 + $0xe8] sm:$0xff]
      %v5887 = vld [vmem:[%s5856 + $0xf0] sm:$0xff]
      %v5888 = vld [vmem:[%s5856 + $0xf8] sm:$0xff]
      %v5889 = vpack.c.bf16 %v5855, %v5855
      %s5890 = scalar_lea.vmem %s18, 12
      %v5891 = vld [vmem:[%s5890] sm:$0xf]
      %v5893 = vlaneseq
      %v5894 = vshrl.u32 %v5893, 7
      %v5895 = vsub.s32 0, %v5894
      %v5896 = vrot.slane %v5891, %v5895
      %v5897 = vlaneseq
      %v5898 = vshrl.u32 %v5897, 7
      %v5899 = vsub.s32 1, %v5898
      %v5900 = vrot.slane %v5891, %v5899
      %v5901 = vlaneseq
      %v5902 = vshrl.u32 %v5901, 7
      %v5903 = vsub.s32 2, %v5902
      %v5904 = vrot.slane %v5891, %v5903
      %v5905 = vlaneseq
      %v5906 = vshrl.u32 %v5905, 7
      %v5907 = vsub.s32 3, %v5906
      %v5908 = vrot.slane %v5891, %v5907
      %v5945 = vunpack.c.l.b16 %v5857
      %v5946 = vunpack.c.h.b16 %v5857
      %v5947 = vunpack.c.l.b16 %v5858
      %v5948 = vunpack.c.h.b16 %v5858
      %v5949 = vunpack.c.l.b16 %v5859
      %v5950 = vunpack.c.h.b16 %v5859
      %v5951 = vunpack.c.l.b16 %v5860
      %v5952 = vunpack.c.h.b16 %v5860
      %v5953 = vunpack.c.l.b16 %v5861
      %v5954 = vunpack.c.h.b16 %v5861
      %v5955 = vunpack.c.l.b16 %v5862
      %v5956 = vunpack.c.h.b16 %v5862
      %v5957 = vunpack.c.l.b16 %v5863
      %v5958 = vunpack.c.h.b16 %v5863
      %v5959 = vunpack.c.l.b16 %v5864
      %v5960 = vunpack.c.h.b16 %v5864
      %v5961 = vunpack.c.l.b16 %v5865
      %v5962 = vunpack.c.h.b16 %v5865
      %v5963 = vunpack.c.l.b16 %v5866
      %v5964 = vunpack.c.h.b16 %v5866
      %v5965 = vunpack.c.l.b16 %v5867
      %v5966 = vunpack.c.h.b16 %v5867
      %v5967 = vunpack.c.l.b16 %v5868
      %v5968 = vunpack.c.h.b16 %v5868
      %v5969 = vunpack.c.l.b16 %v5869
      %v5970 = vunpack.c.h.b16 %v5869
      %v5971 = vunpack.c.l.b16 %v5870
      %v5972 = vunpack.c.h.b16 %v5870
      %v5973 = vunpack.c.l.b16 %v5871
      %v5974 = vunpack.c.h.b16 %v5871
      %v5975 = vunpack.c.l.b16 %v5872
      %v5976 = vunpack.c.h.b16 %v5872
      %v5977 = vunpack.c.l.b16 %v5873
      %v5978 = vunpack.c.h.b16 %v5873
      %v5979 = vunpack.c.l.b16 %v5874
      %v5980 = vunpack.c.h.b16 %v5874
      %v5981 = vunpack.c.l.b16 %v5875
      %v5982 = vunpack.c.h.b16 %v5875
      %v5983 = vunpack.c.l.b16 %v5876
      %v5984 = vunpack.c.h.b16 %v5876
      %v5985 = vunpack.c.l.b16 %v5877
      %v5986 = vunpack.c.h.b16 %v5877
      %v5987 = vunpack.c.l.b16 %v5878
      %v5988 = vunpack.c.h.b16 %v5878
      %v5989 = vunpack.c.l.b16 %v5879
      %v5990 = vunpack.c.h.b16 %v5879
      %v5991 = vunpack.c.l.b16 %v5880
      %v5992 = vunpack.c.h.b16 %v5880
      %v5993 = vunpack.c.l.b16 %v5881
      %v5994 = vunpack.c.h.b16 %v5881
      %v5995 = vunpack.c.l.b16 %v5882
      %v5996 = vunpack.c.h.b16 %v5882
      %v5997 = vunpack.c.l.b16 %v5883
      %v5998 = vunpack.c.h.b16 %v5883
      %v5999 = vunpack.c.l.b16 %v5884
      %v6000 = vunpack.c.h.b16 %v5884
      %v6001 = vunpack.c.l.b16 %v5885
      %v6002 = vunpack.c.h.b16 %v5885
      %v6003 = vunpack.c.l.b16 %v5886
      %v6004 = vunpack.c.h.b16 %v5886
      %v6005 = vunpack.c.l.b16 %v5887
      %v6006 = vunpack.c.h.b16 %v5887
      %v6007 = vunpack.c.l.b16 %v5888
      %v6008 = vunpack.c.h.b16 %v5888
      %v6009 = vpack.c.b16 %v5949, %v5945
      %v6010 = vpack.c.b16 %v5950, %v5946
      %v6011 = vpack.c.b16 %v5951, %v5947
      %v6012 = vpack.c.b16 %v5952, %v5948
      %v6013 = vpack.c.b16 %v5957, %v5953
      %v6014 = vpack.c.b16 %v5958, %v5954
      %v6015 = vpack.c.b16 %v5959, %v5955
      %v6016 = vpack.c.b16 %v5960, %v5956
      %v6017 = vpack.c.b16 %v5965, %v5961
      %v6018 = vpack.c.b16 %v5966, %v5962
      %v6019 = vpack.c.b16 %v5967, %v5963
      %v6020 = vpack.c.b16 %v5968, %v5964
      %v6021 = vpack.c.b16 %v5973, %v5969
      %v6022 = vpack.c.b16 %v5974, %v5970
      %v6023 = vpack.c.b16 %v5975, %v5971
      %v6024 = vpack.c.b16 %v5976, %v5972
      %v6025 = vpack.c.b16 %v5981, %v5977
      %v6026 = vpack.c.b16 %v5982, %v5978
      %v6027 = vpack.c.b16 %v5983, %v5979
      %v6028 = vpack.c.b16 %v5984, %v5980
      %v6029 = vpack.c.b16 %v5989, %v5985
      %v6030 = vpack.c.b16 %v5990, %v5986
      %v6031 = vpack.c.b16 %v5991, %v5987
      %v6032 = vpack.c.b16 %v5992, %v5988
      %v6033 = vpack.c.b16 %v5997, %v5993
      %v6034 = vpack.c.b16 %v5998, %v5994
      %v6035 = vpack.c.b16 %v5999, %v5995
      %v6036 = vpack.c.b16 %v6000, %v5996
      %v6037 = vpack.c.b16 %v6005, %v6001
      %v6038 = vpack.c.b16 %v6006, %v6002
      %v6039 = vpack.c.b16 %v6007, %v6003
      %v6040 = vpack.c.b16 %v6008, %v6004
      %6073 = vmatprep.subr.bf16.mxu0 %v6010
      %6074 = vmatpush1.bf16.msra.mxu0 %v6009
      %6075 = vmatprep.subr.bf16.mxu0 %v6014
      %6076 = vmatpush1.bf16.msra.mxu0 %v6013
      %6077 = vmatprep.subr.bf16.mxu0 %v6018
      %6078 = vmatpush1.bf16.msra.mxu0 %v6017
      %6079 = vmatprep.subr.bf16.mxu0 %v6022
      %6080 = vmatpush1.bf16.msra.mxu0 %v6021
      %6081 = vmatprep.subr.bf16.mxu0 %v6026
      %6082 = vmatpush1.bf16.msra.mxu0 %v6025
      %6083 = vmatprep.subr.bf16.mxu0 %v6030
      %6084 = vmatpush1.bf16.msra.mxu0 %v6029
      %6085 = vmatprep.subr.bf16.mxu0 %v6034
      %6086 = vmatpush1.bf16.msra.mxu0 %v6033
      %6087 = vmatprep.subr.bf16.mxu0 %v6038
      %6088 = vmatpush1.bf16.msra.mxu0 %v6037
      %6089 = vmatprep.subr.bf16.mxu0 0
      %6090 = vmatpush1.bf16.msra.mxu0 0
      %6091 = vmatprep.subr.bf16.mxu0 0
      %6092 = vmatpush1.bf16.msra.mxu0 0
      %6093 = vmatprep.subr.bf16.mxu0 0
      %6094 = vmatpush1.bf16.msra.mxu0 0
      %6095 = vmatprep.subr.bf16.mxu0 0
      %6096 = vmatpush1.bf16.msra.mxu0 0
      %6097 = vmatprep.subr.bf16.mxu0 0
      %6098 = vmatpush1.bf16.msra.mxu0 0
      %6099 = vmatprep.subr.bf16.mxu0 0
      %6100 = vmatpush1.bf16.msra.mxu0 0
      %6101 = vmatprep.subr.bf16.mxu0 0
      %6102 = vmatpush1.bf16.msra.mxu0 0
      %6103 = vmatprep.subr.bf16.mxu0 0
      %6104 = vmatpush1.bf16.msra.mxu0 0
      %6105 = vmatprep.mubr.bf16.mxu0 0
      %6106 = vmatmul.mubr.bf16.gmra.mrb[0].mxu0 %v5889
      %v6107 = vpop.f32.mrb[0].mxu0
      %v6108 = vadd.f32 %v5896, %v6107
      %v6109 = vpop.f32.mrb[0].mxu0
      %v6110 = vadd.f32 %v5900, %v6109
      %v6111 = vpop.f32.mrb[0].mxu0
      %v6112 = vpop.f32.mrb[0].mxu0
      %6113 = vdwg.mxu0
      %6114 = vmatprep.subr.bf16.mxu0 %v6012
      %6115 = vmatpush1.bf16.msra.mxu0 %v6011
      %6116 = vmatprep.subr.bf16.mxu0 %v6016
      %6117 = vmatpush1.bf16.msra.mxu0 %v6015
      %6118 = vmatprep.subr.bf16.mxu0 %v6020
      %6119 = vmatpush1.bf16.msra.mxu0 %v6019
      %6120 = vmatprep.subr.bf16.mxu0 %v6024
      %6121 = vmatpush1.bf16.msra.mxu0 %v6023
      %6122 = vmatprep.subr.bf16.mxu0 %v6028
      %6123 = vmatpush1.bf16.msra.mxu0 %v6027
      %6124 = vmatprep.subr.bf16.mxu0 %v6032
      %6125 = vmatpush1.bf16.msra.mxu0 %v6031
      %6126 = vmatprep.subr.bf16.mxu0 %v6036
      %6127 = vmatpush1.bf16.msra.mxu0 %v6035
      %6128 = vmatprep.subr.bf16.mxu0 %v6040
      %6129 = vmatpush1.bf16.msra.mxu0 %v6039
      %6130 = vmatprep.subr.bf16.mxu0 0
      %6131 = vmatpush1.bf16.msra.mxu0 0
      %6132 = vmatprep.subr.bf16.mxu0 0
      %6133 = vmatpush1.bf16.msra.mxu0 0
      %6134 = vmatprep.subr.bf16.mxu0 0
      %6135 = vmatpush1.bf16.msra.mxu0 0
      %6136 = vmatprep.subr.bf16.mxu0 0
      %6137 = vmatpush1.bf16.msra.mxu0 0
      %6138 = vmatprep.subr.bf16.mxu0 0
      %6139 = vmatpush1.bf16.msra.mxu0 0
      %6140 = vmatprep.subr.bf16.mxu0 0
      %6141 = vmatpush1.bf16.msra.mxu0 0
      %6142 = vmatprep.subr.bf16.mxu0 0
      %6143 = vmatpush1.bf16.msra.mxu0 0
      %6144 = vmatprep.subr.bf16.mxu0 0
      %6145 = vmatpush1.bf16.msra.mxu0 0
      %6146 = vmatprep.mubr.bf16.mxu0 0
      %6147 = vmatmul.mubr.bf16.gmra.mrb[0].mxu0 %v5889
      %v6148 = vpop.f32.mrb[0].mxu0
      %v6149 = vadd.f32 %v5904, %v6148
      %v6150 = vpop.f32.mrb[0].mxu0
      %v6151 = vadd.f32 %v5908, %v6150
      %v6152 = vpop.f32.mrb[0].mxu0
      %v6153 = vpop.f32.mrb[0].mxu0
      %6154 = vdwg.mxu0
      %v6155 = vmul.f32 %v6108, %v6108
      %v6156 = vmul.f32 %v6110, %v6110
      %v6157 = vmul.f32 %v6149, %v6149
      %v6158 = vmul.f32 %v6151, %v6151
      %v6159 = vmul.f32 %v6108, %v6155
      %v6160 = vmul.f32 %v6110, %v6156
      %v6161 = vmul.f32 %v6149, %v6157
      %v6162 = vmul.f32 %v6151, %v6158
      %v6163 = vmul.f32 %v6159, 0.044715
      %v6164 = vmul.f32 %v6160, 0.044715
      %v6165 = vmul.f32 %v6161, 0.044715
      %v6166 = vmul.f32 %v6162, 0.044715
      %v6167 = vadd.f32 %v6108, %v6163
      %v6168 = vadd.f32 %v6110, %v6164
      %v6169 = vadd.f32 %v6149, %v6165
      %v6170 = vadd.f32 %v6151, %v6166
      %v6171 = vmul.f32 %v6167, 0.7978846
      %v6172 = vmul.f32 %v6168, 0.7978846
      %v6173 = vmul.f32 %v6169, 0.7978846
      %v6174 = vmul.f32 %v6170, 0.7978846
      %v6175 = vtanh.pop %v6171
      %v6176 = vtanh.pop %v6172
      %v6177 = vtanh.pop %v6173
      %v6178 = vtanh.pop %v6174
      %v6179 = vadd.f32 %v6175, 1.0
      %v6180 = vadd.f32 %v6176, 1.0
      %v6181 = vadd.f32 %v6177, 1.0
      %v6182 = vadd.f32 %v6178, 1.0
      %v6183 = vmul.f32 %v6179, 0.5
      %v6184 = vmul.f32 %v6180, 0.5
      %v6185 = vmul.f32 %v6181, 0.5
      %v6186 = vmul.f32 %v6182, 0.5
      %v6187 = vmul.f32 %v6108, %v6183
      %v6188 = vmul.f32 %v6110, %v6184
      %v6189 = vmul.f32 %v6149, %v6185
      %v6190 = vmul.f32 %v6151, %v6186
      %s6191 = scalar_lea.vmem %s19, 768
      %v6192 = vld [vmem:[%s6191] sm:$0xf]
      %v6193 = vld [vmem:[%s6191 + $0x4] sm:$0xf]
      %v6194 = vld [vmem:[%s6191 + $0x8] sm:$0xf]
      %v6195 = vld [vmem:[%s6191 + $0xc] sm:$0xf]
      %v6196 = vld [vmem:[%s6191 + $0x10] sm:$0xf]
      %v6197 = vld [vmem:[%s6191 + $0x14] sm:$0xf]
      %v6198 = vld [vmem:[%s6191 + $0x18] sm:$0xf]
      %v6199 = vld [vmem:[%s6191 + $0x1c] sm:$0xf]
      %v6200 = vld [vmem:[%s6191 + $0x20] sm:$0xf]
      %v6201 = vld [vmem:[%s6191 + $0x24] sm:$0xf]
      %v6202 = vld [vmem:[%s6191 + $0x28] sm:$0xf]
      %v6203 = vld [vmem:[%s6191 + $0x2c] sm:$0xf]
      %v6204 = vld [vmem:[%s6191 + $0x30] sm:$0xf]
      %v6205 = vld [vmem:[%s6191 + $0x34] sm:$0xf]
      %v6206 = vld [vmem:[%s6191 + $0x38] sm:$0xf]
      %v6207 = vld [vmem:[%s6191 + $0x3c] sm:$0xf]
      %v6208 = vld [vmem:[%s6191 + $0x40] sm:$0xf]
      %v6209 = vld [vmem:[%s6191 + $0x44] sm:$0xf]
      %v6210 = vld [vmem:[%s6191 + $0x48] sm:$0xf]
      %v6211 = vld [vmem:[%s6191 + $0x4c] sm:$0xf]
      %v6212 = vld [vmem:[%s6191 + $0x50] sm:$0xf]
      %v6213 = vld [vmem:[%s6191 + $0x54] sm:$0xf]
      %v6214 = vld [vmem:[%s6191 + $0x58] sm:$0xf]
      %v6215 = vld [vmem:[%s6191 + $0x5c] sm:$0xf]
      %v6216 = vld [vmem:[%s6191 + $0x60] sm:$0xf]
      %v6217 = vld [vmem:[%s6191 + $0x64] sm:$0xf]
      %v6218 = vld [vmem:[%s6191 + $0x68] sm:$0xf]
      %v6219 = vld [vmem:[%s6191 + $0x6c] sm:$0xf]
      %v6220 = vld [vmem:[%s6191 + $0x70] sm:$0xf]
      %v6221 = vld [vmem:[%s6191 + $0x74] sm:$0xf]
      %v6222 = vld [vmem:[%s6191 + $0x78] sm:$0xf]
      %v6223 = vld [vmem:[%s6191 + $0x7c] sm:$0xf]
      %v6224 = vld [vmem:[%s6191 + $0x80] sm:$0xf]
      %v6225 = vld [vmem:[%s6191 + $0x84] sm:$0xf]
      %v6226 = vld [vmem:[%s6191 + $0x88] sm:$0xf]
      %v6227 = vld [vmem:[%s6191 + $0x8c] sm:$0xf]
      %v6228 = vld [vmem:[%s6191 + $0x90] sm:$0xf]
      %v6229 = vld [vmem:[%s6191 + $0x94] sm:$0xf]
      %v6230 = vld [vmem:[%s6191 + $0x98] sm:$0xf]
      %v6231 = vld [vmem:[%s6191 + $0x9c] sm:$0xf]
      %v6232 = vld [vmem:[%s6191 + $0xa0] sm:$0xf]
      %v6233 = vld [vmem:[%s6191 + $0xa4] sm:$0xf]
      %v6234 = vld [vmem:[%s6191 + $0xa8] sm:$0xf]
      %v6235 = vld [vmem:[%s6191 + $0xac] sm:$0xf]
      %v6236 = vld [vmem:[%s6191 + $0xb0] sm:$0xf]
      %v6237 = vld [vmem:[%s6191 + $0xb4] sm:$0xf]
      %v6238 = vld [vmem:[%s6191 + $0xb8] sm:$0xf]
      %v6239 = vld [vmem:[%s6191 + $0xbc] sm:$0xf]
      %v6240 = vld [vmem:[%s6191 + $0xc0] sm:$0xf]
      %v6241 = vld [vmem:[%s6191 + $0xc4] sm:$0xf]
      %v6242 = vld [vmem:[%s6191 + $0xc8] sm:$0xf]
      %v6243 = vld [vmem:[%s6191 + $0xcc] sm:$0xf]
      %v6244 = vld [vmem:[%s6191 + $0xd0] sm:$0xf]
      %v6245 = vld [vmem:[%s6191 + $0xd4] sm:$0xf]
      %v6246 = vld [vmem:[%s6191 + $0xd8] sm:$0xf]
      %v6247 = vld [vmem:[%s6191 + $0xdc] sm:$0xf]
      %v6248 = vld [vmem:[%s6191 + $0xe0] sm:$0xf]
      %v6249 = vld [vmem:[%s6191 + $0xe4] sm:$0xf]
      %v6250 = vld [vmem:[%s6191 + $0xe8] sm:$0xf]
      %v6251 = vld [vmem:[%s6191 + $0xec] sm:$0xf]
      %v6252 = vld [vmem:[%s6191 + $0xf0] sm:$0xf]
      %v6253 = vld [vmem:[%s6191 + $0xf4] sm:$0xf]
      %v6254 = vld [vmem:[%s6191 + $0xf8] sm:$0xf]
      %v6255 = vld [vmem:[%s6191 + $0xfc] sm:$0xf]
      %v6256 = vpack.c.bf16 %v6187, %v6187
      %v6257 = vpack.c.bf16 %v6188, %v6188
      %v6258 = vpack.c.bf16 %v6189, %v6189
      %v6259 = vpack.c.bf16 %v6190, %v6190
      %s6260 = scalar_lea.vmem %s20, 3
      %v6261 = vld [vmem:[%s6260] sm:$0x1]
      %v6263 = vlaneseq
      %v6264 = vshrl.u32 %v6263, 7
      %v6265 = vsub.s32 0, %v6264
      %v6266 = vrot.slane %v6261, %v6265
      %v6332 = vunpack.c.l.b16 %v6192
      %v6333 = vunpack.c.l.b16 %v6193
      %v6334 = vunpack.c.l.b16 %v6194
      %v6335 = vunpack.c.l.b16 %v6195
      %v6336 = vunpack.c.l.b16 %v6196
      %v6337 = vunpack.c.l.b16 %v6197
      %v6338 = vunpack.c.l.b16 %v6198
      %v6339 = vunpack.c.l.b16 %v6199
      %v6340 = vunpack.c.l.b16 %v6200
      %v6341 = vunpack.c.l.b16 %v6201
      %v6342 = vunpack.c.l.b16 %v6202
      %v6343 = vunpack.c.l.b16 %v6203
      %v6344 = vunpack.c.l.b16 %v6204
      %v6345 = vunpack.c.l.b16 %v6205
      %v6346 = vunpack.c.l.b16 %v6206
      %v6347 = vunpack.c.l.b16 %v6207
      %v6348 = vunpack.c.l.b16 %v6208
      %v6349 = vunpack.c.l.b16 %v6209
      %v6350 = vunpack.c.l.b16 %v6210
      %v6351 = vunpack.c.l.b16 %v6211
      %v6352 = vunpack.c.l.b16 %v6212
      %v6353 = vunpack.c.l.b16 %v6213
      %v6354 = vunpack.c.l.b16 %v6214
      %v6355 = vunpack.c.l.b16 %v6215
      %v6356 = vunpack.c.l.b16 %v6216
      %v6357 = vunpack.c.l.b16 %v6217
      %v6358 = vunpack.c.l.b16 %v6218
      %v6359 = vunpack.c.l.b16 %v6219
      %v6360 = vunpack.c.l.b16 %v6220
      %v6361 = vunpack.c.l.b16 %v6221
      %v6362 = vunpack.c.l.b16 %v6222
      %v6363 = vunpack.c.l.b16 %v6223
      %v6364 = vunpack.c.l.b16 %v6224
      %v6365 = vunpack.c.l.b16 %v6225
      %v6366 = vunpack.c.l.b16 %v6226
      %v6367 = vunpack.c.l.b16 %v6227
      %v6368 = vunpack.c.l.b16 %v6228
      %v6369 = vunpack.c.l.b16 %v6229
      %v6370 = vunpack.c.l.b16 %v6230
      %v6371 = vunpack.c.l.b16 %v6231
      %v6372 = vunpack.c.l.b16 %v6232
      %v6373 = vunpack.c.l.b16 %v6233
      %v6374 = vunpack.c.l.b16 %v6234
      %v6375 = vunpack.c.l.b16 %v6235
      %v6376 = vunpack.c.l.b16 %v6236
      %v6377 = vunpack.c.l.b16 %v6237
      %v6378 = vunpack.c.l.b16 %v6238
      %v6379 = vunpack.c.l.b16 %v6239
      %v6380 = vunpack.c.l.b16 %v6240
      %v6381 = vunpack.c.l.b16 %v6241
      %v6382 = vunpack.c.l.b16 %v6242
      %v6383 = vunpack.c.l.b16 %v6243
      %v6384 = vunpack.c.l.b16 %v6244
      %v6385 = vunpack.c.l.b16 %v6245
      %v6386 = vunpack.c.l.b16 %v6246
      %v6387 = vunpack.c.l.b16 %v6247
      %v6388 = vunpack.c.l.b16 %v6248
      %v6389 = vunpack.c.l.b16 %v6249
      %v6390 = vunpack.c.l.b16 %v6250
      %v6391 = vunpack.c.l.b16 %v6251
      %v6392 = vunpack.c.l.b16 %v6252
      %v6393 = vunpack.c.l.b16 %v6253
      %v6394 = vunpack.c.l.b16 %v6254
      %v6395 = vunpack.c.l.b16 %v6255
      %v6396 = vpack.c.b16 %v6333, %v6332
      %v6397 = vpack.c.b16 %v6335, %v6334
      %v6398 = vpack.c.b16 %v6337, %v6336
      %v6399 = vpack.c.b16 %v6339, %v6338
      %v6400 = vpack.c.b16 %v6341, %v6340
      %v6401 = vpack.c.b16 %v6343, %v6342
      %v6402 = vpack.c.b16 %v6345, %v6344
      %v6403 = vpack.c.b16 %v6347, %v6346
      %v6404 = vpack.c.b16 %v6349, %v6348
      %v6405 = vpack.c.b16 %v6351, %v6350
      %v6406 = vpack.c.b16 %v6353, %v6352
      %v6407 = vpack.c.b16 %v6355, %v6354
      %v6408 = vpack.c.b16 %v6357, %v6356
      %v6409 = vpack.c.b16 %v6359, %v6358
      %v6410 = vpack.c.b16 %v6361, %v6360
      %v6411 = vpack.c.b16 %v6363, %v6362
      %v6412 = vpack.c.b16 %v6365, %v6364
      %v6413 = vpack.c.b16 %v6367, %v6366
      %v6414 = vpack.c.b16 %v6369, %v6368
      %v6415 = vpack.c.b16 %v6371, %v6370
      %v6416 = vpack.c.b16 %v6373, %v6372
      %v6417 = vpack.c.b16 %v6375, %v6374
      %v6418 = vpack.c.b16 %v6377, %v6376
      %v6419 = vpack.c.b16 %v6379, %v6378
      %v6420 = vpack.c.b16 %v6381, %v6380
      %v6421 = vpack.c.b16 %v6383, %v6382
      %v6422 = vpack.c.b16 %v6385, %v6384
      %v6423 = vpack.c.b16 %v6387, %v6386
      %v6424 = vpack.c.b16 %v6389, %v6388
      %v6425 = vpack.c.b16 %v6391, %v6390
      %v6426 = vpack.c.b16 %v6393, %v6392
      %v6427 = vpack.c.b16 %v6395, %v6394
      %6460 = vmatprep.subr.bf16.mxu0 0
      %6461 = vmatpush1.bf16.msra.mxu0 %v6396
      %6462 = vmatprep.subr.bf16.mxu0 0
      %6463 = vmatpush1.bf16.msra.mxu0 %v6397
      %6464 = vmatprep.subr.bf16.mxu0 0
      %6465 = vmatpush1.bf16.msra.mxu0 %v6398
      %6466 = vmatprep.subr.bf16.mxu0 0
      %6467 = vmatpush1.bf16.msra.mxu0 %v6399
      %6468 = vmatprep.subr.bf16.mxu0 0
      %6469 = vmatpush1.bf16.msra.mxu0 %v6400
      %6470 = vmatprep.subr.bf16.mxu0 0
      %6471 = vmatpush1.bf16.msra.mxu0 %v6401
      %6472 = vmatprep.subr.bf16.mxu0 0
      %6473 = vmatpush1.bf16.msra.mxu0 %v6402
      %6474 = vmatprep.subr.bf16.mxu0 0
      %6475 = vmatpush1.bf16.msra.mxu0 %v6403
      %6476 = vmatprep.subr.bf16.mxu0 0
      %6477 = vmatpush1.bf16.msra.mxu0 %v6404
      %6478 = vmatprep.subr.bf16.mxu0 0
      %6479 = vmatpush1.bf16.msra.mxu0 %v6405
      %6480 = vmatprep.subr.bf16.mxu0 0
      %6481 = vmatpush1.bf16.msra.mxu0 %v6406
      %6482 = vmatprep.subr.bf16.mxu0 0
      %6483 = vmatpush1.bf16.msra.mxu0 %v6407
      %6484 = vmatprep.subr.bf16.mxu0 0
      %6485 = vmatpush1.bf16.msra.mxu0 %v6408
      %6486 = vmatprep.subr.bf16.mxu0 0
      %6487 = vmatpush1.bf16.msra.mxu0 %v6409
      %6488 = vmatprep.subr.bf16.mxu0 0
      %6489 = vmatpush1.bf16.msra.mxu0 %v6410
      %6490 = vmatprep.subr.bf16.mxu0 0
      %6491 = vmatpush1.bf16.msra.mxu0 %v6411
      %6492 = vmatprep.mubr.bf16.mxu0 %v6257
      %6493 = vmatmul.mubr.bf16.gmra.mrb[0].mxu0 %v6256
      %v6494 = vpop.f32.mrb[0].mxu0
      %v6495 = vadd.f32 %v6266, %v6494
      %v6496 = vpop.f32.mrb[0].mxu0
      %v6497 = vpop.f32.mrb[0].mxu0
      %v6498 = vpop.f32.mrb[0].mxu0
      %6499 = vdwg.mxu0
      %6500 = vmatprep.subr.bf16.mxu0 0
      %6501 = vmatpush1.bf16.msra.mxu0 %v6412
      %6502 = vmatprep.subr.bf16.mxu0 0
      %6503 = vmatpush1.bf16.msra.mxu0 %v6413
      %6504 = vmatprep.subr.bf16.mxu0 0
      %6505 = vmatpush1.bf16.msra.mxu0 %v6414
      %6506 = vmatprep.subr.bf16.mxu0 0
      %6507 = vmatpush1.bf16.msra.mxu0 %v6415
      %6508 = vmatprep.subr.bf16.mxu0 0
      %6509 = vmatpush1.bf16.msra.mxu0 %v6416
      %6510 = vmatprep.subr.bf16.mxu0 0
      %6511 = vmatpush1.bf16.msra.mxu0 %v6417
      %6512 = vmatprep.subr.bf16.mxu0 0
      %6513 = vmatpush1.bf16.msra.mxu0 %v6418
      %6514 = vmatprep.subr.bf16.mxu0 0
      %6515 = vmatpush1.bf16.msra.mxu0 %v6419
      %6516 = vmatprep.subr.bf16.mxu0 0
      %6517 = vmatpush1.bf16.msra.mxu0 %v6420
      %6518 = vmatprep.subr.bf16.mxu0 0
      %6519 = vmatpush1.bf16.msra.mxu0 %v6421
      %6520 = vmatprep.subr.bf16.mxu0 0
      %6521 = vmatpush1.bf16.msra.mxu0 %v6422
      %6522 = vmatprep.subr.bf16.mxu0 0
      %6523 = vmatpush1.bf16.msra.mxu0 %v6423
      %6524 = vmatprep.subr.bf16.mxu0 0
      %6525 = vmatpush1.bf16.msra.mxu0 %v6424
      %6526 = vmatprep.subr.bf16.mxu0 0
      %6527 = vmatpush1.bf16.msra.mxu0 %v6425
      %6528 = vmatprep.subr.bf16.mxu0 0
      %6529 = vmatpush1.bf16.msra.mxu0 %v6426
      %6530 = vmatprep.subr.bf16.mxu0 0
      %6531 = vmatpush1.bf16.msra.mxu0 %v6427
      %6532 = vmatprep.mubr.bf16.mxu0 %v6259
      %6533 = vmatmul.mubr.bf16.gmra.mrb[0].mxu0 %v6258
      %v6534 = vpop.f32.mrb[0].mxu0
      %v6535 = vadd.f32 %v6495, %v6534
      %v6536 = vpop.f32.mrb[0].mxu0
      %v6537 = vpop.f32.mrb[0].mxu0
      %v6538 = vpop.f32.mrb[0].mxu0
      %6539 = vdwg.mxu0
      %v6540 = vmul.f32 %v6535, %v6535
      %v6541 = vmul.f32 %v6535, %v6540
      %v6542 = vmul.f32 %v6541, 0.044715
      %v6543 = vadd.f32 %v6535, %v6542
      %v6544 = vmul.f32 %v6543, 0.7978846
      %v6545 = vtanh.pop %v6544
      %v6546 = vadd.f32 %v6545, 1.0
      %v6547 = vmul.f32 %v6546, 0.5
      %v6548 = vmul.f32 %v6535, %v6547
      %v6549 = vadd.f32 %v6548, %v5826
      %s6550 = scalar_lea.vmem %s9, 4
      %v6551 = vld [vmem:[%s6550] sm:$0x1]
      %s6552 = scalar_lea.vmem %s10, 4
      %v6553 = vld [vmem:[%s6552] sm:$0x1]
      %6554 = vadd.xlane.f32.xlu0 %v6549
      %v6555 = vpop.xlane.xlu0 %6554
      %v6556 = vmul.f32 %v6555, %v1128
      %v6557 = vsub.f32 %v6549, %v6556
      %v6558 = vmul.f32 %v6557, %v6557
      %6559 = vadd.xlane.f32.xlu0 %v6558
      %v6560 = vpop.xlane.xlu0 %6559
      %v6561 = vmul.f32 %v6560, %v1128
      %v6562 = vadd.f32 %v6561, 1e-06
      %v6563 = vrsqrt.pop %v6562
      %v6564 = vmul.f32 %v6557, %v6563
      %v6566 = vlaneseq
      %v6567 = vshrl.u32 %v6566, 7
      %v6568 = vsub.s32 0, %v6567
      %v6569 = vrot.slane %v6551, %v6568
      %v6571 = vmul.f32 %v6564, %v6569
      %v6573 = vlaneseq
      %v6574 = vshrl.u32 %v6573, 7
      %v6575 = vsub.s32 0, %v6574
      %v6576 = vrot.slane %v6553, %v6575
      %v6578 = vadd.f32 %v6571, %v6576
      %s6579 = scalar_lea.vmem %s11, 768
      %v6580 = vld [vmem:[%s6579] sm:$0xff]
      %v6581 = vld [vmem:[%s6579 + $0x8] sm:$0xf]
      %v6582 = vld [vmem:[%s6579 + $0xc] sm:$0xff]
      %v6583 = vld [vmem:[%s6579 + $0x14] sm:$0xf]
      %v6584 = vld [vmem:[%s6579 + $0x18] sm:$0xff]
      %v6585 = vld [vmem:[%s6579 + $0x20] sm:$0xf]
      %v6586 = vld [vmem:[%s6579 + $0x24] sm:$0xff]
      %v6587 = vld [vmem:[%s6579 + $0x2c] sm:$0xf]
      %v6588 = vld [vmem:[%s6579 + $0x30] sm:$0xff]
      %v6589 = vld [vmem:[%s6579 + $0x38] sm:$0xf]
      %v6590 = vld [vmem:[%s6579 + $0x3c] sm:$0xff]
      %v6591 = vld [vmem:[%s6579 + $0x44] sm:$0xf]
      %v6592 = vld [vmem:[%s6579 + $0x48] sm:$0xff]
      %v6593 = vld [vmem:[%s6579 + $0x50] sm:$0xf]
      %v6594 = vld [vmem:[%s6579 + $0x54] sm:$0xff]
      %v6595 = vld [vmem:[%s6579 + $0x5c] sm:$0xf]
      %v6596 = vld [vmem:[%s6579 + $0x60] sm:$0xff]
      %v6597 = vld [vmem:[%s6579 + $0x68] sm:$0xf]
      %v6598 = vld [vmem:[%s6579 + $0x6c] sm:$0xff]
      %v6599 = vld [vmem:[%s6579 + $0x74] sm:$0xf]
      %v6600 = vld [vmem:[%s6579 + $0x78] sm:$0xff]
      %v6601 = vld [vmem:[%s6579 + $0x80] sm:$0xf]
      %v6602 = vld [vmem:[%s6579 + $0x84] sm:$0xff]
      %v6603 = vld [vmem:[%s6579 + $0x8c] sm:$0xf]
      %v6604 = vld [vmem:[%s6579 + $0x90] sm:$0xff]
      %v6605 = vld [vmem:[%s6579 + $0x98] sm:$0xf]
      %v6606 = vld [vmem:[%s6579 + $0x9c] sm:$0xff]
      %v6607 = vld [vmem:[%s6579 + $0xa4] sm:$0xf]
      %v6608 = vld [vmem:[%s6579 + $0xa8] sm:$0xff]
      %v6609 = vld [vmem:[%s6579 + $0xb0] sm:$0xf]
      %v6610 = vld [vmem:[%s6579 + $0xb4] sm:$0xff]
      %v6611 = vld [vmem:[%s6579 + $0xbc] sm:$0xf]
      %v6612 = vpack.c.bf16 %v6578, %v6578
      %s6613 = scalar_lea.vmem %s12, 12
      %v6614 = vld [vmem:[%s6613] sm:$0x7]
      %v6616 = vlaneseq
      %v6617 = vshrl.u32 %v6616, 7
      %v6618 = vsub.s32 0, %v6617
      %v6619 = vrot.slane %v6614, %v6618
      %v6620 = vlaneseq
      %v6621 = vshrl.u32 %v6620, 7
      %v6622 = vsub.s32 1, %v6621
      %v6623 = vrot.slane %v6614, %v6622
      %v6624 = vlaneseq
      %v6625 = vshrl.u32 %v6624, 7
      %v6626 = vsub.s32 2, %v6625
      %v6627 = vrot.slane %v6614, %v6626
      %v6663 = vunpack.c.l.b16 %v6580
      %v6664 = vunpack.c.h.b16 %v6580
      %v6665 = vunpack.c.l.b16 %v6581
      %v6666 = vunpack.c.l.b16 %v6582
      %v6667 = vunpack.c.h.b16 %v6582
      %v6668 = vunpack.c.l.b16 %v6583
      %v6669 = vunpack.c.l.b16 %v6584
      %v6670 = vunpack.c.h.b16 %v6584
      %v6671 = vunpack.c.l.b16 %v6585
      %v6672 = vunpack.c.l.b16 %v6586
      %v6673 = vunpack.c.h.b16 %v6586
      %v6674 = vunpack.c.l.b16 %v6587
      %v6675 = vunpack.c.l.b16 %v6588
      %v6676 = vunpack.c.h.b16 %v6588
      %v6677 = vunpack.c.l.b16 %v6589
      %v6678 = vunpack.c.l.b16 %v6590
      %v6679 = vunpack.c.h.b16 %v6590
      %v6680 = vunpack.c.l.b16 %v6591
      %v6681 = vunpack.c.l.b16 %v6592
      %v6682 = vunpack.c.h.b16 %v6592
      %v6683 = vunpack.c.l.b16 %v6593
      %v6684 = vunpack.c.l.b16 %v6594
      %v6685 = vunpack.c.h.b16 %v6594
      %v6686 = vunpack.c.l.b16 %v6595
      %v6687 = vunpack.c.l.b16 %v6596
      %v6688 = vunpack.c.h.b16 %v6596
      %v6689 = vunpack.c.l.b16 %v6597
      %v6690 = vunpack.c.l.b16 %v6598
      %v6691 = vunpack.c.h.b16 %v6598
      %v6692 = vunpack.c.l.b16 %v6599
      %v6693 = vunpack.c.l.b16 %v6600
      %v6694 = vunpack.c.h.b16 %v6600
      %v6695 = vunpack.c.l.b16 %v6601
      %v6696 = vunpack.c.l.b16 %v6602
      %v6697 = vunpack.c.h.b16 %v6602
      %v6698 = vunpack.c.l.b16 %v6603
      %v6699 = vunpack.c.l.b16 %v6604
      %v6700 = vunpack.c.h.b16 %v6604
      %v6701 = vunpack.c.l.b16 %v6605
      %v6702 = vunpack.c.l.b16 %v6606
      %v6703 = vunpack.c.h.b16 %v6606
      %v6704 = vunpack.c.l.b16 %v6607
      %v6705 = vunpack.c.l.b16 %v6608
      %v6706 = vunpack.c.h.b16 %v6608
      %v6707 = vunpack.c.l.b16 %v6609
      %v6708 = vunpack.c.l.b16 %v6610
      %v6709 = vunpack.c.h.b16 %v6610
      %v6710 = vunpack.c.l.b16 %v6611
      %v6711 = vpack.c.b16 %v6666, %v6663
      %v6712 = vpack.c.b16 %v6667, %v6664
      %v6713 = vpack.c.b16 %v6668, %v6665
      %v6714 = vpack.c.b16 %v6672, %v6669
      %v6715 = vpack.c.b16 %v6673, %v6670
      %v6716 = vpack.c.b16 %v6674, %v6671
      %v6717 = vpack.c.b16 %v6678, %v6675
      %v6718 = vpack.c.b16 %v6679, %v6676
      %v6719 = vpack.c.b16 %v6680, %v6677
      %v6720 = vpack.c.b16 %v6684, %v6681
      %v6721 = vpack.c.b16 %v6685, %v6682
      %v6722 = vpack.c.b16 %v6686, %v6683
      %v6723 = vpack.c.b16 %v6690, %v6687
      %v6724 = vpack.c.b16 %v6691, %v6688
      %v6725 = vpack.c.b16 %v6692, %v6689
      %v6726 = vpack.c.b16 %v6696, %v6693
      %v6727 = vpack.c.b16 %v6697, %v6694
      %v6728 = vpack.c.b16 %v6698, %v6695
      %v6729 = vpack.c.b16 %v6702, %v6699
      %v6730 = vpack.c.b16 %v6703, %v6700
      %v6731 = vpack.c.b16 %v6704, %v6701
      %v6732 = vpack.c.b16 %v6708, %v6705
      %v6733 = vpack.c.b16 %v6709, %v6706
      %v6734 = vpack.c.b16 %v6710, %v6707
      %6759 = vmatprep.subr.bf16.mxu0 %v6712
      %6760 = vmatpush1.bf16.msra.mxu0 %v6711
      %6761 = vmatprep.subr.bf16.mxu0 %v6715
      %6762 = vmatpush1.bf16.msra.mxu0 %v6714
      %6763 = vmatprep.subr.bf16.mxu0 %v6718
      %6764 = vmatpush1.bf16.msra.mxu0 %v6717
      %6765 = vmatprep.subr.bf16.mxu0 %v6721
      %6766 = vmatpush1.bf16.msra.mxu0 %v6720
      %6767 = vmatprep.subr.bf16.mxu0 %v6724
      %6768 = vmatpush1.bf16.msra.mxu0 %v6723
      %6769 = vmatprep.subr.bf16.mxu0 %v6727
      %6770 = vmatpush1.bf16.msra.mxu0 %v6726
      %6771 = vmatprep.subr.bf16.mxu0 %v6730
      %6772 = vmatpush1.bf16.msra.mxu0 %v6729
      %6773 = vmatprep.subr.bf16.mxu0 %v6733
      %6774 = vmatpush1.bf16.msra.mxu0 %v6732
      %6775 = vmatprep.subr.bf16.mxu0 0
      %6776 = vmatpush1.bf16.msra.mxu0 0
      %6777 = vmatprep.subr.bf16.mxu0 0
      %6778 = vmatpush1.bf16.msra.mxu0 0
      %6779 = vmatprep.subr.bf16.mxu0 0
      %6780 = vmatpush1.bf16.msra.mxu0 0
      %6781 = vmatprep.subr.bf16.mxu0 0
      %6782 = vmatpush1.bf16.msra.mxu0 0
      %6783 = vmatprep.subr.bf16.mxu0 0
      %6784 = vmatpush1.bf16.msra.mxu0 0
      %6785 = vmatprep.subr.bf16.mxu0 0
      %6786 = vmatpush1.bf16.msra.mxu0 0
      %6787 = vmatprep.subr.bf16.mxu0 0
      %6788 = vmatpush1.bf16.msra.mxu0 0
      %6789 = vmatprep.subr.bf16.mxu0 0
      %6790 = vmatpush1.bf16.msra.mxu0 0
      %6791 = vmatprep.mubr.bf16.mxu0 0
      %6792 = vmatmul.mubr.bf16.gmra.mrb[0].mxu0 %v6612
      %v6793 = vpop.f32.mrb[0].mxu0
      %v6794 = vadd.f32 %v6619, %v6793
      %v6795 = vpop.f32.mrb[0].mxu0
      %v6796 = vadd.f32 %v6623, %v6795
      %v6797 = vpop.f32.mrb[0].mxu0
      %v6798 = vpop.f32.mrb[0].mxu0
      %6799 = vdwg.mxu0
      %6800 = vmatprep.subr.bf16.mxu0 0
      %6801 = vmatpush1.bf16.msra.mxu0 %v6713
      %6802 = vmatprep.subr.bf16.mxu0 0
      %6803 = vmatpush1.bf16.msra.mxu0 %v6716
      %6804 = vmatprep.subr.bf16.mxu0 0
      %6805 = vmatpush1.bf16.msra.mxu0 %v6719
      %6806 = vmatprep.subr.bf16.mxu0 0
      %6807 = vmatpush1.bf16.msra.mxu0 %v6722
      %6808 = vmatprep.subr.bf16.mxu0 0
      %6809 = vmatpush1.bf16.msra.mxu0 %v6725
      %6810 = vmatprep.subr.bf16.mxu0 0
      %6811 = vmatpush1.bf16.msra.mxu0 %v6728
      %6812 = vmatprep.subr.bf16.mxu0 0
      %6813 = vmatpush1.bf16.msra.mxu0 %v6731
      %6814 = vmatprep.subr.bf16.mxu0 0
      %6815 = vmatpush1.bf16.msra.mxu0 %v6734
      %6816 = vmatprep.subr.bf16.mxu0 0
      %6817 = vmatpush1.bf16.msra.mxu0 0
      %6818 = vmatprep.subr.bf16.mxu0 0
      %6819 = vmatpush1.bf16.msra.mxu0 0
      %6820 = vmatprep.subr.bf16.mxu0 0
      %6821 = vmatpush1.bf16.msra.mxu0 0
      %6822 = vmatprep.subr.bf16.mxu0 0
      %6823 = vmatpush1.bf16.msra.mxu0 0
      %6824 = vmatprep.subr.bf16.mxu0 0
      %6825 = vmatpush1.bf16.msra.mxu0 0
      %6826 = vmatprep.subr.bf16.mxu0 0
      %6827 = vmatpush1.bf16.msra.mxu0 0
      %6828 = vmatprep.subr.bf16.mxu0 0
      %6829 = vmatpush1.bf16.msra.mxu0 0
      %6830 = vmatprep.subr.bf16.mxu0 0
      %6831 = vmatpush1.bf16.msra.mxu0 0
      %6832 = vmatprep.mubr.bf16.mxu0 0
      %6833 = vmatmul.mubr.bf16.gmra.mrb[0].mxu0 %v6612
      %v6834 = vpop.f32.mrb[0].mxu0
      %v6835 = vadd.f32 %v6627, %v6834
      %v6836 = vpop.f32.mrb[0].mxu0
      %v6837 = vpop.f32.mrb[0].mxu0
      %v6838 = vpop.f32.mrb[0].mxu0
      %6839 = vdwg.mxu0
      %v6840 = vpack.c.bf16 %v6794, %v6794
      %v6841 = vpack.c.bf16 %v6796, %v6796
      %v6843 = vsel %vm1413, %v6840, 0
      %v6846 = vsel %vm1413, %v6841, 0
      %6848 = vmatprep.subr.bf16.mxu0 0
      %6849 = vmatpush1.bf16.xpose.msra.mxu0 %v6846
      %6850 = vmatprep.subr.bf16.mxu0 0
      %6851 = vmatpush1.bf16.xpose.msra.mxu0 0
      %6852 = vmatprep.subr.bf16.mxu0 0
      %6853 = vmatpush1.bf16.xpose.msra.mxu0 0
      %6854 = vmatprep.subr.bf16.mxu0 0
      %6855 = vmatpush1.bf16.xpose.msra.mxu0 0
      %6856 = vmatprep.subr.bf16.mxu0 0
      %6857 = vmatpush1.bf16.xpose.msra.mxu0 0
      %6858 = vmatprep.subr.bf16.mxu0 0
      %6859 = vmatpush1.bf16.xpose.msra.mxu0 0
      %6860 = vmatprep.subr.bf16.mxu0 0
      %6861 = vmatpush1.bf16.xpose.msra.mxu0 0
      %6862 = vmatprep.subr.bf16.mxu0 0
      %6863 = vmatpush1.bf16.xpose.msra.mxu0 0
      %6864 = vmatprep.subr.bf16.mxu0 0
      %6865 = vmatpush1.bf16.xpose.msra.mxu0 0
      %6866 = vmatprep.subr.bf16.mxu0 0
      %6867 = vmatpush1.bf16.xpose.msra.mxu0 0
      %6868 = vmatprep.subr.bf16.mxu0 0
      %6869 = vmatpush1.bf16.xpose.msra.mxu0 0
      %6870 = vmatprep.subr.bf16.mxu0 0
      %6871 = vmatpush1.bf16.xpose.msra.mxu0 0
      %6872 = vmatprep.subr.bf16.mxu0 0
      %6873 = vmatpush1.bf16.xpose.msra.mxu0 0
      %6874 = vmatprep.subr.bf16.mxu0 0
      %6875 = vmatpush1.bf16.xpose.msra.mxu0 0
      %6876 = vmatprep.subr.bf16.mxu0 0
      %6877 = vmatpush1.bf16.xpose.msra.mxu0 0
      %6878 = vmatprep.subr.bf16.mxu0 0
      %6879 = vmatpush1.bf16.xpose.msra.mxu0 0
      %6880 = vmatprep.mubr.bf16.mxu0 0
      %6881 = vmatmul.mubr.bf16.gmra.mrb[0].mxu0 %v6843
      %v6882 = vpop.f32.mrb[0].mxu0
      %v6883 = vadd.f32 0.0, %v6882
      %v6884 = vpop.f32.mrb[0].mxu0
      %v6885 = vpop.f32.mrb[0].mxu0
      %v6886 = vpop.f32.mrb[0].mxu0
      %6887 = vdwg.mxu0
      %v6888 = vmul.f32 %v6883, 0.125
      %v6889 = vadd.f32 %v6888, %v1465
      %v6890 = vsel %vm1468, %v6889, -inf
      %6891 = vmax.xlane.f32.xlu0 %v6890
      %v6892 = vpop.xlane.xlu0 %6891
      %v6893 = vsub.f32 %v6889, %v6892
      %v6894 = vmul.f32 %v6893, 1.442695
      %v6895 = vpow.pop %v6894
      %v6896 = vsel %vm1468, %v6895, 0.0
      %6897 = vadd.xlane.f32.xlu0 %v6896
      %v6898 = vpop.xlane.xlu0 %6897
      %v6899 = vrcp.pop %v6898
      %v6900 = vmul.f32 %v6895, %v6899
      %v6901 = vpack.c.bf16 %v6835, %v6835
      %v6902 = vpack.c.bf16 %v6900, %v6900
      %v6904 = vsel %vm1468, %v6902, 0
      %v6907 = vsel %vm1485, %v6901, 0
      %6909 = vmatprep.subr.bf16.mxu0 0
      %6910 = vmatpush1.bf16.msra.mxu0 %v6907
      %6911 = vmatprep.subr.bf16.mxu0 0
      %6912 = vmatpush1.bf16.msra.mxu0 0
      %6913 = vmatprep.subr.bf16.mxu0 0
      %6914 = vmatpush1.bf16.msra.mxu0 0
      %6915 = vmatprep.subr.bf16.mxu0 0
      %6916 = vmatpush1.bf16.msra.mxu0 0
      %6917 = vmatprep.subr.bf16.mxu0 0
      %6918 = vmatpush1.bf16.msra.mxu0 0
      %6919 = vmatprep.subr.bf16.mxu0 0
      %6920 = vmatpush1.bf16.msra.mxu0 0
      %6921 = vmatprep.subr.bf16.mxu0 0
      %6922 = vmatpush1.bf16.msra.mxu0 0
      %6923 = vmatprep.subr.bf16.mxu0 0
      %6924 = vmatpush1.bf16.msra.mxu0 0
      %6925 = vmatprep.subr.bf16.mxu0 0
      %6926 = vmatpush1.bf16.msra.mxu0 0
      %6927 = vmatprep.subr.bf16.mxu0 0
      %6928 = vmatpush1.bf16.msra.mxu0 0
      %6929 = vmatprep.subr.bf16.mxu0 0
      %6930 = vmatpush1.bf16.msra.mxu0 0
      %6931 = vmatprep.subr.bf16.mxu0 0
      %6932 = vmatpush1.bf16.msra.mxu0 0
      %6933 = vmatprep.subr.bf16.mxu0 0
      %6934 = vmatpush1.bf16.msra.mxu0 0
      %6935 = vmatprep.subr.bf16.mxu0 0
      %6936 = vmatpush1.bf16.msra.mxu0 0
      %6937 = vmatprep.subr.bf16.mxu0 0
      %6938 = vmatpush1.bf16.msra.mxu0 0
      %6939 = vmatprep.subr.bf16.mxu0 0
      %6940 = vmatpush1.bf16.msra.mxu0 0
      %6941 = vmatprep.mubr.bf16.mxu0 0
      %6942 = vmatmul.mubr.bf16.gmra.mrb[0].mxu0 %v6904
      %v6943 = vpop.f32.mrb[0].mxu0
      %v6944 = vadd.f32 0.0, %v6943
      %v6945 = vpop.f32.mrb[0].mxu0
      %v6946 = vpop.f32.mrb[0].mxu0
      %v6947 = vpop.f32.mrb[0].mxu0
      %6948 = vdwg.mxu0
      %6950 = vrot.lane.b32.xlu0 %v6840, 64
      %v6951 = vpop.permute.xlu0 %6950
      %6953 = vrot.lane.b32.xlu0 %v6841, 64
      %v6954 = vpop.permute.xlu0 %6953
      %v6956 = vsel %vm1413, %v6951, 0
      %v6959 = vsel %vm1413, %v6954, 0
      %6961 = vmatprep.subr.bf16.mxu0 0
      %6962 = vmatpush1.bf16.xpose.msra.mxu0 %v6959
      %6963 = vmatprep.subr.bf16.mxu0 0
      %6964 = vmatpush1.bf16.xpose.msra.mxu0 0
      %6965 = vmatprep.subr.bf16.mxu0 0
      %6966 = vmatpush1.bf16.xpose.msra.mxu0 0
      %6967 = vmatprep.subr.bf16.mxu0 0
      %6968 = vmatpush1.bf16.xpose.msra.mxu0 0
      %6969 = vmatprep.subr.bf16.mxu0 0
      %6970 = vmatpush1.bf16.xpose.msra.mxu0 0
      %6971 = vmatprep.subr.bf16.mxu0 0
      %6972 = vmatpush1.bf16.xpose.msra.mxu0 0
      %6973 = vmatprep.subr.bf16.mxu0 0
      %6974 = vmatpush1.bf16.xpose.msra.mxu0 0
      %6975 = vmatprep.subr.bf16.mxu0 0
      %6976 = vmatpush1.bf16.xpose.msra.mxu0 0
      %6977 = vmatprep.subr.bf16.mxu0 0
      %6978 = vmatpush1.bf16.xpose.msra.mxu0 0
      %6979 = vmatprep.subr.bf16.mxu0 0
      %6980 = vmatpush1.bf16.xpose.msra.mxu0 0
      %6981 = vmatprep.subr.bf16.mxu0 0
      %6982 = vmatpush1.bf16.xpose.msra.mxu0 0
      %6983 = vmatprep.subr.bf16.mxu0 0
      %6984 = vmatpush1.bf16.xpose.msra.mxu0 0
      %6985 = vmatprep.subr.bf16.mxu0 0
      %6986 = vmatpush1.bf16.xpose.msra.mxu0 0
      %6987 = vmatprep.subr.bf16.mxu0 0
      %6988 = vmatpush1.bf16.xpose.msra.mxu0 0
      %6989 = vmatprep.subr.bf16.mxu0 0
      %6990 = vmatpush1.bf16.xpose.msra.mxu0 0
      %6991 = vmatprep.subr.bf16.mxu0 0
      %6992 = vmatpush1.bf16.xpose.msra.mxu0 0
      %6993 = vmatprep.mubr.bf16.mxu0 0
      %6994 = vmatmul.mubr.bf16.gmra.mrb[0].mxu0 %v6956
      %v6995 = vpop.f32.mrb[0].mxu0
      %v6996 = vadd.f32 0.0, %v6995
      %v6997 = vpop.f32.mrb[0].mxu0
      %v6998 = vpop.f32.mrb[0].mxu0
      %v6999 = vpop.f32.mrb[0].mxu0
      %7000 = vdwg.mxu0
      %v7001 = vmul.f32 %v6996, 0.125
      %v7002 = vadd.f32 %v7001, %v1465
      %v7003 = vsel %vm1468, %v7002, -inf
      %7004 = vmax.xlane.f32.xlu0 %v7003
      %v7005 = vpop.xlane.xlu0 %7004
      %v7006 = vsub.f32 %v7002, %v7005
      %v7007 = vmul.f32 %v7006, 1.442695
      %v7008 = vpow.pop %v7007
      %v7009 = vsel %vm1468, %v7008, 0.0
      %7010 = vadd.xlane.f32.xlu0 %v7009
      %v7011 = vpop.xlane.xlu0 %7010
      %v7012 = vrcp.pop %v7011
      %v7013 = vmul.f32 %v7008, %v7012
      %v7014 = vpack.c.bf16 %v7013, %v7013
      %7016 = vrot.lane.b32.xlu0 %v6901, 64
      %v7017 = vpop.permute.xlu0 %7016
      %v7019 = vsel %vm1468, %v7014, 0
      %v7022 = vsel %vm1485, %v7017, 0
      %7024 = vmatprep.subr.bf16.mxu0 0
      %7025 = vmatpush1.bf16.msra.mxu0 %v7022
      %7026 = vmatprep.subr.bf16.mxu0 0
      %7027 = vmatpush1.bf16.msra.mxu0 0
      %7028 = vmatprep.subr.bf16.mxu0 0
      %7029 = vmatpush1.bf16.msra.mxu0 0
      %7030 = vmatprep.subr.bf16.mxu0 0
      %7031 = vmatpush1.bf16.msra.mxu0 0
      %7032 = vmatprep.subr.bf16.mxu0 0
      %7033 = vmatpush1.bf16.msra.mxu0 0
      %7034 = vmatprep.subr.bf16.mxu0 0
      %7035 = vmatpush1.bf16.msra.mxu0 0
      %7036 = vmatprep.subr.bf16.mxu0 0
      %7037 = vmatpush1.bf16.msra.mxu0 0
      %7038 = vmatprep.subr.bf16.mxu0 0
      %7039 = vmatpush1.bf16.msra.mxu0 0
      %7040 = vmatprep.subr.bf16.mxu0 0
      %7041 = vmatpush1.bf16.msra.mxu0 0
      %7042 = vmatprep.subr.bf16.mxu0 0
      %7043 = vmatpush1.bf16.msra.mxu0 0
      %7044 = vmatprep.subr.bf16.mxu0 0
      %7045 = vmatpush1.bf16.msra.mxu0 0
      %7046 = vmatprep.subr.bf16.mxu0 0
      %7047 = vmatpush1.bf16.msra.mxu0 0
      %7048 = vmatprep.subr.bf16.mxu0 0
      %7049 = vmatpush1.bf16.msra.mxu0 0
      %7050 = vmatprep.subr.bf16.mxu0 0
      %7051 = vmatpush1.bf16.msra.mxu0 0
      %7052 = vmatprep.subr.bf16.mxu0 0
      %7053 = vmatpush1.bf16.msra.mxu0 0
      %7054 = vmatprep.subr.bf16.mxu0 0
      %7055 = vmatpush1.bf16.msra.mxu0 0
      %7056 = vmatprep.mubr.bf16.mxu0 0
      %7057 = vmatmul.mubr.bf16.gmra.mrb[0].mxu0 %v7019
      %v7058 = vpop.f32.mrb[0].mxu0
      %v7059 = vadd.f32 0.0, %v7058
      %v7060 = vpop.f32.mrb[0].mxu0
      %v7061 = vpop.f32.mrb[0].mxu0
      %v7062 = vpop.f32.mrb[0].mxu0
      %7063 = vdwg.mxu0
      %7065 = vrot.lane.b32.xlu0 %v7059, 64
      %v7066 = vpop.permute.xlu0 %7065
      %v7068 = vsel %vm1413, %v6944, %v7066
      %s7069 = scalar_lea.vmem %s13, 256
      %v7070 = vld [vmem:[%s7069] sm:$0xf]
      %v7071 = vld [vmem:[%s7069 + $0x4] sm:$0xf]
      %v7072 = vld [vmem:[%s7069 + $0x8] sm:$0xf]
      %v7073 = vld [vmem:[%s7069 + $0xc] sm:$0xf]
      %v7074 = vld [vmem:[%s7069 + $0x10] sm:$0xf]
      %v7075 = vld [vmem:[%s7069 + $0x14] sm:$0xf]
      %v7076 = vld [vmem:[%s7069 + $0x18] sm:$0xf]
      %v7077 = vld [vmem:[%s7069 + $0x1c] sm:$0xf]
      %v7078 = vld [vmem:[%s7069 + $0x20] sm:$0xf]
      %v7079 = vld [vmem:[%s7069 + $0x24] sm:$0xf]
      %v7080 = vld [vmem:[%s7069 + $0x28] sm:$0xf]
      %v7081 = vld [vmem:[%s7069 + $0x2c] sm:$0xf]
      %v7082 = vld [vmem:[%s7069 + $0x30] sm:$0xf]
      %v7083 = vld [vmem:[%s7069 + $0x34] sm:$0xf]
      %v7084 = vld [vmem:[%s7069 + $0x38] sm:$0xf]
      %v7085 = vld [vmem:[%s7069 + $0x3c] sm:$0xf]
      %v7086 = vpack.c.bf16 %v7068, %v7068
      %s7087 = scalar_lea.vmem %s14, 4
      %v7088 = vld [vmem:[%s7087] sm:$0x1]
      %v7090 = vlaneseq
      %v7091 = vshrl.u32 %v7090, 7
      %v7092 = vsub.s32 0, %v7091
      %v7093 = vrot.slane %v7088, %v7092
      %v7111 = vunpack.c.l.b16 %v7070
      %v7112 = vunpack.c.l.b16 %v7071
      %v7113 = vunpack.c.l.b16 %v7072
      %v7114 = vunpack.c.l.b16 %v7073
      %v7115 = vunpack.c.l.b16 %v7074
      %v7116 = vunpack.c.l.b16 %v7075
      %v7117 = vunpack.c.l.b16 %v7076
      %v7118 = vunpack.c.l.b16 %v7077
      %v7119 = vunpack.c.l.b16 %v7078
      %v7120 = vunpack.c.l.b16 %v7079
      %v7121 = vunpack.c.l.b16 %v7080
      %v7122 = vunpack.c.l.b16 %v7081
      %v7123 = vunpack.c.l.b16 %v7082
      %v7124 = vunpack.c.l.b16 %v7083
      %v7125 = vunpack.c.l.b16 %v7084
      %v7126 = vunpack.c.l.b16 %v7085
      %v7127 = vpack.c.b16 %v7112, %v7111
      %v7128 = vpack.c.b16 %v7114, %v7113
      %v7129 = vpack.c.b16 %v7116, %v7115
      %v7130 = vpack.c.b16 %v7118, %v7117
      %v7131 = vpack.c.b16 %v7120, %v7119
      %v7132 = vpack.c.b16 %v7122, %v7121
      %v7133 = vpack.c.b16 %v7124, %v7123
      %v7134 = vpack.c.b16 %v7126, %v7125
      %7143 = vmatprep.subr.bf16.mxu0 0
      %7144 = vmatpush1.bf16.msra.mxu0 %v7127
      %7145 = vmatprep.subr.bf16.mxu0 0
      %7146 = vmatpush1.bf16.msra.mxu0 %v7128
      %7147 = vmatprep.subr.bf16.mxu0 0
      %7148 = vmatpush1.bf16.msra.mxu0 %v7129
      %7149 = vmatprep.subr.bf16.mxu0 0
      %7150 = vmatpush1.bf16.msra.mxu0 %v7130
      %7151 = vmatprep.subr.bf16.mxu0 0
      %7152 = vmatpush1.bf16.msra.mxu0 %v7131
      %7153 = vmatprep.subr.bf16.mxu0 0
      %7154 = vmatpush1.bf16.msra.mxu0 %v7132
      %7155 = vmatprep.subr.bf16.mxu0 0
      %7156 = vmatpush1.bf16.msra.mxu0 %v7133
      %7157 = vmatprep.subr.bf16.mxu0 0
      %7158 = vmatpush1.bf16.msra.mxu0 %v7134
      %7159 = vmatprep.subr.bf16.mxu0 0
      %7160 = vmatpush1.bf16.msra.mxu0 0
      %7161 = vmatprep.subr.bf16.mxu0 0
      %7162 = vmatpush1.bf16.msra.mxu0 0
      %7163 = vmatprep.subr.bf16.mxu0 0
      %7164 = vmatpush1.bf16.msra.mxu0 0
      %7165 = vmatprep.subr.bf16.mxu0 0
      %7166 = vmatpush1.bf16.msra.mxu0 0
      %7167 = vmatprep.subr.bf16.mxu0 0
      %7168 = vmatpush1.bf16.msra.mxu0 0
      %7169 = vmatprep.subr.bf16.mxu0 0
      %7170 = vmatpush1.bf16.msra.mxu0 0
      %7171 = vmatprep.subr.bf16.mxu0 0
      %7172 = vmatpush1.bf16.msra.mxu0 0
      %7173 = vmatprep.subr.bf16.mxu0 0
      %7174 = vmatpush1.bf16.msra.mxu0 0
      %7175 = vmatprep.mubr.bf16.mxu0 0
      %7176 = vmatmul.mubr.bf16.gmra.mrb[0].mxu0 %v7086
      %v7177 = vpop.f32.mrb[0].mxu0
      %v7178 = vadd.f32 %v7093, %v7177
      %v7179 = vpop.f32.mrb[0].mxu0
      %v7180 = vpop.f32.mrb[0].mxu0
      %v7181 = vpop.f32.mrb[0].mxu0
      %7182 = vdwg.mxu0
      %v7183 = vadd.f32 %v7178, %v6549
      %s7184 = scalar_lea.vmem %s15, 4
      %v7185 = vld [vmem:[%s7184] sm:$0x1]
      %s7186 = scalar_lea.vmem %s16, 4
      %v7187 = vld [vmem:[%s7186] sm:$0x1]
      %7188 = vadd.xlane.f32.xlu0 %v7183
      %v7189 = vpop.xlane.xlu0 %7188
      %v7190 = vmul.f32 %v7189, %v1128
      %v7191 = vsub.f32 %v7183, %v7190
      %v7192 = vmul.f32 %v7191, %v7191
      %7193 = vadd.xlane.f32.xlu0 %v7192
      %v7194 = vpop.xlane.xlu0 %7193
      %v7195 = vmul.f32 %v7194, %v1128
      %v7196 = vadd.f32 %v7195, 1e-06
      %v7197 = vrsqrt.pop %v7196
      %v7198 = vmul.f32 %v7191, %v7197
      %v7200 = vlaneseq
      %v7201 = vshrl.u32 %v7200, 7
      %v7202 = vsub.s32 0, %v7201
      %v7203 = vrot.slane %v7185, %v7202
      %v7205 = vmul.f32 %v7198, %v7203
      %v7207 = vlaneseq
      %v7208 = vshrl.u32 %v7207, 7
      %v7209 = vsub.s32 0, %v7208
      %v7210 = vrot.slane %v7187, %v7209
      %v7212 = vadd.f32 %v7205, %v7210
      %s7213 = scalar_lea.vmem %s17, 1024
      %v7214 = vld [vmem:[%s7213] sm:$0xff]
      %v7215 = vld [vmem:[%s7213 + $0x8] sm:$0xff]
      %v7216 = vld [vmem:[%s7213 + $0x10] sm:$0xff]
      %v7217 = vld [vmem:[%s7213 + $0x18] sm:$0xff]
      %v7218 = vld [vmem:[%s7213 + $0x20] sm:$0xff]
      %v7219 = vld [vmem:[%s7213 + $0x28] sm:$0xff]
      %v7220 = vld [vmem:[%s7213 + $0x30] sm:$0xff]
      %v7221 = vld [vmem:[%s7213 + $0x38] sm:$0xff]
      %v7222 = vld [vmem:[%s7213 + $0x40] sm:$0xff]
      %v7223 = vld [vmem:[%s7213 + $0x48] sm:$0xff]
      %v7224 = vld [vmem:[%s7213 + $0x50] sm:$0xff]
      %v7225 = vld [vmem:[%s7213 + $0x58] sm:$0xff]
      %v7226 = vld [vmem:[%s7213 + $0x60] sm:$0xff]
      %v7227 = vld [vmem:[%s7213 + $0x68] sm:$0xff]
      %v7228 = vld [vmem:[%s7213 + $0x70] sm:$0xff]
      %v7229 = vld [vmem:[%s7213 + $0x78] sm:$0xff]
      %v7230 = vld [vmem:[%s7213 + $0x80] sm:$0xff]
      %v7231 = vld [vmem:[%s7213 + $0x88] sm:$0xff]
      %v7232 = vld [vmem:[%s7213 + $0x90] sm:$0xff]
      %v7233 = vld [vmem:[%s7213 + $0x98] sm:$0xff]
      %v7234 = vld [vmem:[%s7213 + $0xa0] sm:$0xff]
      %v7235 = vld [vmem:[%s7213 + $0xa8] sm:$0xff]
      %v7236 = vld [vmem:[%s7213 + $0xb0] sm:$0xff]
      %v7237 = vld [vmem:[%s7213 + $0xb8] sm:$0xff]
      %v7238 = vld [vmem:[%s7213 + $0xc0] sm:$0xff]
      %v7239 = vld [vmem:[%s7213 + $0xc8] sm:$0xff]
      %v7240 = vld [vmem:[%s7213 + $0xd0] sm:$0xff]
      %v7241 = vld [vmem:[%s7213 + $0xd8] sm:$0xff]
      %v7242 = vld [vmem:[%s7213 + $0xe0] sm:$0xff]
      %v7243 = vld [vmem:[%s7213 + $0xe8] sm:$0xff]
      %v7244 = vld [vmem:[%s7213 + $0xf0] sm:$0xff]
      %v7245 = vld [vmem:[%s7213 + $0xf8] sm:$0xff]
      %v7246 = vpack.c.bf16 %v7212, %v7212
      %s7247 = scalar_lea.vmem %s18, 16
      %v7248 = vld [vmem:[%s7247] sm:$0xf]
      %v7250 = vlaneseq
      %v7251 = vshrl.u32 %v7250, 7
      %v7252 = vsub.s32 0, %v7251
      %v7253 = vrot.slane %v7248, %v7252
      %v7254 = vlaneseq
      %v7255 = vshrl.u32 %v7254, 7
      %v7256 = vsub.s32 1, %v7255
      %v7257 = vrot.slane %v7248, %v7256
      %v7258 = vlaneseq
      %v7259 = vshrl.u32 %v7258, 7
      %v7260 = vsub.s32 2, %v7259
      %v7261 = vrot.slane %v7248, %v7260
      %v7262 = vlaneseq
      %v7263 = vshrl.u32 %v7262, 7
      %v7264 = vsub.s32 3, %v7263
      %v7265 = vrot.slane %v7248, %v7264
      %v7302 = vunpack.c.l.b16 %v7214
      %v7303 = vunpack.c.h.b16 %v7214
      %v7304 = vunpack.c.l.b16 %v7215
      %v7305 = vunpack.c.h.b16 %v7215
      %v7306 = vunpack.c.l.b16 %v7216
      %v7307 = vunpack.c.h.b16 %v7216
      %v7308 = vunpack.c.l.b16 %v7217
      %v7309 = vunpack.c.h.b16 %v7217
      %v7310 = vunpack.c.l.b16 %v7218
      %v7311 = vunpack.c.h.b16 %v7218
      %v7312 = vunpack.c.l.b16 %v7219
      %v7313 = vunpack.c.h.b16 %v7219
      %v7314 = vunpack.c.l.b16 %v7220
      %v7315 = vunpack.c.h.b16 %v7220
      %v7316 = vunpack.c.l.b16 %v7221
      %v7317 = vunpack.c.h.b16 %v7221
      %v7318 = vunpack.c.l.b16 %v7222
      %v7319 = vunpack.c.h.b16 %v7222
      %v7320 = vunpack.c.l.b16 %v7223
      %v7321 = vunpack.c.h.b16 %v7223
      %v7322 = vunpack.c.l.b16 %v7224
      %v7323 = vunpack.c.h.b16 %v7224
      %v7324 = vunpack.c.l.b16 %v7225
      %v7325 = vunpack.c.h.b16 %v7225
      %v7326 = vunpack.c.l.b16 %v7226
      %v7327 = vunpack.c.h.b16 %v7226
      %v7328 = vunpack.c.l.b16 %v7227
      %v7329 = vunpack.c.h.b16 %v7227
      %v7330 = vunpack.c.l.b16 %v7228
      %v7331 = vunpack.c.h.b16 %v7228
      %v7332 = vunpack.c.l.b16 %v7229
      %v7333 = vunpack.c.h.b16 %v7229
      %v7334 = vunpack.c.l.b16 %v7230
      %v7335 = vunpack.c.h.b16 %v7230
      %v7336 = vunpack.c.l.b16 %v7231
      %v7337 = vunpack.c.h.b16 %v7231
      %v7338 = vunpack.c.l.b16 %v7232
      %v7339 = vunpack.c.h.b16 %v7232
      %v7340 = vunpack.c.l.b16 %v7233
      %v7341 = vunpack.c.h.b16 %v7233
      %v7342 = vunpack.c.l.b16 %v7234
      %v7343 = vunpack.c.h.b16 %v7234
      %v7344 = vunpack.c.l.b16 %v7235
      %v7345 = vunpack.c.h.b16 %v7235
      %v7346 = vunpack.c.l.b16 %v7236
      %v7347 = vunpack.c.h.b16 %v7236
      %v7348 = vunpack.c.l.b16 %v7237
      %v7349 = vunpack.c.h.b16 %v7237
      %v7350 = vunpack.c.l.b16 %v7238
      %v7351 = vunpack.c.h.b16 %v7238
      %v7352 = vunpack.c.l.b16 %v7239
      %v7353 = vunpack.c.h.b16 %v7239
      %v7354 = vunpack.c.l.b16 %v7240
      %v7355 = vunpack.c.h.b16 %v7240
      %v7356 = vunpack.c.l.b16 %v7241
      %v7357 = vunpack.c.h.b16 %v7241
      %v7358 = vunpack.c.l.b16 %v7242
      %v7359 = vunpack.c.h.b16 %v7242
      %v7360 = vunpack.c.l.b16 %v7243
      %v7361 = vunpack.c.h.b16 %v7243
      %v7362 = vunpack.c.l.b16 %v7244
      %v7363 = vunpack.c.h.b16 %v7244
      %v7364 = vunpack.c.l.b16 %v7245
      %v7365 = vunpack.c.h.b16 %v7245
      %v7366 = vpack.c.b16 %v7306, %v7302
      %v7367 = vpack.c.b16 %v7307, %v7303
      %v7368 = vpack.c.b16 %v7308, %v7304
      %v7369 = vpack.c.b16 %v7309, %v7305
      %v7370 = vpack.c.b16 %v7314, %v7310
      %v7371 = vpack.c.b16 %v7315, %v7311
      %v7372 = vpack.c.b16 %v7316, %v7312
      %v7373 = vpack.c.b16 %v7317, %v7313
      %v7374 = vpack.c.b16 %v7322, %v7318
      %v7375 = vpack.c.b16 %v7323, %v7319
      %v7376 = vpack.c.b16 %v7324, %v7320
      %v7377 = vpack.c.b16 %v7325, %v7321
      %v7378 = vpack.c.b16 %v7330, %v7326
      %v7379 = vpack.c.b16 %v7331, %v7327
      %v7380 = vpack.c.b16 %v7332, %v7328
      %v7381 = vpack.c.b16 %v7333, %v7329
      %v7382 = vpack.c.b16 %v7338, %v7334
      %v7383 = vpack.c.b16 %v7339, %v7335
      %v7384 = vpack.c.b16 %v7340, %v7336
      %v7385 = vpack.c.b16 %v7341, %v7337
      %v7386 = vpack.c.b16 %v7346, %v7342
      %v7387 = vpack.c.b16 %v7347, %v7343
      %v7388 = vpack.c.b16 %v7348, %v7344
      %v7389 = vpack.c.b16 %v7349, %v7345
      %v7390 = vpack.c.b16 %v7354, %v7350
      %v7391 = vpack.c.b16 %v7355, %v7351
      %v7392 = vpack.c.b16 %v7356, %v7352
      %v7393 = vpack.c.b16 %v7357, %v7353
      %v7394 = vpack.c.b16 %v7362, %v7358
      %v7395 = vpack.c.b16 %v7363, %v7359
      %v7396 = vpack.c.b16 %v7364, %v7360
      %v7397 = vpack.c.b16 %v7365, %v7361
      %7430 = vmatprep.subr.bf16.mxu0 %v7367
      %7431 = vmatpush1.bf16.msra.mxu0 %v7366
      %7432 = vmatprep.subr.bf16.mxu0 %v7371
      %7433 = vmatpush1.bf16.msra.mxu0 %v7370
      %7434 = vmatprep.subr.bf16.mxu0 %v7375
      %7435 = vmatpush1.bf16.msra.mxu0 %v7374
      %7436 = vmatprep.subr.bf16.mxu0 %v7379
      %7437 = vmatpush1.bf16.msra.mxu0 %v7378
      %7438 = vmatprep.subr.bf16.mxu0 %v7383
      %7439 = vmatpush1.bf16.msra.mxu0 %v7382
      %7440 = vmatprep.subr.bf16.mxu0 %v7387
      %7441 = vmatpush1.bf16.msra.mxu0 %v7386
      %7442 = vmatprep.subr.bf16.mxu0 %v7391
      %7443 = vmatpush1.bf16.msra.mxu0 %v7390
      %7444 = vmatprep.subr.bf16.mxu0 %v7395
      %7445 = vmatpush1.bf16.msra.mxu0 %v7394
      %7446 = vmatprep.subr.bf16.mxu0 0
      %7447 = vmatpush1.bf16.msra.mxu0 0
      %7448 = vmatprep.subr.bf16.mxu0 0
      %7449 = vmatpush1.bf16.msra.mxu0 0
      %7450 = vmatprep.subr.bf16.mxu0 0
      %7451 = vmatpush1.bf16.msra.mxu0 0
      %7452 = vmatprep.subr.bf16.mxu0 0
      %7453 = vmatpush1.bf16.msra.mxu0 0
      %7454 = vmatprep.subr.bf16.mxu0 0
      %7455 = vmatpush1.bf16.msra.mxu0 0
      %7456 = vmatprep.subr.bf16.mxu0 0
      %7457 = vmatpush1.bf16.msra.mxu0 0
      %7458 = vmatprep.subr.bf16.mxu0 0
      %7459 = vmatpush1.bf16.msra.mxu0 0
      %7460 = vmatprep.subr.bf16.mxu0 0
      %7461 = vmatpush1.bf16.msra.mxu0 0
      %7462 = vmatprep.mubr.bf16.mxu0 0
      %7463 = vmatmul.mubr.bf16.gmra.mrb[0].mxu0 %v7246
      %v7464 = vpop.f32.mrb[0].mxu0
      %v7465 = vadd.f32 %v7253, %v7464
      %v7466 = vpop.f32.mrb[0].mxu0
      %v7467 = vadd.f32 %v7257, %v7466
      %v7468 = vpop.f32.mrb[0].mxu0
      %v7469 = vpop.f32.mrb[0].mxu0
      %7470 = vdwg.mxu0
      %7471 = vmatprep.subr.bf16.mxu0 %v7369
      %7472 = vmatpush1.bf16.msra.mxu0 %v7368
      %7473 = vmatprep.subr.bf16.mxu0 %v7373
      %7474 = vmatpush1.bf16.msra.mxu0 %v7372
      %7475 = vmatprep.subr.bf16.mxu0 %v7377
      %7476 = vmatpush1.bf16.msra.mxu0 %v7376
      %7477 = vmatprep.subr.bf16.mxu0 %v7381
      %7478 = vmatpush1.bf16.msra.mxu0 %v7380
      %7479 = vmatprep.subr.bf16.mxu0 %v7385
      %7480 = vmatpush1.bf16.msra.mxu0 %v7384
      %7481 = vmatprep.subr.bf16.mxu0 %v7389
      %7482 = vmatpush1.bf16.msra.mxu0 %v7388
      %7483 = vmatprep.subr.bf16.mxu0 %v7393
      %7484 = vmatpush1.bf16.msra.mxu0 %v7392
      %7485 = vmatprep.subr.bf16.mxu0 %v7397
      %7486 = vmatpush1.bf16.msra.mxu0 %v7396
      %7487 = vmatprep.subr.bf16.mxu0 0
      %7488 = vmatpush1.bf16.msra.mxu0 0
      %7489 = vmatprep.subr.bf16.mxu0 0
      %7490 = vmatpush1.bf16.msra.mxu0 0
      %7491 = vmatprep.subr.bf16.mxu0 0
      %7492 = vmatpush1.bf16.msra.mxu0 0
      %7493 = vmatprep.subr.bf16.mxu0 0
      %7494 = vmatpush1.bf16.msra.mxu0 0
      %7495 = vmatprep.subr.bf16.mxu0 0
      %7496 = vmatpush1.bf16.msra.mxu0 0
      %7497 = vmatprep.subr.bf16.mxu0 0
      %7498 = vmatpush1.bf16.msra.mxu0 0
      %7499 = vmatprep.subr.bf16.mxu0 0
      %7500 = vmatpush1.bf16.msra.mxu0 0
      %7501 = vmatprep.subr.bf16.mxu0 0
      %7502 = vmatpush1.bf16.msra.mxu0 0
      %7503 = vmatprep.mubr.bf16.mxu0 0
      %7504 = vmatmul.mubr.bf16.gmra.mrb[0].mxu0 %v7246
      %v7505 = vpop.f32.mrb[0].mxu0
      %v7506 = vadd.f32 %v7261, %v7505
      %v7507 = vpop.f32.mrb[0].mxu0
      %v7508 = vadd.f32 %v7265, %v7507
      %v7509 = vpop.f32.mrb[0].mxu0
      %v7510 = vpop.f32.mrb[0].mxu0
      %7511 = vdwg.mxu0
      %v7512 = vmul.f32 %v7465, %v7465
      %v7513 = vmul.f32 %v7467, %v7467
      %v7514 = vmul.f32 %v7506, %v7506
      %v7515 = vmul.f32 %v7508, %v7508
      %v7516 = vmul.f32 %v7465, %v7512
      %v7517 = vmul.f32 %v7467, %v7513
      %v7518 = vmul.f32 %v7506, %v7514
      %v7519 = vmul.f32 %v7508, %v7515
      %v7520 = vmul.f32 %v7516, 0.044715
      %v7521 = vmul.f32 %v7517, 0.044715
      %v7522 = vmul.f32 %v7518, 0.044715
      %v7523 = vmul.f32 %v7519, 0.044715
      %v7524 = vadd.f32 %v7465, %v7520
      %v7525 = vadd.f32 %v7467, %v7521
      %v7526 = vadd.f32 %v7506, %v7522
      %v7527 = vadd.f32 %v7508, %v7523
      %v7528 = vmul.f32 %v7524, 0.7978846
      %v7529 = vmul.f32 %v7525, 0.7978846
      %v7530 = vmul.f32 %v7526, 0.7978846
      %v7531 = vmul.f32 %v7527, 0.7978846
      %v7532 = vtanh.pop %v7528
      %v7533 = vtanh.pop %v7529
      %v7534 = vtanh.pop %v7530
      %v7535 = vtanh.pop %v7531
      %v7536 = vadd.f32 %v7532, 1.0
      %v7537 = vadd.f32 %v7533, 1.0
      %v7538 = vadd.f32 %v7534, 1.0
      %v7539 = vadd.f32 %v7535, 1.0
      %v7540 = vmul.f32 %v7536, 0.5
      %v7541 = vmul.f32 %v7537, 0.5
      %v7542 = vmul.f32 %v7538, 0.5
      %v7543 = vmul.f32 %v7539, 0.5
      %v7544 = vmul.f32 %v7465, %v7540
      %v7545 = vmul.f32 %v7467, %v7541
      %v7546 = vmul.f32 %v7506, %v7542
      %v7547 = vmul.f32 %v7508, %v7543
      %s7548 = scalar_lea.vmem %s19, 1024
      %v7549 = vld [vmem:[%s7548] sm:$0xf]
      %v7550 = vld [vmem:[%s7548 + $0x4] sm:$0xf]
      %v7551 = vld [vmem:[%s7548 + $0x8] sm:$0xf]
      %v7552 = vld [vmem:[%s7548 + $0xc] sm:$0xf]
      %v7553 = vld [vmem:[%s7548 + $0x10] sm:$0xf]
      %v7554 = vld [vmem:[%s7548 + $0x14] sm:$0xf]
      %v7555 = vld [vmem:[%s7548 + $0x18] sm:$0xf]
      %v7556 = vld [vmem:[%s7548 + $0x1c] sm:$0xf]
      %v7557 = vld [vmem:[%s7548 + $0x20] sm:$0xf]
      %v7558 = vld [vmem:[%s7548 + $0x24] sm:$0xf]
      %v7559 = vld [vmem:[%s7548 + $0x28] sm:$0xf]
      %v7560 = vld [vmem:[%s7548 + $0x2c] sm:$0xf]
      %v7561 = vld [vmem:[%s7548 + $0x30] sm:$0xf]
      %v7562 = vld [vmem:[%s7548 + $0x34] sm:$0xf]
      %v7563 = vld [vmem:[%s7548 + $0x38] sm:$0xf]
      %v7564 = vld [vmem:[%s7548 + $0x3c] sm:$0xf]
      %v7565 = vld [vmem:[%s7548 + $0x40] sm:$0xf]
      %v7566 = vld [vmem:[%s7548 + $0x44] sm:$0xf]
      %v7567 = vld [vmem:[%s7548 + $0x48] sm:$0xf]
      %v7568 = vld [vmem:[%s7548 + $0x4c] sm:$0xf]
      %v7569 = vld [vmem:[%s7548 + $0x50] sm:$0xf]
      %v7570 = vld [vmem:[%s7548 + $0x54] sm:$0xf]
      %v7571 = vld [vmem:[%s7548 + $0x58] sm:$0xf]
      %v7572 = vld [vmem:[%s7548 + $0x5c] sm:$0xf]
      %v7573 = vld [vmem:[%s7548 + $0x60] sm:$0xf]
      %v7574 = vld [vmem:[%s7548 + $0x64] sm:$0xf]
      %v7575 = vld [vmem:[%s7548 + $0x68] sm:$0xf]
      %v7576 = vld [vmem:[%s7548 + $0x6c] sm:$0xf]
      %v7577 = vld [vmem:[%s7548 + $0x70] sm:$0xf]
      %v7578 = vld [vmem:[%s7548 + $0x74] sm:$0xf]
      %v7579 = vld [vmem:[%s7548 + $0x78] sm:$0xf]
      %v7580 = vld [vmem:[%s7548 + $0x7c] sm:$0xf]
      %v7581 = vld [vmem:[%s7548 + $0x80] sm:$0xf]
      %v7582 = vld [vmem:[%s7548 + $0x84] sm:$0xf]
      %v7583 = vld [vmem:[%s7548 + $0x88] sm:$0xf]
      %v7584 = vld [vmem:[%s7548 + $0x8c] sm:$0xf]
      %v7585 = vld [vmem:[%s7548 + $0x90] sm:$0xf]
      %v7586 = vld [vmem:[%s7548 + $0x94] sm:$0xf]
      %v7587 = vld [vmem:[%s7548 + $0x98] sm:$0xf]
      %v7588 = vld [vmem:[%s7548 + $0x9c] sm:$0xf]
      %v7589 = vld [vmem:[%s7548 + $0xa0] sm:$0xf]
      %v7590 = vld [vmem:[%s7548 + $0xa4] sm:$0xf]
      %v7591 = vld [vmem:[%s7548 + $0xa8] sm:$0xf]
      %v7592 = vld [vmem:[%s7548 + $0xac] sm:$0xf]
      %v7593 = vld [vmem:[%s7548 + $0xb0] sm:$0xf]
      %v7594 = vld [vmem:[%s7548 + $0xb4] sm:$0xf]
      %v7595 = vld [vmem:[%s7548 + $0xb8] sm:$0xf]
      %v7596 = vld [vmem:[%s7548 + $0xbc] sm:$0xf]
      %v7597 = vld [vmem:[%s7548 + $0xc0] sm:$0xf]
      %v7598 = vld [vmem:[%s7548 + $0xc4] sm:$0xf]
      %v7599 = vld [vmem:[%s7548 + $0xc8] sm:$0xf]
      %v7600 = vld [vmem:[%s7548 + $0xcc] sm:$0xf]
      %v7601 = vld [vmem:[%s7548 + $0xd0] sm:$0xf]
      %v7602 = vld [vmem:[%s7548 + $0xd4] sm:$0xf]
      %v7603 = vld [vmem:[%s7548 + $0xd8] sm:$0xf]
      %v7604 = vld [vmem:[%s7548 + $0xdc] sm:$0xf]
      %v7605 = vld [vmem:[%s7548 + $0xe0] sm:$0xf]
      %v7606 = vld [vmem:[%s7548 + $0xe4] sm:$0xf]
      %v7607 = vld [vmem:[%s7548 + $0xe8] sm:$0xf]
      %v7608 = vld [vmem:[%s7548 + $0xec] sm:$0xf]
      %v7609 = vld [vmem:[%s7548 + $0xf0] sm:$0xf]
      %v7610 = vld [vmem:[%s7548 + $0xf4] sm:$0xf]
      %v7611 = vld [vmem:[%s7548 + $0xf8] sm:$0xf]
      %v7612 = vld [vmem:[%s7548 + $0xfc] sm:$0xf]
      %v7613 = vpack.c.bf16 %v7544, %v7544
      %v7614 = vpack.c.bf16 %v7545, %v7545
      %v7615 = vpack.c.bf16 %v7546, %v7546
      %v7616 = vpack.c.bf16 %v7547, %v7547
      %s7617 = scalar_lea.vmem %s20, 4
      %v7618 = vld [vmem:[%s7617] sm:$0x1]
      %v7620 = vlaneseq
      %v7621 = vshrl.u32 %v7620, 7
      %v7622 = vsub.s32 0, %v7621
      %v7623 = vrot.slane %v7618, %v7622
      %v7689 = vunpack.c.l.b16 %v7549
      %v7690 = vunpack.c.l.b16 %v7550
      %v7691 = vunpack.c.l.b16 %v7551
      %v7692 = vunpack.c.l.b16 %v7552
      %v7693 = vunpack.c.l.b16 %v7553
      %v7694 = vunpack.c.l.b16 %v7554
      %v7695 = vunpack.c.l.b16 %v7555
      %v7696 = vunpack.c.l.b16 %v7556
      %v7697 = vunpack.c.l.b16 %v7557
      %v7698 = vunpack.c.l.b16 %v7558
      %v7699 = vunpack.c.l.b16 %v7559
      %v7700 = vunpack.c.l.b16 %v7560
      %v7701 = vunpack.c.l.b16 %v7561
      %v7702 = vunpack.c.l.b16 %v7562
      %v7703 = vunpack.c.l.b16 %v7563
      %v7704 = vunpack.c.l.b16 %v7564
      %v7705 = vunpack.c.l.b16 %v7565
      %v7706 = vunpack.c.l.b16 %v7566
      %v7707 = vunpack.c.l.b16 %v7567
      %v7708 = vunpack.c.l.b16 %v7568
      %v7709 = vunpack.c.l.b16 %v7569
      %v7710 = vunpack.c.l.b16 %v7570
      %v7711 = vunpack.c.l.b16 %v7571
      %v7712 = vunpack.c.l.b16 %v7572
      %v7713 = vunpack.c.l.b16 %v7573
      %v7714 = vunpack.c.l.b16 %v7574
      %v7715 = vunpack.c.l.b16 %v7575
      %v7716 = vunpack.c.l.b16 %v7576
      %v7717 = vunpack.c.l.b16 %v7577
      %v7718 = vunpack.c.l.b16 %v7578
      %v7719 = vunpack.c.l.b16 %v7579
      %v7720 = vunpack.c.l.b16 %v7580
      %v7721 = vunpack.c.l.b16 %v7581
      %v7722 = vunpack.c.l.b16 %v7582
      %v7723 = vunpack.c.l.b16 %v7583
      %v7724 = vunpack.c.l.b16 %v7584
      %v7725 = vunpack.c.l.b16 %v7585
      %v7726 = vunpack.c.l.b16 %v7586
      %v7727 = vunpack.c.l.b16 %v7587
      %v7728 = vunpack.c.l.b16 %v7588
      %v7729 = vunpack.c.l.b16 %v7589
      %v7730 = vunpack.c.l.b16 %v7590
      %v7731 = vunpack.c.l.b16 %v7591
      %v7732 = vunpack.c.l.b16 %v7592
      %v7733 = vunpack.c.l.b16 %v7593
      %v7734 = vunpack.c.l.b16 %v7594
      %v7735 = vunpack.c.l.b16 %v7595
      %v7736 = vunpack.c.l.b16 %v7596
      %v7737 = vunpack.c.l.b16 %v7597
      %v7738 = vunpack.c.l.b16 %v7598
      %v7739 = vunpack.c.l.b16 %v7599
      %v7740 = vunpack.c.l.b16 %v7600
      %v7741 = vunpack.c.l.b16 %v7601
      %v7742 = vunpack.c.l.b16 %v7602
      %v7743 = vunpack.c.l.b16 %v7603
      %v7744 = vunpack.c.l.b16 %v7604
      %v7745 = vunpack.c.l.b16 %v7605
      %v7746 = vunpack.c.l.b16 %v7606
      %v7747 = vunpack.c.l.b16 %v7607
      %v7748 = vunpack.c.l.b16 %v7608
      %v7749 = vunpack.c.l.b16 %v7609
      %v7750 = vunpack.c.l.b16 %v7610
      %v7751 = vunpack.c.l.b16 %v7611
      %v7752 = vunpack.c.l.b16 %v7612
      %v7753 = vpack.c.b16 %v7690, %v7689
      %v7754 = vpack.c.b16 %v7692, %v7691
      %v7755 = vpack.c.b16 %v7694, %v7693
      %v7756 = vpack.c.b16 %v7696, %v7695
      %v7757 = vpack.c.b16 %v7698, %v7697
      %v7758 = vpack.c.b16 %v7700, %v7699
      %v7759 = vpack.c.b16 %v7702, %v7701
      %v7760 = vpack.c.b16 %v7704, %v7703
      %v7761 = vpack.c.b16 %v7706, %v7705
      %v7762 = vpack.c.b16 %v7708, %v7707
      %v7763 = vpack.c.b16 %v7710, %v7709
      %v7764 = vpack.c.b16 %v7712, %v7711
      %v7765 = vpack.c.b16 %v7714, %v7713
      %v7766 = vpack.c.b16 %v7716, %v7715
      %v7767 = vpack.c.b16 %v7718, %v7717
      %v7768 = vpack.c.b16 %v7720, %v7719
      %v7769 = vpack.c.b16 %v7722, %v7721
      %v7770 = vpack.c.b16 %v7724, %v7723
      %v7771 = vpack.c.b16 %v7726, %v7725
      %v7772 = vpack.c.b16 %v7728, %v7727
      %v7773 = vpack.c.b16 %v7730, %v7729
      %v7774 = vpack.c.b16 %v7732, %v7731
      %v7775 = vpack.c.b16 %v7734, %v7733
      %v7776 = vpack.c.b16 %v7736, %v7735
      %v7777 = vpack.c.b16 %v7738, %v7737
      %v7778 = vpack.c.b16 %v7740, %v7739
      %v7779 = vpack.c.b16 %v7742, %v7741
      %v7780 = vpack.c.b16 %v7744, %v7743
      %v7781 = vpack.c.b16 %v7746, %v7745
      %v7782 = vpack.c.b16 %v7748, %v7747
      %v7783 = vpack.c.b16 %v7750, %v7749
      %v7784 = vpack.c.b16 %v7752, %v7751
      %7817 = vmatprep.subr.bf16.mxu0 0
      %7818 = vmatpush1.bf16.msra.mxu0 %v7753
      %7819 = vmatprep.subr.bf16.mxu0 0
      %7820 = vmatpush1.bf16.msra.mxu0 %v7754
      %7821 = vmatprep.subr.bf16.mxu0 0
      %7822 = vmatpush1.bf16.msra.mxu0 %v7755
      %7823 = vmatprep.subr.bf16.mxu0 0
      %7824 = vmatpush1.bf16.msra.mxu0 %v7756
      %7825 = vmatprep.subr.bf16.mxu0 0
      %7826 = vmatpush1.bf16.msra.mxu0 %v7757
      %7827 = vmatprep.subr.bf16.mxu0 0
      %7828 = vmatpush1.bf16.msra.mxu0 %v7758
      %7829 = vmatprep.subr.bf16.mxu0 0
      %7830 = vmatpush1.bf16.msra.mxu0 %v7759
      %7831 = vmatprep.subr.bf16.mxu0 0
      %7832 = vmatpush1.bf16.msra.mxu0 %v7760
      %7833 = vmatprep.subr.bf16.mxu0 0
      %7834 = vmatpush1.bf16.msra.mxu0 %v7761
      %7835 = vmatprep.subr.bf16.mxu0 0
      %7836 = vmatpush1.bf16.msra.mxu0 %v7762
      %7837 = vmatprep.subr.bf16.mxu0 0
      %7838 = vmatpush1.bf16.msra.mxu0 %v7763
      %7839 = vmatprep.subr.bf16.mxu0 0
      %7840 = vmatpush1.bf16.msra.mxu0 %v7764
      %7841 = vmatprep.subr.bf16.mxu0 0
      %7842 = vmatpush1.bf16.msra.mxu0 %v7765
      %7843 = vmatprep.subr.bf16.mxu0 0
      %7844 = vmatpush1.bf16.msra.mxu0 %v7766
      %7845 = vmatprep.subr.bf16.mxu0 0
      %7846 = vmatpush1.bf16.msra.mxu0 %v7767
      %7847 = vmatprep.subr.bf16.mxu0 0
      %7848 = vmatpush1.bf16.msra.mxu0 %v7768
      %7849 = vmatprep.mubr.bf16.mxu0 %v7614
      %7850 = vmatmul.mubr.bf16.gmra.mrb[0].mxu0 %v7613
      %v7851 = vpop.f32.mrb[0].mxu0
      %v7852 = vadd.f32 %v7623, %v7851
      %v7853 = vpop.f32.mrb[0].mxu0
      %v7854 = vpop.f32.mrb[0].mxu0
      %v7855 = vpop.f32.mrb[0].mxu0
      %7856 = vdwg.mxu0
      %7857 = vmatprep.subr.bf16.mxu0 0
      %7858 = vmatpush1.bf16.msra.mxu0 %v7769
      %7859 = vmatprep.subr.bf16.mxu0 0
      %7860 = vmatpush1.bf16.msra.mxu0 %v7770
      %7861 = vmatprep.subr.bf16.mxu0 0
      %7862 = vmatpush1.bf16.msra.mxu0 %v7771
      %7863 = vmatprep.subr.bf16.mxu0 0
      %7864 = vmatpush1.bf16.msra.mxu0 %v7772
      %7865 = vmatprep.subr.bf16.mxu0 0
      %7866 = vmatpush1.bf16.msra.mxu0 %v7773
      %7867 = vmatprep.subr.bf16.mxu0 0
      %7868 = vmatpush1.bf16.msra.mxu0 %v7774
      %7869 = vmatprep.subr.bf16.mxu0 0
      %7870 = vmatpush1.bf16.msra.mxu0 %v7775
      %7871 = vmatprep.subr.bf16.mxu0 0
      %7872 = vmatpush1.bf16.msra.mxu0 %v7776
      %7873 = vmatprep.subr.bf16.mxu0 0
      %7874 = vmatpush1.bf16.msra.mxu0 %v7777
      %7875 = vmatprep.subr.bf16.mxu0 0
      %7876 = vmatpush1.bf16.msra.mxu0 %v7778
      %7877 = vmatprep.subr.bf16.mxu0 0
      %7878 = vmatpush1.bf16.msra.mxu0 %v7779
      %7879 = vmatprep.subr.bf16.mxu0 0
      %7880 = vmatpush1.bf16.msra.mxu0 %v7780
      %7881 = vmatprep.subr.bf16.mxu0 0
      %7882 = vmatpush1.bf16.msra.mxu0 %v7781
      %7883 = vmatprep.subr.bf16.mxu0 0
      %7884 = vmatpush1.bf16.msra.mxu0 %v7782
      %7885 = vmatprep.subr.bf16.mxu0 0
      %7886 = vmatpush1.bf16.msra.mxu0 %v7783
      %7887 = vmatprep.subr.bf16.mxu0 0
      %7888 = vmatpush1.bf16.msra.mxu0 %v7784
      %7889 = vmatprep.mubr.bf16.mxu0 %v7616
      %7890 = vmatmul.mubr.bf16.gmra.mrb[0].mxu0 %v7615
      %v7891 = vpop.f32.mrb[0].mxu0
      %v7892 = vadd.f32 %v7852, %v7891
      %v7893 = vpop.f32.mrb[0].mxu0
      %v7894 = vpop.f32.mrb[0].mxu0
      %v7895 = vpop.f32.mrb[0].mxu0
      %7896 = vdwg.mxu0
      %v7897 = vmul.f32 %v7892, %v7892
      %v7898 = vmul.f32 %v7892, %v7897
      %v7899 = vmul.f32 %v7898, 0.044715
      %v7900 = vadd.f32 %v7892, %v7899
      %v7901 = vmul.f32 %v7900, 0.7978846
      %v7902 = vtanh.pop %v7901
      %v7903 = vadd.f32 %v7902, 1.0
      %v7904 = vmul.f32 %v7903, 0.5
      %v7905 = vmul.f32 %v7892, %v7904
      %v7906 = vadd.f32 %v7905, %v7183
      %s7907 = scalar_lea.vmem %s9, 5
      %v7908 = vld [vmem:[%s7907] sm:$0x1]
      %s7909 = scalar_lea.vmem %s10, 5
      %v7910 = vld [vmem:[%s7909] sm:$0x1]
      %7911 = vadd.xlane.f32.xlu0 %v7906
      %v7912 = vpop.xlane.xlu0 %7911
      %v7913 = vmul.f32 %v7912, %v1128
      %v7914 = vsub.f32 %v7906, %v7913
      %v7915 = vmul.f32 %v7914, %v7914
      %7916 = vadd.xlane.f32.xlu0 %v7915
      %v7917 = vpop.xlane.xlu0 %7916
      %v7918 = vmul.f32 %v7917, %v1128
      %v7919 = vadd.f32 %v7918, 1e-06
      %v7920 = vrsqrt.pop %v7919
      %v7921 = vmul.f32 %v7914, %v7920
      %v7923 = vlaneseq
      %v7924 = vshrl.u32 %v7923, 7
      %v7925 = vsub.s32 0, %v7924
      %v7926 = vrot.slane %v7908, %v7925
      %v7928 = vmul.f32 %v7921, %v7926
      %v7930 = vlaneseq
      %v7931 = vshrl.u32 %v7930, 7
      %v7932 = vsub.s32 0, %v7931
      %v7933 = vrot.slane %v7910, %v7932
      %v7935 = vadd.f32 %v7928, %v7933
      %s7936 = scalar_lea.vmem %s11, 960
      %v7937 = vld [vmem:[%s7936] sm:$0xff]
      %v7938 = vld [vmem:[%s7936 + $0x8] sm:$0xf]
      %v7939 = vld [vmem:[%s7936 + $0xc] sm:$0xff]
      %v7940 = vld [vmem:[%s7936 + $0x14] sm:$0xf]
      %v7941 = vld [vmem:[%s7936 + $0x18] sm:$0xff]
      %v7942 = vld [vmem:[%s7936 + $0x20] sm:$0xf]
      %v7943 = vld [vmem:[%s7936 + $0x24] sm:$0xff]
      %v7944 = vld [vmem:[%s7936 + $0x2c] sm:$0xf]
      %v7945 = vld [vmem:[%s7936 + $0x30] sm:$0xff]
      %v7946 = vld [vmem:[%s7936 + $0x38] sm:$0xf]
      %v7947 = vld [vmem:[%s7936 + $0x3c] sm:$0xff]
      %v7948 = vld [vmem:[%s7936 + $0x44] sm:$0xf]
      %v7949 = vld [vmem:[%s7936 + $0x48] sm:$0xff]
      %v7950 = vld [vmem:[%s7936 + $0x50] sm:$0xf]
      %v7951 = vld [vmem:[%s7936 + $0x54] sm:$0xff]
      %v7952 = vld [vmem:[%s7936 + $0x5c] sm:$0xf]
      %v7953 = vld [vmem:[%s7936 + $0x60] sm:$0xff]
      %v7954 = vld [vmem:[%s7936 + $0x68] sm:$0xf]
      %v7955 = vld [vmem:[%s7936 + $0x6c] sm:$0xff]
      %v7956 = vld [vmem:[%s7936 + $0x74] sm:$0xf]
      %v7957 = vld [vmem:[%s7936 + $0x78] sm:$0xff]
      %v7958 = vld [vmem:[%s7936 + $0x80] sm:$0xf]
      %v7959 = vld [vmem:[%s7936 + $0x84] sm:$0xff]
      %v7960 = vld [vmem:[%s7936 + $0x8c] sm:$0xf]
      %v7961 = vld [vmem:[%s7936 + $0x90] sm:$0xff]
      %v7962 = vld [vmem:[%s7936 + $0x98] sm:$0xf]
      %v7963 = vld [vmem:[%s7936 + $0x9c] sm:$0xff]
      %v7964 = vld [vmem:[%s7936 + $0xa4] sm:$0xf]
      %v7965 = vld [vmem:[%s7936 + $0xa8] sm:$0xff]
      %v7966 = vld [vmem:[%s7936 + $0xb0] sm:$0xf]
      %v7967 = vld [vmem:[%s7936 + $0xb4] sm:$0xff]
      %v7968 = vld [vmem:[%s7936 + $0xbc] sm:$0xf]
      %v7969 = vpack.c.bf16 %v7935, %v7935
      %s7970 = scalar_lea.vmem %s12, 15
      %v7971 = vld [vmem:[%s7970] sm:$0x7]
      %v7973 = vlaneseq
      %v7974 = vshrl.u32 %v7973, 7
      %v7975 = vsub.s32 0, %v7974
      %v7976 = vrot.slane %v7971, %v7975
      %v7977 = vlaneseq
      %v7978 = vshrl.u32 %v7977, 7
      %v7979 = vsub.s32 1, %v7978
      %v7980 = vrot.slane %v7971, %v7979
      %v7981 = vlaneseq
      %v7982 = vshrl.u32 %v7981, 7
      %v7983 = vsub.s32 2, %v7982
      %v7984 = vrot.slane %v7971, %v7983
      %v8020 = vunpack.c.l.b16 %v7937
      %v8021 = vunpack.c.h.b16 %v7937
      %v8022 = vunpack.c.l.b16 %v7938
      %v8023 = vunpack.c.l.b16 %v7939
      %v8024 = vunpack.c.h.b16 %v7939
      %v8025 = vunpack.c.l.b16 %v7940
      %v8026 = vunpack.c.l.b16 %v7941
      %v8027 = vunpack.c.h.b16 %v7941
      %v8028 = vunpack.c.l.b16 %v7942
      %v8029 = vunpack.c.l.b16 %v7943
      %v8030 = vunpack.c.h.b16 %v7943
      %v8031 = vunpack.c.l.b16 %v7944
      %v8032 = vunpack.c.l.b16 %v7945
      %v8033 = vunpack.c.h.b16 %v7945
      %v8034 = vunpack.c.l.b16 %v7946
      %v8035 = vunpack.c.l.b16 %v7947
      %v8036 = vunpack.c.h.b16 %v7947
      %v8037 = vunpack.c.l.b16 %v7948
      %v8038 = vunpack.c.l.b16 %v7949
      %v8039 = vunpack.c.h.b16 %v7949
      %v8040 = vunpack.c.l.b16 %v7950
      %v8041 = vunpack.c.l.b16 %v7951
      %v8042 = vunpack.c.h.b16 %v7951
      %v8043 = vunpack.c.l.b16 %v7952
      %v8044 = vunpack.c.l.b16 %v7953
      %v8045 = vunpack.c.h.b16 %v7953
      %v8046 = vunpack.c.l.b16 %v7954
      %v8047 = vunpack.c.l.b16 %v7955
      %v8048 = vunpack.c.h.b16 %v7955
      %v8049 = vunpack.c.l.b16 %v7956
      %v8050 = vunpack.c.l.b16 %v7957
      %v8051 = vunpack.c.h.b16 %v7957
      %v8052 = vunpack.c.l.b16 %v7958
      %v8053 = vunpack.c.l.b16 %v7959
      %v8054 = vunpack.c.h.b16 %v7959
      %v8055 = vunpack.c.l.b16 %v7960
      %v8056 = vunpack.c.l.b16 %v7961
      %v8057 = vunpack.c.h.b16 %v7961
      %v8058 = vunpack.c.l.b16 %v7962
      %v8059 = vunpack.c.l.b16 %v7963
      %v8060 = vunpack.c.h.b16 %v7963
      %v8061 = vunpack.c.l.b16 %v7964
      %v8062 = vunpack.c.l.b16 %v7965
      %v8063 = vunpack.c.h.b16 %v7965
      %v8064 = vunpack.c.l.b16 %v7966
      %v8065 = vunpack.c.l.b16 %v7967
      %v8066 = vunpack.c.h.b16 %v7967
      %v8067 = vunpack.c.l.b16 %v7968
      %v8068 = vpack.c.b16 %v8023, %v8020
      %v8069 = vpack.c.b16 %v8024, %v8021
      %v8070 = vpack.c.b16 %v8025, %v8022
      %v8071 = vpack.c.b16 %v8029, %v8026
      %v8072 = vpack.c.b16 %v8030, %v8027
      %v8073 = vpack.c.b16 %v8031, %v8028
      %v8074 = vpack.c.b16 %v8035, %v8032
      %v8075 = vpack.c.b16 %v8036, %v8033
      %v8076 = vpack.c.b16 %v8037, %v8034
      %v8077 = vpack.c.b16 %v8041, %v8038
      %v8078 = vpack.c.b16 %v8042, %v8039
      %v8079 = vpack.c.b16 %v8043, %v8040
      %v8080 = vpack.c.b16 %v8047, %v8044
      %v8081 = vpack.c.b16 %v8048, %v8045
      %v8082 = vpack.c.b16 %v8049, %v8046
      %v8083 = vpack.c.b16 %v8053, %v8050
      %v8084 = vpack.c.b16 %v8054, %v8051
      %v8085 = vpack.c.b16 %v8055, %v8052
      %v8086 = vpack.c.b16 %v8059, %v8056
      %v8087 = vpack.c.b16 %v8060, %v8057
      %v8088 = vpack.c.b16 %v8061, %v8058
      %v8089 = vpack.c.b16 %v8065, %v8062
      %v8090 = vpack.c.b16 %v8066, %v8063
      %v8091 = vpack.c.b16 %v8067, %v8064
      %8116 = vmatprep.subr.bf16.mxu0 %v8069
      %8117 = vmatpush1.bf16.msra.mxu0 %v8068
      %8118 = vmatprep.subr.bf16.mxu0 %v8072
      %8119 = vmatpush1.bf16.msra.mxu0 %v8071
      %8120 = vmatprep.subr.bf16.mxu0 %v8075
      %8121 = vmatpush1.bf16.msra.mxu0 %v8074
      %8122 = vmatprep.subr.bf16.mxu0 %v8078
      %8123 = vmatpush1.bf16.msra.mxu0 %v8077
      %8124 = vmatprep.subr.bf16.mxu0 %v8081
      %8125 = vmatpush1.bf16.msra.mxu0 %v8080
      %8126 = vmatprep.subr.bf16.mxu0 %v8084
      %8127 = vmatpush1.bf16.msra.mxu0 %v8083
      %8128 = vmatprep.subr.bf16.mxu0 %v8087
      %8129 = vmatpush1.bf16.msra.mxu0 %v8086
      %8130 = vmatprep.subr.bf16.mxu0 %v8090
      %8131 = vmatpush1.bf16.msra.mxu0 %v8089
      %8132 = vmatprep.subr.bf16.mxu0 0
      %8133 = vmatpush1.bf16.msra.mxu0 0
      %8134 = vmatprep.subr.bf16.mxu0 0
      %8135 = vmatpush1.bf16.msra.mxu0 0
      %8136 = vmatprep.subr.bf16.mxu0 0
      %8137 = vmatpush1.bf16.msra.mxu0 0
      %8138 = vmatprep.subr.bf16.mxu0 0
      %8139 = vmatpush1.bf16.msra.mxu0 0
      %8140 = vmatprep.subr.bf16.mxu0 0
      %8141 = vmatpush1.bf16.msra.mxu0 0
      %8142 = vmatprep.subr.bf16.mxu0 0
      %8143 = vmatpush1.bf16.msra.mxu0 0
      %8144 = vmatprep.subr.bf16.mxu0 0
      %8145 = vmatpush1.bf16.msra.mxu0 0
      %8146 = vmatprep.subr.bf16.mxu0 0
      %8147 = vmatpush1.bf16.msra.mxu0 0
      %8148 = vmatprep.mubr.bf16.mxu0 0
      %8149 = vmatmul.mubr.bf16.gmra.mrb[0].mxu0 %v7969
      %v8150 = vpop.f32.mrb[0].mxu0
      %v8151 = vadd.f32 %v7976, %v8150
      %v8152 = vpop.f32.mrb[0].mxu0
      %v8153 = vadd.f32 %v7980, %v8152
      %v8154 = vpop.f32.mrb[0].mxu0
      %v8155 = vpop.f32.mrb[0].mxu0
      %8156 = vdwg.mxu0
      %8157 = vmatprep.subr.bf16.mxu0 0
      %8158 = vmatpush1.bf16.msra.mxu0 %v8070
      %8159 = vmatprep.subr.bf16.mxu0 0
      %8160 = vmatpush1.bf16.msra.mxu0 %v8073
      %8161 = vmatprep.subr.bf16.mxu0 0
      %8162 = vmatpush1.bf16.msra.mxu0 %v8076
      %8163 = vmatprep.subr.bf16.mxu0 0
      %8164 = vmatpush1.bf16.msra.mxu0 %v8079
      %8165 = vmatprep.subr.bf16.mxu0 0
      %8166 = vmatpush1.bf16.msra.mxu0 %v8082
      %8167 = vmatprep.subr.bf16.mxu0 0
      %8168 = vmatpush1.bf16.msra.mxu0 %v8085
      %8169 = vmatprep.subr.bf16.mxu0 0
      %8170 = vmatpush1.bf16.msra.mxu0 %v8088
      %8171 = vmatprep.subr.bf16.mxu0 0
      %8172 = vmatpush1.bf16.msra.mxu0 %v8091
      %8173 = vmatprep.subr.bf16.mxu0 0
      %8174 = vmatpush1.bf16.msra.mxu0 0
      %8175 = vmatprep.subr.bf16.mxu0 0
      %8176 = vmatpush1.bf16.msra.mxu0 0
      %8177 = vmatprep.subr.bf16.mxu0 0
      %8178 = vmatpush1.bf16.msra.mxu0 0
      %8179 = vmatprep.subr.bf16.mxu0 0
      %8180 = vmatpush1.bf16.msra.mxu0 0
      %8181 = vmatprep.subr.bf16.mxu0 0
      %8182 = vmatpush1.bf16.msra.mxu0 0
      %8183 = vmatprep.subr.bf16.mxu0 0
      %8184 = vmatpush1.bf16.msra.mxu0 0
      %8185 = vmatprep.subr.bf16.mxu0 0
      %8186 = vmatpush1.bf16.msra.mxu0 0
      %8187 = vmatprep.subr.bf16.mxu0 0
      %8188 = vmatpush1.bf16.msra.mxu0 0
      %8189 = vmatprep.mubr.bf16.mxu0 0
      %8190 = vmatmul.mubr.bf16.gmra.mrb[0].mxu0 %v7969
      %v8191 = vpop.f32.mrb[0].mxu0
      %v8192 = vadd.f32 %v7984, %v8191
      %v8193 = vpop.f32.mrb[0].mxu0
      %v8194 = vpop.f32.mrb[0].mxu0
      %v8195 = vpop.f32.mrb[0].mxu0
      %8196 = vdwg.mxu0
      %v8197 = vpack.c.bf16 %v8151, %v8151
      %v8198 = vpack.c.bf16 %v8153, %v8153
      %v8200 = vsel %vm1413, %v8197, 0
      %v8203 = vsel %vm1413, %v8198, 0
      %8205 = vmatprep.subr.bf16.mxu0 0
      %8206 = vmatpush1.bf16.xpose.msra.mxu0 %v8203
      %8207 = vmatprep.subr.bf16.mxu0 0
      %8208 = vmatpush1.bf16.xpose.msra.mxu0 0
      %8209 = vmatprep.subr.bf16.mxu0 0
      %8210 = vmatpush1.bf16.xpose.msra.mxu0 0
      %8211 = vmatprep.subr.bf16.mxu0 0
      %8212 = vmatpush1.bf16.xpose.msra.mxu0 0
      %8213 = vmatprep.subr.bf16.mxu0 0
      %8214 = vmatpush1.bf16.xpose.msra.mxu0 0
      %8215 = vmatprep.subr.bf16.mxu0 0
      %8216 = vmatpush1.bf16.xpose.msra.mxu0 0
      %8217 = vmatprep.subr.bf16.mxu0 0
      %8218 = vmatpush1.bf16.xpose.msra.mxu0 0
      %8219 = vmatprep.subr.bf16.mxu0 0
      %8220 = vmatpush1.bf16.xpose.msra.mxu0 0
      %8221 = vmatprep.subr.bf16.mxu0 0
      %8222 = vmatpush1.bf16.xpose.msra.mxu0 0
      %8223 = vmatprep.subr.bf16.mxu0 0
      %8224 = vmatpush1.bf16.xpose.msra.mxu0 0
      %8225 = vmatprep.subr.bf16.mxu0 0
      %8226 = vmatpush1.bf16.xpose.msra.mxu0 0
      %8227 = vmatprep.subr.bf16.mxu0 0
      %8228 = vmatpush1.bf16.xpose.msra.mxu0 0
      %8229 = vmatprep.subr.bf16.mxu0 0
      %8230 = vmatpush1.bf16.xpose.msra.mxu0 0
      %8231 = vmatprep.subr.bf16.mxu0 0
      %8232 = vmatpush1.bf16.xpose.msra.mxu0 0
      %8233 = vmatprep.subr.bf16.mxu0 0
      %8234 = vmatpush1.bf16.xpose.msra.mxu0 0
      %8235 = vmatprep.subr.bf16.mxu0 0
      %8236 = vmatpush1.bf16.xpose.msra.mxu0 0
      %8237 = vmatprep.mubr.bf16.mxu0 0
      %8238 = vmatmul.mubr.bf16.gmra.mrb[0].mxu0 %v8200
      %v8239 = vpop.f32.mrb[0].mxu0
      %v8240 = vadd.f32 0.0, %v8239
      %v8241 = vpop.f32.mrb[0].mxu0
      %v8242 = vpop.f32.mrb[0].mxu0
      %v8243 = vpop.f32.mrb[0].mxu0
      %8244 = vdwg.mxu0
      %v8245 = vmul.f32 %v8240, 0.125
      %v8246 = vadd.f32 %v8245, %v1465
      %v8247 = vsel %vm1468, %v8246, -inf
      %8248 = vmax.xlane.f32.xlu0 %v8247
      %v8249 = vpop.xlane.xlu0 %8248
      %v8250 = vsub.f32 %v8246, %v8249
      %v8251 = vmul.f32 %v8250, 1.442695
      %v8252 = vpow.pop %v8251
      %v8253 = vsel %vm1468, %v8252, 0.0
      %8254 = vadd.xlane.f32.xlu0 %v8253
      %v8255 = vpop.xlane.xlu0 %8254
      %v8256 = vrcp.pop %v8255
      %v8257 = vmul.f32 %v8252, %v8256
      %v8258 = vpack.c.bf16 %v8192, %v8192
      %v8259 = vpack.c.bf16 %v8257, %v8257
      %v8261 = vsel %vm1468, %v8259, 0
      %v8264 = vsel %vm1485, %v8258, 0
      %8266 = vmatprep.subr.bf16.mxu0 0
      %8267 = vmatpush1.bf16.msra.mxu0 %v8264
      %8268 = vmatprep.subr.bf16.mxu0 0
      %8269 = vmatpush1.bf16.msra.mxu0 0
      %8270 = vmatprep.subr.bf16.mxu0 0
      %8271 = vmatpush1.bf16.msra.mxu0 0
      %8272 = vmatprep.subr.bf16.mxu0 0
      %8273 = vmatpush1.bf16.msra.mxu0 0
      %8274 = vmatprep.subr.bf16.mxu0 0
      %8275 = vmatpush1.bf16.msra.mxu0 0
      %8276 = vmatprep.subr.bf16.mxu0 0
      %8277 = vmatpush1.bf16.msra.mxu0 0
      %8278 = vmatprep.subr.bf16.mxu0 0
      %8279 = vmatpush1.bf16.msra.mxu0 0
      %8280 = vmatprep.subr.bf16.mxu0 0
      %8281 = vmatpush1.bf16.msra.mxu0 0
      %8282 = vmatprep.subr.bf16.mxu0 0
      %8283 = vmatpush1.bf16.msra.mxu0 0
      %8284 = vmatprep.subr.bf16.mxu0 0
      %8285 = vmatpush1.bf16.msra.mxu0 0
      %8286 = vmatprep.subr.bf16.mxu0 0
      %8287 = vmatpush1.bf16.msra.mxu0 0
      %8288 = vmatprep.subr.bf16.mxu0 0
      %8289 = vmatpush1.bf16.msra.mxu0 0
      %8290 = vmatprep.subr.bf16.mxu0 0
      %8291 = vmatpush1.bf16.msra.mxu0 0
      %8292 = vmatprep.subr.bf16.mxu0 0
      %8293 = vmatpush1.bf16.msra.mxu0 0
      %8294 = vmatprep.subr.bf16.mxu0 0
      %8295 = vmatpush1.bf16.msra.mxu0 0
      %8296 = vmatprep.subr.bf16.mxu0 0
      %8297 = vmatpush1.bf16.msra.mxu0 0
      %8298 = vmatprep.mubr.bf16.mxu0 0
      %8299 = vmatmul.mubr.bf16.gmra.mrb[0].mxu0 %v8261
      %v8300 = vpop.f32.mrb[0].mxu0
      %v8301 = vadd.f32 0.0, %v8300
      %v8302 = vpop.f32.mrb[0].mxu0
      %v8303 = vpop.f32.mrb[0].mxu0
      %v8304 = vpop.f32.mrb[0].mxu0
      %8305 = vdwg.mxu0
      %8307 = vrot.lane.b32.xlu0 %v8197, 64
      %v8308 = vpop.permute.xlu0 %8307
      %8310 = vrot.lane.b32.xlu0 %v8198, 64
      %v8311 = vpop.permute.xlu0 %8310
      %v8313 = vsel %vm1413, %v8308, 0
      %v8316 = vsel %vm1413, %v8311, 0
      %8318 = vmatprep.subr.bf16.mxu0 0
      %8319 = vmatpush1.bf16.xpose.msra.mxu0 %v8316
      %8320 = vmatprep.subr.bf16.mxu0 0
      %8321 = vmatpush1.bf16.xpose.msra.mxu0 0
      %8322 = vmatprep.subr.bf16.mxu0 0
      %8323 = vmatpush1.bf16.xpose.msra.mxu0 0
      %8324 = vmatprep.subr.bf16.mxu0 0
      %8325 = vmatpush1.bf16.xpose.msra.mxu0 0
      %8326 = vmatprep.subr.bf16.mxu0 0
      %8327 = vmatpush1.bf16.xpose.msra.mxu0 0
      %8328 = vmatprep.subr.bf16.mxu0 0
      %8329 = vmatpush1.bf16.xpose.msra.mxu0 0
      %8330 = vmatprep.subr.bf16.mxu0 0
      %8331 = vmatpush1.bf16.xpose.msra.mxu0 0
      %8332 = vmatprep.subr.bf16.mxu0 0
      %8333 = vmatpush1.bf16.xpose.msra.mxu0 0
      %8334 = vmatprep.subr.bf16.mxu0 0
      %8335 = vmatpush1.bf16.xpose.msra.mxu0 0
      %8336 = vmatprep.subr.bf16.mxu0 0
      %8337 = vmatpush1.bf16.xpose.msra.mxu0 0
      %8338 = vmatprep.subr.bf16.mxu0 0
      %8339 = vmatpush1.bf16.xpose.msra.mxu0 0
      %8340 = vmatprep.subr.bf16.mxu0 0
      %8341 = vmatpush1.bf16.xpose.msra.mxu0 0
      %8342 = vmatprep.subr.bf16.mxu0 0
      %8343 = vmatpush1.bf16.xpose.msra.mxu0 0
      %8344 = vmatprep.subr.bf16.mxu0 0
      %8345 = vmatpush1.bf16.xpose.msra.mxu0 0
      %8346 = vmatprep.subr.bf16.mxu0 0
      %8347 = vmatpush1.bf16.xpose.msra.mxu0 0
      %8348 = vmatprep.subr.bf16.mxu0 0
      %8349 = vmatpush1.bf16.xpose.msra.mxu0 0
      %8350 = vmatprep.mubr.bf16.mxu0 0
      %8351 = vmatmul.mubr.bf16.gmra.mrb[0].mxu0 %v8313
      %v8352 = vpop.f32.mrb[0].mxu0
      %v8353 = vadd.f32 0.0, %v8352
      %v8354 = vpop.f32.mrb[0].mxu0
      %v8355 = vpop.f32.mrb[0].mxu0
      %v8356 = vpop.f32.mrb[0].mxu0
      %8357 = vdwg.mxu0
      %v8358 = vmul.f32 %v8353, 0.125
      %v8359 = vadd.f32 %v8358, %v1465
      %v8360 = vsel %vm1468, %v8359, -inf
      %8361 = vmax.xlane.f32.xlu0 %v8360
      %v8362 = vpop.xlane.xlu0 %8361
      %v8363 = vsub.f32 %v8359, %v8362
      %v8364 = vmul.f32 %v8363, 1.442695
      %v8365 = vpow.pop %v8364
      %v8366 = vsel %vm1468, %v8365, 0.0
      %8367 = vadd.xlane.f32.xlu0 %v8366
      %v8368 = vpop.xlane.xlu0 %8367
      %v8369 = vrcp.pop %v8368
      %v8370 = vmul.f32 %v8365, %v8369
      %v8371 = vpack.c.bf16 %v8370, %v8370
      %8373 = vrot.lane.b32.xlu0 %v8258, 64
      %v8374 = vpop.permute.xlu0 %8373
      %v8376 = vsel %vm1468, %v8371, 0
      %v8379 = vsel %vm1485, %v8374, 0
      %8381 = vmatprep.subr.bf16.mxu0 0
      %8382 = vmatpush1.bf16.msra.mxu0 %v8379
      %8383 = vmatprep.subr.bf16.mxu0 0
      %8384 = vmatpush1.bf16.msra.mxu0 0
      %8385 = vmatprep.subr.bf16.mxu0 0
      %8386 = vmatpush1.bf16.msra.mxu0 0
      %8387 = vmatprep.subr.bf16.mxu0 0
      %8388 = vmatpush1.bf16.msra.mxu0 0
      %8389 = vmatprep.subr.bf16.mxu0 0
      %8390 = vmatpush1.bf16.msra.mxu0 0
      %8391 = vmatprep.subr.bf16.mxu0 0
      %8392 = vmatpush1.bf16.msra.mxu0 0
      %8393 = vmatprep.subr.bf16.mxu0 0
      %8394 = vmatpush1.bf16.msra.mxu0 0
      %8395 = vmatprep.subr.bf16.mxu0 0
      %8396 = vmatpush1.bf16.msra.mxu0 0
      %8397 = vmatprep.subr.bf16.mxu0 0
      %8398 = vmatpush1.bf16.msra.mxu0 0
      %8399 = vmatprep.subr.bf16.mxu0 0
      %8400 = vmatpush1.bf16.msra.mxu0 0
      %8401 = vmatprep.subr.bf16.mxu0 0
      %8402 = vmatpush1.bf16.msra.mxu0 0
      %8403 = vmatprep.subr.bf16.mxu0 0
      %8404 = vmatpush1.bf16.msra.mxu0 0
      %8405 = vmatprep.subr.bf16.mxu0 0
      %8406 = vmatpush1.bf16.msra.mxu0 0
      %8407 = vmatprep.subr.bf16.mxu0 0
      %8408 = vmatpush1.bf16.msra.mxu0 0
      %8409 = vmatprep.subr.bf16.mxu0 0
      %8410 = vmatpush1.bf16.msra.mxu0 0
      %8411 = vmatprep.subr.bf16.mxu0 0
      %8412 = vmatpush1.bf16.msra.mxu0 0
      %8413 = vmatprep.mubr.bf16.mxu0 0
      %8414 = vmatmul.mubr.bf16.gmra.mrb[0].mxu0 %v8376
      %v8415 = vpop.f32.mrb[0].mxu0
      %v8416 = vadd.f32 0.0, %v8415
      %v8417 = vpop.f32.mrb[0].mxu0
      %v8418 = vpop.f32.mrb[0].mxu0
      %v8419 = vpop.f32.mrb[0].mxu0
      %8420 = vdwg.mxu0
      %8422 = vrot.lane.b32.xlu0 %v8416, 64
      %v8423 = vpop.permute.xlu0 %8422
      %v8425 = vsel %vm1413, %v8301, %v8423
      %s8426 = scalar_lea.vmem %s13, 320
      %v8427 = vld [vmem:[%s8426] sm:$0xf]
      %v8428 = vld [vmem:[%s8426 + $0x4] sm:$0xf]
      %v8429 = vld [vmem:[%s8426 + $0x8] sm:$0xf]
      %v8430 = vld [vmem:[%s8426 + $0xc] sm:$0xf]
      %v8431 = vld [vmem:[%s8426 + $0x10] sm:$0xf]
      %v8432 = vld [vmem:[%s8426 + $0x14] sm:$0xf]
      %v8433 = vld [vmem:[%s8426 + $0x18] sm:$0xf]
      %v8434 = vld [vmem:[%s8426 + $0x1c] sm:$0xf]
      %v8435 = vld [vmem:[%s8426 + $0x20] sm:$0xf]
      %v8436 = vld [vmem:[%s8426 + $0x24] sm:$0xf]
      %v8437 = vld [vmem:[%s8426 + $0x28] sm:$0xf]
      %v8438 = vld [vmem:[%s8426 + $0x2c] sm:$0xf]
      %v8439 = vld [vmem:[%s8426 + $0x30] sm:$0xf]
      %v8440 = vld [vmem:[%s8426 + $0x34] sm:$0xf]
      %v8441 = vld [vmem:[%s8426 + $0x38] sm:$0xf]
      %v8442 = vld [vmem:[%s8426 + $0x3c] sm:$0xf]
      %v8443 = vpack.c.bf16 %v8425, %v8425
      %s8444 = scalar_lea.vmem %s14, 5
      %v8445 = vld [vmem:[%s8444] sm:$0x1]
      %v8447 = vlaneseq
      %v8448 = vshrl.u32 %v8447, 7
      %v8449 = vsub.s32 0, %v8448
      %v8450 = vrot.slane %v8445, %v8449
      %v8468 = vunpack.c.l.b16 %v8427
      %v8469 = vunpack.c.l.b16 %v8428
      %v8470 = vunpack.c.l.b16 %v8429
      %v8471 = vunpack.c.l.b16 %v8430
      %v8472 = vunpack.c.l.b16 %v8431
      %v8473 = vunpack.c.l.b16 %v8432
      %v8474 = vunpack.c.l.b16 %v8433
      %v8475 = vunpack.c.l.b16 %v8434
      %v8476 = vunpack.c.l.b16 %v8435
      %v8477 = vunpack.c.l.b16 %v8436
      %v8478 = vunpack.c.l.b16 %v8437
      %v8479 = vunpack.c.l.b16 %v8438
      %v8480 = vunpack.c.l.b16 %v8439
      %v8481 = vunpack.c.l.b16 %v8440
      %v8482 = vunpack.c.l.b16 %v8441
      %v8483 = vunpack.c.l.b16 %v8442
      %v8484 = vpack.c.b16 %v8469, %v8468
      %v8485 = vpack.c.b16 %v8471, %v8470
      %v8486 = vpack.c.b16 %v8473, %v8472
      %v8487 = vpack.c.b16 %v8475, %v8474
      %v8488 = vpack.c.b16 %v8477, %v8476
      %v8489 = vpack.c.b16 %v8479, %v8478
      %v8490 = vpack.c.b16 %v8481, %v8480
      %v8491 = vpack.c.b16 %v8483, %v8482
      %8500 = vmatprep.subr.bf16.mxu0 0
      %8501 = vmatpush1.bf16.msra.mxu0 %v8484
      %8502 = vmatprep.subr.bf16.mxu0 0
      %8503 = vmatpush1.bf16.msra.mxu0 %v8485
      %8504 = vmatprep.subr.bf16.mxu0 0
      %8505 = vmatpush1.bf16.msra.mxu0 %v8486
      %8506 = vmatprep.subr.bf16.mxu0 0
      %8507 = vmatpush1.bf16.msra.mxu0 %v8487
      %8508 = vmatprep.subr.bf16.mxu0 0
      %8509 = vmatpush1.bf16.msra.mxu0 %v8488
      %8510 = vmatprep.subr.bf16.mxu0 0
      %8511 = vmatpush1.bf16.msra.mxu0 %v8489
      %8512 = vmatprep.subr.bf16.mxu0 0
      %8513 = vmatpush1.bf16.msra.mxu0 %v8490
      %8514 = vmatprep.subr.bf16.mxu0 0
      %8515 = vmatpush1.bf16.msra.mxu0 %v8491
      %8516 = vmatprep.subr.bf16.mxu0 0
      %8517 = vmatpush1.bf16.msra.mxu0 0
      %8518 = vmatprep.subr.bf16.mxu0 0
      %8519 = vmatpush1.bf16.msra.mxu0 0
      %8520 = vmatprep.subr.bf16.mxu0 0
      %8521 = vmatpush1.bf16.msra.mxu0 0
      %8522 = vmatprep.subr.bf16.mxu0 0
      %8523 = vmatpush1.bf16.msra.mxu0 0
      %8524 = vmatprep.subr.bf16.mxu0 0
      %8525 = vmatpush1.bf16.msra.mxu0 0
      %8526 = vmatprep.subr.bf16.mxu0 0
      %8527 = vmatpush1.bf16.msra.mxu0 0
      %8528 = vmatprep.subr.bf16.mxu0 0
      %8529 = vmatpush1.bf16.msra.mxu0 0
      %8530 = vmatprep.subr.bf16.mxu0 0
      %8531 = vmatpush1.bf16.msra.mxu0 0
      %8532 = vmatprep.mubr.bf16.mxu0 0
      %8533 = vmatmul.mubr.bf16.gmra.mrb[0].mxu0 %v8443
      %v8534 = vpop.f32.mrb[0].mxu0
      %v8535 = vadd.f32 %v8450, %v8534
      %v8536 = vpop.f32.mrb[0].mxu0
      %v8537 = vpop.f32.mrb[0].mxu0
      %v8538 = vpop.f32.mrb[0].mxu0
      %8539 = vdwg.mxu0
      %v8540 = vadd.f32 %v8535, %v7906
      %s8541 = scalar_lea.vmem %s15, 5
      %v8542 = vld [vmem:[%s8541] sm:$0x1]
      %s8543 = scalar_lea.vmem %s16, 5
      %v8544 = vld [vmem:[%s8543] sm:$0x1]
      %8545 = vadd.xlane.f32.xlu0 %v8540
      %v8546 = vpop.xlane.xlu0 %8545
      %v8547 = vmul.f32 %v8546, %v1128
      %v8548 = vsub.f32 %v8540, %v8547
      %v8549 = vmul.f32 %v8548, %v8548
      %8550 = vadd.xlane.f32.xlu0 %v8549
      %v8551 = vpop.xlane.xlu0 %8550
      %v8552 = vmul.f32 %v8551, %v1128
      %v8553 = vadd.f32 %v8552, 1e-06
      %v8554 = vrsqrt.pop %v8553
      %v8555 = vmul.f32 %v8548, %v8554
      %v8557 = vlaneseq
      %v8558 = vshrl.u32 %v8557, 7
      %v8559 = vsub.s32 0, %v8558
      %v8560 = vrot.slane %v8542, %v8559
      %v8562 = vmul.f32 %v8555, %v8560
      %v8564 = vlaneseq
      %v8565 = vshrl.u32 %v8564, 7
      %v8566 = vsub.s32 0, %v8565
      %v8567 = vrot.slane %v8544, %v8566
      %v8569 = vadd.f32 %v8562, %v8567
      %s8570 = scalar_lea.vmem %s17, 1280
      %v8571 = vld [vmem:[%s8570] sm:$0xff]
      %v8572 = vld [vmem:[%s8570 + $0x8] sm:$0xff]
      %v8573 = vld [vmem:[%s8570 + $0x10] sm:$0xff]
      %v8574 = vld [vmem:[%s8570 + $0x18] sm:$0xff]
      %v8575 = vld [vmem:[%s8570 + $0x20] sm:$0xff]
      %v8576 = vld [vmem:[%s8570 + $0x28] sm:$0xff]
      %v8577 = vld [vmem:[%s8570 + $0x30] sm:$0xff]
      %v8578 = vld [vmem:[%s8570 + $0x38] sm:$0xff]
      %v8579 = vld [vmem:[%s8570 + $0x40] sm:$0xff]
      %v8580 = vld [vmem:[%s8570 + $0x48] sm:$0xff]
      %v8581 = vld [vmem:[%s8570 + $0x50] sm:$0xff]
      %v8582 = vld [vmem:[%s8570 + $0x58] sm:$0xff]
      %v8583 = vld [vmem:[%s8570 + $0x60] sm:$0xff]
      %v8584 = vld [vmem:[%s8570 + $0x68] sm:$0xff]
      %v8585 = vld [vmem:[%s8570 + $0x70] sm:$0xff]
      %v8586 = vld [vmem:[%s8570 + $0x78] sm:$0xff]
      %v8587 = vld [vmem:[%s8570 + $0x80] sm:$0xff]
      %v8588 = vld [vmem:[%s8570 + $0x88] sm:$0xff]
      %v8589 = vld [vmem:[%s8570 + $0x90] sm:$0xff]
      %v8590 = vld [vmem:[%s8570 + $0x98] sm:$0xff]
      %v8591 = vld [vmem:[%s8570 + $0xa0] sm:$0xff]
      %v8592 = vld [vmem:[%s8570 + $0xa8] sm:$0xff]
      %v8593 = vld [vmem:[%s8570 + $0xb0] sm:$0xff]
      %v8594 = vld [vmem:[%s8570 + $0xb8] sm:$0xff]
      %v8595 = vld [vmem:[%s8570 + $0xc0] sm:$0xff]
      %v8596 = vld [vmem:[%s8570 + $0xc8] sm:$0xff]
      %v8597 = vld [vmem:[%s8570 + $0xd0] sm:$0xff]
      %v8598 = vld [vmem:[%s8570 + $0xd8] sm:$0xff]
      %v8599 = vld [vmem:[%s8570 + $0xe0] sm:$0xff]
      %v8600 = vld [vmem:[%s8570 + $0xe8] sm:$0xff]
      %v8601 = vld [vmem:[%s8570 + $0xf0] sm:$0xff]
      %v8602 = vld [vmem:[%s8570 + $0xf8] sm:$0xff]
      %v8603 = vpack.c.bf16 %v8569, %v8569
      %s8604 = scalar_lea.vmem %s18, 20
      %v8605 = vld [vmem:[%s8604] sm:$0xf]
      %v8607 = vlaneseq
      %v8608 = vshrl.u32 %v8607, 7
      %v8609 = vsub.s32 0, %v8608
      %v8610 = vrot.slane %v8605, %v8609
      %v8611 = vlaneseq
      %v8612 = vshrl.u32 %v8611, 7
      %v8613 = vsub.s32 1, %v8612
      %v8614 = vrot.slane %v8605, %v8613
      %v8615 = vlaneseq
      %v8616 = vshrl.u32 %v8615, 7
      %v8617 = vsub.s32 2, %v8616
      %v8618 = vrot.slane %v8605, %v8617
      %v8619 = vlaneseq
      %v8620 = vshrl.u32 %v8619, 7
      %v8621 = vsub.s32 3, %v8620
      %v8622 = vrot.slane %v8605, %v8621
      %v8659 = vunpack.c.l.b16 %v8571
      %v8660 = vunpack.c.h.b16 %v8571
      %v8661 = vunpack.c.l.b16 %v8572
      %v8662 = vunpack.c.h.b16 %v8572
      %v8663 = vunpack.c.l.b16 %v8573
      %v8664 = vunpack.c.h.b16 %v8573
      %v8665 = vunpack.c.l.b16 %v8574
      %v8666 = vunpack.c.h.b16 %v8574
      %v8667 = vunpack.c.l.b16 %v8575
      %v8668 = vunpack.c.h.b16 %v8575
      %v8669 = vunpack.c.l.b16 %v8576
      %v8670 = vunpack.c.h.b16 %v8576
      %v8671 = vunpack.c.l.b16 %v8577
      %v8672 = vunpack.c.h.b16 %v8577
      %v8673 = vunpack.c.l.b16 %v8578
      %v8674 = vunpack.c.h.b16 %v8578
      %v8675 = vunpack.c.l.b16 %v8579
      %v8676 = vunpack.c.h.b16 %v8579
      %v8677 = vunpack.c.l.b16 %v8580
      %v8678 = vunpack.c.h.b16 %v8580
      %v8679 = vunpack.c.l.b16 %v8581
      %v8680 = vunpack.c.h.b16 %v8581
      %v8681 = vunpack.c.l.b16 %v8582
      %v8682 = vunpack.c.h.b16 %v8582
      %v8683 = vunpack.c.l.b16 %v8583
      %v8684 = vunpack.c.h.b16 %v8583
      %v8685 = vunpack.c.l.b16 %v8584
      %v8686 = vunpack.c.h.b16 %v8584
      %v8687 = vunpack.c.l.b16 %v8585
      %v8688 = vunpack.c.h.b16 %v8585
      %v8689 = vunpack.c.l.b16 %v8586
      %v8690 = vunpack.c.h.b16 %v8586
      %v8691 = vunpack.c.l.b16 %v8587
      %v8692 = vunpack.c.h.b16 %v8587
      %v8693 = vunpack.c.l.b16 %v8588
      %v8694 = vunpack.c.h.b16 %v8588
      %v8695 = vunpack.c.l.b16 %v8589
      %v8696 = vunpack.c.h.b16 %v8589
      %v8697 = vunpack.c.l.b16 %v8590
      %v8698 = vunpack.c.h.b16 %v8590
      %v8699 = vunpack.c.l.b16 %v8591
      %v8700 = vunpack.c.h.b16 %v8591
      %v8701 = vunpack.c.l.b16 %v8592
      %v8702 = vunpack.c.h.b16 %v8592
      %v8703 = vunpack.c.l.b16 %v8593
      %v8704 = vunpack.c.h.b16 %v8593
      %v8705 = vunpack.c.l.b16 %v8594
      %v8706 = vunpack.c.h.b16 %v8594
      %v8707 = vunpack.c.l.b16 %v8595
      %v8708 = vunpack.c.h.b16 %v8595
      %v8709 = vunpack.c.l.b16 %v8596
      %v8710 = vunpack.c.h.b16 %v8596
      %v8711 = vunpack.c.l.b16 %v8597
      %v8712 = vunpack.c.h.b16 %v8597
      %v8713 = vunpack.c.l.b16 %v8598
      %v8714 = vunpack.c.h.b16 %v8598
      %v8715 = vunpack.c.l.b16 %v8599
      %v8716 = vunpack.c.h.b16 %v8599
      %v8717 = vunpack.c.l.b16 %v8600
      %v8718 = vunpack.c.h.b16 %v8600
      %v8719 = vunpack.c.l.b16 %v8601
      %v8720 = vunpack.c.h.b16 %v8601
      %v8721 = vunpack.c.l.b16 %v8602
      %v8722 = vunpack.c.h.b16 %v8602
      %v8723 = vpack.c.b16 %v8663, %v8659
      %v8724 = vpack.c.b16 %v8664, %v8660
      %v8725 = vpack.c.b16 %v8665, %v8661
      %v8726 = vpack.c.b16 %v8666, %v8662
      %v8727 = vpack.c.b16 %v8671, %v8667
      %v8728 = vpack.c.b16 %v8672, %v8668
      %v8729 = vpack.c.b16 %v8673, %v8669
      %v8730 = vpack.c.b16 %v8674, %v8670
      %v8731 = vpack.c.b16 %v8679, %v8675
      %v8732 = vpack.c.b16 %v8680, %v8676
      %v8733 = vpack.c.b16 %v8681, %v8677
      %v8734 = vpack.c.b16 %v8682, %v8678
      %v8735 = vpack.c.b16 %v8687, %v8683
      %v8736 = vpack.c.b16 %v8688, %v8684
      %v8737 = vpack.c.b16 %v8689, %v8685
      %v8738 = vpack.c.b16 %v8690, %v8686
      %v8739 = vpack.c.b16 %v8695, %v8691
      %v8740 = vpack.c.b16 %v8696, %v8692
      %v8741 = vpack.c.b16 %v8697, %v8693
      %v8742 = vpack.c.b16 %v8698, %v8694
      %v8743 = vpack.c.b16 %v8703, %v8699
      %v8744 = vpack.c.b16 %v8704, %v8700
      %v8745 = vpack.c.b16 %v8705, %v8701
      %v8746 = vpack.c.b16 %v8706, %v8702
      %v8747 = vpack.c.b16 %v8711, %v8707
      %v8748 = vpack.c.b16 %v8712, %v8708
      %v8749 = vpack.c.b16 %v8713, %v8709
      %v8750 = vpack.c.b16 %v8714, %v8710
      %v8751 = vpack.c.b16 %v8719, %v8715
      %v8752 = vpack.c.b16 %v8720, %v8716
      %v8753 = vpack.c.b16 %v8721, %v8717
      %v8754 = vpack.c.b16 %v8722, %v8718
      %8787 = vmatprep.subr.bf16.mxu0 %v8724
      %8788 = vmatpush1.bf16.msra.mxu0 %v8723
      %8789 = vmatprep.subr.bf16.mxu0 %v8728
      %8790 = vmatpush1.bf16.msra.mxu0 %v8727
      %8791 = vmatprep.subr.bf16.mxu0 %v8732
      %8792 = vmatpush1.bf16.msra.mxu0 %v8731
      %8793 = vmatprep.subr.bf16.mxu0 %v8736
      %8794 = vmatpush1.bf16.msra.mxu0 %v8735
      %8795 = vmatprep.subr.bf16.mxu0 %v8740
      %8796 = vmatpush1.bf16.msra.mxu0 %v8739
      %8797 = vmatprep.subr.bf16.mxu0 %v8744
      %8798 = vmatpush1.bf16.msra.mxu0 %v8743
      %8799 = vmatprep.subr.bf16.mxu0 %v8748
      %8800 = vmatpush1.bf16.msra.mxu0 %v8747
      %8801 = vmatprep.subr.bf16.mxu0 %v8752
      %8802 = vmatpush1.bf16.msra.mxu0 %v8751
      %8803 = vmatprep.subr.bf16.mxu0 0
      %8804 = vmatpush1.bf16.msra.mxu0 0
      %8805 = vmatprep.subr.bf16.mxu0 0
      %8806 = vmatpush1.bf16.msra.mxu0 0
      %8807 = vmatprep.subr.bf16.mxu0 0
      %8808 = vmatpush1.bf16.msra.mxu0 0
      %8809 = vmatprep.subr.bf16.mxu0 0
      %8810 = vmatpush1.bf16.msra.mxu0 0
      %8811 = vmatprep.subr.bf16.mxu0 0
      %8812 = vmatpush1.bf16.msra.mxu0 0
      %8813 = vmatprep.subr.bf16.mxu0 0
      %8814 = vmatpush1.bf16.msra.mxu0 0
      %8815 = vmatprep.subr.bf16.mxu0 0
      %8816 = vmatpush1.bf16.msra.mxu0 0
      %8817 = vmatprep.subr.bf16.mxu0 0
      %8818 = vmatpush1.bf16.msra.mxu0 0
      %8819 = vmatprep.mubr.bf16.mxu0 0
      %8820 = vmatmul.mubr.bf16.gmra.mrb[0].mxu0 %v8603
      %v8821 = vpop.f32.mrb[0].mxu0
      %v8822 = vadd.f32 %v8610, %v8821
      %v8823 = vpop.f32.mrb[0].mxu0
      %v8824 = vadd.f32 %v8614, %v8823
      %v8825 = vpop.f32.mrb[0].mxu0
      %v8826 = vpop.f32.mrb[0].mxu0
      %8827 = vdwg.mxu0
      %8828 = vmatprep.subr.bf16.mxu0 %v8726
      %8829 = vmatpush1.bf16.msra.mxu0 %v8725
      %8830 = vmatprep.subr.bf16.mxu0 %v8730
      %8831 = vmatpush1.bf16.msra.mxu0 %v8729
      %8832 = vmatprep.subr.bf16.mxu0 %v8734
      %8833 = vmatpush1.bf16.msra.mxu0 %v8733
      %8834 = vmatprep.subr.bf16.mxu0 %v8738
      %8835 = vmatpush1.bf16.msra.mxu0 %v8737
      %8836 = vmatprep.subr.bf16.mxu0 %v8742
      %8837 = vmatpush1.bf16.msra.mxu0 %v8741
      %8838 = vmatprep.subr.bf16.mxu0 %v8746
      %8839 = vmatpush1.bf16.msra.mxu0 %v8745
      %8840 = vmatprep.subr.bf16.mxu0 %v8750
      %8841 = vmatpush1.bf16.msra.mxu0 %v8749
      %8842 = vmatprep.subr.bf16.mxu0 %v8754
      %8843 = vmatpush1.bf16.msra.mxu0 %v8753
      %8844 = vmatprep.subr.bf16.mxu0 0
      %8845 = vmatpush1.bf16.msra.mxu0 0
      %8846 = vmatprep.subr.bf16.mxu0 0
      %8847 = vmatpush1.bf16.msra.mxu0 0
      %8848 = vmatprep.subr.bf16.mxu0 0
      %8849 = vmatpush1.bf16.msra.mxu0 0
      %8850 = vmatprep.subr.bf16.mxu0 0
      %8851 = vmatpush1.bf16.msra.mxu0 0
      %8852 = vmatprep.subr.bf16.mxu0 0
      %8853 = vmatpush1.bf16.msra.mxu0 0
      %8854 = vmatprep.subr.bf16.mxu0 0
      %8855 = vmatpush1.bf16.msra.mxu0 0
      %8856 = vmatprep.subr.bf16.mxu0 0
      %8857 = vmatpush1.bf16.msra.mxu0 0
      %8858 = vmatprep.subr.bf16.mxu0 0
      %8859 = vmatpush1.bf16.msra.mxu0 0
      %8860 = vmatprep.mubr.bf16.mxu0 0
      %8861 = vmatmul.mubr.bf16.gmra.mrb[0].mxu0 %v8603
      %v8862 = vpop.f32.mrb[0].mxu0
      %v8863 = vadd.f32 %v8618, %v8862
      %v8864 = vpop.f32.mrb[0].mxu0
      %v8865 = vadd.f32 %v8622, %v8864
      %v8866 = vpop.f32.mrb[0].mxu0
      %v8867 = vpop.f32.mrb[0].mxu0
      %8868 = vdwg.mxu0
      %v8869 = vmul.f32 %v8822, %v8822
      %v8870 = vmul.f32 %v8824, %v8824
      %v8871 = vmul.f32 %v8863, %v8863
      %v8872 = vmul.f32 %v8865, %v8865
      %v8873 = vmul.f32 %v8822, %v8869
      %v8874 = vmul.f32 %v8824, %v8870
      %v8875 = vmul.f32 %v8863, %v8871
      %v8876 = vmul.f32 %v8865, %v8872
      %v8877 = vmul.f32 %v8873, 0.044715
      %v8878 = vmul.f32 %v8874, 0.044715
      %v8879 = vmul.f32 %v8875, 0.044715
      %v8880 = vmul.f32 %v8876, 0.044715
      %v8881 = vadd.f32 %v8822, %v8877
      %v8882 = vadd.f32 %v8824, %v8878
      %v8883 = vadd.f32 %v8863, %v8879
      %v8884 = vadd.f32 %v8865, %v8880
      %v8885 = vmul.f32 %v8881, 0.7978846
      %v8886 = vmul.f32 %v8882, 0.7978846
      %v8887 = vmul.f32 %v8883, 0.7978846
      %v8888 = vmul.f32 %v8884, 0.7978846
      %v8889 = vtanh.pop %v8885
      %v8890 = vtanh.pop %v8886
      %v8891 = vtanh.pop %v8887
      %v8892 = vtanh.pop %v8888
      %v8893 = vadd.f32 %v8889, 1.0
      %v8894 = vadd.f32 %v8890, 1.0
      %v8895 = vadd.f32 %v8891, 1.0
      %v8896 = vadd.f32 %v8892, 1.0
      %v8897 = vmul.f32 %v8893, 0.5
      %v8898 = vmul.f32 %v8894, 0.5
      %v8899 = vmul.f32 %v8895, 0.5
      %v8900 = vmul.f32 %v8896, 0.5
      %v8901 = vmul.f32 %v8822, %v8897
      %v8902 = vmul.f32 %v8824, %v8898
      %v8903 = vmul.f32 %v8863, %v8899
      %v8904 = vmul.f32 %v8865, %v8900
      %s8905 = scalar_lea.vmem %s19, 1280
      %v8906 = vld [vmem:[%s8905] sm:$0xf]
      %v8907 = vld [vmem:[%s8905 + $0x4] sm:$0xf]
      %v8908 = vld [vmem:[%s8905 + $0x8] sm:$0xf]
      %v8909 = vld [vmem:[%s8905 + $0xc] sm:$0xf]
      %v8910 = vld [vmem:[%s8905 + $0x10] sm:$0xf]
      %v8911 = vld [vmem:[%s8905 + $0x14] sm:$0xf]
      %v8912 = vld [vmem:[%s8905 + $0x18] sm:$0xf]
      %v8913 = vld [vmem:[%s8905 + $0x1c] sm:$0xf]
      %v8914 = vld [vmem:[%s8905 + $0x20] sm:$0xf]
      %v8915 = vld [vmem:[%s8905 + $0x24] sm:$0xf]
      %v8916 = vld [vmem:[%s8905 + $0x28] sm:$0xf]
      %v8917 = vld [vmem:[%s8905 + $0x2c] sm:$0xf]
      %v8918 = vld [vmem:[%s8905 + $0x30] sm:$0xf]
      %v8919 = vld [vmem:[%s8905 + $0x34] sm:$0xf]
      %v8920 = vld [vmem:[%s8905 + $0x38] sm:$0xf]
      %v8921 = vld [vmem:[%s8905 + $0x3c] sm:$0xf]
      %v8922 = vld [vmem:[%s8905 + $0x40] sm:$0xf]
      %v8923 = vld [vmem:[%s8905 + $0x44] sm:$0xf]
      %v8924 = vld [vmem:[%s8905 + $0x48] sm:$0xf]
      %v8925 = vld [vmem:[%s8905 + $0x4c] sm:$0xf]
      %v8926 = vld [vmem:[%s8905 + $0x50] sm:$0xf]
      %v8927 = vld [vmem:[%s8905 + $0x54] sm:$0xf]
      %v8928 = vld [vmem:[%s8905 + $0x58] sm:$0xf]
      %v8929 = vld [vmem:[%s8905 + $0x5c] sm:$0xf]
      %v8930 = vld [vmem:[%s8905 + $0x60] sm:$0xf]
      %v8931 = vld [vmem:[%s8905 + $0x64] sm:$0xf]
      %v8932 = vld [vmem:[%s8905 + $0x68] sm:$0xf]
      %v8933 = vld [vmem:[%s8905 + $0x6c] sm:$0xf]
      %v8934 = vld [vmem:[%s8905 + $0x70] sm:$0xf]
      %v8935 = vld [vmem:[%s8905 + $0x74] sm:$0xf]
      %v8936 = vld [vmem:[%s8905 + $0x78] sm:$0xf]
      %v8937 = vld [vmem:[%s8905 + $0x7c] sm:$0xf]
      %v8938 = vld [vmem:[%s8905 + $0x80] sm:$0xf]
      %v8939 = vld [vmem:[%s8905 + $0x84] sm:$0xf]
      %v8940 = vld [vmem:[%s8905 + $0x88] sm:$0xf]
      %v8941 = vld [vmem:[%s8905 + $0x8c] sm:$0xf]
      %v8942 = vld [vmem:[%s8905 + $0x90] sm:$0xf]
      %v8943 = vld [vmem:[%s8905 + $0x94] sm:$0xf]
      %v8944 = vld [vmem:[%s8905 + $0x98] sm:$0xf]
      %v8945 = vld [vmem:[%s8905 + $0x9c] sm:$0xf]
      %v8946 = vld [vmem:[%s8905 + $0xa0] sm:$0xf]
      %v8947 = vld [vmem:[%s8905 + $0xa4] sm:$0xf]
      %v8948 = vld [vmem:[%s8905 + $0xa8] sm:$0xf]
      %v8949 = vld [vmem:[%s8905 + $0xac] sm:$0xf]
      %v8950 = vld [vmem:[%s8905 + $0xb0] sm:$0xf]
      %v8951 = vld [vmem:[%s8905 + $0xb4] sm:$0xf]
      %v8952 = vld [vmem:[%s8905 + $0xb8] sm:$0xf]
      %v8953 = vld [vmem:[%s8905 + $0xbc] sm:$0xf]
      %v8954 = vld [vmem:[%s8905 + $0xc0] sm:$0xf]
      %v8955 = vld [vmem:[%s8905 + $0xc4] sm:$0xf]
      %v8956 = vld [vmem:[%s8905 + $0xc8] sm:$0xf]
      %v8957 = vld [vmem:[%s8905 + $0xcc] sm:$0xf]
      %v8958 = vld [vmem:[%s8905 + $0xd0] sm:$0xf]
      %v8959 = vld [vmem:[%s8905 + $0xd4] sm:$0xf]
      %v8960 = vld [vmem:[%s8905 + $0xd8] sm:$0xf]
      %v8961 = vld [vmem:[%s8905 + $0xdc] sm:$0xf]
      %v8962 = vld [vmem:[%s8905 + $0xe0] sm:$0xf]
      %v8963 = vld [vmem:[%s8905 + $0xe4] sm:$0xf]
      %v8964 = vld [vmem:[%s8905 + $0xe8] sm:$0xf]
      %v8965 = vld [vmem:[%s8905 + $0xec] sm:$0xf]
      %v8966 = vld [vmem:[%s8905 + $0xf0] sm:$0xf]
      %v8967 = vld [vmem:[%s8905 + $0xf4] sm:$0xf]
      %v8968 = vld [vmem:[%s8905 + $0xf8] sm:$0xf]
      %v8969 = vld [vmem:[%s8905 + $0xfc] sm:$0xf]
      %v8970 = vpack.c.bf16 %v8901, %v8901
      %v8971 = vpack.c.bf16 %v8902, %v8902
      %v8972 = vpack.c.bf16 %v8903, %v8903
      %v8973 = vpack.c.bf16 %v8904, %v8904
      %s8974 = scalar_lea.vmem %s20, 5
      %v8975 = vld [vmem:[%s8974] sm:$0x1]
      %v8977 = vlaneseq
      %v8978 = vshrl.u32 %v8977, 7
      %v8979 = vsub.s32 0, %v8978
      %v8980 = vrot.slane %v8975, %v8979
      %v9046 = vunpack.c.l.b16 %v8906
      %v9047 = vunpack.c.l.b16 %v8907
      %v9048 = vunpack.c.l.b16 %v8908
      %v9049 = vunpack.c.l.b16 %v8909
      %v9050 = vunpack.c.l.b16 %v8910
      %v9051 = vunpack.c.l.b16 %v8911
      %v9052 = vunpack.c.l.b16 %v8912
      %v9053 = vunpack.c.l.b16 %v8913
      %v9054 = vunpack.c.l.b16 %v8914
      %v9055 = vunpack.c.l.b16 %v8915
      %v9056 = vunpack.c.l.b16 %v8916
      %v9057 = vunpack.c.l.b16 %v8917
      %v9058 = vunpack.c.l.b16 %v8918
      %v9059 = vunpack.c.l.b16 %v8919
      %v9060 = vunpack.c.l.b16 %v8920
      %v9061 = vunpack.c.l.b16 %v8921
      %v9062 = vunpack.c.l.b16 %v8922
      %v9063 = vunpack.c.l.b16 %v8923
      %v9064 = vunpack.c.l.b16 %v8924
      %v9065 = vunpack.c.l.b16 %v8925
      %v9066 = vunpack.c.l.b16 %v8926
      %v9067 = vunpack.c.l.b16 %v8927
      %v9068 = vunpack.c.l.b16 %v8928
      %v9069 = vunpack.c.l.b16 %v8929
      %v9070 = vunpack.c.l.b16 %v8930
      %v9071 = vunpack.c.l.b16 %v8931
      %v9072 = vunpack.c.l.b16 %v8932
      %v9073 = vunpack.c.l.b16 %v8933
      %v9074 = vunpack.c.l.b16 %v8934
      %v9075 = vunpack.c.l.b16 %v8935
      %v9076 = vunpack.c.l.b16 %v8936
      %v9077 = vunpack.c.l.b16 %v8937
      %v9078 = vunpack.c.l.b16 %v8938
      %v9079 = vunpack.c.l.b16 %v8939
      %v9080 = vunpack.c.l.b16 %v8940
      %v9081 = vunpack.c.l.b16 %v8941
      %v9082 = vunpack.c.l.b16 %v8942
      %v9083 = vunpack.c.l.b16 %v8943
      %v9084 = vunpack.c.l.b16 %v8944
      %v9085 = vunpack.c.l.b16 %v8945
      %v9086 = vunpack.c.l.b16 %v8946
      %v9087 = vunpack.c.l.b16 %v8947
      %v9088 = vunpack.c.l.b16 %v8948
      %v9089 = vunpack.c.l.b16 %v8949
      %v9090 = vunpack.c.l.b16 %v8950
      %v9091 = vunpack.c.l.b16 %v8951
      %v9092 = vunpack.c.l.b16 %v8952
      %v9093 = vunpack.c.l.b16 %v8953
      %v9094 = vunpack.c.l.b16 %v8954
      %v9095 = vunpack.c.l.b16 %v8955
      %v9096 = vunpack.c.l.b16 %v8956
      %v9097 = vunpack.c.l.b16 %v8957
      %v9098 = vunpack.c.l.b16 %v8958
      %v9099 = vunpack.c.l.b16 %v8959
      %v9100 = vunpack.c.l.b16 %v8960
      %v9101 = vunpack.c.l.b16 %v8961
      %v9102 = vunpack.c.l.b16 %v8962
      %v9103 = vunpack.c.l.b16 %v8963
      %v9104 = vunpack.c.l.b16 %v8964
      %v9105 = vunpack.c.l.b16 %v8965
      %v9106 = vunpack.c.l.b16 %v8966
      %v9107 = vunpack.c.l.b16 %v8967
      %v9108 = vunpack.c.l.b16 %v8968
      %v9109 = vunpack.c.l.b16 %v8969
      %v9110 = vpack.c.b16 %v9047, %v9046
      %v9111 = vpack.c.b16 %v9049, %v9048
      %v9112 = vpack.c.b16 %v9051, %v9050
      %v9113 = vpack.c.b16 %v9053, %v9052
      %v9114 = vpack.c.b16 %v9055, %v9054
      %v9115 = vpack.c.b16 %v9057, %v9056
      %v9116 = vpack.c.b16 %v9059, %v9058
      %v9117 = vpack.c.b16 %v9061, %v9060
      %v9118 = vpack.c.b16 %v9063, %v9062
      %v9119 = vpack.c.b16 %v9065, %v9064
      %v9120 = vpack.c.b16 %v9067, %v9066
      %v9121 = vpack.c.b16 %v9069, %v9068
      %v9122 = vpack.c.b16 %v9071, %v9070
      %v9123 = vpack.c.b16 %v9073, %v9072
      %v9124 = vpack.c.b16 %v9075, %v9074
      %v9125 = vpack.c.b16 %v9077, %v9076
      %v9126 = vpack.c.b16 %v9079, %v9078
      %v9127 = vpack.c.b16 %v9081, %v9080
      %v9128 = vpack.c.b16 %v9083, %v9082
      %v9129 = vpack.c.b16 %v9085, %v9084
      %v9130 = vpack.c.b16 %v9087, %v9086
      %v9131 = vpack.c.b16 %v9089, %v9088
      %v9132 = vpack.c.b16 %v9091, %v9090
      %v9133 = vpack.c.b16 %v9093, %v9092
      %v9134 = vpack.c.b16 %v9095, %v9094
      %v9135 = vpack.c.b16 %v9097, %v9096
      %v9136 = vpack.c.b16 %v9099, %v9098
      %v9137 = vpack.c.b16 %v9101, %v9100
      %v9138 = vpack.c.b16 %v9103, %v9102
      %v9139 = vpack.c.b16 %v9105, %v9104
      %v9140 = vpack.c.b16 %v9107, %v9106
      %v9141 = vpack.c.b16 %v9109, %v9108
      %9174 = vmatprep.subr.bf16.mxu0 0
      %9175 = vmatpush1.bf16.msra.mxu0 %v9110
      %9176 = vmatprep.subr.bf16.mxu0 0
      %9177 = vmatpush1.bf16.msra.mxu0 %v9111
      %9178 = vmatprep.subr.bf16.mxu0 0
      %9179 = vmatpush1.bf16.msra.mxu0 %v9112
      %9180 = vmatprep.subr.bf16.mxu0 0
      %9181 = vmatpush1.bf16.msra.mxu0 %v9113
      %9182 = vmatprep.subr.bf16.mxu0 0
      %9183 = vmatpush1.bf16.msra.mxu0 %v9114
      %9184 = vmatprep.subr.bf16.mxu0 0
      %9185 = vmatpush1.bf16.msra.mxu0 %v9115
      %9186 = vmatprep.subr.bf16.mxu0 0
      %9187 = vmatpush1.bf16.msra.mxu0 %v9116
      %9188 = vmatprep.subr.bf16.mxu0 0
      %9189 = vmatpush1.bf16.msra.mxu0 %v9117
      %9190 = vmatprep.subr.bf16.mxu0 0
      %9191 = vmatpush1.bf16.msra.mxu0 %v9118
      %9192 = vmatprep.subr.bf16.mxu0 0
      %9193 = vmatpush1.bf16.msra.mxu0 %v9119
      %9194 = vmatprep.subr.bf16.mxu0 0
      %9195 = vmatpush1.bf16.msra.mxu0 %v9120
      %9196 = vmatprep.subr.bf16.mxu0 0
      %9197 = vmatpush1.bf16.msra.mxu0 %v9121
      %9198 = vmatprep.subr.bf16.mxu0 0
      %9199 = vmatpush1.bf16.msra.mxu0 %v9122
      %9200 = vmatprep.subr.bf16.mxu0 0
      %9201 = vmatpush1.bf16.msra.mxu0 %v9123
      %9202 = vmatprep.subr.bf16.mxu0 0
      %9203 = vmatpush1.bf16.msra.mxu0 %v9124
      %9204 = vmatprep.subr.bf16.mxu0 0
      %9205 = vmatpush1.bf16.msra.mxu0 %v9125
      %9206 = vmatprep.mubr.bf16.mxu0 %v8971
      %9207 = vmatmul.mubr.bf16.gmra.mrb[0].mxu0 %v8970
      %v9208 = vpop.f32.mrb[0].mxu0
      %v9209 = vadd.f32 %v8980, %v9208
      %v9210 = vpop.f32.mrb[0].mxu0
      %v9211 = vpop.f32.mrb[0].mxu0
      %v9212 = vpop.f32.mrb[0].mxu0
      %9213 = vdwg.mxu0
      %9214 = vmatprep.subr.bf16.mxu0 0
      %9215 = vmatpush1.bf16.msra.mxu0 %v9126
      %9216 = vmatprep.subr.bf16.mxu0 0
      %9217 = vmatpush1.bf16.msra.mxu0 %v9127
      %9218 = vmatprep.subr.bf16.mxu0 0
      %9219 = vmatpush1.bf16.msra.mxu0 %v9128
      %9220 = vmatprep.subr.bf16.mxu0 0
      %9221 = vmatpush1.bf16.msra.mxu0 %v9129
      %9222 = vmatprep.subr.bf16.mxu0 0
      %9223 = vmatpush1.bf16.msra.mxu0 %v9130
      %9224 = vmatprep.subr.bf16.mxu0 0
      %9225 = vmatpush1.bf16.msra.mxu0 %v9131
      %9226 = vmatprep.subr.bf16.mxu0 0
      %9227 = vmatpush1.bf16.msra.mxu0 %v9132
      %9228 = vmatprep.subr.bf16.mxu0 0
      %9229 = vmatpush1.bf16.msra.mxu0 %v9133
      %9230 = vmatprep.subr.bf16.mxu0 0
      %9231 = vmatpush1.bf16.msra.mxu0 %v9134
      %9232 = vmatprep.subr.bf16.mxu0 0
      %9233 = vmatpush1.bf16.msra.mxu0 %v9135
      %9234 = vmatprep.subr.bf16.mxu0 0
      %9235 = vmatpush1.bf16.msra.mxu0 %v9136
      %9236 = vmatprep.subr.bf16.mxu0 0
      %9237 = vmatpush1.bf16.msra.mxu0 %v9137
      %9238 = vmatprep.subr.bf16.mxu0 0
      %9239 = vmatpush1.bf16.msra.mxu0 %v9138
      %9240 = vmatprep.subr.bf16.mxu0 0
      %9241 = vmatpush1.bf16.msra.mxu0 %v9139
      %9242 = vmatprep.subr.bf16.mxu0 0
      %9243 = vmatpush1.bf16.msra.mxu0 %v9140
      %9244 = vmatprep.subr.bf16.mxu0 0
      %9245 = vmatpush1.bf16.msra.mxu0 %v9141
      %9246 = vmatprep.mubr.bf16.mxu0 %v8973
      %9247 = vmatmul.mubr.bf16.gmra.mrb[0].mxu0 %v8972
      %v9248 = vpop.f32.mrb[0].mxu0
      %v9249 = vadd.f32 %v9209, %v9248
      %v9250 = vpop.f32.mrb[0].mxu0
      %v9251 = vpop.f32.mrb[0].mxu0
      %v9252 = vpop.f32.mrb[0].mxu0
      %9253 = vdwg.mxu0
      %v9254 = vmul.f32 %v9249, %v9249
      %v9255 = vmul.f32 %v9249, %v9254
      %v9256 = vmul.f32 %v9255, 0.044715
      %v9257 = vadd.f32 %v9249, %v9256
      %v9258 = vmul.f32 %v9257, 0.7978846
      %v9259 = vtanh.pop %v9258
      %v9260 = vadd.f32 %v9259, 1.0
      %v9261 = vmul.f32 %v9260, 0.5
      %v9262 = vmul.f32 %v9249, %v9261
      %v9263 = vadd.f32 %v9262, %v8540
      %v9264 = vld [vmem:[%s21] sm:$0x1]
      %v9265 = vld [vmem:[%s22] sm:$0x1]
      %9266 = vadd.xlane.f32.xlu0 %v9263
      %v9267 = vpop.xlane.xlu0 %9266
      %v9268 = vmul.f32 %v9267, %v1128
      %v9269 = vsub.f32 %v9263, %v9268
      %v9270 = vmul.f32 %v9269, %v9269
      %9271 = vadd.xlane.f32.xlu0 %v9270
      %v9272 = vpop.xlane.xlu0 %9271
      %v9273 = vmul.f32 %v9272, %v1128
      %v9274 = vadd.f32 %v9273, 1e-06
      %v9275 = vrsqrt.pop %v9274
      %v9276 = vmul.f32 %v9269, %v9275
      %v9278 = vlaneseq
      %v9279 = vshrl.u32 %v9278, 7
      %v9280 = vsub.s32 0, %v9279
      %v9281 = vrot.slane %v9264, %v9280
      %v9283 = vmul.f32 %v9276, %v9281
      %v9285 = vlaneseq
      %v9286 = vshrl.u32 %v9285, 7
      %v9287 = vsub.s32 0, %v9286
      %v9288 = vrot.slane %v9265, %v9287
      %v9290 = vadd.f32 %v9283, %v9288
      %v9291 = vld [vmem:[%s23] sm:$0xff]
      %v9292 = vld [vmem:[%s23 + $0x8] sm:$0xff]
      %v9293 = vld [vmem:[%s23 + $0x10] sm:$0xff]
      %v9294 = vld [vmem:[%s23 + $0x18] sm:$0xff]
      %v9295 = vld [vmem:[%s23 + $0x20] sm:$0xff]
      %v9296 = vld [vmem:[%s23 + $0x28] sm:$0xff]
      %v9297 = vld [vmem:[%s23 + $0x30] sm:$0xff]
      %v9298 = vld [vmem:[%s23 + $0x38] sm:$0xff]
      %v9299 = vld [vmem:[%s23 + $0x40] sm:$0xff]
      %v9300 = vld [vmem:[%s23 + $0x48] sm:$0xff]
      %v9301 = vld [vmem:[%s23 + $0x50] sm:$0xff]
      %v9302 = vld [vmem:[%s23 + $0x58] sm:$0xff]
      %v9303 = vld [vmem:[%s23 + $0x60] sm:$0xff]
      %v9304 = vld [vmem:[%s23 + $0x68] sm:$0xff]
      %v9305 = vld [vmem:[%s23 + $0x70] sm:$0xff]
      %v9306 = vld [vmem:[%s23 + $0x78] sm:$0xff]
      %v9307 = vpack.c.bf16 %v9290, %v9290
      %v9308 = vld [vmem:[%s827] sm:$0x3]
      %v9310 = vlaneseq
      %v9311 = vshrl.u32 %v9310, 7
      %v9312 = vsub.s32 0, %v9311
      %v9313 = vrot.slane %v9308, %v9312
      %v9314 = vlaneseq
      %v9315 = vshrl.u32 %v9314, 7
      %v9316 = vsub.s32 1, %v9315
      %v9317 = vrot.slane %v9308, %v9316
      %v9336 = vunpack.c.l.b16 %v9291
      %v9337 = vunpack.c.h.b16 %v9291
      %v9338 = vunpack.c.l.b16 %v9292
      %v9339 = vunpack.c.h.b16 %v9292
      %v9340 = vunpack.c.l.b16 %v9293
      %v9341 = vunpack.c.h.b16 %v9293
      %v9342 = vunpack.c.l.b16 %v9294
      %v9343 = vunpack.c.h.b16 %v9294
      %v9344 = vunpack.c.l.b16 %v9295
      %v9345 = vunpack.c.h.b16 %v9295
      %v9346 = vunpack.c.l.b16 %v9296
      %v9347 = vunpack.c.h.b16 %v9296
      %v9348 = vunpack.c.l.b16 %v9297
      %v9349 = vunpack.c.h.b16 %v9297
      %v9350 = vunpack.c.l.b16 %v9298
      %v9351 = vunpack.c.h.b16 %v9298
      %v9352 = vunpack.c.l.b16 %v9299
      %v9353 = vunpack.c.h.b16 %v9299
      %v9354 = vunpack.c.l.b16 %v9300
      %v9355 = vunpack.c.h.b16 %v9300
      %v9356 = vunpack.c.l.b16 %v9301
      %v9357 = vunpack.c.h.b16 %v9301
      %v9358 = vunpack.c.l.b16 %v9302
      %v9359 = vunpack.c.h.b16 %v9302
      %v9360 = vunpack.c.l.b16 %v9303
      %v9361 = vunpack.c.h.b16 %v9303
      %v9362 = vunpack.c.l.b16 %v9304
      %v9363 = vunpack.c.h.b16 %v9304
      %v9364 = vunpack.c.l.b16 %v9305
      %v9365 = vunpack.c.h.b16 %v9305
      %v9366 = vunpack.c.l.b16 %v9306
      %v9367 = vunpack.c.h.b16 %v9306
      %v9368 = vpack.c.b16 %v9338, %v9336
      %v9369 = vpack.c.b16 %v9339, %v9337
      %v9370 = vpack.c.b16 %v9342, %v9340
      %v9371 = vpack.c.b16 %v9343, %v9341
      %v9372 = vpack.c.b16 %v9346, %v9344
      %v9373 = vpack.c.b16 %v9347, %v9345
      %v9374 = vpack.c.b16 %v9350, %v9348
      %v9375 = vpack.c.b16 %v9351, %v9349
      %v9376 = vpack.c.b16 %v9354, %v9352
      %v9377 = vpack.c.b16 %v9355, %v9353
      %v9378 = vpack.c.b16 %v9358, %v9356
      %v9379 = vpack.c.b16 %v9359, %v9357
      %v9380 = vpack.c.b16 %v9362, %v9360
      %v9381 = vpack.c.b16 %v9363, %v9361
      %v9382 = vpack.c.b16 %v9366, %v9364
      %v9383 = vpack.c.b16 %v9367, %v9365
      %9400 = vmatprep.subr.bf16.mxu0 %v9369
      %9401 = vmatpush1.bf16.msra.mxu0 %v9368
      %9402 = vmatprep.subr.bf16.mxu0 %v9371
      %9403 = vmatpush1.bf16.msra.mxu0 %v9370
      %9404 = vmatprep.subr.bf16.mxu0 %v9373
      %9405 = vmatpush1.bf16.msra.mxu0 %v9372
      %9406 = vmatprep.subr.bf16.mxu0 %v9375
      %9407 = vmatpush1.bf16.msra.mxu0 %v9374
      %9408 = vmatprep.subr.bf16.mxu0 %v9377
      %9409 = vmatpush1.bf16.msra.mxu0 %v9376
      %9410 = vmatprep.subr.bf16.mxu0 %v9379
      %9411 = vmatpush1.bf16.msra.mxu0 %v9378
      %9412 = vmatprep.subr.bf16.mxu0 %v9381
      %9413 = vmatpush1.bf16.msra.mxu0 %v9380
      %9414 = vmatprep.subr.bf16.mxu0 %v9383
      %9415 = vmatpush1.bf16.msra.mxu0 %v9382
      %9416 = vmatprep.subr.bf16.mxu0 0
      %9417 = vmatpush1.bf16.msra.mxu0 0
      %9418 = vmatprep.subr.bf16.mxu0 0
      %9419 = vmatpush1.bf16.msra.mxu0 0
      %9420 = vmatprep.subr.bf16.mxu0 0
      %9421 = vmatpush1.bf16.msra.mxu0 0
      %9422 = vmatprep.subr.bf16.mxu0 0
      %9423 = vmatpush1.bf16.msra.mxu0 0
      %9424 = vmatprep.subr.bf16.mxu0 0
      %9425 = vmatpush1.bf16.msra.mxu0 0
      %9426 = vmatprep.subr.bf16.mxu0 0
      %9427 = vmatpush1.bf16.msra.mxu0 0
      %9428 = vmatprep.subr.bf16.mxu0 0
      %9429 = vmatpush1.bf16.msra.mxu0 0
      %9430 = vmatprep.subr.bf16.mxu0 0
      %9431 = vmatpush1.bf16.msra.mxu0 0
      %9432 = vmatprep.mubr.bf16.mxu0 0
      %9433 = vmatmul.mubr.bf16.gmra.mrb[0].mxu0 %v9307
      %v9434 = vpop.f32.mrb[0].mxu0
      %v9435 = vadd.f32 %v9313, %v9434
      %v9436 = vpop.f32.mrb[0].mxu0
      %v9437 = vadd.f32 %v9317, %v9436
      %v9438 = vpop.f32.mrb[0].mxu0
      %v9439 = vpop.f32.mrb[0].mxu0
      %9440 = vdwg.mxu0
      %vm9441 = vcmp.gt.f32.partialorder %v9435, 0.0
      %vm9442 = vcmp.gt.f32.partialorder %v9437, 0.0
      %v9443 = vmul.f32 %v9435, 0.01
      %v9444 = vmul.f32 %v9437, 0.01
      %v9445 = vsel %vm9441, %v9435, %v9443
      %v9446 = vsel %vm9442, %v9437, %v9444
      %v9447 = vld [vmem:[%s24] sm:$0xf]
      %v9448 = vld [vmem:[%s24 + $0x4] sm:$0xf]
      %v9449 = vld [vmem:[%s24 + $0x8] sm:$0xf]
      %v9450 = vld [vmem:[%s24 + $0xc] sm:$0xf]
      %v9451 = vld [vmem:[%s24 + $0x10] sm:$0xf]
      %v9452 = vld [vmem:[%s24 + $0x14] sm:$0xf]
      %v9453 = vld [vmem:[%s24 + $0x18] sm:$0xf]
      %v9454 = vld [vmem:[%s24 + $0x1c] sm:$0xf]
      %v9455 = vld [vmem:[%s24 + $0x20] sm:$0xf]
      %v9456 = vld [vmem:[%s24 + $0x24] sm:$0xf]
      %v9457 = vld [vmem:[%s24 + $0x28] sm:$0xf]
      %v9458 = vld [vmem:[%s24 + $0x2c] sm:$0xf]
      %v9459 = vld [vmem:[%s24 + $0x30] sm:$0xf]
      %v9460 = vld [vmem:[%s24 + $0x34] sm:$0xf]
      %v9461 = vld [vmem:[%s24 + $0x38] sm:$0xf]
      %v9462 = vld [vmem:[%s24 + $0x3c] sm:$0xf]
      %v9463 = vld [vmem:[%s24 + $0x40] sm:$0xf]
      %v9464 = vld [vmem:[%s24 + $0x44] sm:$0xf]
      %v9465 = vld [vmem:[%s24 + $0x48] sm:$0xf]
      %v9466 = vld [vmem:[%s24 + $0x4c] sm:$0xf]
      %v9467 = vld [vmem:[%s24 + $0x50] sm:$0xf]
      %v9468 = vld [vmem:[%s24 + $0x54] sm:$0xf]
      %v9469 = vld [vmem:[%s24 + $0x58] sm:$0xf]
      %v9470 = vld [vmem:[%s24 + $0x5c] sm:$0xf]
      %v9471 = vld [vmem:[%s24 + $0x60] sm:$0xf]
      %v9472 = vld [vmem:[%s24 + $0x64] sm:$0xf]
      %v9473 = vld [vmem:[%s24 + $0x68] sm:$0xf]
      %v9474 = vld [vmem:[%s24 + $0x6c] sm:$0xf]
      %v9475 = vld [vmem:[%s24 + $0x70] sm:$0xf]
      %v9476 = vld [vmem:[%s24 + $0x74] sm:$0xf]
      %v9477 = vld [vmem:[%s24 + $0x78] sm:$0xf]
      %v9478 = vld [vmem:[%s24 + $0x7c] sm:$0xf]
      %v9479 = vpack.c.bf16 %v9445, %v9445
      %v9480 = vpack.c.bf16 %v9446, %v9446
      %v9481 = vld [vmem:[%s25] sm:$0x1]
      %v9483 = vlaneseq
      %v9484 = vshrl.u32 %v9483, 7
      %v9485 = vsub.s32 0, %v9484
      %v9486 = vrot.slane %v9481, %v9485
      %v9520 = vunpack.c.l.b16 %v9447
      %v9521 = vunpack.c.l.b16 %v9448
      %v9522 = vunpack.c.l.b16 %v9449
      %v9523 = vunpack.c.l.b16 %v9450
      %v9524 = vunpack.c.l.b16 %v9451
      %v9525 = vunpack.c.l.b16 %v9452
      %v9526 = vunpack.c.l.b16 %v9453
      %v9527 = vunpack.c.l.b16 %v9454
      %v9528 = vunpack.c.l.b16 %v9455
      %v9529 = vunpack.c.l.b16 %v9456
      %v9530 = vunpack.c.l.b16 %v9457
      %v9531 = vunpack.c.l.b16 %v9458
      %v9532 = vunpack.c.l.b16 %v9459
      %v9533 = vunpack.c.l.b16 %v9460
      %v9534 = vunpack.c.l.b16 %v9461
      %v9535 = vunpack.c.l.b16 %v9462
      %v9536 = vunpack.c.l.b16 %v9463
      %v9537 = vunpack.c.l.b16 %v9464
      %v9538 = vunpack.c.l.b16 %v9465
      %v9539 = vunpack.c.l.b16 %v9466
      %v9540 = vunpack.c.l.b16 %v9467
      %v9541 = vunpack.c.l.b16 %v9468
      %v9542 = vunpack.c.l.b16 %v9469
      %v9543 = vunpack.c.l.b16 %v9470
      %v9544 = vunpack.c.l.b16 %v9471
      %v9545 = vunpack.c.l.b16 %v9472
      %v9546 = vunpack.c.l.b16 %v9473
      %v9547 = vunpack.c.l.b16 %v9474
      %v9548 = vunpack.c.l.b16 %v9475
      %v9549 = vunpack.c.l.b16 %v9476
      %v9550 = vunpack.c.l.b16 %v9477
      %v9551 = vunpack.c.l.b16 %v9478
      %v9552 = vpack.c.b16 %v9521, %v9520
      %v9553 = vpack.c.b16 %v9523, %v9522
      %v9554 = vpack.c.b16 %v9525, %v9524
      %v9555 = vpack.c.b16 %v9527, %v9526
      %v9556 = vpack.c.b16 %v9529, %v9528
      %v9557 = vpack.c.b16 %v9531, %v9530
      %v9558 = vpack.c.b16 %v9533, %v9532
      %v9559 = vpack.c.b16 %v9535, %v9534
      %v9560 = vpack.c.b16 %v9537, %v9536
      %v9561 = vpack.c.b16 %v9539, %v9538
      %v9562 = vpack.c.b16 %v9541, %v9540
      %v9563 = vpack.c.b16 %v9543, %v9542
      %v9564 = vpack.c.b16 %v9545, %v9544
      %v9565 = vpack.c.b16 %v9547, %v9546
      %v9566 = vpack.c.b16 %v9549, %v9548
      %v9567 = vpack.c.b16 %v9551, %v9550
      %9584 = vmatprep.subr.bf16.mxu0 0
      %9585 = vmatpush1.bf16.msra.mxu0 %v9552
      %9586 = vmatprep.subr.bf16.mxu0 0
      %9587 = vmatpush1.bf16.msra.mxu0 %v9553
      %9588 = vmatprep.subr.bf16.mxu0 0
      %9589 = vmatpush1.bf16.msra.mxu0 %v9554
      %9590 = vmatprep.subr.bf16.mxu0 0
      %9591 = vmatpush1.bf16.msra.mxu0 %v9555
      %9592 = vmatprep.subr.bf16.mxu0 0
      %9593 = vmatpush1.bf16.msra.mxu0 %v9556
      %9594 = vmatprep.subr.bf16.mxu0 0
      %9595 = vmatpush1.bf16.msra.mxu0 %v9557
      %9596 = vmatprep.subr.bf16.mxu0 0
      %9597 = vmatpush1.bf16.msra.mxu0 %v9558
      %9598 = vmatprep.subr.bf16.mxu0 0
      %9599 = vmatpush1.bf16.msra.mxu0 %v9559
      %9600 = vmatprep.subr.bf16.mxu0 0
      %9601 = vmatpush1.bf16.msra.mxu0 %v9560
      %9602 = vmatprep.subr.bf16.mxu0 0
      %9603 = vmatpush1.bf16.msra.mxu0 %v9561
      %9604 = vmatprep.subr.bf16.mxu0 0
      %9605 = vmatpush1.bf16.msra.mxu0 %v9562
      %9606 = vmatprep.subr.bf16.mxu0 0
      %9607 = vmatpush1.bf16.msra.mxu0 %v9563
      %9608 = vmatprep.subr.bf16.mxu0 0
      %9609 = vmatpush1.bf16.msra.mxu0 %v9564
      %9610 = vmatprep.subr.bf16.mxu0 0
      %9611 = vmatpush1.bf16.msra.mxu0 %v9565
      %9612 = vmatprep.subr.bf16.mxu0 0
      %9613 = vmatpush1.bf16.msra.mxu0 %v9566
      %9614 = vmatprep.subr.bf16.mxu0 0
      %9615 = vmatpush1.bf16.msra.mxu0 %v9567
      %9616 = vmatprep.mubr.bf16.mxu0 %v9480
      %9617 = vmatmul.mubr.bf16.gmra.mrb[0].mxu0 %v9479
      %v9618 = vpop.f32.mrb[0].mxu0
      %v9619 = vadd.f32 %v9486, %v9618
      %v9620 = vpop.f32.mrb[0].mxu0
      %v9621 = vpop.f32.mrb[0].mxu0
      %v9622 = vpop.f32.mrb[0].mxu0
      %9623 = vdwg.mxu0
      %9624 = vst.msk [vmem:[%s831] sm:$0xff] %vm846, %v9619
      %p9625 = scmp.lt.s32.totalorder %s37, 1
      %s9626 = scalar_select %p9625, %s37, 1
      %s9627 = smul.addr %s9626, 8
      %s9628 = scalar_lea.vmem %s26, %s9627
      // Predicated region
      $region125: #{model_part_forward.1} parent=123 // pred_check
        %p9629 = pneg %p621
      $region126: #{model_part_forward.1} parent=123 // pred_check_branch
        %9631 = sbr.rel (%p9629) target = $region128
      $region127: #{model_part_forward.1} parent=123 // pred_region
        _
      $region128: #{model_part_forward.1} parent=123 // pred_fallthru
        _
    $region124: #{model_part_forward.1} parent=5 // pred_fallthru
      _
    %p9632 = scmp.le.s32.totalorder 2, %s32
    // Predicated region
    $region129: #{model_part_forward.1} parent=5 // pred_check
      %p9633 = pneg %p9632
    $region130: #{model_part_forward.1} parent=5 // pred_check_branch
      %9635 = sbr.rel (%p9633) target = $region132
    $region131: #{model_part_forward.1} parent=5 // pred_region
      %s9636 = ssub.s32 %s32, 2
      // Predicated region
      $region133: #{model_part_forward.1} parent=131 // pred_check
        %p9637 = pneg %p627
      $region134: #{model_part_forward.1} parent=131 // pred_check_branch
        %9639 = sbr.rel (%p9637) target = $region136
      $region135: #{model_part_forward.1} parent=131 // pred_region
        %p9640 = scmp.lt.s32.totalorder %s38, 1
        %s9641 = scalar_select %p9640, %s38, 1
        %s9642 = smul.addr %s9641, 8
        %s9643 = scalar_lea.vmem %s26, %s9642
      $region136: #{model_part_forward.1} parent=131 // pred_fallthru
        _
    $region132: #{model_part_forward.1} parent=5 // pred_fallthru
      _
  $region6: #{model_part_forward.1} parent=0 // loop_footer
    %s36 = sadd.s32 1, %s32
  $region7: #{model_part_forward.1} parent=0 // loop_footer_branch
    %31 = sbr.rel target = $region3
  $region8: #{model_part_forward.1} parent=0 // loop_exit
    _

</llo_original>
